<compile_context>
chip_gen: v7x
topology: tpu7x:2x2x1
jax: 0.10.0
libtpu: 0.0.40
codegen_flags: <defaults>
</compile_context>

<pallas_src>
import functools
import math

import jax
import jax.numpy as jnp
from jax.experimental import pallas as pl
from jax.experimental.pallas import tpu as pltpu


def _round_up(x, m):
    return (x + m - 1) // m * m


def _tiles(M, tm):
    TM = min(tm, _round_up(M, 8))
    Mp = _round_up(M, TM)
    return TM, Mp


# ----------------------------------------------------------------------------
# Pallas kernels
# ----------------------------------------------------------------------------
def _dense_kernel(x_ref, w_ref, b_ref, o_ref):
    """o = x @ w + b  (x fp32 cast to bf16 for the MXU, w is bf16, fp32 acc)."""
    y = jnp.dot(x_ref[...].astype(jnp.bfloat16), w_ref[...],
                preferred_element_type=jnp.float32)
    o_ref[...] = y + b_ref[...]


def _proj_res_ln_kernel(x_ref, w_ref, b_ref, r_ref, g_ref, bb_ref, o_ref, *, eps):
    """o = LayerNorm(res + (x @ w + b))  -- out_proj + residual + LN1 fused."""
    y = jnp.dot(x_ref[...].astype(jnp.bfloat16), w_ref[...],
                preferred_element_type=jnp.float32) + b_ref[...]
    z = r_ref[...] + y
    mu = jnp.mean(z, axis=-1, keepdims=True)
    var = jnp.mean((z - mu) ** 2, axis=-1, keepdims=True)
    o_ref[...] = (z - mu) * jax.lax.rsqrt(var + eps) * g_ref[...] + bb_ref[...]


def _ffn_res_ln_kernel(x_ref, w1_ref, b1_ref, w2_ref, b2_ref, g_ref, bb_ref,
                       o_ref, *, eps):
    """o = LayerNorm(x + lin2(gelu(lin1(x))))  -- whole FFN block fused."""
    x = x_ref[...]
    h = jnp.dot(x.astype(jnp.bfloat16), w1_ref[...],
                preferred_element_type=jnp.float32) + b1_ref[...]
    # exact (erf) GELU, matching torch F.gelu default; kept in fp32 (v5e EUP).
    h = 0.5 * h * (1.0 + jax.lax.erf(h * (1.0 / math.sqrt(2.0))))
    y = jnp.dot(h.astype(jnp.bfloat16), w2_ref[...],
                preferred_element_type=jnp.float32) + b2_ref[...]
    z = x + y
    mu = jnp.mean(z, axis=-1, keepdims=True)
    var = jnp.mean((z - mu) ** 2, axis=-1, keepdims=True)
    o_ref[...] = (z - mu) * jax.lax.rsqrt(var + eps) * g_ref[...] + bb_ref[...]


def _attn_kernel(q_ref, k_ref, v_ref, m_ref, o_ref, *, scale):
    """All heads of one batch element; additive (H,T,T) ALiBi mask."""
    q = q_ref[0].astype(jnp.bfloat16)            # (H, T, dh)
    k = k_ref[0].astype(jnp.bfloat16)
    v = v_ref[0].astype(jnp.bfloat16)
    s = jnp.einsum("hqd,hkd->hqk", q, k,
                   preferred_element_type=jnp.float32) * scale + m_ref[...]
    s = s - jnp.max(s, axis=-1, keepdims=True)
    p = jnp.exp(s)                               # fp32 softmax (v5e-safe)
    p = p * pl.reciprocal(jnp.sum(p, axis=-1, keepdims=True), approx=True)
    o_ref[0] = jnp.einsum("hqk,hkd->hqd", p.astype(jnp.bfloat16), v,
                          preferred_element_type=jnp.float32)


def _conv_kernel(x_ref, w_ref, b_ref, s_ref, t_ref, o_ref, *, taps, act):
    """K-tap stride-1 conv on an already-padded (1, T_out+taps-1, Cin) tile.

    out[t] = sum_k x[t+k] @ w[k]; epilogue: +bias, LeakyReLU, BN affine."""
    t_out = o_ref.shape[1]
    c_out = o_ref.shape[2]
    x = x_ref[0].astype(jnp.bfloat16)            # (T_pad, Cin)
    acc = jnp.zeros((t_out, c_out), jnp.float32)
    for k in range(taps):                        # statically unrolled
        acc = acc + jnp.dot(x[k:k + t_out, :], w_ref[k],
                            preferred_element_type=jnp.float32)
    y = acc + b_ref[...]
    if act == "leaky":
        y = jnp.where(y >= 0.0, y, 0.2 * y)
    y = y * s_ref[...] + t_ref[...]              # folded BatchNorm (after act)
    o_ref[0] = y


def _vq_kernel(x_ref, c_ref, xd_ref, loss_ref, perp_ref, cnt_ref, sq_ref,
               *, m_actual, tm):
    """QuantizeEMAReset inference path, tiled over M with VMEM accumulators."""
    i = pl.program_id(0)
    nsteps = pl.num_programs(0)

    @pl.when(i == 0)
    def _():
        cnt_ref[...] = jnp.zeros_like(cnt_ref)
        sq_ref[...] = jnp.zeros_like(sq_ref)

    x = x_ref[...]                               # (TM, D) fp32 (keeps argmin stable)
    c = c_ref[...]                               # (K, D)  fp32
    n_code = c.shape[0]
    d = x.shape[-1]
    x2 = jnp.sum(x * x, axis=-1, keepdims=True)
    c2 = jnp.sum(c * c, axis=-1, keepdims=True).T
    dist = x2 - 2.0 * jnp.dot(x, c.T, preferred_element_type=jnp.float32) + c2
    dmin = jnp.min(dist, axis=-1, keepdims=True)
    col = jax.lax.broadcasted_iota(jnp.int32, dist.shape, 1)
    idx = jnp.min(jnp.where(dist == dmin, col, n_code), axis=-1, keepdims=True)
    row = jax.lax.broadcasted_iota(jnp.int32, dist.shape, 0) + i * tm
    valid = row < m_actual                       # mask padded rows
    onehot = jnp.where((col == idx) & valid, 1.0, 0.0).astype(jnp.float32)
    xd = jnp.dot(onehot, c, preferred_element_type=jnp.float32)
    xd_ref[...] = xd                             # straight-through forward value

    cnt_ref[...] += jnp.sum(onehot, axis=0, keepdims=True)
    sq_ref[...] += jnp.sum((x - xd) ** 2)        # padded rows contribute 0

    @pl.when(i == nsteps - 1)
    def _():
        loss_ref[...] = sq_ref[...] / (m_actual * d)
        counts = cnt_ref[...]
        prob = counts / jnp.sum(counts)
        perp_ref[...] = jnp.reshape(
            jnp.exp(-jnp.sum(prob * jnp.log(prob + 1e-7))), (1, 1))


# ----------------------------------------------------------------------------
# Pallas wrappers
# ----------------------------------------------------------------------------
_PAR = pltpu.CompilerParams(dimension_semantics=("parallel",))


def dense(x, w, b, *, tm=512):
    """x:(M,K) fp32 @ w:(K,N) bf16 + b:(N,) fp32 -> (M,N) fp32, tiled over M."""
    M, K = x.shape
    N = w.shape[1]
    TM, Mp = _tiles(M, tm)
    xp = jnp.pad(x, ((0, Mp - M), (0, 0))) if Mp != M else x
    out = pl.pallas_call(
        _dense_kernel,
        out_shape=jax.ShapeDtypeStruct((Mp, N), jnp.float32),
        grid=(Mp // TM,),
        in_specs=[
            pl.BlockSpec((TM, K), lambda i: (i, 0)),
            pl.BlockSpec((K, N), lambda i: (0, 0)),
            pl.BlockSpec((1, N), lambda i: (0, 0)),
        ],
        out_specs=pl.BlockSpec((TM, N), lambda i: (i, 0)),
        compiler_params=_PAR,
    )(xp, w, b.reshape(1, N))
    return out[:M] if Mp != M else out


def proj_res_ln(x, w, b, res, g, beta, *, eps=1e-5, tm=512):
    """LayerNorm(res + x @ w + b), tiled over M."""
    M, K = x.shape
    N = w.shape[1]
    TM, Mp = _tiles(M, tm)
    pad = Mp - M
    xp = jnp.pad(x, ((0, pad), (0, 0))) if pad else x
    rp = jnp.pad(res, ((0, pad), (0, 0))) if pad else res
    out = pl.pallas_call(
        functools.partial(_proj_res_ln_kernel, eps=eps),
        out_shape=jax.ShapeDtypeStruct((Mp, N), jnp.float32),
        grid=(Mp // TM,),
        in_specs=[
            pl.BlockSpec((TM, K), lambda i: (i, 0)),
            pl.BlockSpec((K, N), lambda i: (0, 0)),
            pl.BlockSpec((1, N), lambda i: (0, 0)),
            pl.BlockSpec((TM, N), lambda i: (i, 0)),
            pl.BlockSpec((1, N), lambda i: (0, 0)),
            pl.BlockSpec((1, N), lambda i: (0, 0)),
        ],
        out_specs=pl.BlockSpec((TM, N), lambda i: (i, 0)),
        compiler_params=_PAR,
    )(xp, w, b.reshape(1, N), rp, g.reshape(1, N), beta.reshape(1, N))
    return out[:M] if pad else out


def ffn_res_ln(x, w1, b1, w2, b2, g, beta, *, eps=1e-5, tm=512):
    """LayerNorm(x + lin2(gelu(lin1(x)))), tiled over M."""
    M, E = x.shape
    F = w1.shape[1]
    TM, Mp = _tiles(M, tm)
    pad = Mp - M
    xp = jnp.pad(x, ((0, pad), (0, 0))) if pad else x
    out = pl.pallas_call(
        functools.partial(_ffn_res_ln_kernel, eps=eps),
        out_shape=jax.ShapeDtypeStruct((Mp, E), jnp.float32),
        grid=(Mp // TM,),
        in_specs=[
            pl.BlockSpec((TM, E), lambda i: (i, 0)),
            pl.BlockSpec((E, F), lambda i: (0, 0)),
            pl.BlockSpec((1, F), lambda i: (0, 0)),
            pl.BlockSpec((F, E), lambda i: (0, 0)),
            pl.BlockSpec((1, E), lambda i: (0, 0)),
            pl.BlockSpec((1, E), lambda i: (0, 0)),
            pl.BlockSpec((1, E), lambda i: (0, 0)),
        ],
        out_specs=pl.BlockSpec((TM, E), lambda i: (i, 0)),
        compiler_params=_PAR,
    )(xp, w1, b1.reshape(1, F), w2, b2.reshape(1, E),
      g.reshape(1, E), beta.reshape(1, E))
    return out[:M] if pad else out


def attention(q, k, v, mask, *, scale):
    """q,k,v: (B, H, T, dh) fp32; mask: (H, T, T) additive fp32 (resident)."""
    B, H, T, dh = q.shape
    kern = functools.partial(_attn_kernel, scale=scale)
    return pl.pallas_call(
        kern,
        out_shape=jax.ShapeDtypeStruct((B, H, T, dh), jnp.float32),
        grid=(B,),
        in_specs=[
            pl.BlockSpec((1, H, T, dh), lambda b: (b, 0, 0, 0)),
            pl.BlockSpec((1, H, T, dh), lambda b: (b, 0, 0, 0)),
            pl.BlockSpec((1, H, T, dh), lambda b: (b, 0, 0, 0)),
            pl.BlockSpec((H, T, T), lambda b: (0, 0, 0)),
        ],
        out_specs=pl.BlockSpec((1, H, T, dh), lambda b: (b, 0, 0, 0)),
        compiler_params=_PAR,
    )(q, k, v, mask)


def conv_taps(x_pad, w_taps, b, s, t, *, act):
    """Generic K-tap stride-1 conv on a pre-padded (B, T_out+taps-1, Cin) input."""
    B, Tp, Cin = x_pad.shape
    taps, _, Cout = w_taps.shape
    T_out = Tp - taps + 1
    kern = functools.partial(_conv_kernel, taps=taps, act=act)
    return pl.pallas_call(
        kern,
        out_shape=jax.ShapeDtypeStruct((B, T_out, Cout), jnp.float32),
        grid=(B,),
        in_specs=[
            pl.BlockSpec((1, Tp, Cin), lambda i: (i, 0, 0)),
            pl.BlockSpec((taps, Cin, Cout), lambda i: (0, 0, 0)),
            pl.BlockSpec((1, Cout), lambda i: (0, 0)),
            pl.BlockSpec((1, Cout), lambda i: (0, 0)),
            pl.BlockSpec((1, Cout), lambda i: (0, 0)),
        ],
        out_specs=pl.BlockSpec((1, T_out, Cout), lambda i: (i, 0, 0)),
        compiler_params=_PAR,
    )(x_pad, w_taps, b.reshape(1, Cout), s.reshape(1, Cout), t.reshape(1, Cout))


def vq_ema_reset(x, codebook, *, tm=512):
    M, D = x.shape
    K = codebook.shape[0]
    TM, Mp = _tiles(M, tm)
    pad = Mp - M
    xp = jnp.pad(x, ((0, pad), (0, 0))) if pad else x
    kern = functools.partial(_vq_kernel, m_actual=M, tm=TM)
    xd, loss, perp = pl.pallas_call(
        kern,
        out_shape=(
            jax.ShapeDtypeStruct((Mp, D), jnp.float32),
            jax.ShapeDtypeStruct((1, 1), jnp.float32),
            jax.ShapeDtypeStruct((1, 1), jnp.float32),
        ),
        grid=(Mp // TM,),
        in_specs=[
            pl.BlockSpec((TM, D), lambda i: (i, 0)),
            pl.BlockSpec((K, D), lambda i: (0, 0)),
        ],
        out_specs=(
            pl.BlockSpec((TM, D), lambda i: (i, 0)),
            pl.BlockSpec((1, 1), lambda i: (0, 0)),
            pl.BlockSpec((1, 1), lambda i: (0, 0)),
        ),
        scratch_shapes=[pltpu.VMEM((1, K), jnp.float32),
                        pltpu.VMEM((1, 1), jnp.float32)],
        compiler_params=pltpu.CompilerParams(
            dimension_semantics=("arbitrary",)),   # cross-tile reduction
    )(xp, codebook.astype(jnp.float32))
    xd = xd[:M] if pad else xd
    return xd, loss[0, 0], perp[0, 0]


# ----------------------------------------------------------------------------
# Conv wrappers (padding / stride handling is cheap JAX glue; matmuls in-kernel)
# ----------------------------------------------------------------------------
def conv1d_stride1(x, p, *, act="leaky", pad_mode="replicate"):
    mode = "edge" if pad_mode == "replicate" else "constant"
    x_pad = jnp.pad(x, ((0, 0), (2, 2), (0, 0)), mode=mode)
    return conv_taps(x_pad, p["w"], p["b"], p["s"], p["t"], act=act)


def conv1d_stride2(x, p):
    """Stride-2 K=5 conv, phase-decomposed into an equivalent 3-tap stride-1
    conv on channel-concatenated even/odd phases of the replicate-padded input."""
    x_pad = jnp.pad(x, ((0, 0), (2, 2), (0, 0)), mode="edge")
    x_cat = jnp.concatenate([x_pad[:, 0::2, :], x_pad[:, 1::2, :]], axis=-1)
    return conv_taps(x_cat, p["w"], p["b"], p["s"], p["t"], act="leaky")


def conv_transpose1d_s2(x, p):
    """ConvTranspose1d(K=5, stride=2, padding=2, output_padding=1) as a 5-tap
    stride-1 conv on the zero-upsampled, zero-padded input (flipped weights)."""
    B, T, Cin = x.shape
    L = 2 * T + 4                                 # T_out + taps - 1
    x_up = jnp.zeros((B, L, Cin), x.dtype).at[:, 2:2 + 2 * T - 1:2, :].set(x)
    return conv_taps(x_up, p["w"], p["b"], p["s"], p["t"], act="leaky")


# ----------------------------------------------------------------------------
# Transformer encoder layer (post-norm, batch_first, gelu, eval mode)
# ----------------------------------------------------------------------------
def transformer_layers(x, layers, mask, num_heads):
    B, T, E = x.shape
    H = num_heads
    dh = E // H
    scale = 1.0 / math.sqrt(dh)
    h = x.reshape(B * T, E)
    for p in layers:
        qkv = dense(h, p["w_qkv"], p["b_qkv"])                 # (B*T, 3E)
        q, k, v = jnp.split(qkv, 3, axis=-1)

        def heads(a):
            return a.reshape(B, T, H, dh).transpose(0, 2, 1, 3)

        o = attention(heads(q), heads(k), heads(v), mask, scale=scale)
        o = o.transpose(0, 2, 1, 3).reshape(B * T, E)
        # out_proj + residual + LayerNorm1 fused
        h = proj_res_ln(o, p["w_out"], p["b_out"], h, p["ln1_g"], p["ln1_b"])
        # lin1 + GELU + lin2 + residual + LayerNorm2 fused
        h = ffn_res_ln(h, p["w_ff1"], p["b_ff1"], p["w_ff2"], p["b_ff2"],
                       p["ln2_g"], p["ln2_b"])
    return h.reshape(B, T, E)


# ----------------------------------------------------------------------------
# ALiBi "future" bias mask
# ----------------------------------------------------------------------------
def _get_slopes(n):
    def p2(n):
        start = 2 ** (-2 ** -(math.log2(n) - 3))
        return [start * (start ** i) for i in range(n)]
    if math.log2(n).is_integer():
        return p2(n)
    closest = 2 ** math.floor(math.log2(n))
    return p2(closest) + _get_slopes(2 * closest)[0::2][: n - closest]


def alibi_future_mask(num_heads, max_len):
    slopes = jnp.asarray(_get_slopes(num_heads), jnp.float32)
    pos = jnp.arange(max_len)
    dist = jnp.abs(pos[:, None] - pos[None, :]).astype(jnp.float32)
    return -slopes[:, None, None] * dist[None]          # (H, L, L)


# ----------------------------------------------------------------------------
# Full TVQVAE forward
# ----------------------------------------------------------------------------
def tvqvae_forward(params, x, cfg):
    B, T, _ = x.shape
    H = cfg["heads"]
    E = cfg["hidden"]

    # ----- Encoder (TransformerEncoder.squasher, channels-last) -----
    h = x.astype(jnp.float32)
    h = conv1d_stride2(h, params["enc_convs"][0])              # T -> T/2
    for p in params["enc_convs"][1:]:
        h = conv1d_stride1(h, p, act="leaky", pad_mode="replicate")
        Bc, Tc, Cc = h.shape
        h = h.reshape(Bc, Tc // 2, 2, Cc).max(axis=2)          # MaxPool1d(2)

    Bq, Tq, _ = h.shape
    # LinearEmbedding: Linear * sqrt(d_model)  (scale folded into the weights)
    h = dense(h.reshape(Bq * Tq, E), params["enc_emb_w"],
              params["enc_emb_b"]).reshape(Bq, Tq, E)

    mask_e = params["alibi"][:, :Tq, :Tq]                      # (H, Tq, Tq)
    h = transformer_layers(h, params["enc_tr"], mask_e, H)

    # ----- pre_quant + quantizer (QuantizeEMAReset, eval path) -----
    z = dense(h.reshape(Bq * Tq, E), params["pre_quant_w"],
              params["pre_quant_b"])                           # (B*Tq, embed)
    xd, commit_loss, perplexity = vq_ema_reset(z, params["codebook"])

    # ----- post_quant + Decoder -----
    h = dense(xd, params["post_quant_w"], params["post_quant_b"])
    h = h.reshape(Bq, Tq, E)

    h = conv_transpose1d_s2(h, params["dec_convt"])            # T/4 -> T/2
    for p in params["dec_convs"]:
        h = conv1d_stride1(h, p, act="leaky", pad_mode="replicate")
        h = jnp.repeat(h, 2, axis=1)                           # repeat_interleave(2, dim=1)

    Bd, Td, _ = h.shape
    h = dense(h.reshape(Bd * Td, E), params["dec_emb_w"],
              params["dec_emb_b"]).reshape(Bd, Td, E)
    mask_d = params["alibi"][:, :Td, :Td]
    h = transformer_layers(h, params["dec_tr"], mask_d, H)
    # post_transformer_linear is computed but unused in the torch forward -> skipped

    out = conv1d_stride1(h, params["cross"], act=None, pad_mode="zeros")
    return out, commit_loss, perplexity


# ----------------------------------------------------------------------------
# Deterministic parameter init (torch layouts generated, then prepared once:
# pre-transposed, BN folded, bf16-cast -- no per-call transposes inside jit)
# ----------------------------------------------------------------------------
def init_params(key, cfg):
    keys = iter(jax.random.split(key, 512))

    def nrm(shape, scale=0.05):
        return jax.random.normal(next(keys), shape, jnp.float32) * scale

    def bn_affine(C, eps=1e-5):
        g = 1.0 + nrm((C,), 0.1)
        b = nrm((C,), 0.01)
        m = nrm((C,), 0.01)
        v = 1.0 + jnp.abs(nrm((C,), 0.1))
        s = g / jnp.sqrt(v + eps)
        return s, b - m * s

    def conv_block(cin, cout, *, stride2=False, transpose=False, with_bn=True):
        if transpose:
            w_t = nrm((cin, cout, 5))                       # torch ConvTranspose1d layout
            w = jnp.transpose(w_t[:, :, ::-1], (2, 0, 1))   # (5, Cin, Cout), flipped
        else:
            w_t = nrm((cout, cin, 5))                       # torch Conv1d layout
            w = jnp.transpose(w_t, (2, 1, 0))               # (5, Cin, Cout)
            if stride2:                                     # phase decomposition
                w_even = w[0::2]                            # taps 0,2,4
                w_odd = jnp.concatenate(
                    [w[1::2], jnp.zeros((1, cin, cout), jnp.float32)], axis=0)
                w = jnp.concatenate([w_even, w_odd], axis=1)  # (3, 2*Cin, Cout)
        b = nrm((cout,), 0.01)
        if with_bn:
            s, t = bn_affine(cout)
        else:
            s, t = jnp.ones((cout,), jnp.float32), jnp.zeros((cout,), jnp.float32)
        return dict(w=w.astype(jnp.bfloat16), b=b, s=s, t=t)

    def tr_layer(E, F):
        in_proj_w = nrm((3 * E, E))
        out_proj_w = nrm((E, E))
        lin1_w = nrm((F, E))
        lin2_w = nrm((E, F))
        return dict(
            w_qkv=in_proj_w.T.astype(jnp.bfloat16), b_qkv=nrm((3 * E,), 0.01),
            w_out=out_proj_w.T.astype(jnp.bfloat16), b_out=nrm((E,), 0.01),
            w_ff1=lin1_w.T.astype(jnp.bfloat16), b_ff1=nrm((F,), 0.01),
            w_ff2=lin2_w.T.astype(jnp.bfloat16), b_ff2=nrm((E,), 0.01),
            ln1_g=1.0 + nrm((E,), 0.05), ln1_b=nrm((E,), 0.01),
            ln2_g=1.0 + nrm((E,), 0.05), ln2_b=nrm((E,), 0.01),
        )

    D_in, E, Demb = cfg["in_dim"], cfg["hidden"], cfg["embed"]
    F, QF, L = cfg["ffn"], cfg["quant_factor"], cfg["layers"]

    enc_convs = [conv_block(D_in, E, stride2=True)]
    enc_convs += [conv_block(E, E) for _ in range(1, QF)]
    dec_convt = conv_block(E, E, transpose=True)
    dec_convs = [conv_block(E, E) for _ in range(1, QF)]

    scale_e = math.sqrt(E)
    enc_emb_w, enc_emb_b = nrm((E, E)), nrm((E,), 0.01)
    dec_emb_w, dec_emb_b = nrm((E, E)), nrm((E,), 0.01)
    pre_quant_w, pre_quant_b = nrm((Demb, E)), nrm((Demb,), 0.01)
    post_quant_w, post_quant_b = nrm((E, Demb)), nrm((E,), 0.01)

    return dict(
        enc_convs=enc_convs,
        enc_emb_w=(enc_emb_w.T * scale_e).astype(jnp.bfloat16),
        enc_emb_b=enc_emb_b * scale_e,
        enc_tr=[tr_layer(E, F) for _ in range(L)],
        pre_quant_w=pre_quant_w.T.astype(jnp.bfloat16), pre_quant_b=pre_quant_b,
        codebook=nrm((cfg["n_embed"], Demb), 0.5),
        post_quant_w=post_quant_w.T.astype(jnp.bfloat16), post_quant_b=post_quant_b,
        dec_convt=dec_convt,
        dec_convs=dec_convs,
        dec_emb_w=dec_emb_w.T.astype(jnp.bfloat16), dec_emb_b=dec_emb_b,
        dec_tr=[tr_layer(E, F) for _ in range(L)],
        cross=conv_block(E, D_in, with_bn=False),
        alibi=alibi_future_mask(cfg["heads"], cfg["max_len"]),
    )


# ----------------------------------------------------------------------------
if __name__ == "__main__":
    cfg = dict(in_dim=12, hidden=32, embed=16, n_embed=32, ffn=64,
               heads=4, layers=1, max_len=64, quant_factor=2)
    key = jax.random.PRNGKey(0)
    pkey, xkey = jax.random.split(key)
    params = init_params(pkey, cfg)

    B, T = 2, 16
    x = jax.random.normal(xkey, (B, T, cfg["in_dim"]), jnp.float32)

    fwd = jax.jit(functools.partial(tvqvae_forward, cfg=cfg))
    out, loss, perp = fwd(params, x)
    jax.block_until_ready((out, loss, perp))

    assert out.shape == (B, T, cfg["in_dim"]), out.shape
    assert loss.shape == () and perp.shape == ()
    assert bool(jnp.all(jnp.isfinite(out)))
    assert bool(jnp.isfinite(loss)) and bool(jnp.isfinite(perp))
    print("KERNEL_OK")
</pallas_src>

<mosaic_0001>
module attributes {stable_mosaic.version = 11 : i64} {
  func.func @_dense_kernel(%arg0: i32, %arg1: memref<8x32xf32, #tpu.memory_space<vmem>>, %arg2: memref<32x96xbf16, #tpu.memory_space<vmem>>, %arg3: memref<1x96xf32, #tpu.memory_space<vmem>>, %arg4: memref<8x96xf32, #tpu.memory_space<vmem>>) attributes {dimension_semantics = [#tpu.dimension_semantics<parallel>], iteration_bounds = array<i64: 1>, scalar_prefetch = 0 : i64, scratch_operands = 0 : i64, tpu.core_type = #tpu.core_type<tc>, window_params = [{transform_indices = @transform_0, window_bounds = array<i64: 8, 32>}, {pipeline_mode = #tpu.pipeline_mode<synchronous>, transform_indices = @transform_1, window_bounds = array<i64: 32, 96>}, {pipeline_mode = #tpu.pipeline_mode<synchronous>, transform_indices = @transform_2, window_bounds = array<i64: 1, 96>}, {transform_indices = @transform_3, window_bounds = array<i64: 8, 96>}]} {
    %c0 = arith.constant 0 : index
    %c0_0 = arith.constant 0 : index
    %0 = vector.load %arg1[%c0, %c0_0] : memref<8x32xf32, #tpu.memory_space<vmem>>, vector<8x32xf32>
    %1 = arith.truncf %0 : vector<8x32xf32> to vector<8x32xbf16>
    %c0_1 = arith.constant 0 : index
    %c0_2 = arith.constant 0 : index
    %2 = vector.load %arg2[%c0_1, %c0_2] : memref<32x96xbf16, #tpu.memory_space<vmem>>, vector<32x96xbf16>
    %cst = arith.constant dense<0.000000e+00> : vector<8x96xf32>
    %3 = tpu.matmul %1, %2, %cst {dimension_numbers = #tpu.dot_dimension_numbers<[1], [0], [0], [1], [0, 0, 1, 1], [], []>} : vector<8x32xbf16>, vector<32x96xbf16>, vector<8x96xf32> -> vector<8x96xf32>
    %c0_3 = arith.constant 0 : index
    %c0_4 = arith.constant 0 : index
    %4 = vector.load %arg3[%c0_3, %c0_4] : memref<1x96xf32, #tpu.memory_space<vmem>>, vector<1x96xf32>
    %5 = vector.broadcast %4 : vector<1x96xf32> to vector<8x96xf32>
    %6 = arith.addf %3, %5 : vector<8x96xf32>
    %c0_5 = arith.constant 0 : index
    %c0_6 = arith.constant 0 : index
    %7 = vector.load %arg4[%c0_5, %c0_6] : memref<8x96xf32, #tpu.memory_space<vmem>>, vector<8x96xf32>
    tpu.vector_store %arg4[%c0_5, %c0_6], %6 {strides = array<i32>} : memref<8x96xf32, #tpu.memory_space<vmem>>, vector<8x96xf32>,
    return
  }
  func.func @transform_0(%arg0: i32) -> (i32, i32) {
    %c0_i32 = arith.constant 0 : i32
    %c0_i32_0 = arith.constant 0 : i32
    return %arg0, %c0_i32 : i32, i32
  }
  func.func @transform_1(%arg0: i32) -> (i32, i32) {
    %c0_i32 = arith.constant 0 : i32
    %c0_i32_0 = arith.constant 0 : i32
    %c0_i32_1 = arith.constant 0 : i32
    return %c0_i32, %c0_i32_0 : i32, i32
  }
  func.func @transform_2(%arg0: i32) -> (i32, i32) {
    %c0_i32 = arith.constant 0 : i32
    %c0_i32_0 = arith.constant 0 : i32
    %c0_i32_1 = arith.constant 0 : i32
    return %c0_i32, %c0_i32_0 : i32, i32
  }
  func.func @transform_3(%arg0: i32) -> (i32, i32) {
    %c0_i32 = arith.constant 0 : i32
    %c0_i32_0 = arith.constant 0 : i32
    return %arg0, %c0_i32 : i32, i32
  }
}

module attributes {stable_mosaic.version = 11 : i64} {
  func.func @_conv_kernel(%arg0: i32, %arg1: memref<1x10x24xf32, #tpu.memory_space<vmem>>, %arg2: memref<3x24x32xbf16, #tpu.memory_space<vmem>>, %arg3: memref<1x32xf32, #tpu.memory_space<vmem>>, %arg4: memref<1x32xf32, #tpu.memory_space<vmem>>, %arg5: memref<1x32xf32, #tpu.memory_space<vmem>>, %arg6: memref<1x8x32xf32, #tpu.memory_space<vmem>>) attributes {dimension_semantics = [#tpu.dimension_semantics<parallel>], iteration_bounds = array<i64: 2>, scalar_prefetch = 0 : i64, scratch_operands = 0 : i64, tpu.core_type = #tpu.core_type<tc>, window_params = [{transform_indices = @transform_0, window_bounds = array<i64: 1, 10, 24>}, {pipeline_mode = #tpu.pipeline_mode<synchronous>, transform_indices = @transform_1, window_bounds = array<i64: 3, 24, 32>}, {pipeline_mode = #tpu.pipeline_mode<synchronous>, transform_indices = @transform_2, window_bounds = array<i64: 1, 32>}, {pipeline_mode = #tpu.pipeline_mode<synchronous>, transform_indices = @transform_3, window_bounds = array<i64: 1, 32>}, {pipeline_mode = #tpu.pipeline_mode<synchronous>, transform_indices = @transform_4, window_bounds = array<i64: 1, 32>}, {transform_indices = @transform_5, window_bounds = array<i64: 1, 8, 32>}]} {
    %c0 = arith.constant 0 : index
    %c0_0 = arith.constant 0 : index
    %c0_1 = arith.constant 0 : index
    %0 = vector.load %arg1[%c0, %c0_0, %c0_1] : memref<1x10x24xf32, #tpu.memory_space<vmem>>, vector<1x10x24xf32>
    %1 = vector.shape_cast %0 : vector<1x10x24xf32> to vector<10x24xf32>
    %2 = arith.truncf %1 : vector<10x24xf32> to vector<10x24xbf16>
    %cst = arith.constant 0.000000e+00 : f32
    %3 = vector.broadcast %cst : f32 to vector<8x32xf32>
    %4 = vector.extract_strided_slice %2 {offsets = [0, 0], sizes = [8, 24], strides = [1, 1]} : vector<10x24xbf16> to vector<8x24xbf16>
    %c0_2 = arith.constant 0 : index
    %c0_3 = arith.constant 0 : index
    %c0_4 = arith.constant 0 : index
    %5 = vector.load %arg2[%c0_2, %c0_3, %c0_4] : memref<3x24x32xbf16, #tpu.memory_space<vmem>>, vector<1x24x32xbf16>
    %6 = vector.shape_cast %5 : vector<1x24x32xbf16> to vector<24x32xbf16>
    %cst_5 = arith.constant dense<0.000000e+00> : vector<8x32xf32>
    %7 = tpu.matmul %4, %6, %cst_5 {dimension_numbers = #tpu.dot_dimension_numbers<[1], [0], [0], [1], [0, 0, 1, 1], [], []>} : vector<8x24xbf16>, vector<24x32xbf16>, vector<8x32xf32> -> vector<8x32xf32>
    %8 = arith.addf %3, %7 : vector<8x32xf32>
    %9 = vector.extract_strided_slice %2 {offsets = [1, 0], sizes = [8, 24], strides = [1, 1]} : vector<10x24xbf16> to vector<8x24xbf16>
    %c1 = arith.constant 1 : index
    %c0_6 = arith.constant 0 : index
    %c0_7 = arith.constant 0 : index
    %10 = vector.load %arg2[%c1, %c0_6, %c0_7] : memref<3x24x32xbf16, #tpu.memory_space<vmem>>, vector<1x24x32xbf16>
    %11 = vector.shape_cast %10 : vector<1x24x32xbf16> to vector<24x32xbf16>
    %cst_8 = arith.constant dense<0.000000e+00> : vector<8x32xf32>
    %12 = tpu.matmul %9, %11, %cst_8 {dimension_numbers = #tpu.dot_dimension_numbers<[1], [0], [0], [1], [0, 0, 1, 1], [], []>} : vector<8x24xbf16>, vector<24x32xbf16>, vector<8x32xf32> -> vector<8x32xf32>
    %13 = arith.addf %8, %12 : vector<8x32xf32>
    %14 = vector.extract_strided_slice %2 {offsets = [2, 0], sizes = [8, 24], strides = [1, 1]} : vector<10x24xbf16> to vector<8x24xbf16>
    %c2 = arith.constant 2 : index
    %c0_9 = arith.constant 0 : index
    %c0_10 = arith.constant 0 : index
    %15 = vector.load %arg2[%c2, %c0_9, %c0_10] : memref<3x24x32xbf16, #tpu.memory_space<vmem>>, vector<1x24x32xbf16>
    %16 = vector.shape_cast %15 : vector<1x24x32xbf16> to vector<24x32xbf16>
    %cst_11 = arith.constant dense<0.000000e+00> : vector<8x32xf32>
    %17 = tpu.matmul %14, %16, %cst_11 {dimension_numbers = #tpu.dot_dimension_numbers<[1], [0], [0], [1], [0, 0, 1, 1], [], []>} : vector<8x24xbf16>, vector<24x32xbf16>, vector<8x32xf32> -> vector<8x32xf32>
    %18 = arith.addf %13, %17 : vector<8x32xf32>
    %c0_12 = arith.constant 0 : index
    %c0_13 = arith.constant 0 : index
    %19 = vector.load %arg3[%c0_12, %c0_13] : memref<1x32xf32, #tpu.memory_space<vmem>>, vector<1x32xf32>
    %20 = vector.broadcast %19 : vector<1x32xf32> to vector<8x32xf32>
    %21 = arith.addf %18, %20 : vector<8x32xf32>
    %cst_14 = arith.constant 0.000000e+00 : f32
    %22 = vector.broadcast %cst_14 : f32 to vector<8x32xf32>
    %23 = arith.cmpf oge, %21, %22 : vector<8x32xf32>
    %cst_15 = arith.constant 2.000000e-01 : f32
    %24 = vector.broadcast %cst_15 : f32 to vector<8x32xf32>
    %25 = arith.mulf %24, %21 : vector<8x32xf32>
    %26 = arith.select %23, %21, %25 : vector<8x32xi1>, vector<8x32xf32>
    %c0_16 = arith.constant 0 : index
    %c0_17 = arith.constant 0 : index
    %27 = vector.load %arg4[%c0_16, %c0_17] : memref<1x32xf32, #tpu.memory_space<vmem>>, vector<1x32xf32>
    %28 = vector.broadcast %27 : vector<1x32xf32> to vector<8x32xf32>
    %29 = arith.mulf %26, %28 : vector<8x32xf32>
    %c0_18 = arith.constant 0 : index
    %c0_19 = arith.constant 0 : index
    %30 = vector.load %arg5[%c0_18, %c0_19] : memref<1x32xf32, #tpu.memory_space<vmem>>, vector<1x32xf32>
    %31 = vector.broadcast %30 : vector<1x32xf32> to vector<8x32xf32>
    %32 = arith.addf %29, %31 : vector<8x32xf32>
    %c0_20 = arith.constant 0 : index
    %c0_21 = arith.constant 0 : index
    %c0_22 = arith.constant 0 : index
    %33 = vector.load %arg6[%c0_20, %c0_21, %c0_22] : memref<1x8x32xf32, #tpu.memory_space<vmem>>, vector<1x8x32xf32>
    %34 = vector.shape_cast %33 : vector<1x8x32xf32> to vector<8x32xf32>
    %35 = vector.shape_cast %32 : vector<8x32xf32> to vector<1x8x32xf32>
    tpu.vector_store %arg6[%c0_20, %c0_21, %c0_22], %35 {strides = array<i32>} : memref<1x8x32xf32, #tpu.memory_space<vmem>>, vector<1x8x32xf32>,
    return
  }
  func.func @transform_0(%arg0: i32) -> (i32, i32, i32) {
    %c0_i32 = arith.constant 0 : i32
    %c0_i32_0 = arith.constant 0 : i32
    %c0_i32_1 = arith.constant 0 : i32
    return %arg0, %c0_i32, %c0_i32_0 : i32, i32, i32
  }
  func.func @transform_1(%arg0: i32) -> (i32, i32, i32) {
    %c0_i32 = arith.constant 0 : i32
    %c0_i32_0 = arith.constant 0 : i32
    %c0_i32_1 = arith.constant 0 : i32
    %c0_i32_2 = arith.constant 0 : i32
    return %c0_i32, %c0_i32_0, %c0_i32_1 : i32, i32, i32
  }
  func.func @transform_2(%arg0: i32) -> (i32, i32) {
    %c0_i32 = arith.constant 0 : i32
    %c0_i32_0 = arith.constant 0 : i32
    %c0_i32_1 = arith.constant 0 : i32
    return %c0_i32, %c0_i32_0 : i32, i32
  }
  func.func @transform_3(%arg0: i32) -> (i32, i32) {
    %c0_i32 = arith.constant 0 : i32
    %c0_i32_0 = arith.constant 0 : i32
    %c0_i32_1 = arith.constant 0 : i32
    return %c0_i32, %c0_i32_0 : i32, i32
  }
  func.func @transform_4(%arg0: i32) -> (i32, i32) {
    %c0_i32 = arith.constant 0 : i32
    %c0_i32_0 = arith.constant 0 : i32
    %c0_i32_1 = arith.constant 0 : i32
    return %c0_i32, %c0_i32_0 : i32, i32
  }
  func.func @transform_5(%arg0: i32) -> (i32, i32, i32) {
    %c0_i32 = arith.constant 0 : i32
    %c0_i32_0 = arith.constant 0 : i32
    %c0_i32_1 = arith.constant 0 : i32
    return %arg0, %c0_i32, %c0_i32_0 : i32, i32, i32
  }
}

module attributes {stable_mosaic.version = 11 : i64} {
  func.func @_dense_kernel(%arg0: i32, %arg1: memref<8x32xf32, #tpu.memory_space<vmem>>, %arg2: memref<32x32xbf16, #tpu.memory_space<vmem>>, %arg3: memref<1x32xf32, #tpu.memory_space<vmem>>, %arg4: memref<8x32xf32, #tpu.memory_space<vmem>>) attributes {dimension_semantics = [#tpu.dimension_semantics<parallel>], iteration_bounds = array<i64: 1>, scalar_prefetch = 0 : i64, scratch_operands = 0 : i64, tpu.core_type = #tpu.core_type<tc>, window_params = [{transform_indices = @transform_0, window_bounds = array<i64: 8, 32>}, {pipeline_mode = #tpu.pipeline_mode<synchronous>, transform_indices = @transform_1, window_bounds = array<i64: 32, 32>}, {pipeline_mode = #tpu.pipeline_mode<synchronous>, transform_indices = @transform_2, window_bounds = array<i64: 1, 32>}, {transform_indices = @transform_3, window_bounds = array<i64: 8, 32>}]} {
    %c0 = arith.constant 0 : index
    %c0_0 = arith.constant 0 : index
    %0 = vector.load %arg1[%c0, %c0_0] : memref<8x32xf32, #tpu.memory_space<vmem>>, vector<8x32xf32>
    %1 = arith.truncf %0 : vector<8x32xf32> to vector<8x32xbf16>
    %c0_1 = arith.constant 0 : index
    %c0_2 = arith.constant 0 : index
    %2 = vector.load %arg2[%c0_1, %c0_2] : memref<32x32xbf16, #tpu.memory_space<vmem>>, vector<32x32xbf16>
    %cst = arith.constant dense<0.000000e+00> : vector<8x32xf32>
    %3 = tpu.matmul %1, %2, %cst {dimension_numbers = #tpu.dot_dimension_numbers<[1], [0], [0], [1], [0, 0, 1, 1], [], []>} : vector<8x32xbf16>, vector<32x32xbf16>, vector<8x32xf32> -> vector<8x32xf32>
    %c0_3 = arith.constant 0 : index
    %c0_4 = arith.constant 0 : index
    %4 = vector.load %arg3[%c0_3, %c0_4] : memref<1x32xf32, #tpu.memory_space<vmem>>, vector<1x32xf32>
    %5 = vector.broadcast %4 : vector<1x32xf32> to vector<8x32xf32>
    %6 = arith.addf %3, %5 : vector<8x32xf32>
    %c0_5 = arith.constant 0 : index
    %c0_6 = arith.constant 0 : index
    %7 = vector.load %arg4[%c0_5, %c0_6] : memref<8x32xf32, #tpu.memory_space<vmem>>, vector<8x32xf32>
    tpu.vector_store %arg4[%c0_5, %c0_6], %6 {strides = array<i32>} : memref<8x32xf32, #tpu.memory_space<vmem>>, vector<8x32xf32>,
    return
  }
  func.func @transform_0(%arg0: i32) -> (i32, i32) {
    %c0_i32 = arith.constant 0 : i32
    %c0_i32_0 = arith.constant 0 : i32
    return %arg0, %c0_i32 : i32, i32
  }
  func.func @transform_1(%arg0: i32) -> (i32, i32) {
    %c0_i32 = arith.constant 0 : i32
    %c0_i32_0 = arith.constant 0 : i32
    %c0_i32_1 = arith.constant 0 : i32
    return %c0_i32, %c0_i32_0 : i32, i32
  }
  func.func @transform_2(%arg0: i32) -> (i32, i32) {
    %c0_i32 = arith.constant 0 : i32
    %c0_i32_0 = arith.constant 0 : i32
    %c0_i32_1 = arith.constant 0 : i32
    return %c0_i32, %c0_i32_0 : i32, i32
  }
  func.func @transform_3(%arg0: i32) -> (i32, i32) {
    %c0_i32 = arith.constant 0 : i32
    %c0_i32_0 = arith.constant 0 : i32
    return %arg0, %c0_i32 : i32, i32
  }
}

module attributes {stable_mosaic.version = 11 : i64} {
  func.func @_conv_kernel(%arg0: i32, %arg1: memref<1x12x32xf32, #tpu.memory_space<vmem>>, %arg2: memref<5x32x32xbf16, #tpu.memory_space<vmem>>, %arg3: memref<1x32xf32, #tpu.memory_space<vmem>>, %arg4: memref<1x32xf32, #tpu.memory_space<vmem>>, %arg5: memref<1x32xf32, #tpu.memory_space<vmem>>, %arg6: memref<1x8x32xf32, #tpu.memory_space<vmem>>) attributes {dimension_semantics = [#tpu.dimension_semantics<parallel>], iteration_bounds = array<i64: 2>, scalar_prefetch = 0 : i64, scratch_operands = 0 : i64, tpu.core_type = #tpu.core_type<tc>, window_params = [{transform_indices = @transform_0, window_bounds = array<i64: 1, 12, 32>}, {pipeline_mode = #tpu.pipeline_mode<synchronous>, transform_indices = @transform_1, window_bounds = array<i64: 5, 32, 32>}, {pipeline_mode = #tpu.pipeline_mode<synchronous>, transform_indices = @transform_2, window_bounds = array<i64: 1, 32>}, {pipeline_mode = #tpu.pipeline_mode<synchronous>, transform_indices = @transform_3, window_bounds = array<i64: 1, 32>}, {pipeline_mode = #tpu.pipeline_mode<synchronous>, transform_indices = @transform_4, window_bounds = array<i64: 1, 32>}, {transform_indices = @transform_5, window_bounds = array<i64: 1, 8, 32>}]} {
    %c0 = arith.constant 0 : index
    %c0_0 = arith.constant 0 : index
    %c0_1 = arith.constant 0 : index
    %0 = vector.load %arg1[%c0, %c0_0, %c0_1] : memref<1x12x32xf32, #tpu.memory_space<vmem>>, vector<1x12x32xf32>
    %1 = vector.shape_cast %0 : vector<1x12x32xf32> to vector<12x32xf32>
    %2 = arith.truncf %1 : vector<12x32xf32> to vector<12x32xbf16>
    %cst = arith.constant 0.000000e+00 : f32
    %3 = vector.broadcast %cst : f32 to vector<8x32xf32>
    %4 = vector.extract_strided_slice %2 {offsets = [0, 0], sizes = [8, 32], strides = [1, 1]} : vector<12x32xbf16> to vector<8x32xbf16>
    %c0_2 = arith.constant 0 : index
    %c0_3 = arith.constant 0 : index
    %c0_4 = arith.constant 0 : index
    %5 = vector.load %arg2[%c0_2, %c0_3, %c0_4] : memref<5x32x32xbf16, #tpu.memory_space<vmem>>, vector<1x32x32xbf16>
    %6 = vector.shape_cast %5 : vector<1x32x32xbf16> to vector<32x32xbf16>
    %cst_5 = arith.constant dense<0.000000e+00> : vector<8x32xf32>
    %7 = tpu.matmul %4, %6, %cst_5 {dimension_numbers = #tpu.dot_dimension_numbers<[1], [0], [0], [1], [0, 0, 1, 1], [], []>} : vector<8x32xbf16>, vector<32x32xbf16>, vector<8x32xf32> -> vector<8x32xf32>
    %8 = arith.addf %3, %7 : vector<8x32xf32>
    %9 = vector.extract_strided_slice %2 {offsets = [1, 0], sizes = [8, 32], strides = [1, 1]} : vector<12x32xbf16> to vector<8x32xbf16>
    %c1 = arith.constant 1 : index
    %c0_6 = arith.constant 0 : index
    %c0_7 = arith.constant 0 : index
    %10 = vector.load %arg2[%c1, %c0_6, %c0_7] : memref<5x32x32xbf16, #tpu.memory_space<vmem>>, vector<1x32x32xbf16>
    %11 = vector.shape_cast %10 : vector<1x32x32xbf16> to vector<32x32xbf16>
    %cst_8 = arith.constant dense<0.000000e+00> : vector<8x32xf32>
    %12 = tpu.matmul %9, %11, %cst_8 {dimension_numbers = #tpu.dot_dimension_numbers<[1], [0], [0], [1], [0, 0, 1, 1], [], []>} : vector<8x32xbf16>, vector<32x32xbf16>, vector<8x32xf32> -> vector<8x32xf32>
    %13 = arith.addf %8, %12 : vector<8x32xf32>
    %14 = vector.extract_strided_slice %2 {offsets = [2, 0], sizes = [8, 32], strides = [1, 1]} : vector<12x32xbf16> to vector<8x32xbf16>
    %c2 = arith.constant 2 : index
    %c0_9 = arith.constant 0 : index
    %c0_10 = arith.constant 0 : index
    %15 = vector.load %arg2[%c2, %c0_9, %c0_10] : memref<5x32x32xbf16, #tpu.memory_space<vmem>>, vector<1x32x32xbf16>
    %16 = vector.shape_cast %15 : vector<1x32x32xbf16> to vector<32x32xbf16>
    %cst_11 = arith.constant dense<0.000000e+00> : vector<8x32xf32>
    %17 = tpu.matmul %14, %16, %cst_11 {dimension_numbers = #tpu.dot_dimension_numbers<[1], [0], [0], [1], [0, 0, 1, 1], [], []>} : vector<8x32xbf16>, vector<32x32xbf16>, vector<8x32xf32> -> vector<8x32xf32>
    %18 = arith.addf %13, %17 : vector<8x32xf32>
    %19 = vector.extract_strided_slice %2 {offsets = [3, 0], sizes = [8, 32], strides = [1, 1]} : vector<12x32xbf16> to vector<8x32xbf16>
    %c3 = arith.constant 3 : index
    %c0_12 = arith.constant 0 : index
    %c0_13 = arith.constant 0 : index
    %20 = vector.load %arg2[%c3, %c0_12, %c0_13] : memref<5x32x32xbf16, #tpu.memory_space<vmem>>, vector<1x32x32xbf16>
    %21 = vector.shape_cast %20 : vector<1x32x32xbf16> to vector<32x32xbf16>
    %cst_14 = arith.constant dense<0.000000e+00> : vector<8x32xf32>
    %22 = tpu.matmul %19, %21, %cst_14 {dimension_numbers = #tpu.dot_dimension_numbers<[1], [0], [0], [1], [0, 0, 1, 1], [], []>} : vector<8x32xbf16>, vector<32x32xbf16>, vector<8x32xf32> -> vector<8x32xf32>
    %23 = arith.addf %18, %22 : vector<8x32xf32>
    %24 = vector.extract_strided_slice %2 {offsets = [4, 0], sizes = [8, 32], strides = [1, 1]} : vector<12x32xbf16> to vector<8x32xbf16>
    %c4 = arith.constant 4 : index
    %c0_15 = arith.constant 0 : index
    %c0_16 = arith.constant 0 : index
    %25 = vector.load %arg2[%c4, %c0_15, %c0_16] : memref<5x32x32xbf16, #tpu.memory_space<vmem>>, vector<1x32x32xbf16>
    %26 = vector.shape_cast %25 : vector<1x32x32xbf16> to vector<32x32xbf16>
    %cst_17 = arith.constant dense<0.000000e+00> : vector<8x32xf32>
    %27 = tpu.matmul %24, %26, %cst_17 {dimension_numbers = #tpu.dot_dimension_numbers<[1], [0], [0], [1], [0, 0, 1, 1], [], []>} : vector<8x32xbf16>, vector<32x32xbf16>, vector<8x32xf32> -> vector<8x32xf32>
    %28 = arith.addf %23, %27 : vector<8x32xf32>
    %c0_18 = arith.constant 0 : index
    %c0_19 = arith.constant 0 : index
    %29 = vector.load %arg3[%c0_18, %c0_19] : memref<1x32xf32, #tpu.memory_space<vmem>>, vector<1x32xf32>
    %30 = vector.broadcast %29 : vector<1x32xf32> to vector<8x32xf32>
    %31 = arith.addf %28, %30 : vector<8x32xf32>
    %cst_20 = arith.constant 0.000000e+00 : f32
    %32 = vector.broadcast %cst_20 : f32 to vector<8x32xf32>
    %33 = arith.cmpf oge, %31, %32 : vector<8x32xf32>
    %cst_21 = arith.constant 2.000000e-01 : f32
    %34 = vector.broadcast %cst_21 : f32 to vector<8x32xf32>
    %35 = arith.mulf %34, %31 : vector<8x32xf32>
    %36 = arith.select %33, %31, %35 : vector<8x32xi1>, vector<8x32xf32>
    %c0_22 = arith.constant 0 : index
    %c0_23 = arith.constant 0 : index
    %37 = vector.load %arg4[%c0_22, %c0_23] : memref<1x32xf32, #tpu.memory_space<vmem>>, vector<1x32xf32>
    %38 = vector.broadcast %37 : vector<1x32xf32> to vector<8x32xf32>
    %39 = arith.mulf %36, %38 : vector<8x32xf32>
    %c0_24 = arith.constant 0 : index
    %c0_25 = arith.constant 0 : index
    %40 = vector.load %arg5[%c0_24, %c0_25] : memref<1x32xf32, #tpu.memory_space<vmem>>, vector<1x32xf32>
    %41 = vector.broadcast %40 : vector<1x32xf32> to vector<8x32xf32>
    %42 = arith.addf %39, %41 : vector<8x32xf32>
    %c0_26 = arith.constant 0 : index
    %c0_27 = arith.constant 0 : index
    %c0_28 = arith.constant 0 : index
    %43 = vector.load %arg6[%c0_26, %c0_27, %c0_28] : memref<1x8x32xf32, #tpu.memory_space<vmem>>, vector<1x8x32xf32>
    %44 = vector.shape_cast %43 : vector<1x8x32xf32> to vector<8x32xf32>
    %45 = vector.shape_cast %42 : vector<8x32xf32> to vector<1x8x32xf32>
    tpu.vector_store %arg6[%c0_26, %c0_27, %c0_28], %45 {strides = array<i32>} : memref<1x8x32xf32, #tpu.memory_space<vmem>>, vector<1x8x32xf32>,
    return
  }
  func.func @transform_0(%arg0: i32) -> (i32, i32, i32) {
    %c0_i32 = arith.constant 0 : i32
    %c0_i32_0 = arith.constant 0 : i32
    %c0_i32_1 = arith.constant 0 : i32
    return %arg0, %c0_i32, %c0_i32_0 : i32, i32, i32
  }
  func.func @transform_1(%arg0: i32) -> (i32, i32, i32) {
    %c0_i32 = arith.constant 0 : i32
    %c0_i32_0 = arith.constant 0 : i32
    %c0_i32_1 = arith.constant 0 : i32
    %c0_i32_2 = arith.constant 0 : i32
    return %c0_i32, %c0_i32_0, %c0_i32_1 : i32, i32, i32
  }
  func.func @transform_2(%arg0: i32) -> (i32, i32) {
    %c0_i32 = arith.constant 0 : i32
    %c0_i32_0 = arith.constant 0 : i32
    %c0_i32_1 = arith.constant 0 : i32
    return %c0_i32, %c0_i32_0 : i32, i32
  }
  func.func @transform_3(%arg0: i32) -> (i32, i32) {
    %c0_i32 = arith.constant 0 : i32
    %c0_i32_0 = arith.constant 0 : i32
    %c0_i32_1 = arith.constant 0 : i32
    return %c0_i32, %c0_i32_0 : i32, i32
  }
  func.func @transform_4(%arg0: i32) -> (i32, i32) {
    %c0_i32 = arith.constant 0 : i32
    %c0_i32_0 = arith.constant 0 : i32
    %c0_i32_1 = arith.constant 0 : i32
    return %c0_i32, %c0_i32_0 : i32, i32
  }
  func.func @transform_5(%arg0: i32) -> (i32, i32, i32) {
    %c0_i32 = arith.constant 0 : i32
    %c0_i32_0 = arith.constant 0 : i32
    %c0_i32_1 = arith.constant 0 : i32
    return %arg0, %c0_i32, %c0_i32_0 : i32, i32, i32
  }
}

module attributes {stable_mosaic.version = 11 : i64} {
  func.func @_ffn_res_ln_kernel(%arg0: i32, %arg1: memref<8x32xf32, #tpu.memory_space<vmem>>, %arg2: memref<32x64xbf16, #tpu.memory_space<vmem>>, %arg3: memref<1x64xf32, #tpu.memory_space<vmem>>, %arg4: memref<64x32xbf16, #tpu.memory_space<vmem>>, %arg5: memref<1x32xf32, #tpu.memory_space<vmem>>, %arg6: memref<1x32xf32, #tpu.memory_space<vmem>>, %arg7: memref<1x32xf32, #tpu.memory_space<vmem>>, %arg8: memref<8x32xf32, #tpu.memory_space<vmem>>) attributes {dimension_semantics = [#tpu.dimension_semantics<parallel>], iteration_bounds = array<i64: 1>, scalar_prefetch = 0 : i64, scratch_operands = 0 : i64, tpu.core_type = #tpu.core_type<tc>, window_params = [{transform_indices = @transform_0, window_bounds = array<i64: 8, 32>}, {pipeline_mode = #tpu.pipeline_mode<synchronous>, transform_indices = @transform_1, window_bounds = array<i64: 32, 64>}, {pipeline_mode = #tpu.pipeline_mode<synchronous>, transform_indices = @transform_2, window_bounds = array<i64: 1, 64>}, {pipeline_mode = #tpu.pipeline_mode<synchronous>, transform_indices = @transform_3, window_bounds = array<i64: 64, 32>}, {pipeline_mode = #tpu.pipeline_mode<synchronous>, transform_indices = @transform_4, window_bounds = array<i64: 1, 32>}, {pipeline_mode = #tpu.pipeline_mode<synchronous>, transform_indices = @transform_5, window_bounds = array<i64: 1, 32>}, {pipeline_mode = #tpu.pipeline_mode<synchronous>, transform_indices = @transform_6, window_bounds = array<i64: 1, 32>}, {transform_indices = @transform_7, window_bounds = array<i64: 8, 32>}]} {
    %c0 = arith.constant 0 : index
    %c0_0 = arith.constant 0 : index
    %0 = vector.load %arg1[%c0, %c0_0] : memref<8x32xf32, #tpu.memory_space<vmem>>, vector<8x32xf32>
    %1 = arith.truncf %0 : vector<8x32xf32> to vector<8x32xbf16>
    %c0_1 = arith.constant 0 : index
    %c0_2 = arith.constant 0 : index
    %2 = vector.load %arg2[%c0_1, %c0_2] : memref<32x64xbf16, #tpu.memory_space<vmem>>, vector<32x64xbf16>
    %cst = arith.constant dense<0.000000e+00> : vector<8x64xf32>
    %3 = tpu.matmul %1, %2, %cst {dimension_numbers = #tpu.dot_dimension_numbers<[1], [0], [0], [1], [0, 0, 1, 1], [], []>} : vector<8x32xbf16>, vector<32x64xbf16>, vector<8x64xf32> -> vector<8x64xf32>
    %c0_3 = arith.constant 0 : index
    %c0_4 = arith.constant 0 : index
    %4 = vector.load %arg3[%c0_3, %c0_4] : memref<1x64xf32, #tpu.memory_space<vmem>>, vector<1x64xf32>
    %5 = vector.broadcast %4 : vector<1x64xf32> to vector<8x64xf32>
    %6 = arith.addf %3, %5 : vector<8x64xf32>
    %cst_5 = arith.constant 5.000000e-01 : f32
    %7 = vector.broadcast %cst_5 : f32 to vector<8x64xf32>
    %8 = arith.mulf %7, %6 : vector<8x64xf32>
    %cst_6 = arith.constant 0.707106769 : f32
    %9 = vector.broadcast %cst_6 : f32 to vector<8x64xf32>
    %10 = arith.mulf %6, %9 : vector<8x64xf32>
    %11 = math.erf %10 : vector<8x64xf32>
    %cst_7 = arith.constant 1.000000e+00 : f32
    %12 = vector.broadcast %cst_7 : f32 to vector<8x64xf32>
    %13 = arith.addf %12, %11 : vector<8x64xf32>
    %14 = arith.mulf %8, %13 : vector<8x64xf32>
    %15 = arith.truncf %14 : vector<8x64xf32> to vector<8x64xbf16>
    %c0_8 = arith.constant 0 : index
    %c0_9 = arith.constant 0 : index
    %16 = vector.load %arg4[%c0_8, %c0_9] : memref<64x32xbf16, #tpu.memory_space<vmem>>, vector<64x32xbf16>
    %cst_10 = arith.constant dense<0.000000e+00> : vector<8x32xf32>
    %17 = tpu.matmul %15, %16, %cst_10 {dimension_numbers = #tpu.dot_dimension_numbers<[1], [0], [0], [1], [0, 0, 1, 1], [], []>} : vector<8x64xbf16>, vector<64x32xbf16>, vector<8x32xf32> -> vector<8x32xf32>
    %c0_11 = arith.constant 0 : index
    %c0_12 = arith.constant 0 : index
    %18 = vector.load %arg5[%c0_11, %c0_12] : memref<1x32xf32, #tpu.memory_space<vmem>>, vector<1x32xf32>
    %19 = vector.broadcast %18 : vector<1x32xf32> to vector<8x32xf32>
    %20 = arith.addf %17, %19 : vector<8x32xf32>
    %21 = arith.addf %0, %20 : vector<8x32xf32>
    %cst_13 = arith.constant dense<0.000000e+00> : vector<8xf32>
    %22 = vector.multi_reduction <add>, %21, %cst_13 [1] : vector<8x32xf32> to vector<8xf32>
    %23 = vector.shape_cast %22 : vector<8xf32> to vector<8x1xf32>
    %cst_14 = arith.constant 3.200000e+01 : f32
    %24 = vector.broadcast %cst_14 : f32 to vector<8x1xf32>
    %25 = arith.divf %23, %24 : vector<8x1xf32>
    %26 = vector.broadcast %25 : vector<8x1xf32> to vector<8x32xf32>
    %27 = arith.subf %21, %26 : vector<8x32xf32>
    %28 = arith.mulf %27, %27 : vector<8x32xf32>
    %cst_15 = arith.constant dense<0.000000e+00> : vector<8xf32>
    %29 = vector.multi_reduction <add>, %28, %cst_15 [1] : vector<8x32xf32> to vector<8xf32>
    %30 = vector.shape_cast %29 : vector<8xf32> to vector<8x1xf32>
    %cst_16 = arith.constant 3.200000e+01 : f32
    %31 = vector.broadcast %cst_16 : f32 to vector<8x1xf32>
    %32 = arith.divf %30, %31 : vector<8x1xf32>
    %33 = vector.broadcast %25 : vector<8x1xf32> to vector<8x32xf32>
    %34 = arith.subf %21, %33 : vector<8x32xf32>
    %cst_17 = arith.constant 9.99999974E-6 : f32
    %35 = vector.broadcast %cst_17 : f32 to vector<8x1xf32>
    %36 = arith.addf %32, %35 : vector<8x1xf32>
    %37 = math.rsqrt %36 : vector<8x1xf32>
    %38 = vector.broadcast %37 : vector<8x1xf32> to vector<8x32xf32>
    %39 = arith.mulf %34, %38 : vector<8x32xf32>
    %c0_18 = arith.constant 0 : index
    %c0_19 = arith.constant 0 : index
    %40 = vector.load %arg6[%c0_18, %c0_19] : memref<1x32xf32, #tpu.memory_space<vmem>>, vector<1x32xf32>
    %41 = vector.broadcast %40 : vector<1x32xf32> to vector<8x32xf32>
    %42 = arith.mulf %39, %41 : vector<8x32xf32>
    %c0_20 = arith.constant 0 : index
    %c0_21 = arith.constant 0 : index
    %43 = vector.load %arg7[%c0_20, %c0_21] : memref<1x32xf32, #tpu.memory_space<vmem>>, vector<1x32xf32>
    %44 = vector.broadcast %43 : vector<1x32xf32> to vector<8x32xf32>
    %45 = arith.addf %42, %44 : vector<8x32xf32>
    %c0_22 = arith.constant 0 : index
    %c0_23 = arith.constant 0 : index
    %46 = vector.load %arg8[%c0_22, %c0_23] : memref<8x32xf32, #tpu.memory_space<vmem>>, vector<8x32xf32>
    tpu.vector_store %arg8[%c0_22, %c0_23], %45 {strides = array<i32>} : memref<8x32xf32, #tpu.memory_space<vmem>>, vector<8x32xf32>,
    return
  }
  func.func @transform_0(%arg0: i32) -> (i32, i32) {
    %c0_i32 = arith.constant 0 : i32
    %c0_i32_0 = arith.constant 0 : i32
    return %arg0, %c0_i32 : i32, i32
  }
  func.func @transform_1(%arg0: i32) -> (i32, i32) {
    %c0_i32 = arith.constant 0 : i32
    %c0_i32_0 = arith.constant 0 : i32
    %c0_i32_1 = arith.constant 0 : i32
    return %c0_i32, %c0_i32_0 : i32, i32
  }
  func.func @transform_2(%arg0: i32) -> (i32, i32) {
    %c0_i32 = arith.constant 0 : i32
    %c0_i32_0 = arith.constant 0 : i32
    %c0_i32_1 = arith.constant 0 : i32
    return %c0_i32, %c0_i32_0 : i32, i32
  }
  func.func @transform_3(%arg0: i32) -> (i32, i32) {
    %c0_i32 = arith.constant 0 : i32
    %c0_i32_0 = arith.constant 0 : i32
    %c0_i32_1 = arith.constant 0 : i32
    return %c0_i32, %c0_i32_0 : i32, i32
  }
  func.func @transform_4(%arg0: i32) -> (i32, i32) {
    %c0_i32 = arith.constant 0 : i32
    %c0_i32_0 = arith.constant 0 : i32
    %c0_i32_1 = arith.constant 0 : i32
    return %c0_i32, %c0_i32_0 : i32, i32
  }
  func.func @transform_5(%arg0: i32) -> (i32, i32) {
    %c0_i32 = arith.constant 0 : i32
    %c0_i32_0 = arith.constant 0 : i32
    %c0_i32_1 = arith.constant 0 : i32
    return %c0_i32, %c0_i32_0 : i32, i32
  }
  func.func @transform_6(%arg0: i32) -> (i32, i32) {
    %c0_i32 = arith.constant 0 : i32
    %c0_i32_0 = arith.constant 0 : i32
    %c0_i32_1 = arith.constant 0 : i32
    return %c0_i32, %c0_i32_0 : i32, i32
  }
  func.func @transform_7(%arg0: i32) -> (i32, i32) {
    %c0_i32 = arith.constant 0 : i32
    %c0_i32_0 = arith.constant 0 : i32
    return %arg0, %c0_i32 : i32, i32
  }
}

module attributes {stable_mosaic.version = 11 : i64} {
  func.func @_proj_res_ln_kernel(%arg0: i32, %arg1: memref<8x32xf32, #tpu.memory_space<vmem>>, %arg2: memref<32x32xbf16, #tpu.memory_space<vmem>>, %arg3: memref<1x32xf32, #tpu.memory_space<vmem>>, %arg4: memref<8x32xf32, #tpu.memory_space<vmem>>, %arg5: memref<1x32xf32, #tpu.memory_space<vmem>>, %arg6: memref<1x32xf32, #tpu.memory_space<vmem>>, %arg7: memref<8x32xf32, #tpu.memory_space<vmem>>) attributes {dimension_semantics = [#tpu.dimension_semantics<parallel>], iteration_bounds = array<i64: 1>, scalar_prefetch = 0 : i64, scratch_operands = 0 : i64, tpu.core_type = #tpu.core_type<tc>, window_params = [{transform_indices = @transform_0, window_bounds = array<i64: 8, 32>}, {pipeline_mode = #tpu.pipeline_mode<synchronous>, transform_indices = @transform_1, window_bounds = array<i64: 32, 32>}, {pipeline_mode = #tpu.pipeline_mode<synchronous>, transform_indices = @transform_2, window_bounds = array<i64: 1, 32>}, {transform_indices = @transform_3, window_bounds = array<i64: 8, 32>}, {pipeline_mode = #tpu.pipeline_mode<synchronous>, transform_indices = @transform_4, window_bounds = array<i64: 1, 32>}, {pipeline_mode = #tpu.pipeline_mode<synchronous>, transform_indices = @transform_5, window_bounds = array<i64: 1, 32>}, {transform_indices = @transform_6, window_bounds = array<i64: 8, 32>}]} {
    %c0 = arith.constant 0 : index
    %c0_0 = arith.constant 0 : index
    %0 = vector.load %arg1[%c0, %c0_0] : memref<8x32xf32, #tpu.memory_space<vmem>>, vector<8x32xf32>
    %1 = arith.truncf %0 : vector<8x32xf32> to vector<8x32xbf16>
    %c0_1 = arith.constant 0 : index
    %c0_2 = arith.constant 0 : index
    %2 = vector.load %arg2[%c0_1, %c0_2] : memref<32x32xbf16, #tpu.memory_space<vmem>>, vector<32x32xbf16>
    %cst = arith.constant dense<0.000000e+00> : vector<8x32xf32>
    %3 = tpu.matmul %1, %2, %cst {dimension_numbers = #tpu.dot_dimension_numbers<[1], [0], [0], [1], [0, 0, 1, 1], [], []>} : vector<8x32xbf16>, vector<32x32xbf16>, vector<8x32xf32> -> vector<8x32xf32>
    %c0_3 = arith.constant 0 : index
    %c0_4 = arith.constant 0 : index
    %4 = vector.load %arg3[%c0_3, %c0_4] : memref<1x32xf32, #tpu.memory_space<vmem>>, vector<1x32xf32>
    %5 = vector.broadcast %4 : vector<1x32xf32> to vector<8x32xf32>
    %6 = arith.addf %3, %5 : vector<8x32xf32>
    %c0_5 = arith.constant 0 : index
    %c0_6 = arith.constant 0 : index
    %7 = vector.load %arg4[%c0_5, %c0_6] : memref<8x32xf32, #tpu.memory_space<vmem>>, vector<8x32xf32>
    %8 = arith.addf %7, %6 : vector<8x32xf32>
    %cst_7 = arith.constant dense<0.000000e+00> : vector<8xf32>
    %9 = vector.multi_reduction <add>, %8, %cst_7 [1] : vector<8x32xf32> to vector<8xf32>
    %10 = vector.shape_cast %9 : vector<8xf32> to vector<8x1xf32>
    %cst_8 = arith.constant 3.200000e+01 : f32
    %11 = vector.broadcast %cst_8 : f32 to vector<8x1xf32>
    %12 = arith.divf %10, %11 : vector<8x1xf32>
    %13 = vector.broadcast %12 : vector<8x1xf32> to vector<8x32xf32>
    %14 = arith.subf %8, %13 : vector<8x32xf32>
    %15 = arith.mulf %14, %14 : vector<8x32xf32>
    %cst_9 = arith.constant dense<0.000000e+00> : vector<8xf32>
    %16 = vector.multi_reduction <add>, %15, %cst_9 [1] : vector<8x32xf32> to vector<8xf32>
    %17 = vector.shape_cast %16 : vector<8xf32> to vector<8x1xf32>
    %cst_10 = arith.constant 3.200000e+01 : f32
    %18 = vector.broadcast %cst_10 : f32 to vector<8x1xf32>
    %19 = arith.divf %17, %18 : vector<8x1xf32>
    %20 = vector.broadcast %12 : vector<8x1xf32> to vector<8x32xf32>
    %21 = arith.subf %8, %20 : vector<8x32xf32>
    %cst_11 = arith.constant 9.99999974E-6 : f32
    %22 = vector.broadcast %cst_11 : f32 to vector<8x1xf32>
    %23 = arith.addf %19, %22 : vector<8x1xf32>
    %24 = math.rsqrt %23 : vector<8x1xf32>
    %25 = vector.broadcast %24 : vector<8x1xf32> to vector<8x32xf32>
    %26 = arith.mulf %21, %25 : vector<8x32xf32>
    %c0_12 = arith.constant 0 : index
    %c0_13 = arith.constant 0 : index
    %27 = vector.load %arg5[%c0_12, %c0_13] : memref<1x32xf32, #tpu.memory_space<vmem>>, vector<1x32xf32>
    %28 = vector.broadcast %27 : vector<1x32xf32> to vector<8x32xf32>
    %29 = arith.mulf %26, %28 : vector<8x32xf32>
    %c0_14 = arith.constant 0 : index
    %c0_15 = arith.constant 0 : index
    %30 = vector.load %arg6[%c0_14, %c0_15] : memref<1x32xf32, #tpu.memory_space<vmem>>, vector<1x32xf32>
    %31 = vector.broadcast %30 : vector<1x32xf32> to vector<8x32xf32>
    %32 = arith.addf %29, %31 : vector<8x32xf32>
    %c0_16 = arith.constant 0 : index
    %c0_17 = arith.constant 0 : index
    %33 = vector.load %arg7[%c0_16, %c0_17] : memref<8x32xf32, #tpu.memory_space<vmem>>, vector<8x32xf32>
    tpu.vector_store %arg7[%c0_16, %c0_17], %32 {strides = array<i32>} : memref<8x32xf32, #tpu.memory_space<vmem>>, vector<8x32xf32>,
    return
  }
  func.func @transform_0(%arg0: i32) -> (i32, i32) {
    %c0_i32 = arith.constant 0 : i32
    %c0_i32_0 = arith.constant 0 : i32
    return %arg0, %c0_i32 : i32, i32
  }
  func.func @transform_1(%arg0: i32) -> (i32, i32) {
    %c0_i32 = arith.constant 0 : i32
    %c0_i32_0 = arith.constant 0 : i32
    %c0_i32_1 = arith.constant 0 : i32
    return %c0_i32, %c0_i32_0 : i32, i32
  }
  func.func @transform_2(%arg0: i32) -> (i32, i32) {
    %c0_i32 = arith.constant 0 : i32
    %c0_i32_0 = arith.constant 0 : i32
    %c0_i32_1 = arith.constant 0 : i32
    return %c0_i32, %c0_i32_0 : i32, i32
  }
  func.func @transform_3(%arg0: i32) -> (i32, i32) {
    %c0_i32 = arith.constant 0 : i32
    %c0_i32_0 = arith.constant 0 : i32
    return %arg0, %c0_i32 : i32, i32
  }
  func.func @transform_4(%arg0: i32) -> (i32, i32) {
    %c0_i32 = arith.constant 0 : i32
    %c0_i32_0 = arith.constant 0 : i32
    %c0_i32_1 = arith.constant 0 : i32
    return %c0_i32, %c0_i32_0 : i32, i32
  }
  func.func @transform_5(%arg0: i32) -> (i32, i32) {
    %c0_i32 = arith.constant 0 : i32
    %c0_i32_0 = arith.constant 0 : i32
    %c0_i32_1 = arith.constant 0 : i32
    return %c0_i32, %c0_i32_0 : i32, i32
  }
  func.func @transform_6(%arg0: i32) -> (i32, i32) {
    %c0_i32 = arith.constant 0 : i32
    %c0_i32_0 = arith.constant 0 : i32
    return %arg0, %c0_i32 : i32, i32
  }
}

module attributes {stable_mosaic.version = 11 : i64} {
  func.func @_dense_kernel(%arg0: i32, %arg1: memref<8x32xf32, #tpu.memory_space<vmem>>, %arg2: memref<32x16xbf16, #tpu.memory_space<vmem>>, %arg3: memref<1x16xf32, #tpu.memory_space<vmem>>, %arg4: memref<8x16xf32, #tpu.memory_space<vmem>>) attributes {dimension_semantics = [#tpu.dimension_semantics<parallel>], iteration_bounds = array<i64: 1>, scalar_prefetch = 0 : i64, scratch_operands = 0 : i64, tpu.core_type = #tpu.core_type<tc>, window_params = [{transform_indices = @transform_0, window_bounds = array<i64: 8, 32>}, {pipeline_mode = #tpu.pipeline_mode<synchronous>, transform_indices = @transform_1, window_bounds = array<i64: 32, 16>}, {pipeline_mode = #tpu.pipeline_mode<synchronous>, transform_indices = @transform_2, window_bounds = array<i64: 1, 16>}, {transform_indices = @transform_3, window_bounds = array<i64: 8, 16>}]} {
    %c0 = arith.constant 0 : index
    %c0_0 = arith.constant 0 : index
    %0 = vector.load %arg1[%c0, %c0_0] : memref<8x32xf32, #tpu.memory_space<vmem>>, vector<8x32xf32>
    %1 = arith.truncf %0 : vector<8x32xf32> to vector<8x32xbf16>
    %c0_1 = arith.constant 0 : index
    %c0_2 = arith.constant 0 : index
    %2 = vector.load %arg2[%c0_1, %c0_2] : memref<32x16xbf16, #tpu.memory_space<vmem>>, vector<32x16xbf16>
    %cst = arith.constant dense<0.000000e+00> : vector<8x16xf32>
    %3 = tpu.matmul %1, %2, %cst {dimension_numbers = #tpu.dot_dimension_numbers<[1], [0], [0], [1], [0, 0, 1, 1], [], []>} : vector<8x32xbf16>, vector<32x16xbf16>, vector<8x16xf32> -> vector<8x16xf32>
    %c0_3 = arith.constant 0 : index
    %c0_4 = arith.constant 0 : index
    %4 = vector.load %arg3[%c0_3, %c0_4] : memref<1x16xf32, #tpu.memory_space<vmem>>, vector<1x16xf32>
    %5 = vector.broadcast %4 : vector<1x16xf32> to vector<8x16xf32>
    %6 = arith.addf %3, %5 : vector<8x16xf32>
    %c0_5 = arith.constant 0 : index
    %c0_6 = arith.constant 0 : index
    %7 = vector.load %arg4[%c0_5, %c0_6] : memref<8x16xf32, #tpu.memory_space<vmem>>, vector<8x16xf32>
    tpu.vector_store %arg4[%c0_5, %c0_6], %6 {strides = array<i32>} : memref<8x16xf32, #tpu.memory_space<vmem>>, vector<8x16xf32>,
    return
  }
  func.func @transform_0(%arg0: i32) -> (i32, i32) {
    %c0_i32 = arith.constant 0 : i32
    %c0_i32_0 = arith.constant 0 : i32
    return %arg0, %c0_i32 : i32, i32
  }
  func.func @transform_1(%arg0: i32) -> (i32, i32) {
    %c0_i32 = arith.constant 0 : i32
    %c0_i32_0 = arith.constant 0 : i32
    %c0_i32_1 = arith.constant 0 : i32
    return %c0_i32, %c0_i32_0 : i32, i32
  }
  func.func @transform_2(%arg0: i32) -> (i32, i32) {
    %c0_i32 = arith.constant 0 : i32
    %c0_i32_0 = arith.constant 0 : i32
    %c0_i32_1 = arith.constant 0 : i32
    return %c0_i32, %c0_i32_0 : i32, i32
  }
  func.func @transform_3(%arg0: i32) -> (i32, i32) {
    %c0_i32 = arith.constant 0 : i32
    %c0_i32_0 = arith.constant 0 : i32
    return %arg0, %c0_i32 : i32, i32
  }
}

module attributes {stable_mosaic.version = 11 : i64} {
  func.func @_attn_kernel(%arg0: i32, %arg1: memref<1x4x4x8xf32, #tpu.memory_space<vmem>>, %arg2: memref<1x4x4x8xf32, #tpu.memory_space<vmem>>, %arg3: memref<1x4x4x8xf32, #tpu.memory_space<vmem>>, %arg4: memref<4x4x4xf32, #tpu.memory_space<vmem>>, %arg5: memref<1x4x4x8xf32, #tpu.memory_space<vmem>>) attributes {dimension_semantics = [#tpu.dimension_semantics<parallel>], iteration_bounds = array<i64: 2>, scalar_prefetch = 0 : i64, scratch_operands = 0 : i64, tpu.core_type = #tpu.core_type<tc>, window_params = [{transform_indices = @transform_0, window_bounds = array<i64: 1, 4, 4, 8>}, {transform_indices = @transform_1, window_bounds = array<i64: 1, 4, 4, 8>}, {transform_indices = @transform_2, window_bounds = array<i64: 1, 4, 4, 8>}, {pipeline_mode = #tpu.pipeline_mode<synchronous>, transform_indices = @transform_3, window_bounds = array<i64: 4, 4, 4>}, {transform_indices = @transform_4, window_bounds = array<i64: 1, 4, 4, 8>}]} {
    %c0 = arith.constant 0 : index
    %c0_0 = arith.constant 0 : index
    %c0_1 = arith.constant 0 : index
    %c0_2 = arith.constant 0 : index
    %0 = vector.load %arg1[%c0, %c0_0, %c0_1, %c0_2] : memref<1x4x4x8xf32, #tpu.memory_space<vmem>>, vector<1x4x4x8xf32>
    %1 = vector.shape_cast %0 : vector<1x4x4x8xf32> to vector<4x4x8xf32>
    %2 = arith.truncf %1 : vector<4x4x8xf32> to vector<4x4x8xbf16>
    %c0_3 = arith.constant 0 : index
    %c0_4 = arith.constant 0 : index
    %c0_5 = arith.constant 0 : index
    %c0_6 = arith.constant 0 : index
    %3 = vector.load %arg2[%c0_3, %c0_4, %c0_5, %c0_6] : memref<1x4x4x8xf32, #tpu.memory_space<vmem>>, vector<1x4x4x8xf32>
    %4 = vector.shape_cast %3 : vector<1x4x4x8xf32> to vector<4x4x8xf32>
    %5 = arith.truncf %4 : vector<4x4x8xf32> to vector<4x4x8xbf16>
    %c0_7 = arith.constant 0 : index
    %c0_8 = arith.constant 0 : index
    %c0_9 = arith.constant 0 : index
    %c0_10 = arith.constant 0 : index
    %6 = vector.load %arg3[%c0_7, %c0_8, %c0_9, %c0_10] : memref<1x4x4x8xf32, #tpu.memory_space<vmem>>, vector<1x4x4x8xf32>
    %7 = vector.shape_cast %6 : vector<1x4x4x8xf32> to vector<4x4x8xf32>
    %8 = arith.truncf %7 : vector<4x4x8xf32> to vector<4x4x8xbf16>
    "tpu.trace_start"() <{level = 10 : i32, message = "hqd,hkd->hqk"}> : () -> ()
    %cst = arith.constant dense<0.000000e+00> : vector<4x4x4xf32>
    %9 = tpu.matmul %2, %5, %cst {dimension_numbers = #tpu.dot_dimension_numbers<[2], [2], [1], [1], [0, 0, 0, 1, 1, 1], [0], [0]>} : vector<4x4x8xbf16>, vector<4x4x8xbf16>, vector<4x4x4xf32> -> vector<4x4x4xf32>
    "tpu.trace_stop"() : () -> ()
    %cst_11 = arith.constant 0.353553385 : f32
    %10 = vector.broadcast %cst_11 : f32 to vector<4x4x4xf32>
    %11 = arith.mulf %9, %10 : vector<4x4x4xf32>
    %c0_12 = arith.constant 0 : index
    %c0_13 = arith.constant 0 : index
    %c0_14 = arith.constant 0 : index
    %12 = vector.load %arg4[%c0_12, %c0_13, %c0_14] : memref<4x4x4xf32, #tpu.memory_space<vmem>>, vector<4x4x4xf32>
    %13 = arith.addf %11, %12 : vector<4x4x4xf32>
    %cst_15 = arith.constant dense<0xFF800000> : vector<4x4xf32>
    %14 = vector.multi_reduction <maximumf>, %13, %cst_15 [2] : vector<4x4x4xf32> to vector<4x4xf32>
    %15 = vector.shape_cast %14 : vector<4x4xf32> to vector<4x4x1xf32>
    %16 = vector.broadcast %15 : vector<4x4x1xf32> to vector<4x4x4xf32>
    %17 = arith.subf %13, %16 : vector<4x4x4xf32>
    %18 = math.exp %17 : vector<4x4x4xf32>
    %cst_16 = arith.constant dense<0.000000e+00> : vector<4x4xf32>
    %19 = vector.multi_reduction <add>, %18, %cst_16 [2] : vector<4x4x4xf32> to vector<4x4xf32>
    %20 = vector.shape_cast %19 : vector<4x4xf32> to vector<4x4x1xf32>
    %21 = tpu.reciprocal %20 {approx = true} : vector<4x4x1xf32> -> vector<4x4x1xf32>
    %22 = vector.broadcast %21 : vector<4x4x1xf32> to vector<4x4x4xf32>
    %23 = arith.mulf %18, %22 : vector<4x4x4xf32>
    %24 = arith.truncf %23 : vector<4x4x4xf32> to vector<4x4x4xbf16>
    "tpu.trace_start"() <{level = 10 : i32, message = "hqk,hkd->hqd"}> : () -> ()
    %cst_17 = arith.constant dense<0.000000e+00> : vector<4x4x8xf32>
    %25 = tpu.matmul %24, %8, %cst_17 {dimension_numbers = #tpu.dot_dimension_numbers<[2], [1], [1], [2], [0, 0, 0, 1, 1, 2], [0], [0]>} : vector<4x4x4xbf16>, vector<4x4x8xbf16>, vector<4x4x8xf32> -> vector<4x4x8xf32>
    "tpu.trace_stop"() : () -> ()
    %c0_18 = arith.constant 0 : index
    %c0_19 = arith.constant 0 : index
    %c0_20 = arith.constant 0 : index
    %c0_21 = arith.constant 0 : index
    %26 = vector.load %arg5[%c0_18, %c0_19, %c0_20, %c0_21] : memref<1x4x4x8xf32, #tpu.memory_space<vmem>>, vector<1x4x4x8xf32>
    %27 = vector.shape_cast %26 : vector<1x4x4x8xf32> to vector<4x4x8xf32>
    %28 = vector.shape_cast %25 : vector<4x4x8xf32> to vector<1x4x4x8xf32>
    tpu.vector_store %arg5[%c0_18, %c0_19, %c0_20, %c0_21], %28 {strides = array<i32>} : memref<1x4x4x8xf32, #tpu.memory_space<vmem>>, vector<1x4x4x8xf32>,
    return
  }
  func.func @transform_0(%arg0: i32) -> (i32, i32, i32, i32) {
    %c0_i32 = arith.constant 0 : i32
    %c0_i32_0 = arith.constant 0 : i32
    %c0_i32_1 = arith.constant 0 : i32
    %c0_i32_2 = arith.constant 0 : i32
    return %arg0, %c0_i32, %c0_i32_0, %c0_i32_1 : i32, i32, i32, i32
  }
  func.func @transform_1(%arg0: i32) -> (i32, i32, i32, i32) {
    %c0_i32 = arith.constant 0 : i32
    %c0_i32_0 = arith.constant 0 : i32
    %c0_i32_1 = arith.constant 0 : i32
    %c0_i32_2 = arith.constant 0 : i32
    return %arg0, %c0_i32, %c0_i32_0, %c0_i32_1 : i32, i32, i32, i32
  }
  func.func @transform_2(%arg0: i32) -> (i32, i32, i32, i32) {
    %c0_i32 = arith.constant 0 : i32
    %c0_i32_0 = arith.constant 0 : i32
    %c0_i32_1 = arith.constant 0 : i32
    %c0_i32_2 = arith.constant 0 : i32
    return %arg0, %c0_i32, %c0_i32_0, %c0_i32_1 : i32, i32, i32, i32
  }
  func.func @transform_3(%arg0: i32) -> (i32, i32, i32) {
    %c0_i32 = arith.constant 0 : i32
    %c0_i32_0 = arith.constant 0 : i32
    %c0_i32_1 = arith.constant 0 : i32
    %c0_i32_2 = arith.constant 0 : i32
    return %c0_i32, %c0_i32_0, %c0_i32_1 : i32, i32, i32
  }
  func.func @transform_4(%arg0: i32) -> (i32, i32, i32, i32) {
    %c0_i32 = arith.constant 0 : i32
    %c0_i32_0 = arith.constant 0 : i32
    %c0_i32_1 = arith.constant 0 : i32
    %c0_i32_2 = arith.constant 0 : i32
    return %arg0, %c0_i32, %c0_i32_0, %c0_i32_1 : i32, i32, i32, i32
  }
}

module attributes {stable_mosaic.version = 11 : i64} {
  func.func @_vq_kernel(%arg0: i32, %arg1: memref<8x16xf32, #tpu.memory_space<vmem>>, %arg2: memref<32x16xf32, #tpu.memory_space<vmem>>, %arg3: memref<8x16xf32, #tpu.memory_space<vmem>>, %arg4: memref<1x1xf32, #tpu.memory_space<vmem>>, %arg5: memref<1x1xf32, #tpu.memory_space<vmem>>, %arg6: memref<1x32xf32, #tpu.memory_space<vmem>>, %arg7: memref<1x1xf32, #tpu.memory_space<vmem>>) attributes {dimension_semantics = [#tpu.dimension_semantics<arbitrary>], iteration_bounds = array<i64: 1>, scalar_prefetch = 0 : i64, scratch_operands = 2 : i64, tpu.core_type = #tpu.core_type<tc>, window_params = [{transform_indices = @transform_0, window_bounds = array<i64: 8, 16>}, {pipeline_mode = #tpu.pipeline_mode<synchronous>, transform_indices = @transform_1, window_bounds = array<i64: 32, 16>}, {transform_indices = @transform_2, window_bounds = array<i64: 8, 16>}, {pipeline_mode = #tpu.pipeline_mode<synchronous>, transform_indices = @transform_3, window_bounds = array<i64: 1, 1>}, {pipeline_mode = #tpu.pipeline_mode<synchronous>, transform_indices = @transform_4, window_bounds = array<i64: 1, 1>}]} {
    %c0_i32 = arith.constant 0 : i32
    %0 = arith.cmpi eq, %arg0, %c0_i32 : i32
    %1 = arith.extui %0 : i1 to i32
    %c0_i32_0 = arith.constant 0 : i32
    %2 = arith.cmpi ne, %1, %c0_i32_0 : i32
    scf.if %2 {
      %cst_27 = arith.constant 0.000000e+00 : f32
      %61 = vector.broadcast %cst_27 : f32 to vector<1x32xf32>
      %c0_28 = arith.constant 0 : index
      %c0_29 = arith.constant 0 : index
      %62 = vector.load %arg6[%c0_28, %c0_29] : memref<1x32xf32, #tpu.memory_space<vmem>>, vector<1x32xf32>
      tpu.vector_store %arg6[%c0_28, %c0_29], %61 {strides = array<i32>} : memref<1x32xf32, #tpu.memory_space<vmem>>, vector<1x32xf32>,
      %cst_30 = arith.constant 0.000000e+00 : f32
      %63 = vector.broadcast %cst_30 : f32 to vector<1x1xf32>
      %c0_31 = arith.constant 0 : index
      %c0_32 = arith.constant 0 : index
      %64 = vector.load %arg7[%c0_31, %c0_32] : memref<1x1xf32, #tpu.memory_space<vmem>>, vector<1x1xf32>
      tpu.vector_store %arg7[%c0_31, %c0_32], %63 {strides = array<i32>} : memref<1x1xf32, #tpu.memory_space<vmem>>, vector<1x1xf32>,
    } else {
    }
    %c0 = arith.constant 0 : index
    %c0_1 = arith.constant 0 : index
    %3 = vector.load %arg1[%c0, %c0_1] : memref<8x16xf32, #tpu.memory_space<vmem>>, vector<8x16xf32>
    %c0_2 = arith.constant 0 : index
    %c0_3 = arith.constant 0 : index
    %4 = vector.load %arg2[%c0_2, %c0_3] : memref<32x16xf32, #tpu.memory_space<vmem>>, vector<32x16xf32>
    %5 = arith.mulf %3, %3 : vector<8x16xf32>
    %cst = arith.constant dense<0.000000e+00> : vector<8xf32>
    %6 = vector.multi_reduction <add>, %5, %cst [1] : vector<8x16xf32> to vector<8xf32>
    %7 = vector.shape_cast %6 : vector<8xf32> to vector<8x1xf32>
    %8 = arith.mulf %4, %4 : vector<32x16xf32>
    %cst_4 = arith.constant dense<0.000000e+00> : vector<32xf32>
    %9 = vector.multi_reduction <add>, %8, %cst_4 [1] : vector<32x16xf32> to vector<32xf32>
    %10 = vector.shape_cast %9 : vector<32xf32> to vector<32x1xf32>
    %11 = tpu.transpose %10, [1, 0] : vector<32x1xf32> -> vector<1x32xf32>
    %12 = tpu.transpose %4, [1, 0] : vector<32x16xf32> -> vector<16x32xf32>
    %cst_5 = arith.constant dense<0.000000e+00> : vector<8x32xf32>
    %13 = tpu.matmul %3, %12, %cst_5 {dimension_numbers = #tpu.dot_dimension_numbers<[1], [0], [0], [1], [0, 0, 1, 1], [], []>} : vector<8x16xf32>, vector<16x32xf32>, vector<8x32xf32> -> vector<8x32xf32>
    %cst_6 = arith.constant 2.000000e+00 : f32
    %14 = vector.broadcast %cst_6 : f32 to vector<8x32xf32>
    %15 = arith.mulf %14, %13 : vector<8x32xf32>
    %16 = vector.broadcast %7 : vector<8x1xf32> to vector<8x32xf32>
    %17 = arith.subf %16, %15 : vector<8x32xf32>
    %18 = vector.broadcast %11 : vector<1x32xf32> to vector<8x32xf32>
    %19 = arith.addf %17, %18 : vector<8x32xf32>
    %cst_7 = arith.constant dense<0x7F800000> : vector<8xf32>
    %20 = vector.multi_reduction <minimumf>, %19, %cst_7 [1] : vector<8x32xf32> to vector<8xf32>
    %21 = vector.shape_cast %20 : vector<8xf32> to vector<8x1xf32>
    %22 = tpu.iota {dimensions = array<i32: 1>} : vector<8x32xi32>
    %23 = vector.broadcast %21 : vector<8x1xf32> to vector<8x32xf32>
    %24 = arith.cmpf oeq, %19, %23 : vector<8x32xf32>
    %c32_i32 = arith.constant 32 : i32
    %25 = vector.broadcast %c32_i32 : i32 to vector<8x32xi32>
    %26 = arith.select %24, %22, %25 : vector<8x32xi1>, vector<8x32xi32>
    %cst_8 = arith.constant dense<2147483647> : vector<8xi32>
    %27 = vector.multi_reduction <minsi>, %26, %cst_8 [1] : vector<8x32xi32> to vector<8xi32>
    %28 = vector.shape_cast %27 : vector<8xi32> to vector<8x1xi32>
    %29 = tpu.iota {dimensions = array<i32: 0>} : vector<8x32xi32>
    %c8_i32 = arith.constant 8 : i32
    %30 = arith.muli %arg0, %c8_i32 : i32
    %31 = vector.broadcast %30 : i32 to vector<8x32xi32>
    %32 = arith.addi %29, %31 : vector<8x32xi32>
    %c8_i32_9 = arith.constant 8 : i32
    %33 = vector.broadcast %c8_i32_9 : i32 to vector<8x32xi32>
    %34 = arith.cmpi slt, %32, %33 : vector<8x32xi32>
    %35 = vector.broadcast %28 : vector<8x1xi32> to vector<8x32xi32>
    %36 = arith.cmpi eq, %22, %35 : vector<8x32xi32>
    %37 = arith.andi %36, %34 : vector<8x32xi1>
    %cst_10 = arith.constant 1.000000e+00 : f32
    %cst_11 = arith.constant 0.000000e+00 : f32
    %38 = vector.broadcast %cst_10 : f32 to vector<8x32xf32>
    %39 = vector.broadcast %cst_11 : f32 to vector<8x32xf32>
    %40 = arith.select %37, %38, %39 : vector<8x32xi1>, vector<8x32xf32>
    %cst_12 = arith.constant dense<0.000000e+00> : vector<8x16xf32>
    %41 = tpu.matmul %40, %4, %cst_12 {dimension_numbers = #tpu.dot_dimension_numbers<[1], [0], [0], [1], [0, 0, 1, 1], [], []>} : vector<8x32xf32>, vector<32x16xf32>, vector<8x16xf32> -> vector<8x16xf32>
    %c0_13 = arith.constant 0 : index
    %c0_14 = arith.constant 0 : index
    %42 = vector.load %arg3[%c0_13, %c0_14] : memref<8x16xf32, #tpu.memory_space<vmem>>, vector<8x16xf32>
    tpu.vector_store %arg3[%c0_13, %c0_14], %41 {strides = array<i32>} : memref<8x16xf32, #tpu.memory_space<vmem>>, vector<8x16xf32>,
    %c0_15 = arith.constant 0 : index
    %c0_16 = arith.constant 0 : index
    %43 = vector.load %arg6[%c0_15, %c0_16] : memref<1x32xf32, #tpu.memory_space<vmem>>, vector<1x32xf32>
    %cst_17 = arith.constant dense<0.000000e+00> : vector<32xf32>
    %44 = vector.multi_reduction <add>, %40, %cst_17 [0] : vector<8x32xf32> to vector<32xf32>
    %45 = vector.shape_cast %44 : vector<32xf32> to vector<1x32xf32>
    %46 = arith.addf %43, %45 : vector<1x32xf32>
    %c0_18 = arith.constant 0 : index
    %c0_19 = arith.constant 0 : index
    %47 = vector.load %arg6[%c0_18, %c0_19] : memref<1x32xf32, #tpu.memory_space<vmem>>, vector<1x32xf32>
    tpu.vector_store %arg6[%c0_18, %c0_19], %46 {strides = array<i32>} : memref<1x32xf32, #tpu.memory_space<vmem>>, vector<1x32xf32>,
    %c0_20 = arith.constant 0 : index
    %c0_21 = arith.constant 0 : index
    %48 = vector.load %arg7[%c0_20, %c0_21] : memref<1x1xf32, #tpu.memory_space<vmem>>, vector<1x1xf32>
    %49 = arith.subf %3, %41 : vector<8x16xf32>
    %50 = arith.mulf %49, %49 : vector<8x16xf32>
    %51 = vector.shape_cast %50 : vector<8x16xf32> to vector<1x8x16xf32>
    %cst_22 = arith.constant dense<0.000000e+00> : vector<1xf32>
    %52 = vector.multi_reduction <add>, %51, %cst_22 [1, 2] : vector<1x8x16xf32> to vector<1xf32>
    %53 = vector.shape_cast %52 : vector<1xf32> to vector<1x1x1xf32>
    %54 = vector.extract %53[0, 0, 0] : f32 from vector<1x1x1xf32>
    %55 = vector.broadcast %54 : f32 to vector<1x1xf32>
    %56 = arith.addf %48, %55 : vector<1x1xf32>
    %c0_23 = arith.constant 0 : index
    %c0_24 = arith.constant 0 : index
    %57 = vector.load %arg7[%c0_23, %c0_24] : memref<1x1xf32, #tpu.memory_space<vmem>>, vector<1x1xf32>
    tpu.vector_store %arg7[%c0_23, %c0_24], %56 {strides = array<i32>} : memref<1x1xf32, #tpu.memory_space<vmem>>, vector<1x1xf32>,
    %c0_i32_25 = arith.constant 0 : i32
    %58 = arith.cmpi eq, %arg0, %c0_i32_25 : i32
    %59 = arith.extui %58 : i1 to i32
    %c0_i32_26 = arith.constant 0 : i32
    %60 = arith.cmpi ne, %59, %c0_i32_26 : i32
    scf.if %60 {
      %c0_27 = arith.constant 0 : index
      %c0_28 = arith.constant 0 : index
      %61 = vector.load %arg7[%c0_27, %c0_28] : memref<1x1xf32, #tpu.memory_space<vmem>>, vector<1x1xf32>
      %cst_29 = arith.constant 1.280000e+02 : f32
      %62 = vector.broadcast %cst_29 : f32 to vector<1x1xf32>
      %63 = arith.divf %61, %62 : vector<1x1xf32>
      %c0_30 = arith.constant 0 : index
      %c0_31 = arith.constant 0 : index
      %64 = vector.load %arg4[%c0_30, %c0_31] : memref<1x1xf32, #tpu.memory_space<vmem>>, vector<1x1xf32>
      tpu.vector_store %arg4[%c0_30, %c0_31], %63 {strides = array<i32>} : memref<1x1xf32, #tpu.memory_space<vmem>>, vector<1x1xf32>,
      %c0_32 = arith.constant 0 : index
      %c0_33 = arith.constant 0 : index
      %65 = vector.load %arg6[%c0_32, %c0_33] : memref<1x32xf32, #tpu.memory_space<vmem>>, vector<1x32xf32>
      %66 = vector.shape_cast %65 : vector<1x32xf32> to vector<1x1x32xf32>
      %cst_34 = arith.constant dense<0.000000e+00> : vector<1xf32>
      %67 = vector.multi_reduction <add>, %66, %cst_34 [1, 2] : vector<1x1x32xf32> to vector<1xf32>
      %68 = vector.shape_cast %67 : vector<1xf32> to vector<1x1x1xf32>
      %69 = vector.extract %68[0, 0, 0] : f32 from vector<1x1x1xf32>
      %70 = vector.broadcast %69 : f32 to vector<1x32xf32>
      %71 = arith.divf %65, %70 : vector<1x32xf32>
      %cst_35 = arith.constant 1.000000e-07 : f32
      %72 = vector.broadcast %cst_35 : f32 to vector<1x32xf32>
      %73 = arith.addf %71, %72 : vector<1x32xf32>
      %74 = math.log %73 : vector<1x32xf32>
      %75 = arith.mulf %71, %74 : vector<1x32xf32>
      %76 = vector.shape_cast %75 : vector<1x32xf32> to vector<1x1x32xf32>
      %cst_36 = arith.constant dense<0.000000e+00> : vector<1xf32>
      %77 = vector.multi_reduction <add>, %76, %cst_36 [1, 2] : vector<1x1x32xf32> to vector<1xf32>
      %78 = vector.shape_cast %77 : vector<1xf32> to vector<1x1x1xf32>
      %79 = vector.extract %78[0, 0, 0] : f32 from vector<1x1x1xf32>
      %cst_37 = arith.constant 0.000000e+00 : f32
      %80 = arith.subf %cst_37, %79 : f32
      %81 = math.exp %80 : f32
      %82 = vector.broadcast %81 : f32 to vector<1x1xf32>
      %c0_38 = arith.constant 0 : index
      %c0_39 = arith.constant 0 : index
      %83 = vector.load %arg5[%c0_38, %c0_39] : memref<1x1xf32, #tpu.memory_space<vmem>>, vector<1x1xf32>
      tpu.vector_store %arg5[%c0_38, %c0_39], %82 {strides = array<i32>} : memref<1x1xf32, #tpu.memory_space<vmem>>, vector<1x1xf32>,
    } else {
    }
    return
  }
  func.func @transform_0(%arg0: i32) -> (i32, i32) {
    %c0_i32 = arith.constant 0 : i32
    %c0_i32_0 = arith.constant 0 : i32
    return %arg0, %c0_i32 : i32, i32
  }
  func.func @transform_1(%arg0: i32) -> (i32, i32) {
    %c0_i32 = arith.constant 0 : i32
    %c0_i32_0 = arith.constant 0 : i32
    %c0_i32_1 = arith.constant 0 : i32
    return %c0_i32, %c0_i32_0 : i32, i32
  }
  func.func @transform_2(%arg0: i32) -> (i32, i32) {
    %c0_i32 = arith.constant 0 : i32
    %c0_i32_0 = arith.constant 0 : i32
    return %arg0, %c0_i32 : i32, i32
  }
  func.func @transform_3(%arg0: i32) -> (i32, i32) {
    %c0_i32 = arith.constant 0 : i32
    %c0_i32_0 = arith.constant 0 : i32
    %c0_i32_1 = arith.constant 0 : i32
    return %c0_i32, %c0_i32_0 : i32, i32
  }
  func.func @transform_4(%arg0: i32) -> (i32, i32) {
    %c0_i32 = arith.constant 0 : i32
    %c0_i32_0 = arith.constant 0 : i32
    %c0_i32_1 = arith.constant 0 : i32
    return %c0_i32, %c0_i32_0 : i32, i32
  }
}

module attributes {stable_mosaic.version = 11 : i64} {
  func.func @_dense_kernel(%arg0: i32, %arg1: memref<8x16xf32, #tpu.memory_space<vmem>>, %arg2: memref<16x32xbf16, #tpu.memory_space<vmem>>, %arg3: memref<1x32xf32, #tpu.memory_space<vmem>>, %arg4: memref<8x32xf32, #tpu.memory_space<vmem>>) attributes {dimension_semantics = [#tpu.dimension_semantics<parallel>], iteration_bounds = array<i64: 1>, scalar_prefetch = 0 : i64, scratch_operands = 0 : i64, tpu.core_type = #tpu.core_type<tc>, window_params = [{transform_indices = @transform_0, window_bounds = array<i64: 8, 16>}, {pipeline_mode = #tpu.pipeline_mode<synchronous>, transform_indices = @transform_1, window_bounds = array<i64: 16, 32>}, {pipeline_mode = #tpu.pipeline_mode<synchronous>, transform_indices = @transform_2, window_bounds = array<i64: 1, 32>}, {transform_indices = @transform_3, window_bounds = array<i64: 8, 32>}]} {
    %c0 = arith.constant 0 : index
    %c0_0 = arith.constant 0 : index
    %0 = vector.load %arg1[%c0, %c0_0] : memref<8x16xf32, #tpu.memory_space<vmem>>, vector<8x16xf32>
    %1 = arith.truncf %0 : vector<8x16xf32> to vector<8x16xbf16>
    %c0_1 = arith.constant 0 : index
    %c0_2 = arith.constant 0 : index
    %2 = vector.load %arg2[%c0_1, %c0_2] : memref<16x32xbf16, #tpu.memory_space<vmem>>, vector<16x32xbf16>
    %cst = arith.constant dense<0.000000e+00> : vector<8x32xf32>
    %3 = tpu.matmul %1, %2, %cst {dimension_numbers = #tpu.dot_dimension_numbers<[1], [0], [0], [1], [0, 0, 1, 1], [], []>} : vector<8x16xbf16>, vector<16x32xbf16>, vector<8x32xf32> -> vector<8x32xf32>
    %c0_3 = arith.constant 0 : index
    %c0_4 = arith.constant 0 : index
    %4 = vector.load %arg3[%c0_3, %c0_4] : memref<1x32xf32, #tpu.memory_space<vmem>>, vector<1x32xf32>
    %5 = vector.broadcast %4 : vector<1x32xf32> to vector<8x32xf32>
    %6 = arith.addf %3, %5 : vector<8x32xf32>
    %c0_5 = arith.constant 0 : index
    %c0_6 = arith.constant 0 : index
    %7 = vector.load %arg4[%c0_5, %c0_6] : memref<8x32xf32, #tpu.memory_space<vmem>>, vector<8x32xf32>
    tpu.vector_store %arg4[%c0_5, %c0_6], %6 {strides = array<i32>} : memref<8x32xf32, #tpu.memory_space<vmem>>, vector<8x32xf32>,
    return
  }
  func.func @transform_0(%arg0: i32) -> (i32, i32) {
    %c0_i32 = arith.constant 0 : i32
    %c0_i32_0 = arith.constant 0 : i32
    return %arg0, %c0_i32 : i32, i32
  }
  func.func @transform_1(%arg0: i32) -> (i32, i32) {
    %c0_i32 = arith.constant 0 : i32
    %c0_i32_0 = arith.constant 0 : i32
    %c0_i32_1 = arith.constant 0 : i32
    return %c0_i32, %c0_i32_0 : i32, i32
  }
  func.func @transform_2(%arg0: i32) -> (i32, i32) {
    %c0_i32 = arith.constant 0 : i32
    %c0_i32_0 = arith.constant 0 : i32
    %c0_i32_1 = arith.constant 0 : i32
    return %c0_i32, %c0_i32_0 : i32, i32
  }
  func.func @transform_3(%arg0: i32) -> (i32, i32) {
    %c0_i32 = arith.constant 0 : i32
    %c0_i32_0 = arith.constant 0 : i32
    return %arg0, %c0_i32 : i32, i32
  }
}

module attributes {stable_mosaic.version = 11 : i64} {
  func.func @_dense_kernel(%arg0: i32, %arg1: memref<32x32xf32, #tpu.memory_space<vmem>>, %arg2: memref<32x32xbf16, #tpu.memory_space<vmem>>, %arg3: memref<1x32xf32, #tpu.memory_space<vmem>>, %arg4: memref<32x32xf32, #tpu.memory_space<vmem>>) attributes {dimension_semantics = [#tpu.dimension_semantics<parallel>], iteration_bounds = array<i64: 1>, scalar_prefetch = 0 : i64, scratch_operands = 0 : i64, tpu.core_type = #tpu.core_type<tc>, window_params = [{transform_indices = @transform_0, window_bounds = array<i64: 32, 32>}, {pipeline_mode = #tpu.pipeline_mode<synchronous>, transform_indices = @transform_1, window_bounds = array<i64: 32, 32>}, {pipeline_mode = #tpu.pipeline_mode<synchronous>, transform_indices = @transform_2, window_bounds = array<i64: 1, 32>}, {transform_indices = @transform_3, window_bounds = array<i64: 32, 32>}]} {
    %c0 = arith.constant 0 : index
    %c0_0 = arith.constant 0 : index
    %0 = vector.load %arg1[%c0, %c0_0] : memref<32x32xf32, #tpu.memory_space<vmem>>, vector<32x32xf32>
    %1 = arith.truncf %0 : vector<32x32xf32> to vector<32x32xbf16>
    %c0_1 = arith.constant 0 : index
    %c0_2 = arith.constant 0 : index
    %2 = vector.load %arg2[%c0_1, %c0_2] : memref<32x32xbf16, #tpu.memory_space<vmem>>, vector<32x32xbf16>
    %cst = arith.constant dense<0.000000e+00> : vector<32x32xf32>
    %3 = tpu.matmul %1, %2, %cst {dimension_numbers = #tpu.dot_dimension_numbers<[1], [0], [0], [1], [0, 0, 1, 1], [], []>} : vector<32x32xbf16>, vector<32x32xbf16>, vector<32x32xf32> -> vector<32x32xf32>
    %c0_3 = arith.constant 0 : index
    %c0_4 = arith.constant 0 : index
    %4 = vector.load %arg3[%c0_3, %c0_4] : memref<1x32xf32, #tpu.memory_space<vmem>>, vector<1x32xf32>
    %5 = vector.broadcast %4 : vector<1x32xf32> to vector<32x32xf32>
    %6 = arith.addf %3, %5 : vector<32x32xf32>
    %c0_5 = arith.constant 0 : index
    %c0_6 = arith.constant 0 : index
    %7 = vector.load %arg4[%c0_5, %c0_6] : memref<32x32xf32, #tpu.memory_space<vmem>>, vector<32x32xf32>
    tpu.vector_store %arg4[%c0_5, %c0_6], %6 {strides = array<i32>} : memref<32x32xf32, #tpu.memory_space<vmem>>, vector<32x32xf32>,
    return
  }
  func.func @transform_0(%arg0: i32) -> (i32, i32) {
    %c0_i32 = arith.constant 0 : i32
    %c0_i32_0 = arith.constant 0 : i32
    return %arg0, %c0_i32 : i32, i32
  }
  func.func @transform_1(%arg0: i32) -> (i32, i32) {
    %c0_i32 = arith.constant 0 : i32
    %c0_i32_0 = arith.constant 0 : i32
    %c0_i32_1 = arith.constant 0 : i32
    return %c0_i32, %c0_i32_0 : i32, i32
  }
  func.func @transform_2(%arg0: i32) -> (i32, i32) {
    %c0_i32 = arith.constant 0 : i32
    %c0_i32_0 = arith.constant 0 : i32
    %c0_i32_1 = arith.constant 0 : i32
    return %c0_i32, %c0_i32_0 : i32, i32
  }
  func.func @transform_3(%arg0: i32) -> (i32, i32) {
    %c0_i32 = arith.constant 0 : i32
    %c0_i32_0 = arith.constant 0 : i32
    return %arg0, %c0_i32 : i32, i32
  }
}

module attributes {stable_mosaic.version = 11 : i64} {
  func.func @_dense_kernel(%arg0: i32, %arg1: memref<32x32xf32, #tpu.memory_space<vmem>>, %arg2: memref<32x96xbf16, #tpu.memory_space<vmem>>, %arg3: memref<1x96xf32, #tpu.memory_space<vmem>>, %arg4: memref<32x96xf32, #tpu.memory_space<vmem>>) attributes {dimension_semantics = [#tpu.dimension_semantics<parallel>], iteration_bounds = array<i64: 1>, scalar_prefetch = 0 : i64, scratch_operands = 0 : i64, tpu.core_type = #tpu.core_type<tc>, window_params = [{transform_indices = @transform_0, window_bounds = array<i64: 32, 32>}, {pipeline_mode = #tpu.pipeline_mode<synchronous>, transform_indices = @transform_1, window_bounds = array<i64: 32, 96>}, {pipeline_mode = #tpu.pipeline_mode<synchronous>, transform_indices = @transform_2, window_bounds = array<i64: 1, 96>}, {transform_indices = @transform_3, window_bounds = array<i64: 32, 96>}]} {
    %c0 = arith.constant 0 : index
    %c0_0 = arith.constant 0 : index
    %0 = vector.load %arg1[%c0, %c0_0] : memref<32x32xf32, #tpu.memory_space<vmem>>, vector<32x32xf32>
    %1 = arith.truncf %0 : vector<32x32xf32> to vector<32x32xbf16>
    %c0_1 = arith.constant 0 : index
    %c0_2 = arith.constant 0 : index
    %2 = vector.load %arg2[%c0_1, %c0_2] : memref<32x96xbf16, #tpu.memory_space<vmem>>, vector<32x96xbf16>
    %cst = arith.constant dense<0.000000e+00> : vector<32x96xf32>
    %3 = tpu.matmul %1, %2, %cst {dimension_numbers = #tpu.dot_dimension_numbers<[1], [0], [0], [1], [0, 0, 1, 1], [], []>} : vector<32x32xbf16>, vector<32x96xbf16>, vector<32x96xf32> -> vector<32x96xf32>
    %c0_3 = arith.constant 0 : index
    %c0_4 = arith.constant 0 : index
    %4 = vector.load %arg3[%c0_3, %c0_4] : memref<1x96xf32, #tpu.memory_space<vmem>>, vector<1x96xf32>
    %5 = vector.broadcast %4 : vector<1x96xf32> to vector<32x96xf32>
    %6 = arith.addf %3, %5 : vector<32x96xf32>
    %c0_5 = arith.constant 0 : index
    %c0_6 = arith.constant 0 : index
    %7 = vector.load %arg4[%c0_5, %c0_6] : memref<32x96xf32, #tpu.memory_space<vmem>>, vector<32x96xf32>
    tpu.vector_store %arg4[%c0_5, %c0_6], %6 {strides = array<i32>} : memref<32x96xf32, #tpu.memory_space<vmem>>, vector<32x96xf32>,
    return
  }
  func.func @transform_0(%arg0: i32) -> (i32, i32) {
    %c0_i32 = arith.constant 0 : i32
    %c0_i32_0 = arith.constant 0 : i32
    return %arg0, %c0_i32 : i32, i32
  }
  func.func @transform_1(%arg0: i32) -> (i32, i32) {
    %c0_i32 = arith.constant 0 : i32
    %c0_i32_0 = arith.constant 0 : i32
    %c0_i32_1 = arith.constant 0 : i32
    return %c0_i32, %c0_i32_0 : i32, i32
  }
  func.func @transform_2(%arg0: i32) -> (i32, i32) {
    %c0_i32 = arith.constant 0 : i32
    %c0_i32_0 = arith.constant 0 : i32
    %c0_i32_1 = arith.constant 0 : i32
    return %c0_i32, %c0_i32_0 : i32, i32
  }
  func.func @transform_3(%arg0: i32) -> (i32, i32) {
    %c0_i32 = arith.constant 0 : i32
    %c0_i32_0 = arith.constant 0 : i32
    return %arg0, %c0_i32 : i32, i32
  }
}

module attributes {stable_mosaic.version = 11 : i64} {
  func.func @_attn_kernel(%arg0: i32, %arg1: memref<1x4x16x8xf32, #tpu.memory_space<vmem>>, %arg2: memref<1x4x16x8xf32, #tpu.memory_space<vmem>>, %arg3: memref<1x4x16x8xf32, #tpu.memory_space<vmem>>, %arg4: memref<4x16x16xf32, #tpu.memory_space<vmem>>, %arg5: memref<1x4x16x8xf32, #tpu.memory_space<vmem>>) attributes {dimension_semantics = [#tpu.dimension_semantics<parallel>], iteration_bounds = array<i64: 2>, scalar_prefetch = 0 : i64, scratch_operands = 0 : i64, tpu.core_type = #tpu.core_type<tc>, window_params = [{transform_indices = @transform_0, window_bounds = array<i64: 1, 4, 16, 8>}, {transform_indices = @transform_1, window_bounds = array<i64: 1, 4, 16, 8>}, {transform_indices = @transform_2, window_bounds = array<i64: 1, 4, 16, 8>}, {pipeline_mode = #tpu.pipeline_mode<synchronous>, transform_indices = @transform_3, window_bounds = array<i64: 4, 16, 16>}, {transform_indices = @transform_4, window_bounds = array<i64: 1, 4, 16, 8>}]} {
    %c0 = arith.constant 0 : index
    %c0_0 = arith.constant 0 : index
    %c0_1 = arith.constant 0 : index
    %c0_2 = arith.constant 0 : index
    %0 = vector.load %arg1[%c0, %c0_0, %c0_1, %c0_2] : memref<1x4x16x8xf32, #tpu.memory_space<vmem>>, vector<1x4x16x8xf32>
    %1 = vector.shape_cast %0 : vector<1x4x16x8xf32> to vector<4x16x8xf32>
    %2 = arith.truncf %1 : vector<4x16x8xf32> to vector<4x16x8xbf16>
    %c0_3 = arith.constant 0 : index
    %c0_4 = arith.constant 0 : index
    %c0_5 = arith.constant 0 : index
    %c0_6 = arith.constant 0 : index
    %3 = vector.load %arg2[%c0_3, %c0_4, %c0_5, %c0_6] : memref<1x4x16x8xf32, #tpu.memory_space<vmem>>, vector<1x4x16x8xf32>
    %4 = vector.shape_cast %3 : vector<1x4x16x8xf32> to vector<4x16x8xf32>
    %5 = arith.truncf %4 : vector<4x16x8xf32> to vector<4x16x8xbf16>
    %c0_7 = arith.constant 0 : index
    %c0_8 = arith.constant 0 : index
    %c0_9 = arith.constant 0 : index
    %c0_10 = arith.constant 0 : index
    %6 = vector.load %arg3[%c0_7, %c0_8, %c0_9, %c0_10] : memref<1x4x16x8xf32, #tpu.memory_space<vmem>>, vector<1x4x16x8xf32>
    %7 = vector.shape_cast %6 : vector<1x4x16x8xf32> to vector<4x16x8xf32>
    %8 = arith.truncf %7 : vector<4x16x8xf32> to vector<4x16x8xbf16>
    "tpu.trace_start"() <{level = 10 : i32, message = "hqd,hkd->hqk"}> : () -> ()
    %cst = arith.constant dense<0.000000e+00> : vector<4x16x16xf32>
    %9 = tpu.matmul %2, %5, %cst {dimension_numbers = #tpu.dot_dimension_numbers<[2], [2], [1], [1], [0, 0, 0, 1, 1, 1], [0], [0]>} : vector<4x16x8xbf16>, vector<4x16x8xbf16>, vector<4x16x16xf32> -> vector<4x16x16xf32>
    "tpu.trace_stop"() : () -> ()
    %cst_11 = arith.constant 0.353553385 : f32
    %10 = vector.broadcast %cst_11 : f32 to vector<4x16x16xf32>
    %11 = arith.mulf %9, %10 : vector<4x16x16xf32>
    %c0_12 = arith.constant 0 : index
    %c0_13 = arith.constant 0 : index
    %c0_14 = arith.constant 0 : index
    %12 = vector.load %arg4[%c0_12, %c0_13, %c0_14] : memref<4x16x16xf32, #tpu.memory_space<vmem>>, vector<4x16x16xf32>
    %13 = arith.addf %11, %12 : vector<4x16x16xf32>
    %cst_15 = arith.constant dense<0xFF800000> : vector<4x16xf32>
    %14 = vector.multi_reduction <maximumf>, %13, %cst_15 [2] : vector<4x16x16xf32> to vector<4x16xf32>
    %15 = vector.shape_cast %14 : vector<4x16xf32> to vector<4x16x1xf32>
    %16 = vector.broadcast %15 : vector<4x16x1xf32> to vector<4x16x16xf32>
    %17 = arith.subf %13, %16 : vector<4x16x16xf32>
    %18 = math.exp %17 : vector<4x16x16xf32>
    %cst_16 = arith.constant dense<0.000000e+00> : vector<4x16xf32>
    %19 = vector.multi_reduction <add>, %18, %cst_16 [2] : vector<4x16x16xf32> to vector<4x16xf32>
    %20 = vector.shape_cast %19 : vector<4x16xf32> to vector<4x16x1xf32>
    %21 = tpu.reciprocal %20 {approx = true} : vector<4x16x1xf32> -> vector<4x16x1xf32>
    %22 = vector.broadcast %21 : vector<4x16x1xf32> to vector<4x16x16xf32>
    %23 = arith.mulf %18, %22 : vector<4x16x16xf32>
    %24 = arith.truncf %23 : vector<4x16x16xf32> to vector<4x16x16xbf16>
    "tpu.trace_start"() <{level = 10 : i32, message = "hqk,hkd->hqd"}> : () -> ()
    %cst_17 = arith.constant dense<0.000000e+00> : vector<4x16x8xf32>
    %25 = tpu.matmul %24, %8, %cst_17 {dimension_numbers = #tpu.dot_dimension_numbers<[2], [1], [1], [2], [0, 0, 0, 1, 1, 2], [0], [0]>} : vector<4x16x16xbf16>, vector<4x16x8xbf16>, vector<4x16x8xf32> -> vector<4x16x8xf32>
    "tpu.trace_stop"() : () -> ()
    %c0_18 = arith.constant 0 : index
    %c0_19 = arith.constant 0 : index
    %c0_20 = arith.constant 0 : index
    %c0_21 = arith.constant 0 : index
    %26 = vector.load %arg5[%c0_18, %c0_19, %c0_20, %c0_21] : memref<1x4x16x8xf32, #tpu.memory_space<vmem>>, vector<1x4x16x8xf32>
    %27 = vector.shape_cast %26 : vector<1x4x16x8xf32> to vector<4x16x8xf32>
    %28 = vector.shape_cast %25 : vector<4x16x8xf32> to vector<1x4x16x8xf32>
    tpu.vector_store %arg5[%c0_18, %c0_19, %c0_20, %c0_21], %28 {strides = array<i32>} : memref<1x4x16x8xf32, #tpu.memory_space<vmem>>, vector<1x4x16x8xf32>,
    return
  }
  func.func @transform_0(%arg0: i32) -> (i32, i32, i32, i32) {
    %c0_i32 = arith.constant 0 : i32
    %c0_i32_0 = arith.constant 0 : i32
    %c0_i32_1 = arith.constant 0 : i32
    %c0_i32_2 = arith.constant 0 : i32
    return %arg0, %c0_i32, %c0_i32_0, %c0_i32_1 : i32, i32, i32, i32
  }
  func.func @transform_1(%arg0: i32) -> (i32, i32, i32, i32) {
    %c0_i32 = arith.constant 0 : i32
    %c0_i32_0 = arith.constant 0 : i32
    %c0_i32_1 = arith.constant 0 : i32
    %c0_i32_2 = arith.constant 0 : i32
    return %arg0, %c0_i32, %c0_i32_0, %c0_i32_1 : i32, i32, i32, i32
  }
  func.func @transform_2(%arg0: i32) -> (i32, i32, i32, i32) {
    %c0_i32 = arith.constant 0 : i32
    %c0_i32_0 = arith.constant 0 : i32
    %c0_i32_1 = arith.constant 0 : i32
    %c0_i32_2 = arith.constant 0 : i32
    return %arg0, %c0_i32, %c0_i32_0, %c0_i32_1 : i32, i32, i32, i32
  }
  func.func @transform_3(%arg0: i32) -> (i32, i32, i32) {
    %c0_i32 = arith.constant 0 : i32
    %c0_i32_0 = arith.constant 0 : i32
    %c0_i32_1 = arith.constant 0 : i32
    %c0_i32_2 = arith.constant 0 : i32
    return %c0_i32, %c0_i32_0, %c0_i32_1 : i32, i32, i32
  }
  func.func @transform_4(%arg0: i32) -> (i32, i32, i32, i32) {
    %c0_i32 = arith.constant 0 : i32
    %c0_i32_0 = arith.constant 0 : i32
    %c0_i32_1 = arith.constant 0 : i32
    %c0_i32_2 = arith.constant 0 : i32
    return %arg0, %c0_i32, %c0_i32_0, %c0_i32_1 : i32, i32, i32, i32
  }
}

module attributes {stable_mosaic.version = 11 : i64} {
  func.func @_ffn_res_ln_kernel(%arg0: i32, %arg1: memref<32x32xf32, #tpu.memory_space<vmem>>, %arg2: memref<32x64xbf16, #tpu.memory_space<vmem>>, %arg3: memref<1x64xf32, #tpu.memory_space<vmem>>, %arg4: memref<64x32xbf16, #tpu.memory_space<vmem>>, %arg5: memref<1x32xf32, #tpu.memory_space<vmem>>, %arg6: memref<1x32xf32, #tpu.memory_space<vmem>>, %arg7: memref<1x32xf32, #tpu.memory_space<vmem>>, %arg8: memref<32x32xf32, #tpu.memory_space<vmem>>) attributes {dimension_semantics = [#tpu.dimension_semantics<parallel>], iteration_bounds = array<i64: 1>, scalar_prefetch = 0 : i64, scratch_operands = 0 : i64, tpu.core_type = #tpu.core_type<tc>, window_params = [{transform_indices = @transform_0, window_bounds = array<i64: 32, 32>}, {pipeline_mode = #tpu.pipeline_mode<synchronous>, transform_indices = @transform_1, window_bounds = array<i64: 32, 64>}, {pipeline_mode = #tpu.pipeline_mode<synchronous>, transform_indices = @transform_2, window_bounds = array<i64: 1, 64>}, {pipeline_mode = #tpu.pipeline_mode<synchronous>, transform_indices = @transform_3, window_bounds = array<i64: 64, 32>}, {pipeline_mode = #tpu.pipeline_mode<synchronous>, transform_indices = @transform_4, window_bounds = array<i64: 1, 32>}, {pipeline_mode = #tpu.pipeline_mode<synchronous>, transform_indices = @transform_5, window_bounds = array<i64: 1, 32>}, {pipeline_mode = #tpu.pipeline_mode<synchronous>, transform_indices = @transform_6, window_bounds = array<i64: 1, 32>}, {transform_indices = @transform_7, window_bounds = array<i64: 32, 32>}]} {
    %c0 = arith.constant 0 : index
    %c0_0 = arith.constant 0 : index
    %0 = vector.load %arg1[%c0, %c0_0] : memref<32x32xf32, #tpu.memory_space<vmem>>, vector<32x32xf32>
    %1 = arith.truncf %0 : vector<32x32xf32> to vector<32x32xbf16>
    %c0_1 = arith.constant 0 : index
    %c0_2 = arith.constant 0 : index
    %2 = vector.load %arg2[%c0_1, %c0_2] : memref<32x64xbf16, #tpu.memory_space<vmem>>, vector<32x64xbf16>
    %cst = arith.constant dense<0.000000e+00> : vector<32x64xf32>
    %3 = tpu.matmul %1, %2, %cst {dimension_numbers = #tpu.dot_dimension_numbers<[1], [0], [0], [1], [0, 0, 1, 1], [], []>} : vector<32x32xbf16>, vector<32x64xbf16>, vector<32x64xf32> -> vector<32x64xf32>
    %c0_3 = arith.constant 0 : index
    %c0_4 = arith.constant 0 : index
    %4 = vector.load %arg3[%c0_3, %c0_4] : memref<1x64xf32, #tpu.memory_space<vmem>>, vector<1x64xf32>
    %5 = vector.broadcast %4 : vector<1x64xf32> to vector<32x64xf32>
    %6 = arith.addf %3, %5 : vector<32x64xf32>
    %cst_5 = arith.constant 5.000000e-01 : f32
    %7 = vector.broadcast %cst_5 : f32 to vector<32x64xf32>
    %8 = arith.mulf %7, %6 : vector<32x64xf32>
    %cst_6 = arith.constant 0.707106769 : f32
    %9 = vector.broadcast %cst_6 : f32 to vector<32x64xf32>
    %10 = arith.mulf %6, %9 : vector<32x64xf32>
    %11 = math.erf %10 : vector<32x64xf32>
    %cst_7 = arith.constant 1.000000e+00 : f32
    %12 = vector.broadcast %cst_7 : f32 to vector<32x64xf32>
    %13 = arith.addf %12, %11 : vector<32x64xf32>
    %14 = arith.mulf %8, %13 : vector<32x64xf32>
    %15 = arith.truncf %14 : vector<32x64xf32> to vector<32x64xbf16>
    %c0_8 = arith.constant 0 : index
    %c0_9 = arith.constant 0 : index
    %16 = vector.load %arg4[%c0_8, %c0_9] : memref<64x32xbf16, #tpu.memory_space<vmem>>, vector<64x32xbf16>
    %cst_10 = arith.constant dense<0.000000e+00> : vector<32x32xf32>
    %17 = tpu.matmul %15, %16, %cst_10 {dimension_numbers = #tpu.dot_dimension_numbers<[1], [0], [0], [1], [0, 0, 1, 1], [], []>} : vector<32x64xbf16>, vector<64x32xbf16>, vector<32x32xf32> -> vector<32x32xf32>
    %c0_11 = arith.constant 0 : index
    %c0_12 = arith.constant 0 : index
    %18 = vector.load %arg5[%c0_11, %c0_12] : memref<1x32xf32, #tpu.memory_space<vmem>>, vector<1x32xf32>
    %19 = vector.broadcast %18 : vector<1x32xf32> to vector<32x32xf32>
    %20 = arith.addf %17, %19 : vector<32x32xf32>
    %21 = arith.addf %0, %20 : vector<32x32xf32>
    %cst_13 = arith.constant dense<0.000000e+00> : vector<32xf32>
    %22 = vector.multi_reduction <add>, %21, %cst_13 [1] : vector<32x32xf32> to vector<32xf32>
    %23 = vector.shape_cast %22 : vector<32xf32> to vector<32x1xf32>
    %cst_14 = arith.constant 3.200000e+01 : f32
    %24 = vector.broadcast %cst_14 : f32 to vector<32x1xf32>
    %25 = arith.divf %23, %24 : vector<32x1xf32>
    %26 = vector.broadcast %25 : vector<32x1xf32> to vector<32x32xf32>
    %27 = arith.subf %21, %26 : vector<32x32xf32>
    %28 = arith.mulf %27, %27 : vector<32x32xf32>
    %cst_15 = arith.constant dense<0.000000e+00> : vector<32xf32>
    %29 = vector.multi_reduction <add>, %28, %cst_15 [1] : vector<32x32xf32> to vector<32xf32>
    %30 = vector.shape_cast %29 : vector<32xf32> to vector<32x1xf32>
    %cst_16 = arith.constant 3.200000e+01 : f32
    %31 = vector.broadcast %cst_16 : f32 to vector<32x1xf32>
    %32 = arith.divf %30, %31 : vector<32x1xf32>
    %33 = vector.broadcast %25 : vector<32x1xf32> to vector<32x32xf32>
    %34 = arith.subf %21, %33 : vector<32x32xf32>
    %cst_17 = arith.constant 9.99999974E-6 : f32
    %35 = vector.broadcast %cst_17 : f32 to vector<32x1xf32>
    %36 = arith.addf %32, %35 : vector<32x1xf32>
    %37 = math.rsqrt %36 : vector<32x1xf32>
    %38 = vector.broadcast %37 : vector<32x1xf32> to vector<32x32xf32>
    %39 = arith.mulf %34, %38 : vector<32x32xf32>
    %c0_18 = arith.constant 0 : index
    %c0_19 = arith.constant 0 : index
    %40 = vector.load %arg6[%c0_18, %c0_19] : memref<1x32xf32, #tpu.memory_space<vmem>>, vector<1x32xf32>
    %41 = vector.broadcast %40 : vector<1x32xf32> to vector<32x32xf32>
    %42 = arith.mulf %39, %41 : vector<32x32xf32>
    %c0_20 = arith.constant 0 : index
    %c0_21 = arith.constant 0 : index
    %43 = vector.load %arg7[%c0_20, %c0_21] : memref<1x32xf32, #tpu.memory_space<vmem>>, vector<1x32xf32>
    %44 = vector.broadcast %43 : vector<1x32xf32> to vector<32x32xf32>
    %45 = arith.addf %42, %44 : vector<32x32xf32>
    %c0_22 = arith.constant 0 : index
    %c0_23 = arith.constant 0 : index
    %46 = vector.load %arg8[%c0_22, %c0_23] : memref<32x32xf32, #tpu.memory_space<vmem>>, vector<32x32xf32>
    tpu.vector_store %arg8[%c0_22, %c0_23], %45 {strides = array<i32>} : memref<32x32xf32, #tpu.memory_space<vmem>>, vector<32x32xf32>,
    return
  }
  func.func @transform_0(%arg0: i32) -> (i32, i32) {
    %c0_i32 = arith.constant 0 : i32
    %c0_i32_0 = arith.constant 0 : i32
    return %arg0, %c0_i32 : i32, i32
  }
  func.func @transform_1(%arg0: i32) -> (i32, i32) {
    %c0_i32 = arith.constant 0 : i32
    %c0_i32_0 = arith.constant 0 : i32
    %c0_i32_1 = arith.constant 0 : i32
    return %c0_i32, %c0_i32_0 : i32, i32
  }
  func.func @transform_2(%arg0: i32) -> (i32, i32) {
    %c0_i32 = arith.constant 0 : i32
    %c0_i32_0 = arith.constant 0 : i32
    %c0_i32_1 = arith.constant 0 : i32
    return %c0_i32, %c0_i32_0 : i32, i32
  }
  func.func @transform_3(%arg0: i32) -> (i32, i32) {
    %c0_i32 = arith.constant 0 : i32
    %c0_i32_0 = arith.constant 0 : i32
    %c0_i32_1 = arith.constant 0 : i32
    return %c0_i32, %c0_i32_0 : i32, i32
  }
  func.func @transform_4(%arg0: i32) -> (i32, i32) {
    %c0_i32 = arith.constant 0 : i32
    %c0_i32_0 = arith.constant 0 : i32
    %c0_i32_1 = arith.constant 0 : i32
    return %c0_i32, %c0_i32_0 : i32, i32
  }
  func.func @transform_5(%arg0: i32) -> (i32, i32) {
    %c0_i32 = arith.constant 0 : i32
    %c0_i32_0 = arith.constant 0 : i32
    %c0_i32_1 = arith.constant 0 : i32
    return %c0_i32, %c0_i32_0 : i32, i32
  }
  func.func @transform_6(%arg0: i32) -> (i32, i32) {
    %c0_i32 = arith.constant 0 : i32
    %c0_i32_0 = arith.constant 0 : i32
    %c0_i32_1 = arith.constant 0 : i32
    return %c0_i32, %c0_i32_0 : i32, i32
  }
  func.func @transform_7(%arg0: i32) -> (i32, i32) {
    %c0_i32 = arith.constant 0 : i32
    %c0_i32_0 = arith.constant 0 : i32
    return %arg0, %c0_i32 : i32, i32
  }
}

module attributes {stable_mosaic.version = 11 : i64} {
  func.func @_proj_res_ln_kernel(%arg0: i32, %arg1: memref<32x32xf32, #tpu.memory_space<vmem>>, %arg2: memref<32x32xbf16, #tpu.memory_space<vmem>>, %arg3: memref<1x32xf32, #tpu.memory_space<vmem>>, %arg4: memref<32x32xf32, #tpu.memory_space<vmem>>, %arg5: memref<1x32xf32, #tpu.memory_space<vmem>>, %arg6: memref<1x32xf32, #tpu.memory_space<vmem>>, %arg7: memref<32x32xf32, #tpu.memory_space<vmem>>) attributes {dimension_semantics = [#tpu.dimension_semantics<parallel>], iteration_bounds = array<i64: 1>, scalar_prefetch = 0 : i64, scratch_operands = 0 : i64, tpu.core_type = #tpu.core_type<tc>, window_params = [{transform_indices = @transform_0, window_bounds = array<i64: 32, 32>}, {pipeline_mode = #tpu.pipeline_mode<synchronous>, transform_indices = @transform_1, window_bounds = array<i64: 32, 32>}, {pipeline_mode = #tpu.pipeline_mode<synchronous>, transform_indices = @transform_2, window_bounds = array<i64: 1, 32>}, {transform_indices = @transform_3, window_bounds = array<i64: 32, 32>}, {pipeline_mode = #tpu.pipeline_mode<synchronous>, transform_indices = @transform_4, window_bounds = array<i64: 1, 32>}, {pipeline_mode = #tpu.pipeline_mode<synchronous>, transform_indices = @transform_5, window_bounds = array<i64: 1, 32>}, {transform_indices = @transform_6, window_bounds = array<i64: 32, 32>}]} {
    %c0 = arith.constant 0 : index
    %c0_0 = arith.constant 0 : index
    %0 = vector.load %arg1[%c0, %c0_0] : memref<32x32xf32, #tpu.memory_space<vmem>>, vector<32x32xf32>
    %1 = arith.truncf %0 : vector<32x32xf32> to vector<32x32xbf16>
    %c0_1 = arith.constant 0 : index
    %c0_2 = arith.constant 0 : index
    %2 = vector.load %arg2[%c0_1, %c0_2] : memref<32x32xbf16, #tpu.memory_space<vmem>>, vector<32x32xbf16>
    %cst = arith.constant dense<0.000000e+00> : vector<32x32xf32>
    %3 = tpu.matmul %1, %2, %cst {dimension_numbers = #tpu.dot_dimension_numbers<[1], [0], [0], [1], [0, 0, 1, 1], [], []>} : vector<32x32xbf16>, vector<32x32xbf16>, vector<32x32xf32> -> vector<32x32xf32>
    %c0_3 = arith.constant 0 : index
    %c0_4 = arith.constant 0 : index
    %4 = vector.load %arg3[%c0_3, %c0_4] : memref<1x32xf32, #tpu.memory_space<vmem>>, vector<1x32xf32>
    %5 = vector.broadcast %4 : vector<1x32xf32> to vector<32x32xf32>
    %6 = arith.addf %3, %5 : vector<32x32xf32>
    %c0_5 = arith.constant 0 : index
    %c0_6 = arith.constant 0 : index
    %7 = vector.load %arg4[%c0_5, %c0_6] : memref<32x32xf32, #tpu.memory_space<vmem>>, vector<32x32xf32>
    %8 = arith.addf %7, %6 : vector<32x32xf32>
    %cst_7 = arith.constant dense<0.000000e+00> : vector<32xf32>
    %9 = vector.multi_reduction <add>, %8, %cst_7 [1] : vector<32x32xf32> to vector<32xf32>
    %10 = vector.shape_cast %9 : vector<32xf32> to vector<32x1xf32>
    %cst_8 = arith.constant 3.200000e+01 : f32
    %11 = vector.broadcast %cst_8 : f32 to vector<32x1xf32>
    %12 = arith.divf %10, %11 : vector<32x1xf32>
    %13 = vector.broadcast %12 : vector<32x1xf32> to vector<32x32xf32>
    %14 = arith.subf %8, %13 : vector<32x32xf32>
    %15 = arith.mulf %14, %14 : vector<32x32xf32>
    %cst_9 = arith.constant dense<0.000000e+00> : vector<32xf32>
    %16 = vector.multi_reduction <add>, %15, %cst_9 [1] : vector<32x32xf32> to vector<32xf32>
    %17 = vector.shape_cast %16 : vector<32xf32> to vector<32x1xf32>
    %cst_10 = arith.constant 3.200000e+01 : f32
    %18 = vector.broadcast %cst_10 : f32 to vector<32x1xf32>
    %19 = arith.divf %17, %18 : vector<32x1xf32>
    %20 = vector.broadcast %12 : vector<32x1xf32> to vector<32x32xf32>
    %21 = arith.subf %8, %20 : vector<32x32xf32>
    %cst_11 = arith.constant 9.99999974E-6 : f32
    %22 = vector.broadcast %cst_11 : f32 to vector<32x1xf32>
    %23 = arith.addf %19, %22 : vector<32x1xf32>
    %24 = math.rsqrt %23 : vector<32x1xf32>
    %25 = vector.broadcast %24 : vector<32x1xf32> to vector<32x32xf32>
    %26 = arith.mulf %21, %25 : vector<32x32xf32>
    %c0_12 = arith.constant 0 : index
    %c0_13 = arith.constant 0 : index
    %27 = vector.load %arg5[%c0_12, %c0_13] : memref<1x32xf32, #tpu.memory_space<vmem>>, vector<1x32xf32>
    %28 = vector.broadcast %27 : vector<1x32xf32> to vector<32x32xf32>
    %29 = arith.mulf %26, %28 : vector<32x32xf32>
    %c0_14 = arith.constant 0 : index
    %c0_15 = arith.constant 0 : index
    %30 = vector.load %arg6[%c0_14, %c0_15] : memref<1x32xf32, #tpu.memory_space<vmem>>, vector<1x32xf32>
    %31 = vector.broadcast %30 : vector<1x32xf32> to vector<32x32xf32>
    %32 = arith.addf %29, %31 : vector<32x32xf32>
    %c0_16 = arith.constant 0 : index
    %c0_17 = arith.constant 0 : index
    %33 = vector.load %arg7[%c0_16, %c0_17] : memref<32x32xf32, #tpu.memory_space<vmem>>, vector<32x32xf32>
    tpu.vector_store %arg7[%c0_16, %c0_17], %32 {strides = array<i32>} : memref<32x32xf32, #tpu.memory_space<vmem>>, vector<32x32xf32>,
    return
  }
  func.func @transform_0(%arg0: i32) -> (i32, i32) {
    %c0_i32 = arith.constant 0 : i32
    %c0_i32_0 = arith.constant 0 : i32
    return %arg0, %c0_i32 : i32, i32
  }
  func.func @transform_1(%arg0: i32) -> (i32, i32) {
    %c0_i32 = arith.constant 0 : i32
    %c0_i32_0 = arith.constant 0 : i32
    %c0_i32_1 = arith.constant 0 : i32
    return %c0_i32, %c0_i32_0 : i32, i32
  }
  func.func @transform_2(%arg0: i32) -> (i32, i32) {
    %c0_i32 = arith.constant 0 : i32
    %c0_i32_0 = arith.constant 0 : i32
    %c0_i32_1 = arith.constant 0 : i32
    return %c0_i32, %c0_i32_0 : i32, i32
  }
  func.func @transform_3(%arg0: i32) -> (i32, i32) {
    %c0_i32 = arith.constant 0 : i32
    %c0_i32_0 = arith.constant 0 : i32
    return %arg0, %c0_i32 : i32, i32
  }
  func.func @transform_4(%arg0: i32) -> (i32, i32) {
    %c0_i32 = arith.constant 0 : i32
    %c0_i32_0 = arith.constant 0 : i32
    %c0_i32_1 = arith.constant 0 : i32
    return %c0_i32, %c0_i32_0 : i32, i32
  }
  func.func @transform_5(%arg0: i32) -> (i32, i32) {
    %c0_i32 = arith.constant 0 : i32
    %c0_i32_0 = arith.constant 0 : i32
    %c0_i32_1 = arith.constant 0 : i32
    return %c0_i32, %c0_i32_0 : i32, i32
  }
  func.func @transform_6(%arg0: i32) -> (i32, i32) {
    %c0_i32 = arith.constant 0 : i32
    %c0_i32_0 = arith.constant 0 : i32
    return %arg0, %c0_i32 : i32, i32
  }
}

module attributes {stable_mosaic.version = 11 : i64} {
  func.func @_conv_kernel(%arg0: i32, %arg1: memref<1x20x32xf32, #tpu.memory_space<vmem>>, %arg2: memref<5x32x12xbf16, #tpu.memory_space<vmem>>, %arg3: memref<1x12xf32, #tpu.memory_space<vmem>>, %arg4: memref<1x12xf32, #tpu.memory_space<vmem>>, %arg5: memref<1x12xf32, #tpu.memory_space<vmem>>, %arg6: memref<1x16x12xf32, #tpu.memory_space<vmem>>) attributes {dimension_semantics = [#tpu.dimension_semantics<parallel>], iteration_bounds = array<i64: 2>, scalar_prefetch = 0 : i64, scratch_operands = 0 : i64, tpu.core_type = #tpu.core_type<tc>, window_params = [{transform_indices = @transform_0, window_bounds = array<i64: 1, 20, 32>}, {pipeline_mode = #tpu.pipeline_mode<synchronous>, transform_indices = @transform_1, window_bounds = array<i64: 5, 32, 12>}, {pipeline_mode = #tpu.pipeline_mode<synchronous>, transform_indices = @transform_2, window_bounds = array<i64: 1, 12>}, {pipeline_mode = #tpu.pipeline_mode<synchronous>, transform_indices = @transform_3, window_bounds = array<i64: 1, 12>}, {pipeline_mode = #tpu.pipeline_mode<synchronous>, transform_indices = @transform_4, window_bounds = array<i64: 1, 12>}, {transform_indices = @transform_5, window_bounds = array<i64: 1, 16, 12>}]} {
    %c0 = arith.constant 0 : index
    %c0_0 = arith.constant 0 : index
    %c0_1 = arith.constant 0 : index
    %0 = vector.load %arg1[%c0, %c0_0, %c0_1] : memref<1x20x32xf32, #tpu.memory_space<vmem>>, vector<1x20x32xf32>
    %1 = vector.shape_cast %0 : vector<1x20x32xf32> to vector<20x32xf32>
    %2 = arith.truncf %1 : vector<20x32xf32> to vector<20x32xbf16>
    %cst = arith.constant 0.000000e+00 : f32
    %3 = vector.broadcast %cst : f32 to vector<16x12xf32>
    %4 = vector.extract_strided_slice %2 {offsets = [0, 0], sizes = [16, 32], strides = [1, 1]} : vector<20x32xbf16> to vector<16x32xbf16>
    %c0_2 = arith.constant 0 : index
    %c0_3 = arith.constant 0 : index
    %c0_4 = arith.constant 0 : index
    %5 = vector.load %arg2[%c0_2, %c0_3, %c0_4] : memref<5x32x12xbf16, #tpu.memory_space<vmem>>, vector<1x32x12xbf16>
    %6 = vector.shape_cast %5 : vector<1x32x12xbf16> to vector<32x12xbf16>
    %cst_5 = arith.constant dense<0.000000e+00> : vector<16x12xf32>
    %7 = tpu.matmul %4, %6, %cst_5 {dimension_numbers = #tpu.dot_dimension_numbers<[1], [0], [0], [1], [0, 0, 1, 1], [], []>} : vector<16x32xbf16>, vector<32x12xbf16>, vector<16x12xf32> -> vector<16x12xf32>
    %8 = arith.addf %3, %7 : vector<16x12xf32>
    %9 = vector.extract_strided_slice %2 {offsets = [1, 0], sizes = [16, 32], strides = [1, 1]} : vector<20x32xbf16> to vector<16x32xbf16>
    %c1 = arith.constant 1 : index
    %c0_6 = arith.constant 0 : index
    %c0_7 = arith.constant 0 : index
    %10 = vector.load %arg2[%c1, %c0_6, %c0_7] : memref<5x32x12xbf16, #tpu.memory_space<vmem>>, vector<1x32x12xbf16>
    %11 = vector.shape_cast %10 : vector<1x32x12xbf16> to vector<32x12xbf16>
    %cst_8 = arith.constant dense<0.000000e+00> : vector<16x12xf32>
    %12 = tpu.matmul %9, %11, %cst_8 {dimension_numbers = #tpu.dot_dimension_numbers<[1], [0], [0], [1], [0, 0, 1, 1], [], []>} : vector<16x32xbf16>, vector<32x12xbf16>, vector<16x12xf32> -> vector<16x12xf32>
    %13 = arith.addf %8, %12 : vector<16x12xf32>
    %14 = vector.extract_strided_slice %2 {offsets = [2, 0], sizes = [16, 32], strides = [1, 1]} : vector<20x32xbf16> to vector<16x32xbf16>
    %c2 = arith.constant 2 : index
    %c0_9 = arith.constant 0 : index
    %c0_10 = arith.constant 0 : index
    %15 = vector.load %arg2[%c2, %c0_9, %c0_10] : memref<5x32x12xbf16, #tpu.memory_space<vmem>>, vector<1x32x12xbf16>
    %16 = vector.shape_cast %15 : vector<1x32x12xbf16> to vector<32x12xbf16>
    %cst_11 = arith.constant dense<0.000000e+00> : vector<16x12xf32>
    %17 = tpu.matmul %14, %16, %cst_11 {dimension_numbers = #tpu.dot_dimension_numbers<[1], [0], [0], [1], [0, 0, 1, 1], [], []>} : vector<16x32xbf16>, vector<32x12xbf16>, vector<16x12xf32> -> vector<16x12xf32>
    %18 = arith.addf %13, %17 : vector<16x12xf32>
    %19 = vector.extract_strided_slice %2 {offsets = [3, 0], sizes = [16, 32], strides = [1, 1]} : vector<20x32xbf16> to vector<16x32xbf16>
    %c3 = arith.constant 3 : index
    %c0_12 = arith.constant 0 : index
    %c0_13 = arith.constant 0 : index
    %20 = vector.load %arg2[%c3, %c0_12, %c0_13] : memref<5x32x12xbf16, #tpu.memory_space<vmem>>, vector<1x32x12xbf16>
    %21 = vector.shape_cast %20 : vector<1x32x12xbf16> to vector<32x12xbf16>
    %cst_14 = arith.constant dense<0.000000e+00> : vector<16x12xf32>
    %22 = tpu.matmul %19, %21, %cst_14 {dimension_numbers = #tpu.dot_dimension_numbers<[1], [0], [0], [1], [0, 0, 1, 1], [], []>} : vector<16x32xbf16>, vector<32x12xbf16>, vector<16x12xf32> -> vector<16x12xf32>
    %23 = arith.addf %18, %22 : vector<16x12xf32>
    %24 = vector.extract_strided_slice %2 {offsets = [4, 0], sizes = [16, 32], strides = [1, 1]} : vector<20x32xbf16> to vector<16x32xbf16>
    %c4 = arith.constant 4 : index
    %c0_15 = arith.constant 0 : index
    %c0_16 = arith.constant 0 : index
    %25 = vector.load %arg2[%c4, %c0_15, %c0_16] : memref<5x32x12xbf16, #tpu.memory_space<vmem>>, vector<1x32x12xbf16>
    %26 = vector.shape_cast %25 : vector<1x32x12xbf16> to vector<32x12xbf16>
    %cst_17 = arith.constant dense<0.000000e+00> : vector<16x12xf32>
    %27 = tpu.matmul %24, %26, %cst_17 {dimension_numbers = #tpu.dot_dimension_numbers<[1], [0], [0], [1], [0, 0, 1, 1], [], []>} : vector<16x32xbf16>, vector<32x12xbf16>, vector<16x12xf32> -> vector<16x12xf32>
    %28 = arith.addf %23, %27 : vector<16x12xf32>
    %c0_18 = arith.constant 0 : index
    %c0_19 = arith.constant 0 : index
    %29 = vector.load %arg3[%c0_18, %c0_19] : memref<1x12xf32, #tpu.memory_space<vmem>>, vector<1x12xf32>
    %30 = vector.broadcast %29 : vector<1x12xf32> to vector<16x12xf32>
    %31 = arith.addf %28, %30 : vector<16x12xf32>
    %c0_20 = arith.constant 0 : index
    %c0_21 = arith.constant 0 : index
    %32 = vector.load %arg4[%c0_20, %c0_21] : memref<1x12xf32, #tpu.memory_space<vmem>>, vector<1x12xf32>
    %33 = vector.broadcast %32 : vector<1x12xf32> to vector<16x12xf32>
    %34 = arith.mulf %31, %33 : vector<16x12xf32>
    %c0_22 = arith.constant 0 : index
    %c0_23 = arith.constant 0 : index
    %35 = vector.load %arg5[%c0_22, %c0_23] : memref<1x12xf32, #tpu.memory_space<vmem>>, vector<1x12xf32>
    %36 = vector.broadcast %35 : vector<1x12xf32> to vector<16x12xf32>
    %37 = arith.addf %34, %36 : vector<16x12xf32>
    %c0_24 = arith.constant 0 : index
    %c0_25 = arith.constant 0 : index
    %c0_26 = arith.constant 0 : index
    %38 = vector.load %arg6[%c0_24, %c0_25, %c0_26] : memref<1x16x12xf32, #tpu.memory_space<vmem>>, vector<1x16x12xf32>
    %39 = vector.shape_cast %38 : vector<1x16x12xf32> to vector<16x12xf32>
    %40 = vector.shape_cast %37 : vector<16x12xf32> to vector<1x16x12xf32>
    tpu.vector_store %arg6[%c0_24, %c0_25, %c0_26], %40 {strides = array<i32>} : memref<1x16x12xf32, #tpu.memory_space<vmem>>, vector<1x16x12xf32>,
    return
  }
  func.func @transform_0(%arg0: i32) -> (i32, i32, i32) {
    %c0_i32 = arith.constant 0 : i32
    %c0_i32_0 = arith.constant 0 : i32
    %c0_i32_1 = arith.constant 0 : i32
    return %arg0, %c0_i32, %c0_i32_0 : i32, i32, i32
  }
  func.func @transform_1(%arg0: i32) -> (i32, i32, i32) {
    %c0_i32 = arith.constant 0 : i32
    %c0_i32_0 = arith.constant 0 : i32
    %c0_i32_1 = arith.constant 0 : i32
    %c0_i32_2 = arith.constant 0 : i32
    return %c0_i32, %c0_i32_0, %c0_i32_1 : i32, i32, i32
  }
  func.func @transform_2(%arg0: i32) -> (i32, i32) {
    %c0_i32 = arith.constant 0 : i32
    %c0_i32_0 = arith.constant 0 : i32
    %c0_i32_1 = arith.constant 0 : i32
    return %c0_i32, %c0_i32_0 : i32, i32
  }
  func.func @transform_3(%arg0: i32) -> (i32, i32) {
    %c0_i32 = arith.constant 0 : i32
    %c0_i32_0 = arith.constant 0 : i32
    %c0_i32_1 = arith.constant 0 : i32
    return %c0_i32, %c0_i32_0 : i32, i32
  }
  func.func @transform_4(%arg0: i32) -> (i32, i32) {
    %c0_i32 = arith.constant 0 : i32
    %c0_i32_0 = arith.constant 0 : i32
    %c0_i32_1 = arith.constant 0 : i32
    return %c0_i32, %c0_i32_0 : i32, i32
  }
  func.func @transform_5(%arg0: i32) -> (i32, i32, i32) {
    %c0_i32 = arith.constant 0 : i32
    %c0_i32_0 = arith.constant 0 : i32
    %c0_i32_1 = arith.constant 0 : i32
    return %arg0, %c0_i32, %c0_i32_0 : i32, i32, i32
  }
}

</mosaic_0001>

<llo_original>
// kernel: tvqvae_forward.20
$region0: #{tvqvae_forward.20}
  #allocation0 [shape = 'u32[]', space=smem, size = 0x4, offset = 0x4, fixed_abs, tag = 'smem constant byte address 0x4 - core index']
  #allocation1 [shape = 'u32[144,128]{1,0:T(1,128)}', space=vmem, size = 0x12000, scoped, tag = 'internal scratch']
  %s0 = inlined_call_operand.vmem [shape: f32[8,32], index: 0, kind: input, shape index: {}]
  %s1 = inlined_call_operand.vmem [shape: bf16[32,32], index: 1, kind: input, shape index: {}]
  %s2 = inlined_call_operand.vmem [shape: f32[1,32], index: 2, kind: input, shape index: {}]
  %s3 = inlined_call_operand.vmem [shape: f32[8,32], index: 3, kind: output, shape index: {}]
  %s4 = sld [smem:[#allocation0]]
  $region22: #{tvqvae_forward.20} parent=0
    _
  %s6 = ssub.s32 1, %s4
  %s7 = scalar_select 0, %s6, %s4
  // Predicated region
  $region2: #{tvqvae_forward.20} parent=0 // pred_check
    _
  $region3: #{tvqvae_forward.20} parent=0 // pred_check_branch
    %9 = sbr.rel (0) target = $region5
  $region4: #{tvqvae_forward.20} parent=0 // pred_region
    _
  $region5: #{tvqvae_forward.20} parent=0 // pred_fallthru
    _
  // Predicated region
  $region6: #{tvqvae_forward.20} parent=0 // pred_check
    _
  $region7: #{tvqvae_forward.20} parent=0 // pred_check_branch
    %11 = sbr.rel (0) target = $region9
  $region8: #{tvqvae_forward.20} parent=0 // pred_region
    _
  $region9: #{tvqvae_forward.20} parent=0 // pred_fallthru
    _
  // Predicated region
  $region10: #{tvqvae_forward.20} parent=0 // pred_check
    _
  $region11: #{tvqvae_forward.20} parent=0 // pred_check_branch
    %13 = sbr.rel (0) target = $region13
  $region12: #{tvqvae_forward.20} parent=0 // pred_region
    _
  $region13: #{tvqvae_forward.20} parent=0 // pred_fallthru
    _
  %v15 = vld [vmem:[%s0] sm:$0xff]
  %v16 = vpack.c.bf16 %v15, %v15
  %v17 = vld [vmem:[%s1] sm:$0xf]
  %v18 = vld [vmem:[%s1 + $0x4] sm:$0xf]
  %v19 = vld [vmem:[%s1 + $0x8] sm:$0xf]
  %v20 = vld [vmem:[%s1 + $0xc] sm:$0xf]
  %v21 = vld [vmem:[%s2] sm:$0x1]
  %v23 = vlaneseq
  %v24 = vshrl.u32 %v23, 7
  %v25 = vsub.s32 0, %v24
  %v26 = vrot.slane %v21, %v25
  %v32 = vunpack.c.l.b16 %v17
  %v33 = vunpack.c.l.b16 %v18
  %v34 = vunpack.c.l.b16 %v19
  %v35 = vunpack.c.l.b16 %v20
  %v36 = vpack.c.b16 %v33, %v32
  %v37 = vpack.c.b16 %v35, %v34
  %vm40 = vcmask 261120
  %v42 = vsel %vm40, %v16, 0
  %44 = vmatprep.subr.bf16.mxu0 0
  %45 = vmatpush1.bf16.msra.mxu0 %v36
  %46 = vmatprep.subr.bf16.mxu0 0
  %47 = vmatpush1.bf16.msra.mxu0 %v37
  %48 = vmatprep.subr.bf16.mxu0 0
  %49 = vmatpush1.bf16.msra.mxu0 0
  %50 = vmatprep.subr.bf16.mxu0 0
  %51 = vmatpush1.bf16.msra.mxu0 0
  %52 = vmatprep.subr.bf16.mxu0 0
  %53 = vmatpush1.bf16.msra.mxu0 0
  %54 = vmatprep.subr.bf16.mxu0 0
  %55 = vmatpush1.bf16.msra.mxu0 0
  %56 = vmatprep.subr.bf16.mxu0 0
  %57 = vmatpush1.bf16.msra.mxu0 0
  %58 = vmatprep.subr.bf16.mxu0 0
  %59 = vmatpush1.bf16.msra.mxu0 0
  %60 = vmatprep.subr.bf16.mxu0 0
  %61 = vmatpush1.bf16.msra.mxu0 0
  %62 = vmatprep.subr.bf16.mxu0 0
  %63 = vmatpush1.bf16.msra.mxu0 0
  %64 = vmatprep.subr.bf16.mxu0 0
  %65 = vmatpush1.bf16.msra.mxu0 0
  %66 = vmatprep.subr.bf16.mxu0 0
  %67 = vmatpush1.bf16.msra.mxu0 0
  %68 = vmatprep.subr.bf16.mxu0 0
  %69 = vmatpush1.bf16.msra.mxu0 0
  %70 = vmatprep.subr.bf16.mxu0 0
  %71 = vmatpush1.bf16.msra.mxu0 0
  %72 = vmatprep.subr.bf16.mxu0 0
  %73 = vmatpush1.bf16.msra.mxu0 0
  %74 = vmatprep.subr.bf16.mxu0 0
  %75 = vmatpush1.bf16.msra.mxu0 0
  %76 = vmatprep.mubr.bf16.mxu0 0
  %77 = vmatmul.mubr.bf16.gmra.mrb[0].mxu0 %v42
  %v78 = vpop.f32.mrb[0].mxu0
  %v79 = vadd.f32 %v26, %v78
  %v80 = vpop.f32.mrb[0].mxu0
  %v81 = vpop.f32.mrb[0].mxu0
  %v82 = vpop.f32.mrb[0].mxu0
  %83 = vdwg.mxu0
  %84 = vst.msk [vmem:[%s3] sm:$0xff] %vm40, %v79
  // Predicated region
  $region14: #{tvqvae_forward.20} parent=0 // pred_check
    _
  $region15: #{tvqvae_forward.20} parent=0 // pred_check_branch
    %86 = sbr.rel (0) target = $region17
  $region16: #{tvqvae_forward.20} parent=0 // pred_region
    _
  $region17: #{tvqvae_forward.20} parent=0 // pred_fallthru
    _
  // Predicated region
  $region18: #{tvqvae_forward.20} parent=0 // pred_check
    _
  $region19: #{tvqvae_forward.20} parent=0 // pred_check_branch
    %88 = sbr.rel (0) target = $region21
  $region20: #{tvqvae_forward.20} parent=0 // pred_region
    _
  $region21: #{tvqvae_forward.20} parent=0 // pred_fallthru
    _

// kernel: tvqvae_forward.21
$region0: #{tvqvae_forward.21}
  #allocation0 [shape = 'u32[]', space=smem, size = 0x4, offset = 0x4, fixed_abs, tag = 'smem constant byte address 0x4 - core index']
  #allocation1 [shape = 'u32[144,128]{1,0:T(1,128)}', space=vmem, size = 0x12000, scoped, tag = 'internal scratch']
  %s0 = inlined_call_operand.vmem [shape: f32[8,32], index: 0, kind: input, shape index: {}]
  %s1 = inlined_call_operand.vmem [shape: bf16[32,96], index: 1, kind: input, shape index: {}]
  %s2 = inlined_call_operand.vmem [shape: f32[1,96], index: 2, kind: input, shape index: {}]
  %s3 = inlined_call_operand.vmem [shape: f32[8,96], index: 3, kind: output, shape index: {}]
  %s4 = sld [smem:[#allocation0]]
  $region22: #{tvqvae_forward.21} parent=0
    _
  %s6 = ssub.s32 1, %s4
  %s7 = scalar_select 0, %s6, %s4
  // Predicated region
  $region2: #{tvqvae_forward.21} parent=0 // pred_check
    _
  $region3: #{tvqvae_forward.21} parent=0 // pred_check_branch
    %9 = sbr.rel (0) target = $region5
  $region4: #{tvqvae_forward.21} parent=0 // pred_region
    _
  $region5: #{tvqvae_forward.21} parent=0 // pred_fallthru
    _
  // Predicated region
  $region6: #{tvqvae_forward.21} parent=0 // pred_check
    _
  $region7: #{tvqvae_forward.21} parent=0 // pred_check_branch
    %11 = sbr.rel (0) target = $region9
  $region8: #{tvqvae_forward.21} parent=0 // pred_region
    _
  $region9: #{tvqvae_forward.21} parent=0 // pred_fallthru
    _
  // Predicated region
  $region10: #{tvqvae_forward.21} parent=0 // pred_check
    _
  $region11: #{tvqvae_forward.21} parent=0 // pred_check_branch
    %13 = sbr.rel (0) target = $region13
  $region12: #{tvqvae_forward.21} parent=0 // pred_region
    _
  $region13: #{tvqvae_forward.21} parent=0 // pred_fallthru
    _
  %v15 = vld [vmem:[%s0] sm:$0xff]
  %v16 = vpack.c.bf16 %v15, %v15
  %v17 = vld [vmem:[%s1] sm:$0xf]
  %v18 = vld [vmem:[%s1 + $0x4] sm:$0xf]
  %v19 = vld [vmem:[%s1 + $0x8] sm:$0xf]
  %v20 = vld [vmem:[%s1 + $0xc] sm:$0xf]
  %v21 = vld [vmem:[%s2] sm:$0x1]
  %v23 = vlaneseq
  %v24 = vshrl.u32 %v23, 7
  %v25 = vsub.s32 0, %v24
  %v26 = vrot.slane %v21, %v25
  %v32 = vunpack.c.l.b16 %v17
  %v33 = vunpack.c.l.b16 %v18
  %v34 = vunpack.c.l.b16 %v19
  %v35 = vunpack.c.l.b16 %v20
  %v36 = vpack.c.b16 %v33, %v32
  %v37 = vpack.c.b16 %v35, %v34
  %vm40 = vcmask 261120
  %v42 = vsel %vm40, %v16, 0
  %44 = vmatprep.subr.bf16.mxu0 0
  %45 = vmatpush1.bf16.msra.mxu0 %v36
  %46 = vmatprep.subr.bf16.mxu0 0
  %47 = vmatpush1.bf16.msra.mxu0 %v37
  %48 = vmatprep.subr.bf16.mxu0 0
  %49 = vmatpush1.bf16.msra.mxu0 0
  %50 = vmatprep.subr.bf16.mxu0 0
  %51 = vmatpush1.bf16.msra.mxu0 0
  %52 = vmatprep.subr.bf16.mxu0 0
  %53 = vmatpush1.bf16.msra.mxu0 0
  %54 = vmatprep.subr.bf16.mxu0 0
  %55 = vmatpush1.bf16.msra.mxu0 0
  %56 = vmatprep.subr.bf16.mxu0 0
  %57 = vmatpush1.bf16.msra.mxu0 0
  %58 = vmatprep.subr.bf16.mxu0 0
  %59 = vmatpush1.bf16.msra.mxu0 0
  %60 = vmatprep.subr.bf16.mxu0 0
  %61 = vmatpush1.bf16.msra.mxu0 0
  %62 = vmatprep.subr.bf16.mxu0 0
  %63 = vmatpush1.bf16.msra.mxu0 0
  %64 = vmatprep.subr.bf16.mxu0 0
  %65 = vmatpush1.bf16.msra.mxu0 0
  %66 = vmatprep.subr.bf16.mxu0 0
  %67 = vmatpush1.bf16.msra.mxu0 0
  %68 = vmatprep.subr.bf16.mxu0 0
  %69 = vmatpush1.bf16.msra.mxu0 0
  %70 = vmatprep.subr.bf16.mxu0 0
  %71 = vmatpush1.bf16.msra.mxu0 0
  %72 = vmatprep.subr.bf16.mxu0 0
  %73 = vmatpush1.bf16.msra.mxu0 0
  %74 = vmatprep.subr.bf16.mxu0 0
  %75 = vmatpush1.bf16.msra.mxu0 0
  %76 = vmatprep.mubr.bf16.mxu0 0
  %77 = vmatmul.mubr.bf16.gmra.mrb[0].mxu0 %v42
  %v78 = vpop.f32.mrb[0].mxu0
  %v79 = vadd.f32 %v26, %v78
  %v80 = vpop.f32.mrb[0].mxu0
  %v81 = vpop.f32.mrb[0].mxu0
  %v82 = vpop.f32.mrb[0].mxu0
  %83 = vdwg.mxu0
  %vm84 = vcmask 785408
  %85 = vst.msk [vmem:[%s3] sm:$0xff] %vm84, %v79
  // Predicated region
  $region14: #{tvqvae_forward.21} parent=0 // pred_check
    _
  $region15: #{tvqvae_forward.21} parent=0 // pred_check_branch
    %87 = sbr.rel (0) target = $region17
  $region16: #{tvqvae_forward.21} parent=0 // pred_region
    _
  $region17: #{tvqvae_forward.21} parent=0 // pred_fallthru
    _
  // Predicated region
  $region18: #{tvqvae_forward.21} parent=0 // pred_check
    _
  $region19: #{tvqvae_forward.21} parent=0 // pred_check_branch
    %89 = sbr.rel (0) target = $region21
  $region20: #{tvqvae_forward.21} parent=0 // pred_region
    _
  $region21: #{tvqvae_forward.21} parent=0 // pred_fallthru
    _

// kernel: tvqvae_forward.18
$region0: #{tvqvae_forward.18}
  #allocation0 [shape = 'u32[]', space=smem, size = 0x4, offset = 0x4, fixed_abs, tag = 'smem constant byte address 0x4 - core index']
  #allocation1 [shape = 'u32[144,128]{1,0:T(1,128)}', space=vmem, size = 0x12000, scoped, tag = 'internal scratch']
  %s0 = inlined_call_operand.vmem [shape: f32[2,10,24], index: 0, kind: input, shape index: {}]
  %s1 = inlined_call_operand.vmem [shape: bf16[3,24,32], index: 1, kind: input, shape index: {}]
  %s2 = inlined_call_operand.vmem [shape: f32[1,32], index: 2, kind: input, shape index: {}]
  %s3 = inlined_call_operand.vmem [shape: f32[1,32], index: 3, kind: input, shape index: {}]
  %s4 = inlined_call_operand.vmem [shape: f32[1,32], index: 4, kind: input, shape index: {}]
  %s5 = inlined_call_operand.vmem [shape: f32[2,8,32], index: 5, kind: output, shape index: {}]
  %s6 = sld [smem:[#allocation0]]
  $region53: #{tvqvae_forward.18} parent=0
    _
  %s8 = ssub.s32 1, %s6
  %s9 = scalar_select 0, %s8, %s6
  loop: start=0, step=1, limit=4
  $region2: #{tvqvae_forward.18} parent=0 // loop_pre_header
    _
  $region3: #{tvqvae_forward.18} parent=0 // loop_header
    %s11 = sphi 0, %s15
    %p12 = scmp.ge.s32.totalorder %s11, 4
    %s21 = sphi 0, %s23
    %s24 = sphi 0, %s21
    %s25 = sphi 0, %s24
    %s41 = sphi 0, %s25
    %s45 = sphi 0, %s45
    %s47 = sphi 0, %s45
    %s48 = sphi 0, %s47
    %s62 = sphi 0, %s48
    %s66 = sphi 0, %s66
    %s68 = sphi 0, %s66
    %s69 = sphi 0, %s68
    %s83 = sphi 0, %s69
    %s87 = sphi 0, %s87
    %s89 = sphi 0, %s87
    %s90 = sphi 0, %s89
    %s104 = sphi 0, %s90
    %s108 = sphi 0, %s108
    %s110 = sphi 0, %s108
    %s111 = sphi 0, %s110
    %s125 = sphi 0, %s111
    %s131 = sphi 0, %s133
    %s134 = sphi 0, %s131
    %s135 = sphi 0, %s134
    %s151 = sphi 0, %s135
  $region4: #{tvqvae_forward.18} parent=0 // loop_header_branch
    %14 = sbr.rel (%p12) target = $region8
  $region5: #{tvqvae_forward.18} parent=0 // loop_body
    %s16 = ssub.s32 %s11, 1
    %s17 = ssub.s32 %s11, 2
    %s18 = sadd.s32 %s11, 1
    %s19 = ssub.s32 %s11, %s18
    %p20 = scmp.eq.s32.totalorder %s19, 0
    %s22 = sadd.s32 %s21, 1
    %s23 = scalar_select %p20, %s21, %s22
    %p26 = pneg %p20
    %p27 = scmp.eq.s32.totalorder %s11, 1
    %p28 = por %p26, %p27
    %p29 = scmp.ne.s32.totalorder %s21, %s24
    %p30 = scmp.eq.s32.totalorder %s11, 0
    %p31 = por %p29, %p30
    %p32 = scmp.ne.s32.totalorder %s21, %s24
    %p33 = scmp.eq.s32.totalorder %s16, 1
    %p34 = por %p32, %p33
    %p35 = scmp.ne.s32.totalorder %s24, %s25
    %p36 = scmp.eq.s32.totalorder %s16, 0
    %p37 = por %p35, %p36
    %p38 = scmp.ne.s32.totalorder %s24, %s25
    %p39 = scmp.eq.s32.totalorder %s17, 1
    %p40 = por %p38, %p39
    %p42 = scmp.ne.s32.totalorder %s25, %s41
    %p43 = scmp.eq.s32.totalorder %s17, 0
    %p44 = por %p42, %p43
    %s46 = sadd.s32 %s45, 1
    %p49 = scmp.eq.s32.totalorder %s11, 1
    %p50 = scmp.ne.s32.totalorder %s45, %s47
    %p51 = scmp.eq.s32.totalorder %s11, 0
    %p52 = por %p50, %p51
    %p53 = scmp.ne.s32.totalorder %s45, %s47
    %p54 = scmp.eq.s32.totalorder %s16, 1
    %p55 = por %p53, %p54
    %p56 = scmp.ne.s32.totalorder %s47, %s48
    %p57 = scmp.eq.s32.totalorder %s16, 0
    %p58 = por %p56, %p57
    %p59 = scmp.ne.s32.totalorder %s47, %s48
    %p60 = scmp.eq.s32.totalorder %s17, 1
    %p61 = por %p59, %p60
    %p63 = scmp.ne.s32.totalorder %s48, %s62
    %p64 = scmp.eq.s32.totalorder %s17, 0
    %p65 = por %p63, %p64
    %s67 = sadd.s32 %s66, 1
    %p70 = scmp.eq.s32.totalorder %s11, 1
    %p71 = scmp.ne.s32.totalorder %s66, %s68
    %p72 = scmp.eq.s32.totalorder %s11, 0
    %p73 = por %p71, %p72
    %p74 = scmp.ne.s32.totalorder %s66, %s68
    %p75 = scmp.eq.s32.totalorder %s16, 1
    %p76 = por %p74, %p75
    %p77 = scmp.ne.s32.totalorder %s68, %s69
    %p78 = scmp.eq.s32.totalorder %s16, 0
    %p79 = por %p77, %p78
    %p80 = scmp.ne.s32.totalorder %s68, %s69
    %p81 = scmp.eq.s32.totalorder %s17, 1
    %p82 = por %p80, %p81
    %p84 = scmp.ne.s32.totalorder %s69, %s83
    %p85 = scmp.eq.s32.totalorder %s17, 0
    %p86 = por %p84, %p85
    %s88 = sadd.s32 %s87, 1
    %p91 = scmp.eq.s32.totalorder %s11, 1
    %p92 = scmp.ne.s32.totalorder %s87, %s89
    %p93 = scmp.eq.s32.totalorder %s11, 0
    %p94 = por %p92, %p93
    %p95 = scmp.ne.s32.totalorder %s87, %s89
    %p96 = scmp.eq.s32.totalorder %s16, 1
    %p97 = por %p95, %p96
    %p98 = scmp.ne.s32.totalorder %s89, %s90
    %p99 = scmp.eq.s32.totalorder %s16, 0
    %p100 = por %p98, %p99
    %p101 = scmp.ne.s32.totalorder %s89, %s90
    %p102 = scmp.eq.s32.totalorder %s17, 1
    %p103 = por %p101, %p102
    %p105 = scmp.ne.s32.totalorder %s90, %s104
    %p106 = scmp.eq.s32.totalorder %s17, 0
    %p107 = por %p105, %p106
    %s109 = sadd.s32 %s108, 1
    %p112 = scmp.eq.s32.totalorder %s11, 1
    %p113 = scmp.ne.s32.totalorder %s108, %s110
    %p114 = scmp.eq.s32.totalorder %s11, 0
    %p115 = por %p113, %p114
    %p116 = scmp.ne.s32.totalorder %s108, %s110
    %p117 = scmp.eq.s32.totalorder %s16, 1
    %p118 = por %p116, %p117
    %p119 = scmp.ne.s32.totalorder %s110, %s111
    %p120 = scmp.eq.s32.totalorder %s16, 0
    %p121 = por %p119, %p120
    %p122 = scmp.ne.s32.totalorder %s110, %s111
    %p123 = scmp.eq.s32.totalorder %s17, 1
    %p124 = por %p122, %p123
    %p126 = scmp.ne.s32.totalorder %s111, %s125
    %p127 = scmp.eq.s32.totalorder %s17, 0
    %p128 = por %p126, %p127
    %s129 = ssub.s32 %s11, %s18
    %p130 = scmp.eq.s32.totalorder %s129, 0
    %s132 = sadd.s32 %s131, 1
    %s133 = scalar_select %p130, %s131, %s132
    %p136 = pneg %p130
    %p137 = scmp.eq.s32.totalorder %s11, 1
    %p138 = por %p136, %p137
    %p139 = scmp.ne.s32.totalorder %s131, %s134
    %p140 = scmp.eq.s32.totalorder %s11, 0
    %p141 = por %p139, %p140
    %p142 = scmp.ne.s32.totalorder %s131, %s134
    %p143 = scmp.eq.s32.totalorder %s16, 1
    %p144 = por %p142, %p143
    %p145 = scmp.ne.s32.totalorder %s134, %s135
    %p146 = scmp.eq.s32.totalorder %s16, 0
    %p147 = por %p145, %p146
    %p148 = scmp.ne.s32.totalorder %s134, %s135
    %p149 = scmp.eq.s32.totalorder %s17, 1
    %p150 = por %p148, %p149
    %p152 = scmp.ne.s32.totalorder %s135, %s151
    %p153 = scmp.eq.s32.totalorder %s17, 0
    %p154 = por %p152, %p153
    %p155 = scmp.le.s32.totalorder 1, %s11
    %p156 = scmp.lt.s32.totalorder %s11, 3
    %p157 = pnand %p155, %p156
    %p158 = pneg %p157
    // Predicated region
    $region9: #{tvqvae_forward.18} parent=5 // pred_check
      _
    $region10: #{tvqvae_forward.18} parent=5 // pred_check_branch
      %160 = sbr.rel (%p157) target = $region12
    $region11: #{tvqvae_forward.18} parent=5 // pred_region
      %s161 = ssub.s32 %s11, 1
      // Predicated region
      $region13: #{tvqvae_forward.18} parent=11 // pred_check
        %p162 = pneg %p58
      $region14: #{tvqvae_forward.18} parent=11 // pred_check_branch
        %164 = sbr.rel (%p162) target = $region16
      $region15: #{tvqvae_forward.18} parent=11 // pred_region
        _
      $region16: #{tvqvae_forward.18} parent=11 // pred_fallthru
        _
      // Predicated region
      $region17: #{tvqvae_forward.18} parent=11 // pred_check
        %p165 = pneg %p79
      $region18: #{tvqvae_forward.18} parent=11 // pred_check_branch
        %167 = sbr.rel (%p165) target = $region20
      $region19: #{tvqvae_forward.18} parent=11 // pred_region
        _
      $region20: #{tvqvae_forward.18} parent=11 // pred_fallthru
        _
      // Predicated region
      $region21: #{tvqvae_forward.18} parent=11 // pred_check
        %p168 = pneg %p100
      $region22: #{tvqvae_forward.18} parent=11 // pred_check_branch
        %170 = sbr.rel (%p168) target = $region24
      $region23: #{tvqvae_forward.18} parent=11 // pred_region
        _
      $region24: #{tvqvae_forward.18} parent=11 // pred_fallthru
        _
      // Predicated region
      $region25: #{tvqvae_forward.18} parent=11 // pred_check
        %p171 = pneg %p121
      $region26: #{tvqvae_forward.18} parent=11 // pred_check_branch
        %173 = sbr.rel (%p171) target = $region28
      $region27: #{tvqvae_forward.18} parent=11 // pred_region
        _
      $region28: #{tvqvae_forward.18} parent=11 // pred_fallthru
        _
    $region12: #{tvqvae_forward.18} parent=5 // pred_fallthru
      _
    %p174 = scmp.lt.s32.totalorder %s11, 2
    // Predicated region
    $region29: #{tvqvae_forward.18} parent=5 // pred_check
      %p175 = pneg %p174
    $region30: #{tvqvae_forward.18} parent=5 // pred_check_branch
      %177 = sbr.rel (%p175) target = $region32
    $region31: #{tvqvae_forward.18} parent=5 // pred_region
      // Predicated region
      $region33: #{tvqvae_forward.18} parent=31 // pred_check
        %p178 = pneg %p31
      $region34: #{tvqvae_forward.18} parent=31 // pred_check_branch
        %180 = sbr.rel (%p178) target = $region36
      $region35: #{tvqvae_forward.18} parent=31 // pred_region
        %p181 = scmp.lt.s32.totalorder %s11, 1
        %s182 = scalar_select %p181, %s11, 1
        %s183 = smul.addr %s182, 2
        %s184 = smul.addr %s183, 8
        %s185 = scalar_lea.vmem %s0, %s184
      $region36: #{tvqvae_forward.18} parent=31 // pred_fallthru
        _
    $region32: #{tvqvae_forward.18} parent=5 // pred_fallthru
      _
    %p186 = scmp.le.s32.totalorder 1, %s11
    %p187 = scmp.lt.s32.totalorder %s11, 3
    %p188 = pnand %p186, %p187
    %p189 = pneg %p188
    // Predicated region
    $region37: #{tvqvae_forward.18} parent=5 // pred_check
      _
    $region38: #{tvqvae_forward.18} parent=5 // pred_check_branch
      %191 = sbr.rel (%p188) target = $region40
    $region39: #{tvqvae_forward.18} parent=5 // pred_region
      %s192 = ssub.s32 %s11, 1
      %p193 = scmp.lt.s32.totalorder %s16, 1
      %s194 = scalar_select %p193, %s16, 1
      %s195 = smul.addr %s194, 2
      %s196 = smul.addr %s195, 8
      %s197 = scalar_lea.vmem %s0, %s196
      %p198 = pneg %p37
      %p199 = pneg %p34
      %p200 = pneg %p58
      %p201 = pneg %p55
      %p202 = pneg %p79
      %p203 = pneg %p76
      %p204 = pneg %p100
      %p205 = pneg %p97
      %p206 = pneg %p121
      %p207 = pneg %p118
      %p208 = pneg %p147
      %p209 = pneg %p144
      %p210 = scmp.lt.s32.totalorder %s16, 1
      %s211 = scalar_select %p210, %s16, 1
      %s212 = smul.addr %s211, 8
      %s213 = scalar_lea.vmem %s5, %s212
      %p214 = scmp.lt.s32.totalorder %s16, 1
      %s215 = scalar_select %p214, %s16, 1
      %s216 = smul.addr %s215, 2
      %s217 = smul.addr %s216, 8
      %s218 = scalar_lea.vmem %s0, %s217
      %p219 = scmp.lt.s32.totalorder %s16, 1
      %s220 = scalar_select %p219, %s16, 1
      %s221 = smul.addr %s220, 8
      %s222 = scalar_lea.vmem %s5, %s221
      %v224 = vld [vmem:[%s218] sm:$0xff]
      %v225 = vld [vmem:[%s218 + $0x8] sm:$0x3]
      %v226 = vpack.c.bf16 %v225, %v224
      %v227 = vld [vmem:[%s1] sm:$0xf]
      %v228 = vld [vmem:[%s1 + $0x4] sm:$0xf]
      %v229 = vld [vmem:[%s1 + $0x8] sm:$0xf]
      %s230 = scalar_lea.vmem %s1, 12
      %v231 = vld [vmem:[%s230] sm:$0xf]
      %v232 = vld [vmem:[%s230 + $0x4] sm:$0xf]
      %v233 = vld [vmem:[%s230 + $0x8] sm:$0xf]
      %v235 = vshrl.u32 %v226, 16
      %v237 = vshll.u32 %v226, 16
      %v239 = vrot.slane %v237, 1
      %v240 = vor.u32 %v235, %v239
      %v244 = vunpack.c.l.b16 %v231
      %v245 = vunpack.c.l.b16 %v232
      %v246 = vunpack.c.l.b16 %v233
      %v247 = vpack.c.b16 %v245, %v244
      %v248 = vpack.c.b16 %v246, %v246
      %vm250 = vcmask 195584
      %v252 = vsel %vm250, %v240, 0
      %vm254 = vcmask 1043456
      %v256 = vsel %vm254, %v248, 0
      %258 = vmatprep.subr.bf16.mxu0 0
      %259 = vmatpush1.bf16.msra.mxu0 %v247
      %260 = vmatprep.subr.bf16.mxu0 0
      %261 = vmatpush1.bf16.msra.mxu0 %v256
      %262 = vmatprep.subr.bf16.mxu0 0
      %263 = vmatpush1.bf16.msra.mxu0 0
      %264 = vmatprep.subr.bf16.mxu0 0
      %265 = vmatpush1.bf16.msra.mxu0 0
      %266 = vmatprep.subr.bf16.mxu0 0
      %267 = vmatpush1.bf16.msra.mxu0 0
      %268 = vmatprep.subr.bf16.mxu0 0
      %269 = vmatpush1.bf16.msra.mxu0 0
      %270 = vmatprep.subr.bf16.mxu0 0
      %271 = vmatpush1.bf16.msra.mxu0 0
      %272 = vmatprep.subr.bf16.mxu0 0
      %273 = vmatpush1.bf16.msra.mxu0 0
      %274 = vmatprep.subr.bf16.mxu0 0
      %275 = vmatpush1.bf16.msra.mxu0 0
      %276 = vmatprep.subr.bf16.mxu0 0
      %277 = vmatpush1.bf16.msra.mxu0 0
      %278 = vmatprep.subr.bf16.mxu0 0
      %279 = vmatpush1.bf16.msra.mxu0 0
      %280 = vmatprep.subr.bf16.mxu0 0
      %281 = vmatpush1.bf16.msra.mxu0 0
      %282 = vmatprep.subr.bf16.mxu0 0
      %283 = vmatpush1.bf16.msra.mxu0 0
      %284 = vmatprep.subr.bf16.mxu0 0
      %285 = vmatpush1.bf16.msra.mxu0 0
      %286 = vmatprep.subr.bf16.mxu0 0
      %287 = vmatpush1.bf16.msra.mxu0 0
      %288 = vmatprep.subr.bf16.mxu0 0
      %289 = vmatpush1.bf16.msra.mxu0 0
      %290 = vmatprep.mubr.bf16.mxu0 0
      %291 = vmatmul.mubr.bf16.gmra.mrb[0].mxu0 %v252
      %v292 = vpop.f32.mrb[0].mxu0
      %v293 = vadd.f32 0.0, %v292
      %v294 = vpop.f32.mrb[0].mxu0
      %v295 = vpop.f32.mrb[0].mxu0
      %v296 = vpop.f32.mrb[0].mxu0
      %297 = vdwg.mxu0
      %v301 = vunpack.c.l.b16 %v227
      %v302 = vunpack.c.l.b16 %v228
      %v303 = vunpack.c.l.b16 %v229
      %v304 = vpack.c.b16 %v302, %v301
      %v305 = vpack.c.b16 %v303, %v303
      %v307 = vsel %vm250, %v226, 0
      %v310 = vsel %vm254, %v305, 0
      %312 = vmatprep.subr.bf16.mxu0 0
      %313 = vmatpush1.bf16.msra.mxu0 %v304
      %314 = vmatprep.subr.bf16.mxu0 0
      %315 = vmatpush1.bf16.msra.mxu0 %v310
      %316 = vmatprep.subr.bf16.mxu0 0
      %317 = vmatpush1.bf16.msra.mxu0 0
      %318 = vmatprep.subr.bf16.mxu0 0
      %319 = vmatpush1.bf16.msra.mxu0 0
      %320 = vmatprep.subr.bf16.mxu0 0
      %321 = vmatpush1.bf16.msra.mxu0 0
      %322 = vmatprep.subr.bf16.mxu0 0
      %323 = vmatpush1.bf16.msra.mxu0 0
      %324 = vmatprep.subr.bf16.mxu0 0
      %325 = vmatpush1.bf16.msra.mxu0 0
      %326 = vmatprep.subr.bf16.mxu0 0
      %327 = vmatpush1.bf16.msra.mxu0 0
      %328 = vmatprep.subr.bf16.mxu0 0
      %329 = vmatpush1.bf16.msra.mxu0 0
      %330 = vmatprep.subr.bf16.mxu0 0
      %331 = vmatpush1.bf16.msra.mxu0 0
      %332 = vmatprep.subr.bf16.mxu0 0
      %333 = vmatpush1.bf16.msra.mxu0 0
      %334 = vmatprep.subr.bf16.mxu0 0
      %335 = vmatpush1.bf16.msra.mxu0 0
      %336 = vmatprep.subr.bf16.mxu0 0
      %337 = vmatpush1.bf16.msra.mxu0 0
      %338 = vmatprep.subr.bf16.mxu0 0
      %339 = vmatpush1.bf16.msra.mxu0 0
      %340 = vmatprep.subr.bf16.mxu0 0
      %341 = vmatpush1.bf16.msra.mxu0 0
      %342 = vmatprep.subr.bf16.mxu0 0
      %343 = vmatpush1.bf16.msra.mxu0 0
      %344 = vmatprep.mubr.bf16.mxu0 0
      %345 = vmatmul.mubr.bf16.gmra.mrb[0].mxu0 %v307
      %v346 = vpop.f32.mrb[0].mxu0
      %v347 = vadd.f32 %v293, %v346
      %v348 = vpop.f32.mrb[0].mxu0
      %v349 = vpop.f32.mrb[0].mxu0
      %v350 = vpop.f32.mrb[0].mxu0
      %351 = vdwg.mxu0
      %s352 = scalar_lea.vmem %s1, 24
      %v353 = vld [vmem:[%s352] sm:$0xf]
      %v354 = vld [vmem:[%s352 + $0x4] sm:$0xf]
      %v355 = vld [vmem:[%s352 + $0x8] sm:$0xf]
      %v357 = vrot.slane %v226, 1
      %v361 = vunpack.c.l.b16 %v353
      %v362 = vunpack.c.l.b16 %v354
      %v363 = vunpack.c.l.b16 %v355
      %v364 = vpack.c.b16 %v362, %v361
      %v365 = vpack.c.b16 %v363, %v363
      %v368 = vsel %vm250, %v357, 0
      %v371 = vsel %vm254, %v365, 0
      %373 = vmatprep.subr.bf16.mxu0 0
      %374 = vmatpush1.bf16.msra.mxu0 %v364
      %375 = vmatprep.subr.bf16.mxu0 0
      %376 = vmatpush1.bf16.msra.mxu0 %v371
      %377 = vmatprep.subr.bf16.mxu0 0
      %378 = vmatpush1.bf16.msra.mxu0 0
      %379 = vmatprep.subr.bf16.mxu0 0
      %380 = vmatpush1.bf16.msra.mxu0 0
      %381 = vmatprep.subr.bf16.mxu0 0
      %382 = vmatpush1.bf16.msra.mxu0 0
      %383 = vmatprep.subr.bf16.mxu0 0
      %384 = vmatpush1.bf16.msra.mxu0 0
      %385 = vmatprep.subr.bf16.mxu0 0
      %386 = vmatpush1.bf16.msra.mxu0 0
      %387 = vmatprep.subr.bf16.mxu0 0
      %388 = vmatpush1.bf16.msra.mxu0 0
      %389 = vmatprep.subr.bf16.mxu0 0
      %390 = vmatpush1.bf16.msra.mxu0 0
      %391 = vmatprep.subr.bf16.mxu0 0
      %392 = vmatpush1.bf16.msra.mxu0 0
      %393 = vmatprep.subr.bf16.mxu0 0
      %394 = vmatpush1.bf16.msra.mxu0 0
      %395 = vmatprep.subr.bf16.mxu0 0
      %396 = vmatpush1.bf16.msra.mxu0 0
      %397 = vmatprep.subr.bf16.mxu0 0
      %398 = vmatpush1.bf16.msra.mxu0 0
      %399 = vmatprep.subr.bf16.mxu0 0
      %400 = vmatpush1.bf16.msra.mxu0 0
      %401 = vmatprep.subr.bf16.mxu0 0
      %402 = vmatpush1.bf16.msra.mxu0 0
      %403 = vmatprep.subr.bf16.mxu0 0
      %404 = vmatpush1.bf16.msra.mxu0 0
      %405 = vmatprep.mubr.bf16.mxu0 0
      %406 = vmatmul.mubr.bf16.gmra.mrb[0].mxu0 %v368
      %v407 = vpop.f32.mrb[0].mxu0
      %v408 = vadd.f32 0.0, %v407
      %v409 = vpop.f32.mrb[0].mxu0
      %v410 = vpop.f32.mrb[0].mxu0
      %v411 = vpop.f32.mrb[0].mxu0
      %412 = vdwg.mxu0
      %v413 = vadd.f32 %v347, %v408
      %v414 = vld [vmem:[%s2] sm:$0x1]
      %v416 = vlaneseq
      %v417 = vshrl.u32 %v416, 7
      %v418 = vsub.s32 0, %v417
      %v419 = vrot.slane %v414, %v418
      %v421 = vadd.f32 %v413, %v419
      %vm422 = vcmp.ge.f32.partialorder %v421, 0.0
      %v423 = vmul.f32 %v421, 0.2
      %v424 = vsel %vm422, %v421, %v423
      %v425 = vld [vmem:[%s3] sm:$0x1]
      %v427 = vlaneseq
      %v428 = vshrl.u32 %v427, 7
      %v429 = vsub.s32 0, %v428
      %v430 = vrot.slane %v425, %v429
      %v432 = vmul.f32 %v424, %v430
      %v433 = vld [vmem:[%s4] sm:$0x1]
      %v435 = vlaneseq
      %v436 = vshrl.u32 %v435, 7
      %v437 = vsub.s32 0, %v436
      %v438 = vrot.slane %v433, %v437
      %v440 = vadd.f32 %v432, %v438
      %vm441 = vcmask 261120
      %442 = vst.msk [vmem:[%s222] sm:$0xff] %vm441, %v440
      %p443 = scmp.lt.s32.totalorder %s16, 1
      %s444 = scalar_select %p443, %s16, 1
      %s445 = smul.addr %s444, 8
      %s446 = scalar_lea.vmem %s5, %s445
      // Predicated region
      $region41: #{tvqvae_forward.18} parent=39 // pred_check
        %p447 = pneg %p144
      $region42: #{tvqvae_forward.18} parent=39 // pred_check_branch
        %449 = sbr.rel (%p447) target = $region44
      $region43: #{tvqvae_forward.18} parent=39 // pred_region
        _
      $region44: #{tvqvae_forward.18} parent=39 // pred_fallthru
        _
    $region40: #{tvqvae_forward.18} parent=5 // pred_fallthru
      _
    %p450 = scmp.le.s32.totalorder 2, %s11
    // Predicated region
    $region45: #{tvqvae_forward.18} parent=5 // pred_check
      %p451 = pneg %p450
    $region46: #{tvqvae_forward.18} parent=5 // pred_check_branch
      %453 = sbr.rel (%p451) target = $region48
    $region47: #{tvqvae_forward.18} parent=5 // pred_region
      %s454 = ssub.s32 %s11, 2
      // Predicated region
      $region49: #{tvqvae_forward.18} parent=47 // pred_check
        %p455 = pneg %p150
      $region50: #{tvqvae_forward.18} parent=47 // pred_check_branch
        %457 = sbr.rel (%p455) target = $region52
      $region51: #{tvqvae_forward.18} parent=47 // pred_region
        %p458 = scmp.lt.s32.totalorder %s17, 1
        %s459 = scalar_select %p458, %s17, 1
        %s460 = smul.addr %s459, 8
        %s461 = scalar_lea.vmem %s5, %s460
      $region52: #{tvqvae_forward.18} parent=47 // pred_fallthru
        _
    $region48: #{tvqvae_forward.18} parent=5 // pred_fallthru
      _
  $region6: #{tvqvae_forward.18} parent=0 // loop_footer
    %s15 = sadd.s32 1, %s11
  $region7: #{tvqvae_forward.18} parent=0 // loop_footer_branch
    %10 = sbr.rel target = $region3
  $region8: #{tvqvae_forward.18} parent=0 // loop_exit
    _

// kernel: tvqvae_forward.19
$region0: #{tvqvae_forward.19}
  #allocation0 [shape = 'u32[]', space=smem, size = 0x4, offset = 0x4, fixed_abs, tag = 'smem constant byte address 0x4 - core index']
  #allocation1 [shape = 'u32[144,128]{1,0:T(1,128)}', space=vmem, size = 0x12000, scoped, tag = 'internal scratch']
  %s0 = inlined_call_operand.vmem [shape: f32[2,12,32], index: 0, kind: input, shape index: {}]
  %s1 = inlined_call_operand.vmem [shape: bf16[5,32,32], index: 1, kind: input, shape index: {}]
  %s2 = inlined_call_operand.vmem [shape: f32[1,32], index: 2, kind: input, shape index: {}]
  %s3 = inlined_call_operand.vmem [shape: f32[1,32], index: 3, kind: input, shape index: {}]
  %s4 = inlined_call_operand.vmem [shape: f32[1,32], index: 4, kind: input, shape index: {}]
  %s5 = inlined_call_operand.vmem [shape: f32[2,8,32], index: 5, kind: output, shape index: {}]
  %s6 = sld [smem:[#allocation0]]
  $region53: #{tvqvae_forward.19} parent=0
    _
  %s8 = ssub.s32 1, %s6
  %s9 = scalar_select 0, %s8, %s6
  loop: start=0, step=1, limit=4
  $region2: #{tvqvae_forward.19} parent=0 // loop_pre_header
    _
  $region3: #{tvqvae_forward.19} parent=0 // loop_header
    %s11 = sphi 0, %s15
    %p12 = scmp.ge.s32.totalorder %s11, 4
    %s21 = sphi 0, %s23
    %s24 = sphi 0, %s21
    %s25 = sphi 0, %s24
    %s41 = sphi 0, %s25
    %s45 = sphi 0, %s45
    %s47 = sphi 0, %s45
    %s48 = sphi 0, %s47
    %s62 = sphi 0, %s48
    %s66 = sphi 0, %s66
    %s68 = sphi 0, %s66
    %s69 = sphi 0, %s68
    %s83 = sphi 0, %s69
    %s87 = sphi 0, %s87
    %s89 = sphi 0, %s87
    %s90 = sphi 0, %s89
    %s104 = sphi 0, %s90
    %s108 = sphi 0, %s108
    %s110 = sphi 0, %s108
    %s111 = sphi 0, %s110
    %s125 = sphi 0, %s111
    %s131 = sphi 0, %s133
    %s134 = sphi 0, %s131
    %s135 = sphi 0, %s134
    %s151 = sphi 0, %s135
  $region4: #{tvqvae_forward.19} parent=0 // loop_header_branch
    %14 = sbr.rel (%p12) target = $region8
  $region5: #{tvqvae_forward.19} parent=0 // loop_body
    %s16 = ssub.s32 %s11, 1
    %s17 = ssub.s32 %s11, 2
    %s18 = sadd.s32 %s11, 1
    %s19 = ssub.s32 %s11, %s18
    %p20 = scmp.eq.s32.totalorder %s19, 0
    %s22 = sadd.s32 %s21, 1
    %s23 = scalar_select %p20, %s21, %s22
    %p26 = pneg %p20
    %p27 = scmp.eq.s32.totalorder %s11, 1
    %p28 = por %p26, %p27
    %p29 = scmp.ne.s32.totalorder %s21, %s24
    %p30 = scmp.eq.s32.totalorder %s11, 0
    %p31 = por %p29, %p30
    %p32 = scmp.ne.s32.totalorder %s21, %s24
    %p33 = scmp.eq.s32.totalorder %s16, 1
    %p34 = por %p32, %p33
    %p35 = scmp.ne.s32.totalorder %s24, %s25
    %p36 = scmp.eq.s32.totalorder %s16, 0
    %p37 = por %p35, %p36
    %p38 = scmp.ne.s32.totalorder %s24, %s25
    %p39 = scmp.eq.s32.totalorder %s17, 1
    %p40 = por %p38, %p39
    %p42 = scmp.ne.s32.totalorder %s25, %s41
    %p43 = scmp.eq.s32.totalorder %s17, 0
    %p44 = por %p42, %p43
    %s46 = sadd.s32 %s45, 1
    %p49 = scmp.eq.s32.totalorder %s11, 1
    %p50 = scmp.ne.s32.totalorder %s45, %s47
    %p51 = scmp.eq.s32.totalorder %s11, 0
    %p52 = por %p50, %p51
    %p53 = scmp.ne.s32.totalorder %s45, %s47
    %p54 = scmp.eq.s32.totalorder %s16, 1
    %p55 = por %p53, %p54
    %p56 = scmp.ne.s32.totalorder %s47, %s48
    %p57 = scmp.eq.s32.totalorder %s16, 0
    %p58 = por %p56, %p57
    %p59 = scmp.ne.s32.totalorder %s47, %s48
    %p60 = scmp.eq.s32.totalorder %s17, 1
    %p61 = por %p59, %p60
    %p63 = scmp.ne.s32.totalorder %s48, %s62
    %p64 = scmp.eq.s32.totalorder %s17, 0
    %p65 = por %p63, %p64
    %s67 = sadd.s32 %s66, 1
    %p70 = scmp.eq.s32.totalorder %s11, 1
    %p71 = scmp.ne.s32.totalorder %s66, %s68
    %p72 = scmp.eq.s32.totalorder %s11, 0
    %p73 = por %p71, %p72
    %p74 = scmp.ne.s32.totalorder %s66, %s68
    %p75 = scmp.eq.s32.totalorder %s16, 1
    %p76 = por %p74, %p75
    %p77 = scmp.ne.s32.totalorder %s68, %s69
    %p78 = scmp.eq.s32.totalorder %s16, 0
    %p79 = por %p77, %p78
    %p80 = scmp.ne.s32.totalorder %s68, %s69
    %p81 = scmp.eq.s32.totalorder %s17, 1
    %p82 = por %p80, %p81
    %p84 = scmp.ne.s32.totalorder %s69, %s83
    %p85 = scmp.eq.s32.totalorder %s17, 0
    %p86 = por %p84, %p85
    %s88 = sadd.s32 %s87, 1
    %p91 = scmp.eq.s32.totalorder %s11, 1
    %p92 = scmp.ne.s32.totalorder %s87, %s89
    %p93 = scmp.eq.s32.totalorder %s11, 0
    %p94 = por %p92, %p93
    %p95 = scmp.ne.s32.totalorder %s87, %s89
    %p96 = scmp.eq.s32.totalorder %s16, 1
    %p97 = por %p95, %p96
    %p98 = scmp.ne.s32.totalorder %s89, %s90
    %p99 = scmp.eq.s32.totalorder %s16, 0
    %p100 = por %p98, %p99
    %p101 = scmp.ne.s32.totalorder %s89, %s90
    %p102 = scmp.eq.s32.totalorder %s17, 1
    %p103 = por %p101, %p102
    %p105 = scmp.ne.s32.totalorder %s90, %s104
    %p106 = scmp.eq.s32.totalorder %s17, 0
    %p107 = por %p105, %p106
    %s109 = sadd.s32 %s108, 1
    %p112 = scmp.eq.s32.totalorder %s11, 1
    %p113 = scmp.ne.s32.totalorder %s108, %s110
    %p114 = scmp.eq.s32.totalorder %s11, 0
    %p115 = por %p113, %p114
    %p116 = scmp.ne.s32.totalorder %s108, %s110
    %p117 = scmp.eq.s32.totalorder %s16, 1
    %p118 = por %p116, %p117
    %p119 = scmp.ne.s32.totalorder %s110, %s111
    %p120 = scmp.eq.s32.totalorder %s16, 0
    %p121 = por %p119, %p120
    %p122 = scmp.ne.s32.totalorder %s110, %s111
    %p123 = scmp.eq.s32.totalorder %s17, 1
    %p124 = por %p122, %p123
    %p126 = scmp.ne.s32.totalorder %s111, %s125
    %p127 = scmp.eq.s32.totalorder %s17, 0
    %p128 = por %p126, %p127
    %s129 = ssub.s32 %s11, %s18
    %p130 = scmp.eq.s32.totalorder %s129, 0
    %s132 = sadd.s32 %s131, 1
    %s133 = scalar_select %p130, %s131, %s132
    %p136 = pneg %p130
    %p137 = scmp.eq.s32.totalorder %s11, 1
    %p138 = por %p136, %p137
    %p139 = scmp.ne.s32.totalorder %s131, %s134
    %p140 = scmp.eq.s32.totalorder %s11, 0
    %p141 = por %p139, %p140
    %p142 = scmp.ne.s32.totalorder %s131, %s134
    %p143 = scmp.eq.s32.totalorder %s16, 1
    %p144 = por %p142, %p143
    %p145 = scmp.ne.s32.totalorder %s134, %s135
    %p146 = scmp.eq.s32.totalorder %s16, 0
    %p147 = por %p145, %p146
    %p148 = scmp.ne.s32.totalorder %s134, %s135
    %p149 = scmp.eq.s32.totalorder %s17, 1
    %p150 = por %p148, %p149
    %p152 = scmp.ne.s32.totalorder %s135, %s151
    %p153 = scmp.eq.s32.totalorder %s17, 0
    %p154 = por %p152, %p153
    %p155 = scmp.le.s32.totalorder 1, %s11
    %p156 = scmp.lt.s32.totalorder %s11, 3
    %p157 = pnand %p155, %p156
    %p158 = pneg %p157
    // Predicated region
    $region9: #{tvqvae_forward.19} parent=5 // pred_check
      _
    $region10: #{tvqvae_forward.19} parent=5 // pred_check_branch
      %160 = sbr.rel (%p157) target = $region12
    $region11: #{tvqvae_forward.19} parent=5 // pred_region
      %s161 = ssub.s32 %s11, 1
      // Predicated region
      $region13: #{tvqvae_forward.19} parent=11 // pred_check
        %p162 = pneg %p58
      $region14: #{tvqvae_forward.19} parent=11 // pred_check_branch
        %164 = sbr.rel (%p162) target = $region16
      $region15: #{tvqvae_forward.19} parent=11 // pred_region
        _
      $region16: #{tvqvae_forward.19} parent=11 // pred_fallthru
        _
      // Predicated region
      $region17: #{tvqvae_forward.19} parent=11 // pred_check
        %p165 = pneg %p79
      $region18: #{tvqvae_forward.19} parent=11 // pred_check_branch
        %167 = sbr.rel (%p165) target = $region20
      $region19: #{tvqvae_forward.19} parent=11 // pred_region
        _
      $region20: #{tvqvae_forward.19} parent=11 // pred_fallthru
        _
      // Predicated region
      $region21: #{tvqvae_forward.19} parent=11 // pred_check
        %p168 = pneg %p100
      $region22: #{tvqvae_forward.19} parent=11 // pred_check_branch
        %170 = sbr.rel (%p168) target = $region24
      $region23: #{tvqvae_forward.19} parent=11 // pred_region
        _
      $region24: #{tvqvae_forward.19} parent=11 // pred_fallthru
        _
      // Predicated region
      $region25: #{tvqvae_forward.19} parent=11 // pred_check
        %p171 = pneg %p121
      $region26: #{tvqvae_forward.19} parent=11 // pred_check_branch
        %173 = sbr.rel (%p171) target = $region28
      $region27: #{tvqvae_forward.19} parent=11 // pred_region
        _
      $region28: #{tvqvae_forward.19} parent=11 // pred_fallthru
        _
    $region12: #{tvqvae_forward.19} parent=5 // pred_fallthru
      _
    %p174 = scmp.lt.s32.totalorder %s11, 2
    // Predicated region
    $region29: #{tvqvae_forward.19} parent=5 // pred_check
      %p175 = pneg %p174
    $region30: #{tvqvae_forward.19} parent=5 // pred_check_branch
      %177 = sbr.rel (%p175) target = $region32
    $region31: #{tvqvae_forward.19} parent=5 // pred_region
      // Predicated region
      $region33: #{tvqvae_forward.19} parent=31 // pred_check
        %p178 = pneg %p31
      $region34: #{tvqvae_forward.19} parent=31 // pred_check_branch
        %180 = sbr.rel (%p178) target = $region36
      $region35: #{tvqvae_forward.19} parent=31 // pred_region
        %p181 = scmp.lt.s32.totalorder %s11, 1
        %s182 = scalar_select %p181, %s11, 1
        %s183 = smul.addr %s182, 2
        %s184 = smul.addr %s183, 8
        %s185 = scalar_lea.vmem %s0, %s184
      $region36: #{tvqvae_forward.19} parent=31 // pred_fallthru
        _
    $region32: #{tvqvae_forward.19} parent=5 // pred_fallthru
      _
    %p186 = scmp.le.s32.totalorder 1, %s11
    %p187 = scmp.lt.s32.totalorder %s11, 3
    %p188 = pnand %p186, %p187
    %p189 = pneg %p188
    // Predicated region
    $region37: #{tvqvae_forward.19} parent=5 // pred_check
      _
    $region38: #{tvqvae_forward.19} parent=5 // pred_check_branch
      %191 = sbr.rel (%p188) target = $region40
    $region39: #{tvqvae_forward.19} parent=5 // pred_region
      %s192 = ssub.s32 %s11, 1
      %p193 = scmp.lt.s32.totalorder %s16, 1
      %s194 = scalar_select %p193, %s16, 1
      %s195 = smul.addr %s194, 2
      %s196 = smul.addr %s195, 8
      %s197 = scalar_lea.vmem %s0, %s196
      %p198 = pneg %p37
      %p199 = pneg %p34
      %p200 = pneg %p58
      %p201 = pneg %p55
      %p202 = pneg %p79
      %p203 = pneg %p76
      %p204 = pneg %p100
      %p205 = pneg %p97
      %p206 = pneg %p121
      %p207 = pneg %p118
      %p208 = pneg %p147
      %p209 = pneg %p144
      %p210 = scmp.lt.s32.totalorder %s16, 1
      %s211 = scalar_select %p210, %s16, 1
      %s212 = smul.addr %s211, 8
      %s213 = scalar_lea.vmem %s5, %s212
      %p214 = scmp.lt.s32.totalorder %s16, 1
      %s215 = scalar_select %p214, %s16, 1
      %s216 = smul.addr %s215, 2
      %s217 = smul.addr %s216, 8
      %s218 = scalar_lea.vmem %s0, %s217
      %p219 = scmp.lt.s32.totalorder %s16, 1
      %s220 = scalar_select %p219, %s16, 1
      %s221 = smul.addr %s220, 8
      %s222 = scalar_lea.vmem %s5, %s221
      %v224 = vld [vmem:[%s218] sm:$0xff]
      %v225 = vld [vmem:[%s218 + $0x8] sm:$0xf]
      %v226 = vpack.c.bf16 %v225, %v224
      %v227 = vld [vmem:[%s1] sm:$0xf]
      %v228 = vld [vmem:[%s1 + $0x4] sm:$0xf]
      %v229 = vld [vmem:[%s1 + $0x8] sm:$0xf]
      %v230 = vld [vmem:[%s1 + $0xc] sm:$0xf]
      %s231 = scalar_lea.vmem %s1, 16
      %v232 = vld [vmem:[%s231] sm:$0xf]
      %v233 = vld [vmem:[%s231 + $0x4] sm:$0xf]
      %v234 = vld [vmem:[%s231 + $0x8] sm:$0xf]
      %v235 = vld [vmem:[%s231 + $0xc] sm:$0xf]
      %v237 = vshrl.u32 %v226, 16
      %v239 = vshll.u32 %v226, 16
      %v241 = vrot.slane %v239, 1
      %v242 = vor.u32 %v237, %v241
      %v247 = vunpack.c.l.b16 %v232
      %v248 = vunpack.c.l.b16 %v233
      %v249 = vunpack.c.l.b16 %v234
      %v250 = vunpack.c.l.b16 %v235
      %v251 = vpack.c.b16 %v248, %v247
      %v252 = vpack.c.b16 %v250, %v249
      %vm255 = vcmask 261120
      %v257 = vsel %vm255, %v242, 0
      %259 = vmatprep.subr.bf16.mxu0 0
      %260 = vmatpush1.bf16.msra.mxu0 %v251
      %261 = vmatprep.subr.bf16.mxu0 0
      %262 = vmatpush1.bf16.msra.mxu0 %v252
      %263 = vmatprep.subr.bf16.mxu0 0
      %264 = vmatpush1.bf16.msra.mxu0 0
      %265 = vmatprep.subr.bf16.mxu0 0
      %266 = vmatpush1.bf16.msra.mxu0 0
      %267 = vmatprep.subr.bf16.mxu0 0
      %268 = vmatpush1.bf16.msra.mxu0 0
      %269 = vmatprep.subr.bf16.mxu0 0
      %270 = vmatpush1.bf16.msra.mxu0 0
      %271 = vmatprep.subr.bf16.mxu0 0
      %272 = vmatpush1.bf16.msra.mxu0 0
      %273 = vmatprep.subr.bf16.mxu0 0
      %274 = vmatpush1.bf16.msra.mxu0 0
      %275 = vmatprep.subr.bf16.mxu0 0
      %276 = vmatpush1.bf16.msra.mxu0 0
      %277 = vmatprep.subr.bf16.mxu0 0
      %278 = vmatpush1.bf16.msra.mxu0 0
      %279 = vmatprep.subr.bf16.mxu0 0
      %280 = vmatpush1.bf16.msra.mxu0 0
      %281 = vmatprep.subr.bf16.mxu0 0
      %282 = vmatpush1.bf16.msra.mxu0 0
      %283 = vmatprep.subr.bf16.mxu0 0
      %284 = vmatpush1.bf16.msra.mxu0 0
      %285 = vmatprep.subr.bf16.mxu0 0
      %286 = vmatpush1.bf16.msra.mxu0 0
      %287 = vmatprep.subr.bf16.mxu0 0
      %288 = vmatpush1.bf16.msra.mxu0 0
      %289 = vmatprep.subr.bf16.mxu0 0
      %290 = vmatpush1.bf16.msra.mxu0 0
      %291 = vmatprep.mubr.bf16.mxu0 0
      %292 = vmatmul.mubr.bf16.gmra.mrb[0].mxu0 %v257
      %v293 = vpop.f32.mrb[0].mxu0
      %v294 = vadd.f32 0.0, %v293
      %v295 = vpop.f32.mrb[0].mxu0
      %v296 = vpop.f32.mrb[0].mxu0
      %v297 = vpop.f32.mrb[0].mxu0
      %298 = vdwg.mxu0
      %v303 = vunpack.c.l.b16 %v227
      %v304 = vunpack.c.l.b16 %v228
      %v305 = vunpack.c.l.b16 %v229
      %v306 = vunpack.c.l.b16 %v230
      %v307 = vpack.c.b16 %v304, %v303
      %v308 = vpack.c.b16 %v306, %v305
      %v311 = vsel %vm255, %v226, 0
      %313 = vmatprep.subr.bf16.mxu0 0
      %314 = vmatpush1.bf16.msra.mxu0 %v307
      %315 = vmatprep.subr.bf16.mxu0 0
      %316 = vmatpush1.bf16.msra.mxu0 %v308
      %317 = vmatprep.subr.bf16.mxu0 0
      %318 = vmatpush1.bf16.msra.mxu0 0
      %319 = vmatprep.subr.bf16.mxu0 0
      %320 = vmatpush1.bf16.msra.mxu0 0
      %321 = vmatprep.subr.bf16.mxu0 0
      %322 = vmatpush1.bf16.msra.mxu0 0
      %323 = vmatprep.subr.bf16.mxu0 0
      %324 = vmatpush1.bf16.msra.mxu0 0
      %325 = vmatprep.subr.bf16.mxu0 0
      %326 = vmatpush1.bf16.msra.mxu0 0
      %327 = vmatprep.subr.bf16.mxu0 0
      %328 = vmatpush1.bf16.msra.mxu0 0
      %329 = vmatprep.subr.bf16.mxu0 0
      %330 = vmatpush1.bf16.msra.mxu0 0
      %331 = vmatprep.subr.bf16.mxu0 0
      %332 = vmatpush1.bf16.msra.mxu0 0
      %333 = vmatprep.subr.bf16.mxu0 0
      %334 = vmatpush1.bf16.msra.mxu0 0
      %335 = vmatprep.subr.bf16.mxu0 0
      %336 = vmatpush1.bf16.msra.mxu0 0
      %337 = vmatprep.subr.bf16.mxu0 0
      %338 = vmatpush1.bf16.msra.mxu0 0
      %339 = vmatprep.subr.bf16.mxu0 0
      %340 = vmatpush1.bf16.msra.mxu0 0
      %341 = vmatprep.subr.bf16.mxu0 0
      %342 = vmatpush1.bf16.msra.mxu0 0
      %343 = vmatprep.subr.bf16.mxu0 0
      %344 = vmatpush1.bf16.msra.mxu0 0
      %345 = vmatprep.mubr.bf16.mxu0 0
      %346 = vmatmul.mubr.bf16.gmra.mrb[0].mxu0 %v311
      %v347 = vpop.f32.mrb[0].mxu0
      %v348 = vadd.f32 %v294, %v347
      %v349 = vpop.f32.mrb[0].mxu0
      %v350 = vpop.f32.mrb[0].mxu0
      %v351 = vpop.f32.mrb[0].mxu0
      %352 = vdwg.mxu0
      %s353 = scalar_lea.vmem %s1, 32
      %v354 = vld [vmem:[%s353] sm:$0xf]
      %v355 = vld [vmem:[%s353 + $0x4] sm:$0xf]
      %v356 = vld [vmem:[%s353 + $0x8] sm:$0xf]
      %v357 = vld [vmem:[%s353 + $0xc] sm:$0xf]
      %v359 = vrot.slane %v226, 1
      %v364 = vunpack.c.l.b16 %v354
      %v365 = vunpack.c.l.b16 %v355
      %v366 = vunpack.c.l.b16 %v356
      %v367 = vunpack.c.l.b16 %v357
      %v368 = vpack.c.b16 %v365, %v364
      %v369 = vpack.c.b16 %v367, %v366
      %v373 = vsel %vm255, %v359, 0
      %375 = vmatprep.subr.bf16.mxu0 0
      %376 = vmatpush1.bf16.msra.mxu0 %v368
      %377 = vmatprep.subr.bf16.mxu0 0
      %378 = vmatpush1.bf16.msra.mxu0 %v369
      %379 = vmatprep.subr.bf16.mxu0 0
      %380 = vmatpush1.bf16.msra.mxu0 0
      %381 = vmatprep.subr.bf16.mxu0 0
      %382 = vmatpush1.bf16.msra.mxu0 0
      %383 = vmatprep.subr.bf16.mxu0 0
      %384 = vmatpush1.bf16.msra.mxu0 0
      %385 = vmatprep.subr.bf16.mxu0 0
      %386 = vmatpush1.bf16.msra.mxu0 0
      %387 = vmatprep.subr.bf16.mxu0 0
      %388 = vmatpush1.bf16.msra.mxu0 0
      %389 = vmatprep.subr.bf16.mxu0 0
      %390 = vmatpush1.bf16.msra.mxu0 0
      %391 = vmatprep.subr.bf16.mxu0 0
      %392 = vmatpush1.bf16.msra.mxu0 0
      %393 = vmatprep.subr.bf16.mxu0 0
      %394 = vmatpush1.bf16.msra.mxu0 0
      %395 = vmatprep.subr.bf16.mxu0 0
      %396 = vmatpush1.bf16.msra.mxu0 0
      %397 = vmatprep.subr.bf16.mxu0 0
      %398 = vmatpush1.bf16.msra.mxu0 0
      %399 = vmatprep.subr.bf16.mxu0 0
      %400 = vmatpush1.bf16.msra.mxu0 0
      %401 = vmatprep.subr.bf16.mxu0 0
      %402 = vmatpush1.bf16.msra.mxu0 0
      %403 = vmatprep.subr.bf16.mxu0 0
      %404 = vmatpush1.bf16.msra.mxu0 0
      %405 = vmatprep.subr.bf16.mxu0 0
      %406 = vmatpush1.bf16.msra.mxu0 0
      %407 = vmatprep.mubr.bf16.mxu0 0
      %408 = vmatmul.mubr.bf16.gmra.mrb[0].mxu0 %v373
      %v409 = vpop.f32.mrb[0].mxu0
      %v410 = vadd.f32 0.0, %v409
      %v411 = vpop.f32.mrb[0].mxu0
      %v412 = vpop.f32.mrb[0].mxu0
      %v413 = vpop.f32.mrb[0].mxu0
      %414 = vdwg.mxu0
      %v415 = vadd.f32 %v348, %v410
      %s416 = scalar_lea.vmem %s1, 48
      %v417 = vld [vmem:[%s416] sm:$0xf]
      %v418 = vld [vmem:[%s416 + $0x4] sm:$0xf]
      %v419 = vld [vmem:[%s416 + $0x8] sm:$0xf]
      %v420 = vld [vmem:[%s416 + $0xc] sm:$0xf]
      %v421 = vrot.slane %v237, 1
      %v422 = vrot.slane %v239, 2
      %v423 = vor.u32 %v421, %v422
      %v428 = vunpack.c.l.b16 %v417
      %v429 = vunpack.c.l.b16 %v418
      %v430 = vunpack.c.l.b16 %v419
      %v431 = vunpack.c.l.b16 %v420
      %v432 = vpack.c.b16 %v429, %v428
      %v433 = vpack.c.b16 %v431, %v430
      %v437 = vsel %vm255, %v423, 0
      %439 = vmatprep.subr.bf16.mxu0 0
      %440 = vmatpush1.bf16.msra.mxu0 %v432
      %441 = vmatprep.subr.bf16.mxu0 0
      %442 = vmatpush1.bf16.msra.mxu0 %v433
      %443 = vmatprep.subr.bf16.mxu0 0
      %444 = vmatpush1.bf16.msra.mxu0 0
      %445 = vmatprep.subr.bf16.mxu0 0
      %446 = vmatpush1.bf16.msra.mxu0 0
      %447 = vmatprep.subr.bf16.mxu0 0
      %448 = vmatpush1.bf16.msra.mxu0 0
      %449 = vmatprep.subr.bf16.mxu0 0
      %450 = vmatpush1.bf16.msra.mxu0 0
      %451 = vmatprep.subr.bf16.mxu0 0
      %452 = vmatpush1.bf16.msra.mxu0 0
      %453 = vmatprep.subr.bf16.mxu0 0
      %454 = vmatpush1.bf16.msra.mxu0 0
      %455 = vmatprep.subr.bf16.mxu0 0
      %456 = vmatpush1.bf16.msra.mxu0 0
      %457 = vmatprep.subr.bf16.mxu0 0
      %458 = vmatpush1.bf16.msra.mxu0 0
      %459 = vmatprep.subr.bf16.mxu0 0
      %460 = vmatpush1.bf16.msra.mxu0 0
      %461 = vmatprep.subr.bf16.mxu0 0
      %462 = vmatpush1.bf16.msra.mxu0 0
      %463 = vmatprep.subr.bf16.mxu0 0
      %464 = vmatpush1.bf16.msra.mxu0 0
      %465 = vmatprep.subr.bf16.mxu0 0
      %466 = vmatpush1.bf16.msra.mxu0 0
      %467 = vmatprep.subr.bf16.mxu0 0
      %468 = vmatpush1.bf16.msra.mxu0 0
      %469 = vmatprep.subr.bf16.mxu0 0
      %470 = vmatpush1.bf16.msra.mxu0 0
      %471 = vmatprep.mubr.bf16.mxu0 0
      %472 = vmatmul.mubr.bf16.gmra.mrb[0].mxu0 %v437
      %v473 = vpop.f32.mrb[0].mxu0
      %v474 = vadd.f32 0.0, %v473
      %v475 = vpop.f32.mrb[0].mxu0
      %v476 = vpop.f32.mrb[0].mxu0
      %v477 = vpop.f32.mrb[0].mxu0
      %478 = vdwg.mxu0
      %v479 = vadd.f32 %v415, %v474
      %s480 = scalar_lea.vmem %s1, 64
      %v481 = vld [vmem:[%s480] sm:$0xf]
      %v482 = vld [vmem:[%s480 + $0x4] sm:$0xf]
      %v483 = vld [vmem:[%s480 + $0x8] sm:$0xf]
      %v484 = vld [vmem:[%s480 + $0xc] sm:$0xf]
      %v485 = vrot.slane %v226, 2
      %v490 = vunpack.c.l.b16 %v481
      %v491 = vunpack.c.l.b16 %v482
      %v492 = vunpack.c.l.b16 %v483
      %v493 = vunpack.c.l.b16 %v484
      %v494 = vpack.c.b16 %v491, %v490
      %v495 = vpack.c.b16 %v493, %v492
      %v499 = vsel %vm255, %v485, 0
      %501 = vmatprep.subr.bf16.mxu0 0
      %502 = vmatpush1.bf16.msra.mxu0 %v494
      %503 = vmatprep.subr.bf16.mxu0 0
      %504 = vmatpush1.bf16.msra.mxu0 %v495
      %505 = vmatprep.subr.bf16.mxu0 0
      %506 = vmatpush1.bf16.msra.mxu0 0
      %507 = vmatprep.subr.bf16.mxu0 0
      %508 = vmatpush1.bf16.msra.mxu0 0
      %509 = vmatprep.subr.bf16.mxu0 0
      %510 = vmatpush1.bf16.msra.mxu0 0
      %511 = vmatprep.subr.bf16.mxu0 0
      %512 = vmatpush1.bf16.msra.mxu0 0
      %513 = vmatprep.subr.bf16.mxu0 0
      %514 = vmatpush1.bf16.msra.mxu0 0
      %515 = vmatprep.subr.bf16.mxu0 0
      %516 = vmatpush1.bf16.msra.mxu0 0
      %517 = vmatprep.subr.bf16.mxu0 0
      %518 = vmatpush1.bf16.msra.mxu0 0
      %519 = vmatprep.subr.bf16.mxu0 0
      %520 = vmatpush1.bf16.msra.mxu0 0
      %521 = vmatprep.subr.bf16.mxu0 0
      %522 = vmatpush1.bf16.msra.mxu0 0
      %523 = vmatprep.subr.bf16.mxu0 0
      %524 = vmatpush1.bf16.msra.mxu0 0
      %525 = vmatprep.subr.bf16.mxu0 0
      %526 = vmatpush1.bf16.msra.mxu0 0
      %527 = vmatprep.subr.bf16.mxu0 0
      %528 = vmatpush1.bf16.msra.mxu0 0
      %529 = vmatprep.subr.bf16.mxu0 0
      %530 = vmatpush1.bf16.msra.mxu0 0
      %531 = vmatprep.subr.bf16.mxu0 0
      %532 = vmatpush1.bf16.msra.mxu0 0
      %533 = vmatprep.mubr.bf16.mxu0 0
      %534 = vmatmul.mubr.bf16.gmra.mrb[0].mxu0 %v499
      %v535 = vpop.f32.mrb[0].mxu0
      %v536 = vadd.f32 0.0, %v535
      %v537 = vpop.f32.mrb[0].mxu0
      %v538 = vpop.f32.mrb[0].mxu0
      %v539 = vpop.f32.mrb[0].mxu0
      %540 = vdwg.mxu0
      %v541 = vadd.f32 %v479, %v536
      %v542 = vld [vmem:[%s2] sm:$0x1]
      %v544 = vlaneseq
      %v545 = vshrl.u32 %v544, 7
      %v546 = vsub.s32 0, %v545
      %v547 = vrot.slane %v542, %v546
      %v549 = vadd.f32 %v541, %v547
      %vm550 = vcmp.ge.f32.partialorder %v549, 0.0
      %v551 = vmul.f32 %v549, 0.2
      %v552 = vsel %vm550, %v549, %v551
      %v553 = vld [vmem:[%s3] sm:$0x1]
      %v555 = vlaneseq
      %v556 = vshrl.u32 %v555, 7
      %v557 = vsub.s32 0, %v556
      %v558 = vrot.slane %v553, %v557
      %v560 = vmul.f32 %v552, %v558
      %v561 = vld [vmem:[%s4] sm:$0x1]
      %v563 = vlaneseq
      %v564 = vshrl.u32 %v563, 7
      %v565 = vsub.s32 0, %v564
      %v566 = vrot.slane %v561, %v565
      %v568 = vadd.f32 %v560, %v566
      %569 = vst.msk [vmem:[%s222] sm:$0xff] %vm255, %v568
      %p570 = scmp.lt.s32.totalorder %s16, 1
      %s571 = scalar_select %p570, %s16, 1
      %s572 = smul.addr %s571, 8
      %s573 = scalar_lea.vmem %s5, %s572
      // Predicated region
      $region41: #{tvqvae_forward.19} parent=39 // pred_check
        %p574 = pneg %p144
      $region42: #{tvqvae_forward.19} parent=39 // pred_check_branch
        %576 = sbr.rel (%p574) target = $region44
      $region43: #{tvqvae_forward.19} parent=39 // pred_region
        _
      $region44: #{tvqvae_forward.19} parent=39 // pred_fallthru
        _
    $region40: #{tvqvae_forward.19} parent=5 // pred_fallthru
      _
    %p577 = scmp.le.s32.totalorder 2, %s11
    // Predicated region
    $region45: #{tvqvae_forward.19} parent=5 // pred_check
      %p578 = pneg %p577
    $region46: #{tvqvae_forward.19} parent=5 // pred_check_branch
      %580 = sbr.rel (%p578) target = $region48
    $region47: #{tvqvae_forward.19} parent=5 // pred_region
      %s581 = ssub.s32 %s11, 2
      // Predicated region
      $region49: #{tvqvae_forward.19} parent=47 // pred_check
        %p582 = pneg %p150
      $region50: #{tvqvae_forward.19} parent=47 // pred_check_branch
        %584 = sbr.rel (%p582) target = $region52
      $region51: #{tvqvae_forward.19} parent=47 // pred_region
        %p585 = scmp.lt.s32.totalorder %s17, 1
        %s586 = scalar_select %p585, %s17, 1
        %s587 = smul.addr %s586, 8
        %s588 = scalar_lea.vmem %s5, %s587
      $region52: #{tvqvae_forward.19} parent=47 // pred_fallthru
        _
    $region48: #{tvqvae_forward.19} parent=5 // pred_fallthru
      _
  $region6: #{tvqvae_forward.19} parent=0 // loop_footer
    %s15 = sadd.s32 1, %s11
  $region7: #{tvqvae_forward.19} parent=0 // loop_footer_branch
    %10 = sbr.rel target = $region3
  $region8: #{tvqvae_forward.19} parent=0 // loop_exit
    _

// kernel: tvqvae_forward.24
$region0: #{tvqvae_forward.24}
  #allocation0 [shape = 'u32[]', space=smem, size = 0x4, offset = 0x4, fixed_abs, tag = 'smem constant byte address 0x4 - core index']
  #allocation1 [shape = 'u32[144,128]{1,0:T(1,128)}', space=vmem, size = 0x12000, scoped, tag = 'internal scratch']
  %s0 = inlined_call_operand.vmem [shape: f32[8,32], index: 0, kind: input, shape index: {}]
  %s1 = inlined_call_operand.vmem [shape: bf16[32,64], index: 1, kind: input, shape index: {}]
  %s2 = inlined_call_operand.vmem [shape: f32[1,64], index: 2, kind: input, shape index: {}]
  %s3 = inlined_call_operand.vmem [shape: bf16[64,32], index: 3, kind: input, shape index: {}]
  %s4 = inlined_call_operand.vmem [shape: f32[1,32], index: 4, kind: input, shape index: {}]
  %s5 = inlined_call_operand.vmem [shape: f32[1,32], index: 5, kind: input, shape index: {}]
  %s6 = inlined_call_operand.vmem [shape: f32[1,32], index: 6, kind: input, shape index: {}]
  %s7 = inlined_call_operand.vmem [shape: f32[8,32], index: 7, kind: output, shape index: {}]
  %s8 = sld [smem:[#allocation0]]
  $region38: #{tvqvae_forward.24} parent=0
    _
  %s10 = ssub.s32 1, %s8
  %s11 = scalar_select 0, %s10, %s8
  // Predicated region
  $region2: #{tvqvae_forward.24} parent=0 // pred_check
    _
  $region3: #{tvqvae_forward.24} parent=0 // pred_check_branch
    %13 = sbr.rel (0) target = $region5
  $region4: #{tvqvae_forward.24} parent=0 // pred_region
    _
  $region5: #{tvqvae_forward.24} parent=0 // pred_fallthru
    _
  // Predicated region
  $region6: #{tvqvae_forward.24} parent=0 // pred_check
    _
  $region7: #{tvqvae_forward.24} parent=0 // pred_check_branch
    %15 = sbr.rel (0) target = $region9
  $region8: #{tvqvae_forward.24} parent=0 // pred_region
    _
  $region9: #{tvqvae_forward.24} parent=0 // pred_fallthru
    _
  // Predicated region
  $region10: #{tvqvae_forward.24} parent=0 // pred_check
    _
  $region11: #{tvqvae_forward.24} parent=0 // pred_check_branch
    %17 = sbr.rel (0) target = $region13
  $region12: #{tvqvae_forward.24} parent=0 // pred_region
    _
  $region13: #{tvqvae_forward.24} parent=0 // pred_fallthru
    _
  // Predicated region
  $region14: #{tvqvae_forward.24} parent=0 // pred_check
    _
  $region15: #{tvqvae_forward.24} parent=0 // pred_check_branch
    %19 = sbr.rel (0) target = $region17
  $region16: #{tvqvae_forward.24} parent=0 // pred_region
    _
  $region17: #{tvqvae_forward.24} parent=0 // pred_fallthru
    _
  // Predicated region
  $region18: #{tvqvae_forward.24} parent=0 // pred_check
    _
  $region19: #{tvqvae_forward.24} parent=0 // pred_check_branch
    %21 = sbr.rel (0) target = $region21
  $region20: #{tvqvae_forward.24} parent=0 // pred_region
    _
  $region21: #{tvqvae_forward.24} parent=0 // pred_fallthru
    _
  // Predicated region
  $region22: #{tvqvae_forward.24} parent=0 // pred_check
    _
  $region23: #{tvqvae_forward.24} parent=0 // pred_check_branch
    %23 = sbr.rel (0) target = $region25
  $region24: #{tvqvae_forward.24} parent=0 // pred_region
    _
  $region25: #{tvqvae_forward.24} parent=0 // pred_fallthru
    _
  // Predicated region
  $region26: #{tvqvae_forward.24} parent=0 // pred_check
    _
  $region27: #{tvqvae_forward.24} parent=0 // pred_check_branch
    %25 = sbr.rel (0) target = $region29
  $region28: #{tvqvae_forward.24} parent=0 // pred_region
    _
  $region29: #{tvqvae_forward.24} parent=0 // pred_fallthru
    _
  %v27 = vld [vmem:[%s0] sm:$0xff]
  %v28 = vpack.c.bf16 %v27, %v27
  %v29 = vld [vmem:[%s1] sm:$0xf]
  %v30 = vld [vmem:[%s1 + $0x4] sm:$0xf]
  %v31 = vld [vmem:[%s1 + $0x8] sm:$0xf]
  %v32 = vld [vmem:[%s1 + $0xc] sm:$0xf]
  %v33 = vld [vmem:[%s2] sm:$0x1]
  %v35 = vlaneseq
  %v36 = vshrl.u32 %v35, 7
  %v37 = vsub.s32 0, %v36
  %v38 = vrot.slane %v33, %v37
  %v44 = vunpack.c.l.b16 %v29
  %v45 = vunpack.c.l.b16 %v30
  %v46 = vunpack.c.l.b16 %v31
  %v47 = vunpack.c.l.b16 %v32
  %v48 = vpack.c.b16 %v45, %v44
  %v49 = vpack.c.b16 %v47, %v46
  %vm52 = vcmask 261120
  %v54 = vsel %vm52, %v28, 0
  %56 = vmatprep.subr.bf16.mxu0 0
  %57 = vmatpush1.bf16.msra.mxu0 %v48
  %58 = vmatprep.subr.bf16.mxu0 0
  %59 = vmatpush1.bf16.msra.mxu0 %v49
  %60 = vmatprep.subr.bf16.mxu0 0
  %61 = vmatpush1.bf16.msra.mxu0 0
  %62 = vmatprep.subr.bf16.mxu0 0
  %63 = vmatpush1.bf16.msra.mxu0 0
  %64 = vmatprep.subr.bf16.mxu0 0
  %65 = vmatpush1.bf16.msra.mxu0 0
  %66 = vmatprep.subr.bf16.mxu0 0
  %67 = vmatpush1.bf16.msra.mxu0 0
  %68 = vmatprep.subr.bf16.mxu0 0
  %69 = vmatpush1.bf16.msra.mxu0 0
  %70 = vmatprep.subr.bf16.mxu0 0
  %71 = vmatpush1.bf16.msra.mxu0 0
  %72 = vmatprep.subr.bf16.mxu0 0
  %73 = vmatpush1.bf16.msra.mxu0 0
  %74 = vmatprep.subr.bf16.mxu0 0
  %75 = vmatpush1.bf16.msra.mxu0 0
  %76 = vmatprep.subr.bf16.mxu0 0
  %77 = vmatpush1.bf16.msra.mxu0 0
  %78 = vmatprep.subr.bf16.mxu0 0
  %79 = vmatpush1.bf16.msra.mxu0 0
  %80 = vmatprep.subr.bf16.mxu0 0
  %81 = vmatpush1.bf16.msra.mxu0 0
  %82 = vmatprep.subr.bf16.mxu0 0
  %83 = vmatpush1.bf16.msra.mxu0 0
  %84 = vmatprep.subr.bf16.mxu0 0
  %85 = vmatpush1.bf16.msra.mxu0 0
  %86 = vmatprep.subr.bf16.mxu0 0
  %87 = vmatpush1.bf16.msra.mxu0 0
  %88 = vmatprep.mubr.bf16.mxu0 0
  %89 = vmatmul.mubr.bf16.gmra.mrb[0].mxu0 %v54
  %v90 = vpop.f32.mrb[0].mxu0
  %v91 = vadd.f32 %v38, %v90
  %v92 = vpop.f32.mrb[0].mxu0
  %v93 = vpop.f32.mrb[0].mxu0
  %v94 = vpop.f32.mrb[0].mxu0
  %95 = vdwg.mxu0
  %v96 = vmul.f32 %v91, 0.5
  %v97 = vmul.f32 %v91, 0.70710677
  %v98 = verf.f32.pop %v97
  %v99 = vadd.f32 %v98, 1.0
  %v100 = vmul.f32 %v96, %v99
  %v101 = vpack.c.bf16 %v100, %v100
  %v102 = vld [vmem:[%s3] sm:$0xf]
  %v103 = vld [vmem:[%s3 + $0x4] sm:$0xf]
  %v104 = vld [vmem:[%s3 + $0x8] sm:$0xf]
  %v105 = vld [vmem:[%s3 + $0xc] sm:$0xf]
  %v106 = vld [vmem:[%s3 + $0x10] sm:$0xf]
  %v107 = vld [vmem:[%s3 + $0x14] sm:$0xf]
  %v108 = vld [vmem:[%s3 + $0x18] sm:$0xf]
  %v109 = vld [vmem:[%s3 + $0x1c] sm:$0xf]
  %v110 = vld [vmem:[%s4] sm:$0x1]
  %v112 = vlaneseq
  %v113 = vshrl.u32 %v112, 7
  %v114 = vsub.s32 0, %v113
  %v115 = vrot.slane %v110, %v114
  %v125 = vunpack.c.l.b16 %v102
  %v126 = vunpack.c.l.b16 %v103
  %v127 = vunpack.c.l.b16 %v104
  %v128 = vunpack.c.l.b16 %v105
  %v129 = vunpack.c.l.b16 %v106
  %v130 = vunpack.c.l.b16 %v107
  %v131 = vunpack.c.l.b16 %v108
  %v132 = vunpack.c.l.b16 %v109
  %v133 = vpack.c.b16 %v126, %v125
  %v134 = vpack.c.b16 %v128, %v127
  %v135 = vpack.c.b16 %v130, %v129
  %v136 = vpack.c.b16 %v132, %v131
  %vm141 = vcmask 523264
  %v143 = vsel %vm141, %v101, 0
  %145 = vmatprep.subr.bf16.mxu0 0
  %146 = vmatpush1.bf16.msra.mxu0 %v133
  %147 = vmatprep.subr.bf16.mxu0 0
  %148 = vmatpush1.bf16.msra.mxu0 %v134
  %149 = vmatprep.subr.bf16.mxu0 0
  %150 = vmatpush1.bf16.msra.mxu0 %v135
  %151 = vmatprep.subr.bf16.mxu0 0
  %152 = vmatpush1.bf16.msra.mxu0 %v136
  %153 = vmatprep.subr.bf16.mxu0 0
  %154 = vmatpush1.bf16.msra.mxu0 0
  %155 = vmatprep.subr.bf16.mxu0 0
  %156 = vmatpush1.bf16.msra.mxu0 0
  %157 = vmatprep.subr.bf16.mxu0 0
  %158 = vmatpush1.bf16.msra.mxu0 0
  %159 = vmatprep.subr.bf16.mxu0 0
  %160 = vmatpush1.bf16.msra.mxu0 0
  %161 = vmatprep.subr.bf16.mxu0 0
  %162 = vmatpush1.bf16.msra.mxu0 0
  %163 = vmatprep.subr.bf16.mxu0 0
  %164 = vmatpush1.bf16.msra.mxu0 0
  %165 = vmatprep.subr.bf16.mxu0 0
  %166 = vmatpush1.bf16.msra.mxu0 0
  %167 = vmatprep.subr.bf16.mxu0 0
  %168 = vmatpush1.bf16.msra.mxu0 0
  %169 = vmatprep.subr.bf16.mxu0 0
  %170 = vmatpush1.bf16.msra.mxu0 0
  %171 = vmatprep.subr.bf16.mxu0 0
  %172 = vmatpush1.bf16.msra.mxu0 0
  %173 = vmatprep.subr.bf16.mxu0 0
  %174 = vmatpush1.bf16.msra.mxu0 0
  %175 = vmatprep.subr.bf16.mxu0 0
  %176 = vmatpush1.bf16.msra.mxu0 0
  %177 = vmatprep.mubr.bf16.mxu0 0
  %178 = vmatmul.mubr.bf16.gmra.mrb[0].mxu0 %v143
  %v179 = vpop.f32.mrb[0].mxu0
  %v180 = vadd.f32 %v115, %v179
  %v181 = vpop.f32.mrb[0].mxu0
  %v182 = vpop.f32.mrb[0].mxu0
  %v183 = vpop.f32.mrb[0].mxu0
  %184 = vdwg.mxu0
  %v185 = vadd.f32 %v27, %v180
  %v186 = vsel %vm52, %v185, 0.0
  %187 = vadd.xlane.f32.xlu0 %v186
  %v188 = vpop.xlane.xlu0 %187
  %v189 = vrcp.pop 32.0
  %v190 = vmul.f32 %v188, %v189
  %v191 = vsub.f32 %v185, %v190
  %v192 = vmul.f32 %v191, %v191
  %v193 = vsel %vm52, %v192, 0.0
  %194 = vadd.xlane.f32.xlu0 %v193
  %v195 = vpop.xlane.xlu0 %194
  %v196 = vmul.f32 %v195, %v189
  %v197 = vadd.f32 %v196, 1e-05
  %v198 = vrsqrt.pop %v197
  %v199 = vmul.f32 %v191, %v198
  %v200 = vld [vmem:[%s5] sm:$0x1]
  %v202 = vlaneseq
  %v203 = vshrl.u32 %v202, 7
  %v204 = vsub.s32 0, %v203
  %v205 = vrot.slane %v200, %v204
  %v207 = vmul.f32 %v199, %v205
  %v208 = vld [vmem:[%s6] sm:$0x1]
  %v210 = vlaneseq
  %v211 = vshrl.u32 %v210, 7
  %v212 = vsub.s32 0, %v211
  %v213 = vrot.slane %v208, %v212
  %v215 = vadd.f32 %v207, %v213
  %216 = vst.msk [vmem:[%s7] sm:$0xff] %vm52, %v215
  // Predicated region
  $region30: #{tvqvae_forward.24} parent=0 // pred_check
    _
  $region31: #{tvqvae_forward.24} parent=0 // pred_check_branch
    %218 = sbr.rel (0) target = $region33
  $region32: #{tvqvae_forward.24} parent=0 // pred_region
    _
  $region33: #{tvqvae_forward.24} parent=0 // pred_fallthru
    _
  // Predicated region
  $region34: #{tvqvae_forward.24} parent=0 // pred_check
    _
  $region35: #{tvqvae_forward.24} parent=0 // pred_check_branch
    %220 = sbr.rel (0) target = $region37
  $region36: #{tvqvae_forward.24} parent=0 // pred_region
    _
  $region37: #{tvqvae_forward.24} parent=0 // pred_fallthru
    _

// kernel: tvqvae_forward.23
$region0: #{tvqvae_forward.23}
  #allocation0 [shape = 'u32[]', space=smem, size = 0x4, offset = 0x4, fixed_abs, tag = 'smem constant byte address 0x4 - core index']
  #allocation1 [shape = 'u32[144,128]{1,0:T(1,128)}', space=vmem, size = 0x12000, scoped, tag = 'internal scratch']
  %s0 = inlined_call_operand.vmem [shape: f32[8,32], index: 0, kind: input, shape index: {}]
  %s1 = inlined_call_operand.vmem [shape: bf16[32,32], index: 1, kind: input, shape index: {}]
  %s2 = inlined_call_operand.vmem [shape: f32[1,32], index: 2, kind: input, shape index: {}]
  %s3 = inlined_call_operand.vmem [shape: f32[8,32], index: 3, kind: input, shape index: {}]
  %s4 = inlined_call_operand.vmem [shape: f32[1,32], index: 4, kind: input, shape index: {}]
  %s5 = inlined_call_operand.vmem [shape: f32[1,32], index: 5, kind: input, shape index: {}]
  %s6 = inlined_call_operand.vmem [shape: f32[8,32], index: 6, kind: output, shape index: {}]
  %s7 = sld [smem:[#allocation0]]
  $region34: #{tvqvae_forward.23} parent=0
    _
  %s9 = ssub.s32 1, %s7
  %s10 = scalar_select 0, %s9, %s7
  // Predicated region
  $region2: #{tvqvae_forward.23} parent=0 // pred_check
    _
  $region3: #{tvqvae_forward.23} parent=0 // pred_check_branch
    %12 = sbr.rel (0) target = $region5
  $region4: #{tvqvae_forward.23} parent=0 // pred_region
    _
  $region5: #{tvqvae_forward.23} parent=0 // pred_fallthru
    _
  // Predicated region
  $region6: #{tvqvae_forward.23} parent=0 // pred_check
    _
  $region7: #{tvqvae_forward.23} parent=0 // pred_check_branch
    %14 = sbr.rel (0) target = $region9
  $region8: #{tvqvae_forward.23} parent=0 // pred_region
    _
  $region9: #{tvqvae_forward.23} parent=0 // pred_fallthru
    _
  // Predicated region
  $region10: #{tvqvae_forward.23} parent=0 // pred_check
    _
  $region11: #{tvqvae_forward.23} parent=0 // pred_check_branch
    %16 = sbr.rel (0) target = $region13
  $region12: #{tvqvae_forward.23} parent=0 // pred_region
    _
  $region13: #{tvqvae_forward.23} parent=0 // pred_fallthru
    _
  // Predicated region
  $region14: #{tvqvae_forward.23} parent=0 // pred_check
    _
  $region15: #{tvqvae_forward.23} parent=0 // pred_check_branch
    %18 = sbr.rel (0) target = $region17
  $region16: #{tvqvae_forward.23} parent=0 // pred_region
    _
  $region17: #{tvqvae_forward.23} parent=0 // pred_fallthru
    _
  // Predicated region
  $region18: #{tvqvae_forward.23} parent=0 // pred_check
    _
  $region19: #{tvqvae_forward.23} parent=0 // pred_check_branch
    %20 = sbr.rel (0) target = $region21
  $region20: #{tvqvae_forward.23} parent=0 // pred_region
    _
  $region21: #{tvqvae_forward.23} parent=0 // pred_fallthru
    _
  // Predicated region
  $region22: #{tvqvae_forward.23} parent=0 // pred_check
    _
  $region23: #{tvqvae_forward.23} parent=0 // pred_check_branch
    %22 = sbr.rel (0) target = $region25
  $region24: #{tvqvae_forward.23} parent=0 // pred_region
    _
  $region25: #{tvqvae_forward.23} parent=0 // pred_fallthru
    _
  %v24 = vld [vmem:[%s0] sm:$0xff]
  %v25 = vpack.c.bf16 %v24, %v24
  %v26 = vld [vmem:[%s1] sm:$0xf]
  %v27 = vld [vmem:[%s1 + $0x4] sm:$0xf]
  %v28 = vld [vmem:[%s1 + $0x8] sm:$0xf]
  %v29 = vld [vmem:[%s1 + $0xc] sm:$0xf]
  %v30 = vld [vmem:[%s2] sm:$0x1]
  %v32 = vlaneseq
  %v33 = vshrl.u32 %v32, 7
  %v34 = vsub.s32 0, %v33
  %v35 = vrot.slane %v30, %v34
  %v41 = vunpack.c.l.b16 %v26
  %v42 = vunpack.c.l.b16 %v27
  %v43 = vunpack.c.l.b16 %v28
  %v44 = vunpack.c.l.b16 %v29
  %v45 = vpack.c.b16 %v42, %v41
  %v46 = vpack.c.b16 %v44, %v43
  %vm49 = vcmask 261120
  %v51 = vsel %vm49, %v25, 0
  %53 = vmatprep.subr.bf16.mxu0 0
  %54 = vmatpush1.bf16.msra.mxu0 %v45
  %55 = vmatprep.subr.bf16.mxu0 0
  %56 = vmatpush1.bf16.msra.mxu0 %v46
  %57 = vmatprep.subr.bf16.mxu0 0
  %58 = vmatpush1.bf16.msra.mxu0 0
  %59 = vmatprep.subr.bf16.mxu0 0
  %60 = vmatpush1.bf16.msra.mxu0 0
  %61 = vmatprep.subr.bf16.mxu0 0
  %62 = vmatpush1.bf16.msra.mxu0 0
  %63 = vmatprep.subr.bf16.mxu0 0
  %64 = vmatpush1.bf16.msra.mxu0 0
  %65 = vmatprep.subr.bf16.mxu0 0
  %66 = vmatpush1.bf16.msra.mxu0 0
  %67 = vmatprep.subr.bf16.mxu0 0
  %68 = vmatpush1.bf16.msra.mxu0 0
  %69 = vmatprep.subr.bf16.mxu0 0
  %70 = vmatpush1.bf16.msra.mxu0 0
  %71 = vmatprep.subr.bf16.mxu0 0
  %72 = vmatpush1.bf16.msra.mxu0 0
  %73 = vmatprep.subr.bf16.mxu0 0
  %74 = vmatpush1.bf16.msra.mxu0 0
  %75 = vmatprep.subr.bf16.mxu0 0
  %76 = vmatpush1.bf16.msra.mxu0 0
  %77 = vmatprep.subr.bf16.mxu0 0
  %78 = vmatpush1.bf16.msra.mxu0 0
  %79 = vmatprep.subr.bf16.mxu0 0
  %80 = vmatpush1.bf16.msra.mxu0 0
  %81 = vmatprep.subr.bf16.mxu0 0
  %82 = vmatpush1.bf16.msra.mxu0 0
  %83 = vmatprep.subr.bf16.mxu0 0
  %84 = vmatpush1.bf16.msra.mxu0 0
  %85 = vmatprep.mubr.bf16.mxu0 0
  %86 = vmatmul.mubr.bf16.gmra.mrb[0].mxu0 %v51
  %v87 = vpop.f32.mrb[0].mxu0
  %v88 = vadd.f32 %v35, %v87
  %v89 = vpop.f32.mrb[0].mxu0
  %v90 = vpop.f32.mrb[0].mxu0
  %v91 = vpop.f32.mrb[0].mxu0
  %92 = vdwg.mxu0
  %v93 = vld [vmem:[%s3] sm:$0xff]
  %v94 = vadd.f32 %v93, %v88
  %v95 = vsel %vm49, %v94, 0.0
  %96 = vadd.xlane.f32.xlu0 %v95
  %v97 = vpop.xlane.xlu0 %96
  %v98 = vrcp.pop 32.0
  %v99 = vmul.f32 %v97, %v98
  %v100 = vsub.f32 %v94, %v99
  %v101 = vmul.f32 %v100, %v100
  %v102 = vsel %vm49, %v101, 0.0
  %103 = vadd.xlane.f32.xlu0 %v102
  %v104 = vpop.xlane.xlu0 %103
  %v105 = vmul.f32 %v104, %v98
  %v106 = vadd.f32 %v105, 1e-05
  %v107 = vrsqrt.pop %v106
  %v108 = vmul.f32 %v100, %v107
  %v109 = vld [vmem:[%s4] sm:$0x1]
  %v111 = vlaneseq
  %v112 = vshrl.u32 %v111, 7
  %v113 = vsub.s32 0, %v112
  %v114 = vrot.slane %v109, %v113
  %v116 = vmul.f32 %v108, %v114
  %v117 = vld [vmem:[%s5] sm:$0x1]
  %v119 = vlaneseq
  %v120 = vshrl.u32 %v119, 7
  %v121 = vsub.s32 0, %v120
  %v122 = vrot.slane %v117, %v121
  %v124 = vadd.f32 %v116, %v122
  %125 = vst.msk [vmem:[%s6] sm:$0xff] %vm49, %v124
  // Predicated region
  $region26: #{tvqvae_forward.23} parent=0 // pred_check
    _
  $region27: #{tvqvae_forward.23} parent=0 // pred_check_branch
    %127 = sbr.rel (0) target = $region29
  $region28: #{tvqvae_forward.23} parent=0 // pred_region
    _
  $region29: #{tvqvae_forward.23} parent=0 // pred_fallthru
    _
  // Predicated region
  $region30: #{tvqvae_forward.23} parent=0 // pred_check
    _
  $region31: #{tvqvae_forward.23} parent=0 // pred_check_branch
    %129 = sbr.rel (0) target = $region33
  $region32: #{tvqvae_forward.23} parent=0 // pred_region
    _
  $region33: #{tvqvae_forward.23} parent=0 // pred_fallthru
    _

// kernel: tvqvae_forward.25
$region0: #{tvqvae_forward.25}
  #allocation0 [shape = 'u32[]', space=smem, size = 0x4, offset = 0x4, fixed_abs, tag = 'smem constant byte address 0x4 - core index']
  #allocation1 [shape = 'u32[144,128]{1,0:T(1,128)}', space=vmem, size = 0x12000, scoped, tag = 'internal scratch']
  %s0 = inlined_call_operand.vmem [shape: f32[8,32], index: 0, kind: input, shape index: {}]
  %s1 = inlined_call_operand.vmem [shape: bf16[32,16], index: 1, kind: input, shape index: {}]
  %s2 = inlined_call_operand.vmem [shape: f32[1,16], index: 2, kind: input, shape index: {}]
  %s3 = inlined_call_operand.vmem [shape: f32[8,16], index: 3, kind: output, shape index: {}]
  %s4 = sld [smem:[#allocation0]]
  $region22: #{tvqvae_forward.25} parent=0
    _
  %s6 = ssub.s32 1, %s4
  %s7 = scalar_select 0, %s6, %s4
  // Predicated region
  $region2: #{tvqvae_forward.25} parent=0 // pred_check
    _
  $region3: #{tvqvae_forward.25} parent=0 // pred_check_branch
    %9 = sbr.rel (0) target = $region5
  $region4: #{tvqvae_forward.25} parent=0 // pred_region
    _
  $region5: #{tvqvae_forward.25} parent=0 // pred_fallthru
    _
  // Predicated region
  $region6: #{tvqvae_forward.25} parent=0 // pred_check
    _
  $region7: #{tvqvae_forward.25} parent=0 // pred_check_branch
    %11 = sbr.rel (0) target = $region9
  $region8: #{tvqvae_forward.25} parent=0 // pred_region
    _
  $region9: #{tvqvae_forward.25} parent=0 // pred_fallthru
    _
  // Predicated region
  $region10: #{tvqvae_forward.25} parent=0 // pred_check
    _
  $region11: #{tvqvae_forward.25} parent=0 // pred_check_branch
    %13 = sbr.rel (0) target = $region13
  $region12: #{tvqvae_forward.25} parent=0 // pred_region
    _
  $region13: #{tvqvae_forward.25} parent=0 // pred_fallthru
    _
  %v15 = vld [vmem:[%s0] sm:$0xff]
  %v16 = vpack.c.bf16 %v15, %v15
  %v17 = vld [vmem:[%s1] sm:$0xf]
  %v18 = vld [vmem:[%s1 + $0x4] sm:$0xf]
  %v19 = vld [vmem:[%s1 + $0x8] sm:$0xf]
  %v20 = vld [vmem:[%s1 + $0xc] sm:$0xf]
  %v21 = vld [vmem:[%s2] sm:$0x1]
  %v23 = vlaneseq
  %v24 = vshrl.u32 %v23, 7
  %v25 = vsub.s32 0, %v24
  %v26 = vrot.slane %v21, %v25
  %v32 = vunpack.c.l.b16 %v17
  %v33 = vunpack.c.l.b16 %v18
  %v34 = vunpack.c.l.b16 %v19
  %v35 = vunpack.c.l.b16 %v20
  %v36 = vpack.c.b16 %v33, %v32
  %v37 = vpack.c.b16 %v35, %v34
  %vm40 = vcmask 261120
  %v42 = vsel %vm40, %v16, 0
  %44 = vmatprep.subr.bf16.mxu0 0
  %45 = vmatpush1.bf16.msra.mxu0 %v36
  %46 = vmatprep.subr.bf16.mxu0 0
  %47 = vmatpush1.bf16.msra.mxu0 %v37
  %48 = vmatprep.subr.bf16.mxu0 0
  %49 = vmatpush1.bf16.msra.mxu0 0
  %50 = vmatprep.subr.bf16.mxu0 0
  %51 = vmatpush1.bf16.msra.mxu0 0
  %52 = vmatprep.subr.bf16.mxu0 0
  %53 = vmatpush1.bf16.msra.mxu0 0
  %54 = vmatprep.subr.bf16.mxu0 0
  %55 = vmatpush1.bf16.msra.mxu0 0
  %56 = vmatprep.subr.bf16.mxu0 0
  %57 = vmatpush1.bf16.msra.mxu0 0
  %58 = vmatprep.subr.bf16.mxu0 0
  %59 = vmatpush1.bf16.msra.mxu0 0
  %60 = vmatprep.subr.bf16.mxu0 0
  %61 = vmatpush1.bf16.msra.mxu0 0
  %62 = vmatprep.subr.bf16.mxu0 0
  %63 = vmatpush1.bf16.msra.mxu0 0
  %64 = vmatprep.subr.bf16.mxu0 0
  %65 = vmatpush1.bf16.msra.mxu0 0
  %66 = vmatprep.subr.bf16.mxu0 0
  %67 = vmatpush1.bf16.msra.mxu0 0
  %68 = vmatprep.subr.bf16.mxu0 0
  %69 = vmatpush1.bf16.msra.mxu0 0
  %70 = vmatprep.subr.bf16.mxu0 0
  %71 = vmatpush1.bf16.msra.mxu0 0
  %72 = vmatprep.subr.bf16.mxu0 0
  %73 = vmatpush1.bf16.msra.mxu0 0
  %74 = vmatprep.subr.bf16.mxu0 0
  %75 = vmatpush1.bf16.msra.mxu0 0
  %76 = vmatprep.mubr.bf16.mxu0 0
  %77 = vmatmul.mubr.bf16.gmra.mrb[0].mxu0 %v42
  %v78 = vpop.f32.mrb[0].mxu0
  %v79 = vadd.f32 %v26, %v78
  %v80 = vpop.f32.mrb[0].mxu0
  %v81 = vpop.f32.mrb[0].mxu0
  %v82 = vpop.f32.mrb[0].mxu0
  %83 = vdwg.mxu0
  %vm84 = vcmask 130048
  %85 = vst.msk [vmem:[%s3] sm:$0xff] %vm84, %v79
  // Predicated region
  $region14: #{tvqvae_forward.25} parent=0 // pred_check
    _
  $region15: #{tvqvae_forward.25} parent=0 // pred_check_branch
    %87 = sbr.rel (0) target = $region17
  $region16: #{tvqvae_forward.25} parent=0 // pred_region
    _
  $region17: #{tvqvae_forward.25} parent=0 // pred_fallthru
    _
  // Predicated region
  $region18: #{tvqvae_forward.25} parent=0 // pred_check
    _
  $region19: #{tvqvae_forward.25} parent=0 // pred_check_branch
    %89 = sbr.rel (0) target = $region21
  $region20: #{tvqvae_forward.25} parent=0 // pred_region
    _
  $region21: #{tvqvae_forward.25} parent=0 // pred_fallthru
    _

// kernel: tvqvae_forward.26
$region0: #{tvqvae_forward.26}
  #allocation0 [shape = 'u32[]', space=smem, size = 0x4, offset = 0x4, fixed_abs, tag = 'smem constant byte address 0x4 - core index']
  #allocation1 [shape = 'u32[144,128]{1,0:T(1,128)}', space=vmem, size = 0x12000, scoped, tag = 'internal scratch']
  #allocation2 [shape = 'f32[1,32]{1,0:T(1,128)}', space=vmem, size = 0x200, scoped, tag = 'scratch operand']
  #allocation3 [shape = 'f32[1,1]{1,0:T(1,128)}', space=vmem, size = 0x200, scoped, tag = 'scratch operand']
  %s0 = inlined_call_operand.vmem [shape: f32[8,16], index: 0, kind: input, shape index: {}]
  %s1 = inlined_call_operand.vmem [shape: f32[32,16], index: 1, kind: input, shape index: {}]
  %s2 = inlined_call_operand.vmem [shape: f32[8,16], index: 2, kind: output, shape index: {0}]
  %s3 = inlined_call_operand.hbm [shape: f32[1,1], index: 3, kind: output, shape index: {1}]
  %s4 = inlined_call_operand.hbm [shape: f32[1,1], index: 4, kind: output, shape index: {2}]
  %5 = xla_tuple %s2, %s3, %s4
  %s6 = sld [smem:[#allocation0]]
  $region42: #{tvqvae_forward.26} parent=0
    _
  %s8 = ssub.s32 1, %s6
  %s9 = scalar_select 0, %s8, %s6
  $region1: #{tvqvae_forward.26} parent=0
    #allocation4 [shape = 'u8[512]{0}', space=vmem, size = 0x400, scoped, tag = 'output window, operand 1, single buffered']
    #allocation5 [shape = 's32[1]{0}', space=sflag, size = 0x4, scoped, tag = 'scoped memory for tvqvae_forward.26']
    #allocation6 [shape = 'u8[512]{0}', space=vmem, size = 0x400, scoped, tag = 'output window, operand 2, single buffered']
    #allocation7 [shape = 's32[1]{0}', space=sflag, size = 0x4, scoped, tag = 'scoped memory for tvqvae_forward.26']
    %10 = vsyncpa [#allocation5], 0
    %11 = vsyncpa [#allocation7], 0
    // Predicated region
    $region2: #{tvqvae_forward.26} parent=1 // pred_check
      _
    $region3: #{tvqvae_forward.26} parent=1 // pred_check_branch
      %13 = sbr.rel (0) target = $region5
    $region4: #{tvqvae_forward.26} parent=1 // pred_region
      _
    $region5: #{tvqvae_forward.26} parent=1 // pred_fallthru
      _
    // Predicated region
    $region6: #{tvqvae_forward.26} parent=1 // pred_check
      _
    $region7: #{tvqvae_forward.26} parent=1 // pred_check_branch
      %15 = sbr.rel (0) target = $region9
    $region8: #{tvqvae_forward.26} parent=1 // pred_region
      _
    $region9: #{tvqvae_forward.26} parent=1 // pred_fallthru
      _
    %p16 = scmp.eq.s32.totalorder 0, 0
    // Predicated region
    $region10: #{tvqvae_forward.26} parent=1 // pred_check
      %p17 = pneg %p16
    $region11: #{tvqvae_forward.26} parent=1 // pred_check_branch
      %19 = sbr.rel (%p17) target = $region13
    $region12: #{tvqvae_forward.26} parent=1 // pred_region
      %vm20 = vcmask 253952
      %21 = vst.msk [vmem:[#allocation2] sm:$0x1] %vm20, 0.0
      %vm22 = vcmask 0
      %23 = vst.msk [vmem:[#allocation3] sm:$0x1] %vm22, 0.0
    $region13: #{tvqvae_forward.26} parent=1 // pred_fallthru
      _
    %v24 = vld [vmem:[%s0] sm:$0xff]
    %v25 = vld [vmem:[%s1] sm:$0xff]
    %v26 = vld [vmem:[%s1 + $0x8] sm:$0xff]
    %v27 = vld [vmem:[%s1 + $0x10] sm:$0xff]
    %v28 = vld [vmem:[%s1 + $0x18] sm:$0xff]
    %v29 = vmul.f32 %v24, %v24
    %vm30 = vcmask 130048
    %v31 = vsel %vm30, %v29, 0.0
    %32 = vadd.xlane.f32.xlu0 %v31
    %v33 = vpop.xlane.xlu0 %32
    %v34 = vmul.f32 %v25, %v25
    %v35 = vmul.f32 %v26, %v26
    %v36 = vmul.f32 %v27, %v27
    %v37 = vmul.f32 %v28, %v28
    %v38 = vsel %vm30, %v34, 0.0
    %39 = vadd.xlane.f32.xlu0 %v38
    %v40 = vpop.xlane.xlu0 %39
    %v41 = vsel %vm30, %v35, 0.0
    %42 = vadd.xlane.f32.xlu0 %v41
    %v43 = vpop.xlane.xlu0 %42
    %v44 = vsel %vm30, %v36, 0.0
    %45 = vadd.xlane.f32.xlu0 %v44
    %v46 = vpop.xlane.xlu0 %45
    %v47 = vsel %vm30, %v37, 0.0
    %48 = vadd.xlane.f32.xlu0 %v47
    %v49 = vpop.xlane.xlu0 %48
    %50 = vxpose.xlu0.b32.start [1/16] %v40, 128
    %51 = vxpose.xlu0.b32.cont [2/16] %v43, 128
    %52 = vxpose.xlu0.b32.cont [3/16] %v46, 128
    %53 = vxpose.xlu0.b32.cont [4/16] %v49, 128
    %54 = vxpose.xlu0.b32.cont [5/16] 0.0, 128
    %55 = vxpose.xlu0.b32.cont [6/16] 0.0, 128
    %56 = vxpose.xlu0.b32.cont [7/16] 0.0, 128
    %57 = vxpose.xlu0.b32.cont [8/16] 0.0, 128
    %58 = vxpose.xlu0.b32.cont [9/16] 0.0, 128
    %59 = vxpose.xlu0.b32.cont [10/16] 0.0, 128
    %60 = vxpose.xlu0.b32.cont [11/16] 0.0, 128
    %61 = vxpose.xlu0.b32.cont [12/16] 0.0, 128
    %62 = vxpose.xlu0.b32.cont [13/16] 0.0, 128
    %63 = vxpose.xlu0.b32.cont [14/16] 0.0, 128
    %64 = vxpose.xlu0.b32.cont [15/16] 0.0, 128
    %65 = vxpose.xlu0.b32.end [16/16] 0.0, 128
    %v66 = vpop.trf.xlu0
    %v67 = vpop.trf.xlu0
    %v68 = vpop.trf.xlu0
    %v69 = vpop.trf.xlu0
    %v70 = vpop.trf.xlu0
    %v71 = vpop.trf.xlu0
    %v72 = vpop.trf.xlu0
    %v73 = vpop.trf.xlu0
    %v74 = vpop.trf.xlu0
    %v75 = vpop.trf.xlu0
    %v76 = vpop.trf.xlu0
    %v77 = vpop.trf.xlu0
    %v78 = vpop.trf.xlu0
    %v79 = vpop.trf.xlu0
    %v80 = vpop.trf.xlu0
    %v81 = vpop.trf.xlu0
    %v83 = vsel %vm30, %v24, 0
    %v86 = vsel %vm30, %v25, 0
    %v89 = vsel %vm30, %v26, 0
    %v92 = vsel %vm30, %v27, 0
    %v95 = vsel %vm30, %v28, 0
    %97 = vmatprep.subr.mxu0 0.0
    %98 = vmatpush1.xpose.msra.mxu0 %v86
    %99 = vmatprep.subr.mxu0 0.0
    %100 = vmatpush1.xpose.msra.mxu0 %v89
    %101 = vmatprep.subr.mxu0 0.0
    %102 = vmatpush1.xpose.msra.mxu0 %v92
    %103 = vmatprep.subr.mxu0 0.0
    %104 = vmatpush1.xpose.msra.mxu0 %v95
    %105 = vmatprep.subr.mxu0 0.0
    %106 = vmatpush1.xpose.msra.mxu0 0.0
    %107 = vmatprep.subr.mxu0 0.0
    %108 = vmatpush1.xpose.msra.mxu0 0.0
    %109 = vmatprep.subr.mxu0 0.0
    %110 = vmatpush1.xpose.msra.mxu0 0.0
    %111 = vmatprep.subr.mxu0 0.0
    %112 = vmatpush1.xpose.msra.mxu0 0.0
    %113 = vmatprep.subr.mxu0 0.0
    %114 = vmatpush1.xpose.msra.mxu0 0.0
    %115 = vmatprep.subr.mxu0 0.0
    %116 = vmatpush1.xpose.msra.mxu0 0.0
    %117 = vmatprep.subr.mxu0 0.0
    %118 = vmatpush1.xpose.msra.mxu0 0.0
    %119 = vmatprep.subr.mxu0 0.0
    %120 = vmatpush1.xpose.msra.mxu0 0.0
    %121 = vmatprep.subr.mxu0 0.0
    %122 = vmatpush1.xpose.msra.mxu0 0.0
    %123 = vmatprep.subr.mxu0 0.0
    %124 = vmatpush1.xpose.msra.mxu0 0.0
    %125 = vmatprep.subr.mxu0 0.0
    %126 = vmatpush1.xpose.msra.mxu0 0.0
    %127 = vmatprep.subr.mxu0 0.0
    %128 = vmatpush1.xpose.msra.mxu0 0.0
    %129 = vmatprep.subr.mxu0 0.0
    %130 = vmatpush1.xpose.msra.mxu0 0.0
    %131 = vmatprep.subr.mxu0 0.0
    %132 = vmatpush1.xpose.msra.mxu0 0.0
    %133 = vmatprep.subr.mxu0 0.0
    %134 = vmatpush1.xpose.msra.mxu0 0.0
    %135 = vmatprep.subr.mxu0 0.0
    %136 = vmatpush1.xpose.msra.mxu0 0.0
    %137 = vmatprep.subr.mxu0 0.0
    %138 = vmatpush1.xpose.msra.mxu0 0.0
    %139 = vmatprep.subr.mxu0 0.0
    %140 = vmatpush1.xpose.msra.mxu0 0.0
    %141 = vmatprep.subr.mxu0 0.0
    %142 = vmatpush1.xpose.msra.mxu0 0.0
    %143 = vmatprep.subr.mxu0 0.0
    %144 = vmatpush1.xpose.msra.mxu0 0.0
    %145 = vmatprep.subr.mxu0 0.0
    %146 = vmatpush1.xpose.msra.mxu0 0.0
    %147 = vmatprep.subr.mxu0 0.0
    %148 = vmatpush1.xpose.msra.mxu0 0.0
    %149 = vmatprep.subr.mxu0 0.0
    %150 = vmatpush1.xpose.msra.mxu0 0.0
    %151 = vmatprep.subr.mxu0 0.0
    %152 = vmatpush1.xpose.msra.mxu0 0.0
    %153 = vmatprep.subr.mxu0 0.0
    %154 = vmatpush1.xpose.msra.mxu0 0.0
    %155 = vmatprep.subr.mxu0 0.0
    %156 = vmatpush1.xpose.msra.mxu0 0.0
    %157 = vmatprep.subr.mxu0 0.0
    %158 = vmatpush1.xpose.msra.mxu0 0.0
    %159 = vmatprep.subr.mxu0 0.0
    %160 = vmatpush1.xpose.msra.mxu0 0.0
    %161 = vmatprep.mubr.f32.mxu0 0.0
    %162 = vmatmul.mubr.f32.gmra.mrb[0].mxu0 %v83
    %v163 = vpop.f32.mrb[0].mxu0
    %v164 = vadd.f32 0.0, %v163
    %v165 = vpop.f32.mrb[0].mxu0
    %166 = vdwg.mxu0
    %v167 = vmul.f32 %v164, 2.0
    %v168 = vsub.f32 %v33, %v167
    %v169 = vlaneseq
    %v170 = vshrl.u32 %v169, 7
    %v171 = vsub.s32 0, %v170
    %v172 = vrot.slane %v66, %v171
    %v173 = vadd.f32 %v168, %v172
    %vm174 = vcmask 261120
    %v175 = vsel %vm174, %v173, inf
    %176 = vmin.xlane.f32.xlu0 %v175
    %v177 = vpop.xlane.xlu0 %176
    %v178 = vlaneseq
    %v179 = vand.u32 %v178, 127
    %vm180 = vcmp.eq.f32.partialorder %v173, %v177
    %v181 = vsel %vm180, %v179, 32
    %v182 = vsel %vm174, %v181, 2147483647
    %v183 = vand.u32 %v182, 65535
    %v184 = vshra.s32 %v182, 16
    %v185 = vcvt.s32.f32 %v183
    %v186 = vcvt.s32.f32 %v184
    %187 = vmin.xlane.f32.xlu0 %v186
    %v188 = vpop.xlane.xlu0 %187
    %vm189 = vcmp.eq.f32.partialorder %v186, %v188
    %v190 = vsel %vm189, %v185, inf
    %191 = vmin.xlane.f32.xlu0 %v190
    %v192 = vpop.xlane.xlu0 %191
    %v193 = vcvt.f32.s32 %v192
    %v194 = vcvt.f32.s32 %v188
    %v195 = vshll.u32 %v194, 16
    %v196 = vadd.s32 %v195, %v193
    %v197 = vlaneseq
    %v198 = vshrl.u32 %v197, 7
    %s199 = smul.u32 0, 8
    %v200 = vstv %s199
    %v201 = vadd.s32 %v198, %v200
    %vm202 = vcmp.lt.s32.totalorder %v201, 8
    %vm203 = vcmp.eq.s32.totalorder %v179, %v196
    %vm204 = vmand %vm203, %vm202
    %v205 = vsel %vm204, 1.0, 0.0
    %v207 = vsel %vm174, %v205, 0
    %209 = vmatprep.subr.mxu0 0.0
    %210 = vmatpush1.msra.mxu0 %v25
    %211 = vmatprep.subr.mxu0 0.0
    %212 = vmatpush1.msra.mxu0 %v26
    %213 = vmatprep.subr.mxu0 0.0
    %214 = vmatpush1.msra.mxu0 %v27
    %215 = vmatprep.subr.mxu0 0.0
    %216 = vmatpush1.msra.mxu0 %v28
    %217 = vmatprep.subr.mxu0 0.0
    %218 = vmatpush1.msra.mxu0 0.0
    %219 = vmatprep.subr.mxu0 0.0
    %220 = vmatpush1.msra.mxu0 0.0
    %221 = vmatprep.subr.mxu0 0.0
    %222 = vmatpush1.msra.mxu0 0.0
    %223 = vmatprep.subr.mxu0 0.0
    %224 = vmatpush1.msra.mxu0 0.0
    %225 = vmatprep.subr.mxu0 0.0
    %226 = vmatpush1.msra.mxu0 0.0
    %227 = vmatprep.subr.mxu0 0.0
    %228 = vmatpush1.msra.mxu0 0.0
    %229 = vmatprep.subr.mxu0 0.0
    %230 = vmatpush1.msra.mxu0 0.0
    %231 = vmatprep.subr.mxu0 0.0
    %232 = vmatpush1.msra.mxu0 0.0
    %233 = vmatprep.subr.mxu0 0.0
    %234 = vmatpush1.msra.mxu0 0.0
    %235 = vmatprep.subr.mxu0 0.0
    %236 = vmatpush1.msra.mxu0 0.0
    %237 = vmatprep.subr.mxu0 0.0
    %238 = vmatpush1.msra.mxu0 0.0
    %239 = vmatprep.subr.mxu0 0.0
    %240 = vmatpush1.msra.mxu0 0.0
    %241 = vmatprep.subr.mxu0 0.0
    %242 = vmatpush1.msra.mxu0 0.0
    %243 = vmatprep.subr.mxu0 0.0
    %244 = vmatpush1.msra.mxu0 0.0
    %245 = vmatprep.subr.mxu0 0.0
    %246 = vmatpush1.msra.mxu0 0.0
    %247 = vmatprep.subr.mxu0 0.0
    %248 = vmatpush1.msra.mxu0 0.0
    %249 = vmatprep.subr.mxu0 0.0
    %250 = vmatpush1.msra.mxu0 0.0
    %251 = vmatprep.subr.mxu0 0.0
    %252 = vmatpush1.msra.mxu0 0.0
    %253 = vmatprep.subr.mxu0 0.0
    %254 = vmatpush1.msra.mxu0 0.0
    %255 = vmatprep.subr.mxu0 0.0
    %256 = vmatpush1.msra.mxu0 0.0
    %257 = vmatprep.subr.mxu0 0.0
    %258 = vmatpush1.msra.mxu0 0.0
    %259 = vmatprep.subr.mxu0 0.0
    %260 = vmatpush1.msra.mxu0 0.0
    %261 = vmatprep.subr.mxu0 0.0
    %262 = vmatpush1.msra.mxu0 0.0
    %263 = vmatprep.subr.mxu0 0.0
    %264 = vmatpush1.msra.mxu0 0.0
    %265 = vmatprep.subr.mxu0 0.0
    %266 = vmatpush1.msra.mxu0 0.0
    %267 = vmatprep.subr.mxu0 0.0
    %268 = vmatpush1.msra.mxu0 0.0
    %269 = vmatprep.subr.mxu0 0.0
    %270 = vmatpush1.msra.mxu0 0.0
    %271 = vmatprep.subr.mxu0 0.0
    %272 = vmatpush1.msra.mxu0 0.0
    %273 = vmatprep.mubr.f32.mxu0 0.0
    %274 = vmatmul.mubr.f32.gmra.mrb[0].mxu0 %v207
    %v275 = vpop.f32.mrb[0].mxu0
    %v276 = vadd.f32 0.0, %v275
    %v277 = vpop.f32.mrb[0].mxu0
    %278 = vdwg.mxu0
    %279 = vst.msk [vmem:[%s2] sm:$0xff] %vm30, %v276
    %v280 = vld [vmem:[#allocation2] sm:$0x1]
    %v281 = vsel %vm174, %v205, 0.0
    %v282 = vrot.slane %v281, 4
    %v283 = vadd.f32 %v281, %v282
    %v284 = vrot.slane %v283, 2
    %v285 = vadd.f32 %v283, %v284
    %v286 = vrot.slane %v285, 1
    %v287 = vadd.f32 %v285, %v286
    %v288 = vadd.f32 %v280, %v287
    %vm289 = vcmask 253952
    %290 = vst.msk [vmem:[#allocation2] sm:$0x1] %vm289, %v288
    %v291 = vld [vmem:[#allocation3] sm:$0x1]
    %v292 = vsub.f32 %v24, %v276
    %v293 = vmul.f32 %v292, %v292
    %v294 = vsel %vm30, %v293, 0.0
    %295 = vadd.xlane.f32.xlu0 %v294
    %v296 = vpop.xlane.xlu0 %295
    %v297 = vrot.slane %v296, 4
    %v298 = vadd.f32 %v296, %v297
    %v299 = vrot.slane %v298, 2
    %v300 = vadd.f32 %v298, %v299
    %v301 = vrot.slane %v300, 1
    %v302 = vadd.f32 %v300, %v301
    %s303 = vtos %v302
    %v304 = vstv %s303
    %v305 = vadd.f32 %v291, %v304
    %vm306 = vcmask 0
    %307 = vst.msk [vmem:[#allocation3] sm:$0x1] %vm306, %v305
    // Predicated region
    $region14: #{tvqvae_forward.26} parent=1 // pred_check
      %p308 = pneg %p16
    $region15: #{tvqvae_forward.26} parent=1 // pred_check_branch
      %310 = sbr.rel (%p308) target = $region17
    $region16: #{tvqvae_forward.26} parent=1 // pred_region
      %v311 = vld [vmem:[#allocation3] sm:$0x1]
      %v312 = vrcp.pop 128.0
      %v313 = vmul.f32 %v311, %v312
      %314 = vst.msk [vmem:[#allocation4] sm:$0x1] %vm306, %v313
      %v315 = vld [vmem:[#allocation2] sm:$0x1]
      %v316 = vsel %vm289, %v315, 0.0
      %317 = vadd.xlane.f32.xlu0 %v316
      %v318 = vpop.xlane.xlu0 %317
      %v319 = vrot.slane %v318, 4
      %v320 = vadd.f32 %v318, %v319
      %v321 = vrot.slane %v320, 2
      %v322 = vadd.f32 %v320, %v321
      %v323 = vrot.slane %v322, 1
      %v324 = vadd.f32 %v322, %v323
      %s325 = vtos %v324
      %v326 = vstv %s325
      %v327 = vrcp.pop %v326
      %v328 = vmul.f32 %v315, %v327
      %v329 = vadd.f32 %v328, 1e-07
      %v330 = vlog2.pop %v329
      %v331 = vmul.f32 %v330, 0.6931472
      %v332 = vmul.f32 %v328, %v331
      %v333 = vsel %vm289, %v332, 0.0
      %334 = vadd.xlane.f32.xlu0 %v333
      %v335 = vpop.xlane.xlu0 %334
      %v336 = vrot.slane %v335, 4
      %v337 = vadd.f32 %v335, %v336
      %v338 = vrot.slane %v337, 2
      %v339 = vadd.f32 %v337, %v338
      %v340 = vrot.slane %v339, 1
      %v341 = vadd.f32 %v339, %v340
      %s342 = vtos %v341
      %s343 = ssub.f32 0.0, %s342
      %v344 = vstv %s343
      %v345 = vmul.f32 %v344, 1.442695
      %v346 = vpow.pop %v345
      %s347 = vtos %v346
      %v348 = vstv %s347
      %349 = vst.msk [vmem:[#allocation6] sm:$0x1] %vm306, %v348
    $region17: #{tvqvae_forward.26} parent=1 // pred_fallthru
      _
    // Predicated region
    $region18: #{tvqvae_forward.26} parent=1 // pred_check
      _
    $region19: #{tvqvae_forward.26} parent=1 // pred_check_branch
      %351 = sbr.rel (0) target = $region21
    $region20: #{tvqvae_forward.26} parent=1 // pred_region
      _
    $region21: #{tvqvae_forward.26} parent=1 // pred_fallthru
      _
    // Predicated region
    $region22: #{tvqvae_forward.26} parent=1 // pred_check
      _
    $region23: #{tvqvae_forward.26} parent=1 // pred_check_branch
      %353 = sbr.rel (0) target = $region25
    $region24: #{tvqvae_forward.26} parent=1 // pred_region
      %s355 = ssub.s32 16, 16
      %356 = vsyncadd [#allocation5], %s355
      %s358 = sshll.u32 [#allocation4], 4
      %s359 = int_to_ptr.vmem [resolvable:$true] %s358
      %361 = dma.vmem_to_hbm [thread:$0]  %s359, 16, %s3, [#allocation5]
    $region25: #{tvqvae_forward.26} parent=1 // pred_fallthru
      _
    // Predicated region
    $region26: #{tvqvae_forward.26} parent=1 // pred_check
      _
    $region27: #{tvqvae_forward.26} parent=1 // pred_check_branch
      %363 = sbr.rel (0) target = $region29
    $region28: #{tvqvae_forward.26} parent=1 // pred_region
      %s365 = ssub.s32 16, 16
      %366 = vsyncadd [#allocation7], %s365
      %s368 = sshll.u32 [#allocation6], 4
      %s369 = int_to_ptr.vmem [resolvable:$true] %s368
      %371 = dma.vmem_to_hbm [thread:$0]  %s369, 16, %s4, [#allocation7]
    $region29: #{tvqvae_forward.26} parent=1 // pred_fallthru
      _
    // Predicated region
    $region30: #{tvqvae_forward.26} parent=1 // pred_check
      _
    $region31: #{tvqvae_forward.26} parent=1 // pred_check_branch
      %373 = sbr.rel (0) target = $region33
    $region32: #{tvqvae_forward.26} parent=1 // pred_region
      _
    $region33: #{tvqvae_forward.26} parent=1 // pred_fallthru
      _
    // Predicated region
    $region34: #{tvqvae_forward.26} parent=1 // pred_check
      _
    $region35: #{tvqvae_forward.26} parent=1 // pred_check_branch
      %375 = sbr.rel (0) target = $region37
    $region36: #{tvqvae_forward.26} parent=1 // pred_region
      %376 = dma.done [#allocation5], 16
    $region37: #{tvqvae_forward.26} parent=1 // pred_fallthru
      _
    // Predicated region
    $region38: #{tvqvae_forward.26} parent=1 // pred_check
      _
    $region39: #{tvqvae_forward.26} parent=1 // pred_check_branch
      %378 = sbr.rel (0) target = $region41
    $region40: #{tvqvae_forward.26} parent=1 // pred_region
      %379 = dma.done [#allocation7], 16
    $region41: #{tvqvae_forward.26} parent=1 // pred_fallthru
      _
    %380 = vsyncpa [#allocation5], 1
    %381 = vsyncpa [#allocation7], 1

// kernel: tvqvae_forward.22
$region0: #{tvqvae_forward.22}
  #allocation0 [shape = 'u32[]', space=smem, size = 0x4, offset = 0x4, fixed_abs, tag = 'smem constant byte address 0x4 - core index']
  #allocation1 [shape = 'u32[144,128]{1,0:T(1,128)}', space=vmem, size = 0x12000, scoped, tag = 'internal scratch']
  %s0 = inlined_call_operand.vmem [shape: f32[2,4,4,8], index: 0, kind: input, shape index: {}]
  %s1 = inlined_call_operand.vmem [shape: f32[2,4,4,8], index: 1, kind: input, shape index: {}]
  %s2 = inlined_call_operand.vmem [shape: f32[2,4,4,8], index: 2, kind: input, shape index: {}]
  %s3 = inlined_call_operand.vmem [shape: f32[4,4,4], index: 3, kind: input, shape index: {}]
  %s4 = inlined_call_operand.vmem [shape: f32[2,4,4,8], index: 4, kind: output, shape index: {}]
  %s5 = sld [smem:[#allocation0]]
  $region49: #{tvqvae_forward.22} parent=0
    _
  %s7 = ssub.s32 1, %s5
  %s8 = scalar_select 0, %s7, %s5
  loop: start=0, step=1, limit=4
  $region2: #{tvqvae_forward.22} parent=0 // loop_pre_header
    _
  $region3: #{tvqvae_forward.22} parent=0 // loop_header
    %s10 = sphi 0, %s14
    %p11 = scmp.ge.s32.totalorder %s10, 4
    %s20 = sphi 0, %s22
    %s23 = sphi 0, %s20
    %s24 = sphi 0, %s23
    %s40 = sphi 0, %s24
    %s46 = sphi 0, %s48
    %s49 = sphi 0, %s46
    %s50 = sphi 0, %s49
    %s66 = sphi 0, %s50
    %s72 = sphi 0, %s74
    %s75 = sphi 0, %s72
    %s76 = sphi 0, %s75
    %s92 = sphi 0, %s76
    %s96 = sphi 0, %s96
    %s98 = sphi 0, %s96
    %s99 = sphi 0, %s98
    %s113 = sphi 0, %s99
    %s119 = sphi 0, %s121
    %s122 = sphi 0, %s119
    %s123 = sphi 0, %s122
    %s139 = sphi 0, %s123
  $region4: #{tvqvae_forward.22} parent=0 // loop_header_branch
    %13 = sbr.rel (%p11) target = $region8
  $region5: #{tvqvae_forward.22} parent=0 // loop_body
    %s15 = ssub.s32 %s10, 1
    %s16 = ssub.s32 %s10, 2
    %s17 = sadd.s32 %s10, 1
    %s18 = ssub.s32 %s10, %s17
    %p19 = scmp.eq.s32.totalorder %s18, 0
    %s21 = sadd.s32 %s20, 1
    %s22 = scalar_select %p19, %s20, %s21
    %p25 = pneg %p19
    %p26 = scmp.eq.s32.totalorder %s10, 1
    %p27 = por %p25, %p26
    %p28 = scmp.ne.s32.totalorder %s20, %s23
    %p29 = scmp.eq.s32.totalorder %s10, 0
    %p30 = por %p28, %p29
    %p31 = scmp.ne.s32.totalorder %s20, %s23
    %p32 = scmp.eq.s32.totalorder %s15, 1
    %p33 = por %p31, %p32
    %p34 = scmp.ne.s32.totalorder %s23, %s24
    %p35 = scmp.eq.s32.totalorder %s15, 0
    %p36 = por %p34, %p35
    %p37 = scmp.ne.s32.totalorder %s23, %s24
    %p38 = scmp.eq.s32.totalorder %s16, 1
    %p39 = por %p37, %p38
    %p41 = scmp.ne.s32.totalorder %s24, %s40
    %p42 = scmp.eq.s32.totalorder %s16, 0
    %p43 = por %p41, %p42
    %s44 = ssub.s32 %s10, %s17
    %p45 = scmp.eq.s32.totalorder %s44, 0
    %s47 = sadd.s32 %s46, 1
    %s48 = scalar_select %p45, %s46, %s47
    %p51 = pneg %p45
    %p52 = scmp.eq.s32.totalorder %s10, 1
    %p53 = por %p51, %p52
    %p54 = scmp.ne.s32.totalorder %s46, %s49
    %p55 = scmp.eq.s32.totalorder %s10, 0
    %p56 = por %p54, %p55
    %p57 = scmp.ne.s32.totalorder %s46, %s49
    %p58 = scmp.eq.s32.totalorder %s15, 1
    %p59 = por %p57, %p58
    %p60 = scmp.ne.s32.totalorder %s49, %s50
    %p61 = scmp.eq.s32.totalorder %s15, 0
    %p62 = por %p60, %p61
    %p63 = scmp.ne.s32.totalorder %s49, %s50
    %p64 = scmp.eq.s32.totalorder %s16, 1
    %p65 = por %p63, %p64
    %p67 = scmp.ne.s32.totalorder %s50, %s66
    %p68 = scmp.eq.s32.totalorder %s16, 0
    %p69 = por %p67, %p68
    %s70 = ssub.s32 %s10, %s17
    %p71 = scmp.eq.s32.totalorder %s70, 0
    %s73 = sadd.s32 %s72, 1
    %s74 = scalar_select %p71, %s72, %s73
    %p77 = pneg %p71
    %p78 = scmp.eq.s32.totalorder %s10, 1
    %p79 = por %p77, %p78
    %p80 = scmp.ne.s32.totalorder %s72, %s75
    %p81 = scmp.eq.s32.totalorder %s10, 0
    %p82 = por %p80, %p81
    %p83 = scmp.ne.s32.totalorder %s72, %s75
    %p84 = scmp.eq.s32.totalorder %s15, 1
    %p85 = por %p83, %p84
    %p86 = scmp.ne.s32.totalorder %s75, %s76
    %p87 = scmp.eq.s32.totalorder %s15, 0
    %p88 = por %p86, %p87
    %p89 = scmp.ne.s32.totalorder %s75, %s76
    %p90 = scmp.eq.s32.totalorder %s16, 1
    %p91 = por %p89, %p90
    %p93 = scmp.ne.s32.totalorder %s76, %s92
    %p94 = scmp.eq.s32.totalorder %s16, 0
    %p95 = por %p93, %p94
    %s97 = sadd.s32 %s96, 1
    %p100 = scmp.eq.s32.totalorder %s10, 1
    %p101 = scmp.ne.s32.totalorder %s96, %s98
    %p102 = scmp.eq.s32.totalorder %s10, 0
    %p103 = por %p101, %p102
    %p104 = scmp.ne.s32.totalorder %s96, %s98
    %p105 = scmp.eq.s32.totalorder %s15, 1
    %p106 = por %p104, %p105
    %p107 = scmp.ne.s32.totalorder %s98, %s99
    %p108 = scmp.eq.s32.totalorder %s15, 0
    %p109 = por %p107, %p108
    %p110 = scmp.ne.s32.totalorder %s98, %s99
    %p111 = scmp.eq.s32.totalorder %s16, 1
    %p112 = por %p110, %p111
    %p114 = scmp.ne.s32.totalorder %s99, %s113
    %p115 = scmp.eq.s32.totalorder %s16, 0
    %p116 = por %p114, %p115
    %s117 = ssub.s32 %s10, %s17
    %p118 = scmp.eq.s32.totalorder %s117, 0
    %s120 = sadd.s32 %s119, 1
    %s121 = scalar_select %p118, %s119, %s120
    %p124 = pneg %p118
    %p125 = scmp.eq.s32.totalorder %s10, 1
    %p126 = por %p124, %p125
    %p127 = scmp.ne.s32.totalorder %s119, %s122
    %p128 = scmp.eq.s32.totalorder %s10, 0
    %p129 = por %p127, %p128
    %p130 = scmp.ne.s32.totalorder %s119, %s122
    %p131 = scmp.eq.s32.totalorder %s15, 1
    %p132 = por %p130, %p131
    %p133 = scmp.ne.s32.totalorder %s122, %s123
    %p134 = scmp.eq.s32.totalorder %s15, 0
    %p135 = por %p133, %p134
    %p136 = scmp.ne.s32.totalorder %s122, %s123
    %p137 = scmp.eq.s32.totalorder %s16, 1
    %p138 = por %p136, %p137
    %p140 = scmp.ne.s32.totalorder %s123, %s139
    %p141 = scmp.eq.s32.totalorder %s16, 0
    %p142 = por %p140, %p141
    %p143 = scmp.le.s32.totalorder 1, %s10
    %p144 = scmp.lt.s32.totalorder %s10, 3
    %p145 = pnand %p143, %p144
    %p146 = pneg %p145
    // Predicated region
    $region9: #{tvqvae_forward.22} parent=5 // pred_check
      _
    $region10: #{tvqvae_forward.22} parent=5 // pred_check_branch
      %148 = sbr.rel (%p145) target = $region12
    $region11: #{tvqvae_forward.22} parent=5 // pred_region
      %s149 = ssub.s32 %s10, 1
      // Predicated region
      $region13: #{tvqvae_forward.22} parent=11 // pred_check
        %p150 = pneg %p109
      $region14: #{tvqvae_forward.22} parent=11 // pred_check_branch
        %152 = sbr.rel (%p150) target = $region16
      $region15: #{tvqvae_forward.22} parent=11 // pred_region
        _
      $region16: #{tvqvae_forward.22} parent=11 // pred_fallthru
        _
    $region12: #{tvqvae_forward.22} parent=5 // pred_fallthru
      _
    %p153 = scmp.lt.s32.totalorder %s10, 2
    // Predicated region
    $region17: #{tvqvae_forward.22} parent=5 // pred_check
      %p154 = pneg %p153
    $region18: #{tvqvae_forward.22} parent=5 // pred_check_branch
      %156 = sbr.rel (%p154) target = $region20
    $region19: #{tvqvae_forward.22} parent=5 // pred_region
      // Predicated region
      $region21: #{tvqvae_forward.22} parent=19 // pred_check
        %p157 = pneg %p30
      $region22: #{tvqvae_forward.22} parent=19 // pred_check_branch
        %159 = sbr.rel (%p157) target = $region24
      $region23: #{tvqvae_forward.22} parent=19 // pred_region
        %p160 = scmp.lt.s32.totalorder %s10, 1
        %s161 = scalar_select %p160, %s10, 1
        %s162 = smul.addr %s161, 4
        %s163 = smul.addr %s162, 4
        %s164 = scalar_lea.vmem %s0, %s163
      $region24: #{tvqvae_forward.22} parent=19 // pred_fallthru
        _
      // Predicated region
      $region25: #{tvqvae_forward.22} parent=19 // pred_check
        %p165 = pneg %p56
      $region26: #{tvqvae_forward.22} parent=19 // pred_check_branch
        %167 = sbr.rel (%p165) target = $region28
      $region27: #{tvqvae_forward.22} parent=19 // pred_region
        %p168 = scmp.lt.s32.totalorder %s10, 1
        %s169 = scalar_select %p168, %s10, 1
        %s170 = smul.addr %s169, 4
        %s171 = smul.addr %s170, 4
        %s172 = scalar_lea.vmem %s1, %s171
      $region28: #{tvqvae_forward.22} parent=19 // pred_fallthru
        _
      // Predicated region
      $region29: #{tvqvae_forward.22} parent=19 // pred_check
        %p173 = pneg %p82
      $region30: #{tvqvae_forward.22} parent=19 // pred_check_branch
        %175 = sbr.rel (%p173) target = $region32
      $region31: #{tvqvae_forward.22} parent=19 // pred_region
        %p176 = scmp.lt.s32.totalorder %s10, 1
        %s177 = scalar_select %p176, %s10, 1
        %s178 = smul.addr %s177, 4
        %s179 = smul.addr %s178, 4
        %s180 = scalar_lea.vmem %s2, %s179
      $region32: #{tvqvae_forward.22} parent=19 // pred_fallthru
        _
    $region20: #{tvqvae_forward.22} parent=5 // pred_fallthru
      _
    %p181 = scmp.le.s32.totalorder 1, %s10
    %p182 = scmp.lt.s32.totalorder %s10, 3
    %p183 = pnand %p181, %p182
    %p184 = pneg %p183
    // Predicated region
    $region33: #{tvqvae_forward.22} parent=5 // pred_check
      _
    $region34: #{tvqvae_forward.22} parent=5 // pred_check_branch
      %186 = sbr.rel (%p183) target = $region36
    $region35: #{tvqvae_forward.22} parent=5 // pred_region
      %s187 = ssub.s32 %s10, 1
      %p188 = scmp.lt.s32.totalorder %s15, 1
      %s189 = scalar_select %p188, %s15, 1
      %s190 = smul.addr %s189, 4
      %s191 = smul.addr %s190, 4
      %s192 = scalar_lea.vmem %s0, %s191
      %p193 = pneg %p36
      %p194 = pneg %p33
      %p195 = scmp.lt.s32.totalorder %s15, 1
      %s196 = scalar_select %p195, %s15, 1
      %s197 = smul.addr %s196, 4
      %s198 = smul.addr %s197, 4
      %s199 = scalar_lea.vmem %s1, %s198
      %p200 = pneg %p62
      %p201 = pneg %p59
      %p202 = scmp.lt.s32.totalorder %s15, 1
      %s203 = scalar_select %p202, %s15, 1
      %s204 = smul.addr %s203, 4
      %s205 = smul.addr %s204, 4
      %s206 = scalar_lea.vmem %s2, %s205
      %p207 = pneg %p88
      %p208 = pneg %p85
      %p209 = pneg %p109
      %p210 = pneg %p106
      %p211 = pneg %p135
      %p212 = pneg %p132
      %p213 = scmp.lt.s32.totalorder %s15, 1
      %s214 = scalar_select %p213, %s15, 1
      %s215 = smul.addr %s214, 4
      %s216 = smul.addr %s215, 4
      %s217 = scalar_lea.vmem %s4, %s216
      %p218 = scmp.lt.s32.totalorder %s15, 1
      %s219 = scalar_select %p218, %s15, 1
      %s220 = smul.addr %s219, 4
      %s221 = smul.addr %s220, 4
      %s222 = scalar_lea.vmem %s0, %s221
      %p223 = scmp.lt.s32.totalorder %s15, 1
      %s224 = scalar_select %p223, %s15, 1
      %s225 = smul.addr %s224, 4
      %s226 = smul.addr %s225, 4
      %s227 = scalar_lea.vmem %s1, %s226
      %p228 = scmp.lt.s32.totalorder %s15, 1
      %s229 = scalar_select %p228, %s15, 1
      %s230 = smul.addr %s229, 4
      %s231 = smul.addr %s230, 4
      %s232 = scalar_lea.vmem %s2, %s231
      %p233 = scmp.lt.s32.totalorder %s15, 1
      %s234 = scalar_select %p233, %s15, 1
      %s235 = smul.addr %s234, 4
      %s236 = smul.addr %s235, 4
      %s237 = scalar_lea.vmem %s4, %s236
      %v239 = vld [vmem:[%s222] sm:$0xf]
      %v240 = vld [vmem:[%s222 + $0x4] sm:$0xf]
      %v241 = vld [vmem:[%s222 + $0x8] sm:$0xf]
      %v242 = vld [vmem:[%s222 + $0xc] sm:$0xf]
      %v243 = vpack.c.bf16 %v239, %v239
      %v244 = vpack.c.bf16 %v240, %v240
      %v245 = vpack.c.bf16 %v241, %v241
      %v246 = vpack.c.bf16 %v242, %v242
      %v247 = vld [vmem:[%s227] sm:$0xf]
      %v248 = vld [vmem:[%s227 + $0x4] sm:$0xf]
      %v249 = vld [vmem:[%s227 + $0x8] sm:$0xf]
      %v250 = vld [vmem:[%s227 + $0xc] sm:$0xf]
      %v251 = vpack.c.bf16 %v247, %v247
      %v252 = vpack.c.bf16 %v248, %v248
      %v253 = vpack.c.bf16 %v249, %v249
      %v254 = vpack.c.bf16 %v250, %v250
      %v255 = vld [vmem:[%s232] sm:$0xf]
      %v256 = vld [vmem:[%s232 + $0x4] sm:$0xf]
      %v257 = vld [vmem:[%s232 + $0x8] sm:$0xf]
      %v258 = vld [vmem:[%s232 + $0xc] sm:$0xf]
      %v259 = vpack.c.bf16 %v255, %v255
      %v260 = vpack.c.bf16 %v256, %v256
      %v261 = vpack.c.bf16 %v257, %v257
      %v262 = vpack.c.bf16 %v258, %v258
      %vm263 = vcmask 64512
      %v265 = vsel %vm263, %v243, 0
      %v268 = vsel %vm263, %v251, 0
      %270 = vmatprep.subr.bf16.mxu0 0
      %271 = vmatpush1.bf16.xpose.msra.mxu0 %v268
      %272 = vmatprep.subr.bf16.mxu0 0
      %273 = vmatpush1.bf16.xpose.msra.mxu0 0
      %274 = vmatprep.subr.bf16.mxu0 0
      %275 = vmatpush1.bf16.xpose.msra.mxu0 0
      %276 = vmatprep.subr.bf16.mxu0 0
      %277 = vmatpush1.bf16.xpose.msra.mxu0 0
      %278 = vmatprep.subr.bf16.mxu0 0
      %279 = vmatpush1.bf16.xpose.msra.mxu0 0
      %280 = vmatprep.subr.bf16.mxu0 0
      %281 = vmatpush1.bf16.xpose.msra.mxu0 0
      %282 = vmatprep.subr.bf16.mxu0 0
      %283 = vmatpush1.bf16.xpose.msra.mxu0 0
      %284 = vmatprep.subr.bf16.mxu0 0
      %285 = vmatpush1.bf16.xpose.msra.mxu0 0
      %286 = vmatprep.subr.bf16.mxu0 0
      %287 = vmatpush1.bf16.xpose.msra.mxu0 0
      %288 = vmatprep.subr.bf16.mxu0 0
      %289 = vmatpush1.bf16.xpose.msra.mxu0 0
      %290 = vmatprep.subr.bf16.mxu0 0
      %291 = vmatpush1.bf16.xpose.msra.mxu0 0
      %292 = vmatprep.subr.bf16.mxu0 0
      %293 = vmatpush1.bf16.xpose.msra.mxu0 0
      %294 = vmatprep.subr.bf16.mxu0 0
      %295 = vmatpush1.bf16.xpose.msra.mxu0 0
      %296 = vmatprep.subr.bf16.mxu0 0
      %297 = vmatpush1.bf16.xpose.msra.mxu0 0
      %298 = vmatprep.subr.bf16.mxu0 0
      %299 = vmatpush1.bf16.xpose.msra.mxu0 0
      %300 = vmatprep.subr.bf16.mxu0 0
      %301 = vmatpush1.bf16.xpose.msra.mxu0 0
      %302 = vmatprep.mubr.bf16.mxu0 0
      %303 = vmatmul.mubr.bf16.gmra.mrb[0].mxu0 %v265
      %v304 = vpop.f32.mrb[0].mxu0
      %v305 = vadd.f32 0.0, %v304
      %v306 = vpop.f32.mrb[0].mxu0
      %v307 = vpop.f32.mrb[0].mxu0
      %v308 = vpop.f32.mrb[0].mxu0
      %309 = vdwg.mxu0
      %v311 = vsel %vm263, %v244, 0
      %v314 = vsel %vm263, %v252, 0
      %316 = vmatprep.subr.bf16.mxu0 0
      %317 = vmatpush1.bf16.xpose.msra.mxu0 %v314
      %318 = vmatprep.subr.bf16.mxu0 0
      %319 = vmatpush1.bf16.xpose.msra.mxu0 0
      %320 = vmatprep.subr.bf16.mxu0 0
      %321 = vmatpush1.bf16.xpose.msra.mxu0 0
      %322 = vmatprep.subr.bf16.mxu0 0
      %323 = vmatpush1.bf16.xpose.msra.mxu0 0
      %324 = vmatprep.subr.bf16.mxu0 0
      %325 = vmatpush1.bf16.xpose.msra.mxu0 0
      %326 = vmatprep.subr.bf16.mxu0 0
      %327 = vmatpush1.bf16.xpose.msra.mxu0 0
      %328 = vmatprep.subr.bf16.mxu0 0
      %329 = vmatpush1.bf16.xpose.msra.mxu0 0
      %330 = vmatprep.subr.bf16.mxu0 0
      %331 = vmatpush1.bf16.xpose.msra.mxu0 0
      %332 = vmatprep.subr.bf16.mxu0 0
      %333 = vmatpush1.bf16.xpose.msra.mxu0 0
      %334 = vmatprep.subr.bf16.mxu0 0
      %335 = vmatpush1.bf16.xpose.msra.mxu0 0
      %336 = vmatprep.subr.bf16.mxu0 0
      %337 = vmatpush1.bf16.xpose.msra.mxu0 0
      %338 = vmatprep.subr.bf16.mxu0 0
      %339 = vmatpush1.bf16.xpose.msra.mxu0 0
      %340 = vmatprep.subr.bf16.mxu0 0
      %341 = vmatpush1.bf16.xpose.msra.mxu0 0
      %342 = vmatprep.subr.bf16.mxu0 0
      %343 = vmatpush1.bf16.xpose.msra.mxu0 0
      %344 = vmatprep.subr.bf16.mxu0 0
      %345 = vmatpush1.bf16.xpose.msra.mxu0 0
      %346 = vmatprep.subr.bf16.mxu0 0
      %347 = vmatpush1.bf16.xpose.msra.mxu0 0
      %348 = vmatprep.mubr.bf16.mxu0 0
      %349 = vmatmul.mubr.bf16.gmra.mrb[0].mxu0 %v311
      %v350 = vpop.f32.mrb[0].mxu0
      %v351 = vadd.f32 0.0, %v350
      %v352 = vpop.f32.mrb[0].mxu0
      %v353 = vpop.f32.mrb[0].mxu0
      %v354 = vpop.f32.mrb[0].mxu0
      %355 = vdwg.mxu0
      %v357 = vsel %vm263, %v245, 0
      %v360 = vsel %vm263, %v253, 0
      %362 = vmatprep.subr.bf16.mxu0 0
      %363 = vmatpush1.bf16.xpose.msra.mxu0 %v360
      %364 = vmatprep.subr.bf16.mxu0 0
      %365 = vmatpush1.bf16.xpose.msra.mxu0 0
      %366 = vmatprep.subr.bf16.mxu0 0
      %367 = vmatpush1.bf16.xpose.msra.mxu0 0
      %368 = vmatprep.subr.bf16.mxu0 0
      %369 = vmatpush1.bf16.xpose.msra.mxu0 0
      %370 = vmatprep.subr.bf16.mxu0 0
      %371 = vmatpush1.bf16.xpose.msra.mxu0 0
      %372 = vmatprep.subr.bf16.mxu0 0
      %373 = vmatpush1.bf16.xpose.msra.mxu0 0
      %374 = vmatprep.subr.bf16.mxu0 0
      %375 = vmatpush1.bf16.xpose.msra.mxu0 0
      %376 = vmatprep.subr.bf16.mxu0 0
      %377 = vmatpush1.bf16.xpose.msra.mxu0 0
      %378 = vmatprep.subr.bf16.mxu0 0
      %379 = vmatpush1.bf16.xpose.msra.mxu0 0
      %380 = vmatprep.subr.bf16.mxu0 0
      %381 = vmatpush1.bf16.xpose.msra.mxu0 0
      %382 = vmatprep.subr.bf16.mxu0 0
      %383 = vmatpush1.bf16.xpose.msra.mxu0 0
      %384 = vmatprep.subr.bf16.mxu0 0
      %385 = vmatpush1.bf16.xpose.msra.mxu0 0
      %386 = vmatprep.subr.bf16.mxu0 0
      %387 = vmatpush1.bf16.xpose.msra.mxu0 0
      %388 = vmatprep.subr.bf16.mxu0 0
      %389 = vmatpush1.bf16.xpose.msra.mxu0 0
      %390 = vmatprep.subr.bf16.mxu0 0
      %391 = vmatpush1.bf16.xpose.msra.mxu0 0
      %392 = vmatprep.subr.bf16.mxu0 0
      %393 = vmatpush1.bf16.xpose.msra.mxu0 0
      %394 = vmatprep.mubr.bf16.mxu0 0
      %395 = vmatmul.mubr.bf16.gmra.mrb[0].mxu0 %v357
      %v396 = vpop.f32.mrb[0].mxu0
      %v397 = vadd.f32 0.0, %v396
      %v398 = vpop.f32.mrb[0].mxu0
      %v399 = vpop.f32.mrb[0].mxu0
      %v400 = vpop.f32.mrb[0].mxu0
      %401 = vdwg.mxu0
      %v403 = vsel %vm263, %v246, 0
      %v406 = vsel %vm263, %v254, 0
      %408 = vmatprep.subr.bf16.mxu0 0
      %409 = vmatpush1.bf16.xpose.msra.mxu0 %v406
      %410 = vmatprep.subr.bf16.mxu0 0
      %411 = vmatpush1.bf16.xpose.msra.mxu0 0
      %412 = vmatprep.subr.bf16.mxu0 0
      %413 = vmatpush1.bf16.xpose.msra.mxu0 0
      %414 = vmatprep.subr.bf16.mxu0 0
      %415 = vmatpush1.bf16.xpose.msra.mxu0 0
      %416 = vmatprep.subr.bf16.mxu0 0
      %417 = vmatpush1.bf16.xpose.msra.mxu0 0
      %418 = vmatprep.subr.bf16.mxu0 0
      %419 = vmatpush1.bf16.xpose.msra.mxu0 0
      %420 = vmatprep.subr.bf16.mxu0 0
      %421 = vmatpush1.bf16.xpose.msra.mxu0 0
      %422 = vmatprep.subr.bf16.mxu0 0
      %423 = vmatpush1.bf16.xpose.msra.mxu0 0
      %424 = vmatprep.subr.bf16.mxu0 0
      %425 = vmatpush1.bf16.xpose.msra.mxu0 0
      %426 = vmatprep.subr.bf16.mxu0 0
      %427 = vmatpush1.bf16.xpose.msra.mxu0 0
      %428 = vmatprep.subr.bf16.mxu0 0
      %429 = vmatpush1.bf16.xpose.msra.mxu0 0
      %430 = vmatprep.subr.bf16.mxu0 0
      %431 = vmatpush1.bf16.xpose.msra.mxu0 0
      %432 = vmatprep.subr.bf16.mxu0 0
      %433 = vmatpush1.bf16.xpose.msra.mxu0 0
      %434 = vmatprep.subr.bf16.mxu0 0
      %435 = vmatpush1.bf16.xpose.msra.mxu0 0
      %436 = vmatprep.subr.bf16.mxu0 0
      %437 = vmatpush1.bf16.xpose.msra.mxu0 0
      %438 = vmatprep.subr.bf16.mxu0 0
      %439 = vmatpush1.bf16.xpose.msra.mxu0 0
      %440 = vmatprep.mubr.bf16.mxu0 0
      %441 = vmatmul.mubr.bf16.gmra.mrb[0].mxu0 %v403
      %v442 = vpop.f32.mrb[0].mxu0
      %v443 = vadd.f32 0.0, %v442
      %v444 = vpop.f32.mrb[0].mxu0
      %v445 = vpop.f32.mrb[0].mxu0
      %v446 = vpop.f32.mrb[0].mxu0
      %447 = vdwg.mxu0
      %v448 = vmul.f32 %v305, 0.35355338
      %v449 = vmul.f32 %v351, 0.35355338
      %v450 = vmul.f32 %v397, 0.35355338
      %v451 = vmul.f32 %v443, 0.35355338
      %v452 = vld [vmem:[%s3] sm:$0xf]
      %v453 = vld [vmem:[%s3 + $0x4] sm:$0xf]
      %v454 = vld [vmem:[%s3 + $0x8] sm:$0xf]
      %v455 = vld [vmem:[%s3 + $0xc] sm:$0xf]
      %v456 = vadd.f32 %v448, %v452
      %v457 = vadd.f32 %v449, %v453
      %v458 = vadd.f32 %v450, %v454
      %v459 = vadd.f32 %v451, %v455
      %vm460 = vcmask 27648
      %v461 = vsel %vm460, %v456, -inf
      %462 = vmax.xlane.f32.xlu0 %v461
      %v463 = vpop.xlane.xlu0 %462
      %v464 = vsel %vm460, %v457, -inf
      %465 = vmax.xlane.f32.xlu0 %v464
      %v466 = vpop.xlane.xlu0 %465
      %v467 = vsel %vm460, %v458, -inf
      %468 = vmax.xlane.f32.xlu0 %v467
      %v469 = vpop.xlane.xlu0 %468
      %v470 = vsel %vm460, %v459, -inf
      %471 = vmax.xlane.f32.xlu0 %v470
      %v472 = vpop.xlane.xlu0 %471
      %v473 = vsub.f32 %v456, %v463
      %v474 = vsub.f32 %v457, %v466
      %v475 = vsub.f32 %v458, %v469
      %v476 = vsub.f32 %v459, %v472
      %v477 = vmul.f32 %v473, 1.442695
      %v478 = vpow.pop %v477
      %v479 = vmul.f32 %v474, 1.442695
      %v480 = vpow.pop %v479
      %v481 = vmul.f32 %v475, 1.442695
      %v482 = vpow.pop %v481
      %v483 = vmul.f32 %v476, 1.442695
      %v484 = vpow.pop %v483
      %v485 = vsel %vm460, %v478, 0.0
      %486 = vadd.xlane.f32.xlu0 %v485
      %v487 = vpop.xlane.xlu0 %486
      %v488 = vsel %vm460, %v480, 0.0
      %489 = vadd.xlane.f32.xlu0 %v488
      %v490 = vpop.xlane.xlu0 %489
      %v491 = vsel %vm460, %v482, 0.0
      %492 = vadd.xlane.f32.xlu0 %v491
      %v493 = vpop.xlane.xlu0 %492
      %v494 = vsel %vm460, %v484, 0.0
      %495 = vadd.xlane.f32.xlu0 %v494
      %v496 = vpop.xlane.xlu0 %495
      %v497 = vrcp.pop %v487
      %v498 = vrcp.pop %v490
      %v499 = vrcp.pop %v493
      %v500 = vrcp.pop %v496
      %v501 = vmul.f32 %v478, %v497
      %v502 = vmul.f32 %v480, %v498
      %v503 = vmul.f32 %v482, %v499
      %v504 = vmul.f32 %v484, %v500
      %v505 = vpack.c.bf16 %v501, %v501
      %v506 = vpack.c.bf16 %v502, %v502
      %v507 = vpack.c.bf16 %v503, %v503
      %v508 = vpack.c.bf16 %v504, %v504
      %vm509 = vcmask 31744
      %v511 = vsel %vm509, %v505, 0
      %vm513 = vcmask 1041408
      %v515 = vsel %vm513, %v259, 0
      %517 = vmatprep.subr.bf16.mxu0 0
      %518 = vmatpush1.bf16.msra.mxu0 %v515
      %519 = vmatprep.subr.bf16.mxu0 0
      %520 = vmatpush1.bf16.msra.mxu0 0
      %521 = vmatprep.subr.bf16.mxu0 0
      %522 = vmatpush1.bf16.msra.mxu0 0
      %523 = vmatprep.subr.bf16.mxu0 0
      %524 = vmatpush1.bf16.msra.mxu0 0
      %525 = vmatprep.subr.bf16.mxu0 0
      %526 = vmatpush1.bf16.msra.mxu0 0
      %527 = vmatprep.subr.bf16.mxu0 0
      %528 = vmatpush1.bf16.msra.mxu0 0
      %529 = vmatprep.subr.bf16.mxu0 0
      %530 = vmatpush1.bf16.msra.mxu0 0
      %531 = vmatprep.subr.bf16.mxu0 0
      %532 = vmatpush1.bf16.msra.mxu0 0
      %533 = vmatprep.subr.bf16.mxu0 0
      %534 = vmatpush1.bf16.msra.mxu0 0
      %535 = vmatprep.subr.bf16.mxu0 0
      %536 = vmatpush1.bf16.msra.mxu0 0
      %537 = vmatprep.subr.bf16.mxu0 0
      %538 = vmatpush1.bf16.msra.mxu0 0
      %539 = vmatprep.subr.bf16.mxu0 0
      %540 = vmatpush1.bf16.msra.mxu0 0
      %541 = vmatprep.subr.bf16.mxu0 0
      %542 = vmatpush1.bf16.msra.mxu0 0
      %543 = vmatprep.subr.bf16.mxu0 0
      %544 = vmatpush1.bf16.msra.mxu0 0
      %545 = vmatprep.subr.bf16.mxu0 0
      %546 = vmatpush1.bf16.msra.mxu0 0
      %547 = vmatprep.subr.bf16.mxu0 0
      %548 = vmatpush1.bf16.msra.mxu0 0
      %549 = vmatprep.mubr.bf16.mxu0 0
      %550 = vmatmul.mubr.bf16.gmra.mrb[0].mxu0 %v511
      %v551 = vpop.f32.mrb[0].mxu0
      %v552 = vadd.f32 0.0, %v551
      %v553 = vpop.f32.mrb[0].mxu0
      %v554 = vpop.f32.mrb[0].mxu0
      %v555 = vpop.f32.mrb[0].mxu0
      %556 = vdwg.mxu0
      %v558 = vsel %vm509, %v506, 0
      %v561 = vsel %vm513, %v260, 0
      %563 = vmatprep.subr.bf16.mxu0 0
      %564 = vmatpush1.bf16.msra.mxu0 %v561
      %565 = vmatprep.subr.bf16.mxu0 0
      %566 = vmatpush1.bf16.msra.mxu0 0
      %567 = vmatprep.subr.bf16.mxu0 0
      %568 = vmatpush1.bf16.msra.mxu0 0
      %569 = vmatprep.subr.bf16.mxu0 0
      %570 = vmatpush1.bf16.msra.mxu0 0
      %571 = vmatprep.subr.bf16.mxu0 0
      %572 = vmatpush1.bf16.msra.mxu0 0
      %573 = vmatprep.subr.bf16.mxu0 0
      %574 = vmatpush1.bf16.msra.mxu0 0
      %575 = vmatprep.subr.bf16.mxu0 0
      %576 = vmatpush1.bf16.msra.mxu0 0
      %577 = vmatprep.subr.bf16.mxu0 0
      %578 = vmatpush1.bf16.msra.mxu0 0
      %579 = vmatprep.subr.bf16.mxu0 0
      %580 = vmatpush1.bf16.msra.mxu0 0
      %581 = vmatprep.subr.bf16.mxu0 0
      %582 = vmatpush1.bf16.msra.mxu0 0
      %583 = vmatprep.subr.bf16.mxu0 0
      %584 = vmatpush1.bf16.msra.mxu0 0
      %585 = vmatprep.subr.bf16.mxu0 0
      %586 = vmatpush1.bf16.msra.mxu0 0
      %587 = vmatprep.subr.bf16.mxu0 0
      %588 = vmatpush1.bf16.msra.mxu0 0
      %589 = vmatprep.subr.bf16.mxu0 0
      %590 = vmatpush1.bf16.msra.mxu0 0
      %591 = vmatprep.subr.bf16.mxu0 0
      %592 = vmatpush1.bf16.msra.mxu0 0
      %593 = vmatprep.subr.bf16.mxu0 0
      %594 = vmatpush1.bf16.msra.mxu0 0
      %595 = vmatprep.mubr.bf16.mxu0 0
      %596 = vmatmul.mubr.bf16.gmra.mrb[0].mxu0 %v558
      %v597 = vpop.f32.mrb[0].mxu0
      %v598 = vadd.f32 0.0, %v597
      %v599 = vpop.f32.mrb[0].mxu0
      %v600 = vpop.f32.mrb[0].mxu0
      %v601 = vpop.f32.mrb[0].mxu0
      %602 = vdwg.mxu0
      %v604 = vsel %vm509, %v507, 0
      %v607 = vsel %vm513, %v261, 0
      %609 = vmatprep.subr.bf16.mxu0 0
      %610 = vmatpush1.bf16.msra.mxu0 %v607
      %611 = vmatprep.subr.bf16.mxu0 0
      %612 = vmatpush1.bf16.msra.mxu0 0
      %613 = vmatprep.subr.bf16.mxu0 0
      %614 = vmatpush1.bf16.msra.mxu0 0
      %615 = vmatprep.subr.bf16.mxu0 0
      %616 = vmatpush1.bf16.msra.mxu0 0
      %617 = vmatprep.subr.bf16.mxu0 0
      %618 = vmatpush1.bf16.msra.mxu0 0
      %619 = vmatprep.subr.bf16.mxu0 0
      %620 = vmatpush1.bf16.msra.mxu0 0
      %621 = vmatprep.subr.bf16.mxu0 0
      %622 = vmatpush1.bf16.msra.mxu0 0
      %623 = vmatprep.subr.bf16.mxu0 0
      %624 = vmatpush1.bf16.msra.mxu0 0
      %625 = vmatprep.subr.bf16.mxu0 0
      %626 = vmatpush1.bf16.msra.mxu0 0
      %627 = vmatprep.subr.bf16.mxu0 0
      %628 = vmatpush1.bf16.msra.mxu0 0
      %629 = vmatprep.subr.bf16.mxu0 0
      %630 = vmatpush1.bf16.msra.mxu0 0
      %631 = vmatprep.subr.bf16.mxu0 0
      %632 = vmatpush1.bf16.msra.mxu0 0
      %633 = vmatprep.subr.bf16.mxu0 0
      %634 = vmatpush1.bf16.msra.mxu0 0
      %635 = vmatprep.subr.bf16.mxu0 0
      %636 = vmatpush1.bf16.msra.mxu0 0
      %637 = vmatprep.subr.bf16.mxu0 0
      %638 = vmatpush1.bf16.msra.mxu0 0
      %639 = vmatprep.subr.bf16.mxu0 0
      %640 = vmatpush1.bf16.msra.mxu0 0
      %641 = vmatprep.mubr.bf16.mxu0 0
      %642 = vmatmul.mubr.bf16.gmra.mrb[0].mxu0 %v604
      %v643 = vpop.f32.mrb[0].mxu0
      %v644 = vadd.f32 0.0, %v643
      %v645 = vpop.f32.mrb[0].mxu0
      %v646 = vpop.f32.mrb[0].mxu0
      %v647 = vpop.f32.mrb[0].mxu0
      %648 = vdwg.mxu0
      %v650 = vsel %vm509, %v508, 0
      %v653 = vsel %vm513, %v262, 0
      %655 = vmatprep.subr.bf16.mxu0 0
      %656 = vmatpush1.bf16.msra.mxu0 %v653
      %657 = vmatprep.subr.bf16.mxu0 0
      %658 = vmatpush1.bf16.msra.mxu0 0
      %659 = vmatprep.subr.bf16.mxu0 0
      %660 = vmatpush1.bf16.msra.mxu0 0
      %661 = vmatprep.subr.bf16.mxu0 0
      %662 = vmatpush1.bf16.msra.mxu0 0
      %663 = vmatprep.subr.bf16.mxu0 0
      %664 = vmatpush1.bf16.msra.mxu0 0
      %665 = vmatprep.subr.bf16.mxu0 0
      %666 = vmatpush1.bf16.msra.mxu0 0
      %667 = vmatprep.subr.bf16.mxu0 0
      %668 = vmatpush1.bf16.msra.mxu0 0
      %669 = vmatprep.subr.bf16.mxu0 0
      %670 = vmatpush1.bf16.msra.mxu0 0
      %671 = vmatprep.subr.bf16.mxu0 0
      %672 = vmatpush1.bf16.msra.mxu0 0
      %673 = vmatprep.subr.bf16.mxu0 0
      %674 = vmatpush1.bf16.msra.mxu0 0
      %675 = vmatprep.subr.bf16.mxu0 0
      %676 = vmatpush1.bf16.msra.mxu0 0
      %677 = vmatprep.subr.bf16.mxu0 0
      %678 = vmatpush1.bf16.msra.mxu0 0
      %679 = vmatprep.subr.bf16.mxu0 0
      %680 = vmatpush1.bf16.msra.mxu0 0
      %681 = vmatprep.subr.bf16.mxu0 0
      %682 = vmatpush1.bf16.msra.mxu0 0
      %683 = vmatprep.subr.bf16.mxu0 0
      %684 = vmatpush1.bf16.msra.mxu0 0
      %685 = vmatprep.subr.bf16.mxu0 0
      %686 = vmatpush1.bf16.msra.mxu0 0
      %687 = vmatprep.mubr.bf16.mxu0 0
      %688 = vmatmul.mubr.bf16.gmra.mrb[0].mxu0 %v650
      %v689 = vpop.f32.mrb[0].mxu0
      %v690 = vadd.f32 0.0, %v689
      %v691 = vpop.f32.mrb[0].mxu0
      %v692 = vpop.f32.mrb[0].mxu0
      %v693 = vpop.f32.mrb[0].mxu0
      %694 = vdwg.mxu0
      %vm695 = vcmask 60416
      %696 = vst.msk [vmem:[%s237] sm:$0xf] %vm695, %v552
      %697 = vst.msk [vmem:[%s237 + $0x4] sm:$0xf] %vm695, %v598
      %698 = vst.msk [vmem:[%s237 + $0x8] sm:$0xf] %vm695, %v644
      %699 = vst.msk [vmem:[%s237 + $0xc] sm:$0xf] %vm695, %v690
      %p700 = scmp.lt.s32.totalorder %s15, 1
      %s701 = scalar_select %p700, %s15, 1
      %s702 = smul.addr %s701, 4
      %s703 = smul.addr %s702, 4
      %s704 = scalar_lea.vmem %s4, %s703
      // Predicated region
      $region37: #{tvqvae_forward.22} parent=35 // pred_check
        %p705 = pneg %p132
      $region38: #{tvqvae_forward.22} parent=35 // pred_check_branch
        %707 = sbr.rel (%p705) target = $region40
      $region39: #{tvqvae_forward.22} parent=35 // pred_region
        _
      $region40: #{tvqvae_forward.22} parent=35 // pred_fallthru
        _
    $region36: #{tvqvae_forward.22} parent=5 // pred_fallthru
      _
    %p708 = scmp.le.s32.totalorder 2, %s10
    // Predicated region
    $region41: #{tvqvae_forward.22} parent=5 // pred_check
      %p709 = pneg %p708
    $region42: #{tvqvae_forward.22} parent=5 // pred_check_branch
      %711 = sbr.rel (%p709) target = $region44
    $region43: #{tvqvae_forward.22} parent=5 // pred_region
      %s712 = ssub.s32 %s10, 2
      // Predicated region
      $region45: #{tvqvae_forward.22} parent=43 // pred_check
        %p713 = pneg %p138
      $region46: #{tvqvae_forward.22} parent=43 // pred_check_branch
        %715 = sbr.rel (%p713) target = $region48
      $region47: #{tvqvae_forward.22} parent=43 // pred_region
        %p716 = scmp.lt.s32.totalorder %s16, 1
        %s717 = scalar_select %p716, %s16, 1
        %s718 = smul.addr %s717, 4
        %s719 = smul.addr %s718, 4
        %s720 = scalar_lea.vmem %s4, %s719
      $region48: #{tvqvae_forward.22} parent=43 // pred_fallthru
        _
    $region44: #{tvqvae_forward.22} parent=5 // pred_fallthru
      _
  $region6: #{tvqvae_forward.22} parent=0 // loop_footer
    %s14 = sadd.s32 1, %s10
  $region7: #{tvqvae_forward.22} parent=0 // loop_footer_branch
    %9 = sbr.rel target = $region3
  $region8: #{tvqvae_forward.22} parent=0 // loop_exit
    _

// kernel: tvqvae_forward.27
$region0: #{tvqvae_forward.27}
  #allocation0 [shape = 'u32[]', space=smem, size = 0x4, offset = 0x4, fixed_abs, tag = 'smem constant byte address 0x4 - core index']
  #allocation1 [shape = 'u32[144,128]{1,0:T(1,128)}', space=vmem, size = 0x12000, scoped, tag = 'internal scratch']
  %s0 = inlined_call_operand.vmem [shape: f32[8,16], index: 0, kind: input, shape index: {}]
  %s1 = inlined_call_operand.vmem [shape: bf16[16,32], index: 1, kind: input, shape index: {}]
  %s2 = inlined_call_operand.vmem [shape: f32[1,32], index: 2, kind: input, shape index: {}]
  %s3 = inlined_call_operand.vmem [shape: f32[8,32], index: 3, kind: output, shape index: {}]
  %s4 = sld [smem:[#allocation0]]
  $region22: #{tvqvae_forward.27} parent=0
    _
  %s6 = ssub.s32 1, %s4
  %s7 = scalar_select 0, %s6, %s4
  // Predicated region
  $region2: #{tvqvae_forward.27} parent=0 // pred_check
    _
  $region3: #{tvqvae_forward.27} parent=0 // pred_check_branch
    %9 = sbr.rel (0) target = $region5
  $region4: #{tvqvae_forward.27} parent=0 // pred_region
    _
  $region5: #{tvqvae_forward.27} parent=0 // pred_fallthru
    _
  // Predicated region
  $region6: #{tvqvae_forward.27} parent=0 // pred_check
    _
  $region7: #{tvqvae_forward.27} parent=0 // pred_check_branch
    %11 = sbr.rel (0) target = $region9
  $region8: #{tvqvae_forward.27} parent=0 // pred_region
    _
  $region9: #{tvqvae_forward.27} parent=0 // pred_fallthru
    _
  // Predicated region
  $region10: #{tvqvae_forward.27} parent=0 // pred_check
    _
  $region11: #{tvqvae_forward.27} parent=0 // pred_check_branch
    %13 = sbr.rel (0) target = $region13
  $region12: #{tvqvae_forward.27} parent=0 // pred_region
    _
  $region13: #{tvqvae_forward.27} parent=0 // pred_fallthru
    _
  %v15 = vld [vmem:[%s0] sm:$0xff]
  %v16 = vpack.c.bf16 %v15, %v15
  %v17 = vld [vmem:[%s1] sm:$0xf]
  %v18 = vld [vmem:[%s1 + $0x4] sm:$0xf]
  %v19 = vld [vmem:[%s2] sm:$0x1]
  %v21 = vlaneseq
  %v22 = vshrl.u32 %v21, 7
  %v23 = vsub.s32 0, %v22
  %v24 = vrot.slane %v19, %v23
  %v28 = vunpack.c.l.b16 %v17
  %v29 = vunpack.c.l.b16 %v18
  %v30 = vpack.c.b16 %v29, %v28
  %vm32 = vcmask 130048
  %v34 = vsel %vm32, %v16, 0
  %36 = vmatprep.subr.bf16.mxu0 0
  %37 = vmatpush1.bf16.msra.mxu0 %v30
  %38 = vmatprep.subr.bf16.mxu0 0
  %39 = vmatpush1.bf16.msra.mxu0 0
  %40 = vmatprep.subr.bf16.mxu0 0
  %41 = vmatpush1.bf16.msra.mxu0 0
  %42 = vmatprep.subr.bf16.mxu0 0
  %43 = vmatpush1.bf16.msra.mxu0 0
  %44 = vmatprep.subr.bf16.mxu0 0
  %45 = vmatpush1.bf16.msra.mxu0 0
  %46 = vmatprep.subr.bf16.mxu0 0
  %47 = vmatpush1.bf16.msra.mxu0 0
  %48 = vmatprep.subr.bf16.mxu0 0
  %49 = vmatpush1.bf16.msra.mxu0 0
  %50 = vmatprep.subr.bf16.mxu0 0
  %51 = vmatpush1.bf16.msra.mxu0 0
  %52 = vmatprep.subr.bf16.mxu0 0
  %53 = vmatpush1.bf16.msra.mxu0 0
  %54 = vmatprep.subr.bf16.mxu0 0
  %55 = vmatpush1.bf16.msra.mxu0 0
  %56 = vmatprep.subr.bf16.mxu0 0
  %57 = vmatpush1.bf16.msra.mxu0 0
  %58 = vmatprep.subr.bf16.mxu0 0
  %59 = vmatpush1.bf16.msra.mxu0 0
  %60 = vmatprep.subr.bf16.mxu0 0
  %61 = vmatpush1.bf16.msra.mxu0 0
  %62 = vmatprep.subr.bf16.mxu0 0
  %63 = vmatpush1.bf16.msra.mxu0 0
  %64 = vmatprep.subr.bf16.mxu0 0
  %65 = vmatpush1.bf16.msra.mxu0 0
  %66 = vmatprep.subr.bf16.mxu0 0
  %67 = vmatpush1.bf16.msra.mxu0 0
  %68 = vmatprep.mubr.bf16.mxu0 0
  %69 = vmatmul.mubr.bf16.gmra.mrb[0].mxu0 %v34
  %v70 = vpop.f32.mrb[0].mxu0
  %v71 = vadd.f32 %v24, %v70
  %v72 = vpop.f32.mrb[0].mxu0
  %v73 = vpop.f32.mrb[0].mxu0
  %v74 = vpop.f32.mrb[0].mxu0
  %75 = vdwg.mxu0
  %vm76 = vcmask 261120
  %77 = vst.msk [vmem:[%s3] sm:$0xff] %vm76, %v71
  // Predicated region
  $region14: #{tvqvae_forward.27} parent=0 // pred_check
    _
  $region15: #{tvqvae_forward.27} parent=0 // pred_check_branch
    %79 = sbr.rel (0) target = $region17
  $region16: #{tvqvae_forward.27} parent=0 // pred_region
    _
  $region17: #{tvqvae_forward.27} parent=0 // pred_fallthru
    _
  // Predicated region
  $region18: #{tvqvae_forward.27} parent=0 // pred_check
    _
  $region19: #{tvqvae_forward.27} parent=0 // pred_check_branch
    %81 = sbr.rel (0) target = $region21
  $region20: #{tvqvae_forward.27} parent=0 // pred_region
    _
  $region21: #{tvqvae_forward.27} parent=0 // pred_fallthru
    _

// kernel: tvqvae_forward.30
$region0: #{tvqvae_forward.30}
  #allocation0 [shape = 'u32[]', space=smem, size = 0x4, offset = 0x4, fixed_abs, tag = 'smem constant byte address 0x4 - core index']
  #allocation1 [shape = 'u32[144,128]{1,0:T(1,128)}', space=vmem, size = 0x12000, scoped, tag = 'internal scratch']
  %s0 = inlined_call_operand.vmem [shape: f32[32,32], index: 0, kind: input, shape index: {}]
  %s1 = inlined_call_operand.vmem [shape: bf16[32,32], index: 1, kind: input, shape index: {}]
  %s2 = inlined_call_operand.vmem [shape: f32[1,32], index: 2, kind: input, shape index: {}]
  %s3 = inlined_call_operand.vmem [shape: f32[32,32], index: 3, kind: output, shape index: {}]
  %s4 = sld [smem:[#allocation0]]
  $region22: #{tvqvae_forward.30} parent=0
    _
  %s6 = ssub.s32 1, %s4
  %s7 = scalar_select 0, %s6, %s4
  // Predicated region
  $region2: #{tvqvae_forward.30} parent=0 // pred_check
    _
  $region3: #{tvqvae_forward.30} parent=0 // pred_check_branch
    %9 = sbr.rel (0) target = $region5
  $region4: #{tvqvae_forward.30} parent=0 // pred_region
    _
  $region5: #{tvqvae_forward.30} parent=0 // pred_fallthru
    _
  // Predicated region
  $region6: #{tvqvae_forward.30} parent=0 // pred_check
    _
  $region7: #{tvqvae_forward.30} parent=0 // pred_check_branch
    %11 = sbr.rel (0) target = $region9
  $region8: #{tvqvae_forward.30} parent=0 // pred_region
    _
  $region9: #{tvqvae_forward.30} parent=0 // pred_fallthru
    _
  // Predicated region
  $region10: #{tvqvae_forward.30} parent=0 // pred_check
    _
  $region11: #{tvqvae_forward.30} parent=0 // pred_check_branch
    %13 = sbr.rel (0) target = $region13
  $region12: #{tvqvae_forward.30} parent=0 // pred_region
    _
  $region13: #{tvqvae_forward.30} parent=0 // pred_fallthru
    _
  %v15 = vld [vmem:[%s0] sm:$0xff]
  %v16 = vld [vmem:[%s0 + $0x8] sm:$0xff]
  %v17 = vld [vmem:[%s0 + $0x10] sm:$0xff]
  %v18 = vld [vmem:[%s0 + $0x18] sm:$0xff]
  %v19 = vpack.c.bf16 %v16, %v15
  %v20 = vpack.c.bf16 %v18, %v17
  %v21 = vld [vmem:[%s1] sm:$0xf]
  %v22 = vld [vmem:[%s1 + $0x4] sm:$0xf]
  %v23 = vld [vmem:[%s1 + $0x8] sm:$0xf]
  %v24 = vld [vmem:[%s1 + $0xc] sm:$0xf]
  %v25 = vld [vmem:[%s2] sm:$0x1]
  %v27 = vlaneseq
  %v28 = vshrl.u32 %v27, 7
  %v29 = vsub.s32 0, %v28
  %v30 = vrot.slane %v25, %v29
  %v36 = vunpack.c.l.b16 %v21
  %v37 = vunpack.c.l.b16 %v22
  %v38 = vunpack.c.l.b16 %v23
  %v39 = vunpack.c.l.b16 %v24
  %v40 = vpack.c.b16 %v37, %v36
  %v41 = vpack.c.b16 %v39, %v38
  %vm44 = vcmask 261120
  %v46 = vsel %vm44, %v19, 0
  %v49 = vsel %vm44, %v20, 0
  %51 = vmatprep.subr.bf16.mxu0 0
  %52 = vmatpush1.bf16.msra.mxu0 %v40
  %53 = vmatprep.subr.bf16.mxu0 0
  %54 = vmatpush1.bf16.msra.mxu0 %v41
  %55 = vmatprep.subr.bf16.mxu0 0
  %56 = vmatpush1.bf16.msra.mxu0 0
  %57 = vmatprep.subr.bf16.mxu0 0
  %58 = vmatpush1.bf16.msra.mxu0 0
  %59 = vmatprep.subr.bf16.mxu0 0
  %60 = vmatpush1.bf16.msra.mxu0 0
  %61 = vmatprep.subr.bf16.mxu0 0
  %62 = vmatpush1.bf16.msra.mxu0 0
  %63 = vmatprep.subr.bf16.mxu0 0
  %64 = vmatpush1.bf16.msra.mxu0 0
  %65 = vmatprep.subr.bf16.mxu0 0
  %66 = vmatpush1.bf16.msra.mxu0 0
  %67 = vmatprep.subr.bf16.mxu0 0
  %68 = vmatpush1.bf16.msra.mxu0 0
  %69 = vmatprep.subr.bf16.mxu0 0
  %70 = vmatpush1.bf16.msra.mxu0 0
  %71 = vmatprep.subr.bf16.mxu0 0
  %72 = vmatpush1.bf16.msra.mxu0 0
  %73 = vmatprep.subr.bf16.mxu0 0
  %74 = vmatpush1.bf16.msra.mxu0 0
  %75 = vmatprep.subr.bf16.mxu0 0
  %76 = vmatpush1.bf16.msra.mxu0 0
  %77 = vmatprep.subr.bf16.mxu0 0
  %78 = vmatpush1.bf16.msra.mxu0 0
  %79 = vmatprep.subr.bf16.mxu0 0
  %80 = vmatpush1.bf16.msra.mxu0 0
  %81 = vmatprep.subr.bf16.mxu0 0
  %82 = vmatpush1.bf16.msra.mxu0 0
  %83 = vmatprep.mubr.bf16.mxu0 0
  %84 = vmatmul.mubr.bf16.gmra.mrb[0].mxu0 %v46
  %v85 = vpop.f32.mrb[0].mxu0
  %v86 = vadd.f32 %v30, %v85
  %v87 = vpop.f32.mrb[0].mxu0
  %v88 = vpop.f32.mrb[0].mxu0
  %v89 = vadd.f32 %v30, %v88
  %v90 = vpop.f32.mrb[0].mxu0
  %91 = vmatprep.mubr.bf16.mxu0 0
  %92 = vmatmul.mubr.bf16.gmra.mrb[0].mxu0 %v49
  %v93 = vpop.f32.mrb[0].mxu0
  %v94 = vadd.f32 %v30, %v93
  %v95 = vpop.f32.mrb[0].mxu0
  %v96 = vpop.f32.mrb[0].mxu0
  %v97 = vadd.f32 %v30, %v96
  %v98 = vpop.f32.mrb[0].mxu0
  %99 = vdwg.mxu0
  %100 = vst.msk [vmem:[%s3] sm:$0xff] %vm44, %v86
  %101 = vst.msk [vmem:[%s3 + $0x8] sm:$0xff] %vm44, %v89
  %102 = vst.msk [vmem:[%s3 + $0x10] sm:$0xff] %vm44, %v94
  %103 = vst.msk [vmem:[%s3 + $0x18] sm:$0xff] %vm44, %v97
  // Predicated region
  $region14: #{tvqvae_forward.30} parent=0 // pred_check
    _
  $region15: #{tvqvae_forward.30} parent=0 // pred_check_branch
    %105 = sbr.rel (0) target = $region17
  $region16: #{tvqvae_forward.30} parent=0 // pred_region
    _
  $region17: #{tvqvae_forward.30} parent=0 // pred_fallthru
    _
  // Predicated region
  $region18: #{tvqvae_forward.30} parent=0 // pred_check
    _
  $region19: #{tvqvae_forward.30} parent=0 // pred_check_branch
    %107 = sbr.rel (0) target = $region21
  $region20: #{tvqvae_forward.30} parent=0 // pred_region
    _
  $region21: #{tvqvae_forward.30} parent=0 // pred_fallthru
    _

// kernel: tvqvae_forward.31
$region0: #{tvqvae_forward.31}
  #allocation0 [shape = 'u32[]', space=smem, size = 0x4, offset = 0x4, fixed_abs, tag = 'smem constant byte address 0x4 - core index']
  #allocation1 [shape = 'u32[144,128]{1,0:T(1,128)}', space=vmem, size = 0x12000, scoped, tag = 'internal scratch']
  %s0 = inlined_call_operand.vmem [shape: f32[32,32], index: 0, kind: input, shape index: {}]
  %s1 = inlined_call_operand.vmem [shape: bf16[32,96], index: 1, kind: input, shape index: {}]
  %s2 = inlined_call_operand.vmem [shape: f32[1,96], index: 2, kind: input, shape index: {}]
  %s3 = inlined_call_operand.vmem [shape: f32[32,96], index: 3, kind: output, shape index: {}]
  %s4 = sld [smem:[#allocation0]]
  $region22: #{tvqvae_forward.31} parent=0
    _
  %s6 = ssub.s32 1, %s4
  %s7 = scalar_select 0, %s6, %s4
  // Predicated region
  $region2: #{tvqvae_forward.31} parent=0 // pred_check
    _
  $region3: #{tvqvae_forward.31} parent=0 // pred_check_branch
    %9 = sbr.rel (0) target = $region5
  $region4: #{tvqvae_forward.31} parent=0 // pred_region
    _
  $region5: #{tvqvae_forward.31} parent=0 // pred_fallthru
    _
  // Predicated region
  $region6: #{tvqvae_forward.31} parent=0 // pred_check
    _
  $region7: #{tvqvae_forward.31} parent=0 // pred_check_branch
    %11 = sbr.rel (0) target = $region9
  $region8: #{tvqvae_forward.31} parent=0 // pred_region
    _
  $region9: #{tvqvae_forward.31} parent=0 // pred_fallthru
    _
  // Predicated region
  $region10: #{tvqvae_forward.31} parent=0 // pred_check
    _
  $region11: #{tvqvae_forward.31} parent=0 // pred_check_branch
    %13 = sbr.rel (0) target = $region13
  $region12: #{tvqvae_forward.31} parent=0 // pred_region
    _
  $region13: #{tvqvae_forward.31} parent=0 // pred_fallthru
    _
  %v15 = vld [vmem:[%s0] sm:$0xff]
  %v16 = vld [vmem:[%s0 + $0x8] sm:$0xff]
  %v17 = vld [vmem:[%s0 + $0x10] sm:$0xff]
  %v18 = vld [vmem:[%s0 + $0x18] sm:$0xff]
  %v19 = vpack.c.bf16 %v16, %v15
  %v20 = vpack.c.bf16 %v18, %v17
  %v21 = vld [vmem:[%s1] sm:$0xf]
  %v22 = vld [vmem:[%s1 + $0x4] sm:$0xf]
  %v23 = vld [vmem:[%s1 + $0x8] sm:$0xf]
  %v24 = vld [vmem:[%s1 + $0xc] sm:$0xf]
  %v25 = vld [vmem:[%s2] sm:$0x1]
  %v27 = vlaneseq
  %v28 = vshrl.u32 %v27, 7
  %v29 = vsub.s32 0, %v28
  %v30 = vrot.slane %v25, %v29
  %v36 = vunpack.c.l.b16 %v21
  %v37 = vunpack.c.l.b16 %v22
  %v38 = vunpack.c.l.b16 %v23
  %v39 = vunpack.c.l.b16 %v24
  %v40 = vpack.c.b16 %v37, %v36
  %v41 = vpack.c.b16 %v39, %v38
  %vm44 = vcmask 261120
  %v46 = vsel %vm44, %v19, 0
  %v49 = vsel %vm44, %v20, 0
  %51 = vmatprep.subr.bf16.mxu0 0
  %52 = vmatpush1.bf16.msra.mxu0 %v40
  %53 = vmatprep.subr.bf16.mxu0 0
  %54 = vmatpush1.bf16.msra.mxu0 %v41
  %55 = vmatprep.subr.bf16.mxu0 0
  %56 = vmatpush1.bf16.msra.mxu0 0
  %57 = vmatprep.subr.bf16.mxu0 0
  %58 = vmatpush1.bf16.msra.mxu0 0
  %59 = vmatprep.subr.bf16.mxu0 0
  %60 = vmatpush1.bf16.msra.mxu0 0
  %61 = vmatprep.subr.bf16.mxu0 0
  %62 = vmatpush1.bf16.msra.mxu0 0
  %63 = vmatprep.subr.bf16.mxu0 0
  %64 = vmatpush1.bf16.msra.mxu0 0
  %65 = vmatprep.subr.bf16.mxu0 0
  %66 = vmatpush1.bf16.msra.mxu0 0
  %67 = vmatprep.subr.bf16.mxu0 0
  %68 = vmatpush1.bf16.msra.mxu0 0
  %69 = vmatprep.subr.bf16.mxu0 0
  %70 = vmatpush1.bf16.msra.mxu0 0
  %71 = vmatprep.subr.bf16.mxu0 0
  %72 = vmatpush1.bf16.msra.mxu0 0
  %73 = vmatprep.subr.bf16.mxu0 0
  %74 = vmatpush1.bf16.msra.mxu0 0
  %75 = vmatprep.subr.bf16.mxu0 0
  %76 = vmatpush1.bf16.msra.mxu0 0
  %77 = vmatprep.subr.bf16.mxu0 0
  %78 = vmatpush1.bf16.msra.mxu0 0
  %79 = vmatprep.subr.bf16.mxu0 0
  %80 = vmatpush1.bf16.msra.mxu0 0
  %81 = vmatprep.subr.bf16.mxu0 0
  %82 = vmatpush1.bf16.msra.mxu0 0
  %83 = vmatprep.mubr.bf16.mxu0 0
  %84 = vmatmul.mubr.bf16.gmra.mrb[0].mxu0 %v46
  %v85 = vpop.f32.mrb[0].mxu0
  %v86 = vadd.f32 %v30, %v85
  %v87 = vpop.f32.mrb[0].mxu0
  %v88 = vpop.f32.mrb[0].mxu0
  %v89 = vadd.f32 %v30, %v88
  %v90 = vpop.f32.mrb[0].mxu0
  %91 = vmatprep.mubr.bf16.mxu0 0
  %92 = vmatmul.mubr.bf16.gmra.mrb[0].mxu0 %v49
  %v93 = vpop.f32.mrb[0].mxu0
  %v94 = vadd.f32 %v30, %v93
  %v95 = vpop.f32.mrb[0].mxu0
  %v96 = vpop.f32.mrb[0].mxu0
  %v97 = vadd.f32 %v30, %v96
  %v98 = vpop.f32.mrb[0].mxu0
  %99 = vdwg.mxu0
  %vm100 = vcmask 785408
  %101 = vst.msk [vmem:[%s3] sm:$0xff] %vm100, %v86
  %102 = vst.msk [vmem:[%s3 + $0x8] sm:$0xff] %vm100, %v89
  %103 = vst.msk [vmem:[%s3 + $0x10] sm:$0xff] %vm100, %v94
  %104 = vst.msk [vmem:[%s3 + $0x18] sm:$0xff] %vm100, %v97
  // Predicated region
  $region14: #{tvqvae_forward.31} parent=0 // pred_check
    _
  $region15: #{tvqvae_forward.31} parent=0 // pred_check_branch
    %106 = sbr.rel (0) target = $region17
  $region16: #{tvqvae_forward.31} parent=0 // pred_region
    _
  $region17: #{tvqvae_forward.31} parent=0 // pred_fallthru
    _
  // Predicated region
  $region18: #{tvqvae_forward.31} parent=0 // pred_check
    _
  $region19: #{tvqvae_forward.31} parent=0 // pred_check_branch
    %108 = sbr.rel (0) target = $region21
  $region20: #{tvqvae_forward.31} parent=0 // pred_region
    _
  $region21: #{tvqvae_forward.31} parent=0 // pred_fallthru
    _

// kernel: tvqvae_forward.34
$region0: #{tvqvae_forward.34}
  #allocation0 [shape = 'u32[]', space=smem, size = 0x4, offset = 0x4, fixed_abs, tag = 'smem constant byte address 0x4 - core index']
  #allocation1 [shape = 'u32[144,128]{1,0:T(1,128)}', space=vmem, size = 0x12000, scoped, tag = 'internal scratch']
  %s0 = inlined_call_operand.vmem [shape: f32[32,32], index: 0, kind: input, shape index: {}]
  %s1 = inlined_call_operand.vmem [shape: bf16[32,64], index: 1, kind: input, shape index: {}]
  %s2 = inlined_call_operand.vmem [shape: f32[1,64], index: 2, kind: input, shape index: {}]
  %s3 = inlined_call_operand.vmem [shape: bf16[64,32], index: 3, kind: input, shape index: {}]
  %s4 = inlined_call_operand.vmem [shape: f32[1,32], index: 4, kind: input, shape index: {}]
  %s5 = inlined_call_operand.vmem [shape: f32[1,32], index: 5, kind: input, shape index: {}]
  %s6 = inlined_call_operand.vmem [shape: f32[1,32], index: 6, kind: input, shape index: {}]
  %s7 = inlined_call_operand.vmem [shape: f32[32,32], index: 7, kind: output, shape index: {}]
  %s8 = sld [smem:[#allocation0]]
  $region38: #{tvqvae_forward.34} parent=0
    _
  %s10 = ssub.s32 1, %s8
  %s11 = scalar_select 0, %s10, %s8
  // Predicated region
  $region2: #{tvqvae_forward.34} parent=0 // pred_check
    _
  $region3: #{tvqvae_forward.34} parent=0 // pred_check_branch
    %13 = sbr.rel (0) target = $region5
  $region4: #{tvqvae_forward.34} parent=0 // pred_region
    _
  $region5: #{tvqvae_forward.34} parent=0 // pred_fallthru
    _
  // Predicated region
  $region6: #{tvqvae_forward.34} parent=0 // pred_check
    _
  $region7: #{tvqvae_forward.34} parent=0 // pred_check_branch
    %15 = sbr.rel (0) target = $region9
  $region8: #{tvqvae_forward.34} parent=0 // pred_region
    _
  $region9: #{tvqvae_forward.34} parent=0 // pred_fallthru
    _
  // Predicated region
  $region10: #{tvqvae_forward.34} parent=0 // pred_check
    _
  $region11: #{tvqvae_forward.34} parent=0 // pred_check_branch
    %17 = sbr.rel (0) target = $region13
  $region12: #{tvqvae_forward.34} parent=0 // pred_region
    _
  $region13: #{tvqvae_forward.34} parent=0 // pred_fallthru
    _
  // Predicated region
  $region14: #{tvqvae_forward.34} parent=0 // pred_check
    _
  $region15: #{tvqvae_forward.34} parent=0 // pred_check_branch
    %19 = sbr.rel (0) target = $region17
  $region16: #{tvqvae_forward.34} parent=0 // pred_region
    _
  $region17: #{tvqvae_forward.34} parent=0 // pred_fallthru
    _
  // Predicated region
  $region18: #{tvqvae_forward.34} parent=0 // pred_check
    _
  $region19: #{tvqvae_forward.34} parent=0 // pred_check_branch
    %21 = sbr.rel (0) target = $region21
  $region20: #{tvqvae_forward.34} parent=0 // pred_region
    _
  $region21: #{tvqvae_forward.34} parent=0 // pred_fallthru
    _
  // Predicated region
  $region22: #{tvqvae_forward.34} parent=0 // pred_check
    _
  $region23: #{tvqvae_forward.34} parent=0 // pred_check_branch
    %23 = sbr.rel (0) target = $region25
  $region24: #{tvqvae_forward.34} parent=0 // pred_region
    _
  $region25: #{tvqvae_forward.34} parent=0 // pred_fallthru
    _
  // Predicated region
  $region26: #{tvqvae_forward.34} parent=0 // pred_check
    _
  $region27: #{tvqvae_forward.34} parent=0 // pred_check_branch
    %25 = sbr.rel (0) target = $region29
  $region28: #{tvqvae_forward.34} parent=0 // pred_region
    _
  $region29: #{tvqvae_forward.34} parent=0 // pred_fallthru
    _
  %v27 = vld [vmem:[%s0] sm:$0xff]
  %v28 = vld [vmem:[%s0 + $0x8] sm:$0xff]
  %v29 = vld [vmem:[%s0 + $0x10] sm:$0xff]
  %v30 = vld [vmem:[%s0 + $0x18] sm:$0xff]
  %v31 = vpack.c.bf16 %v28, %v27
  %v32 = vpack.c.bf16 %v30, %v29
  %v33 = vld [vmem:[%s1] sm:$0xf]
  %v34 = vld [vmem:[%s1 + $0x4] sm:$0xf]
  %v35 = vld [vmem:[%s1 + $0x8] sm:$0xf]
  %v36 = vld [vmem:[%s1 + $0xc] sm:$0xf]
  %v37 = vld [vmem:[%s2] sm:$0x1]
  %v39 = vlaneseq
  %v40 = vshrl.u32 %v39, 7
  %v41 = vsub.s32 0, %v40
  %v42 = vrot.slane %v37, %v41
  %v48 = vunpack.c.l.b16 %v33
  %v49 = vunpack.c.l.b16 %v34
  %v50 = vunpack.c.l.b16 %v35
  %v51 = vunpack.c.l.b16 %v36
  %v52 = vpack.c.b16 %v49, %v48
  %v53 = vpack.c.b16 %v51, %v50
  %vm56 = vcmask 261120
  %v58 = vsel %vm56, %v31, 0
  %v61 = vsel %vm56, %v32, 0
  %63 = vmatprep.subr.bf16.mxu0 0
  %64 = vmatpush1.bf16.msra.mxu0 %v52
  %65 = vmatprep.subr.bf16.mxu0 0
  %66 = vmatpush1.bf16.msra.mxu0 %v53
  %67 = vmatprep.subr.bf16.mxu0 0
  %68 = vmatpush1.bf16.msra.mxu0 0
  %69 = vmatprep.subr.bf16.mxu0 0
  %70 = vmatpush1.bf16.msra.mxu0 0
  %71 = vmatprep.subr.bf16.mxu0 0
  %72 = vmatpush1.bf16.msra.mxu0 0
  %73 = vmatprep.subr.bf16.mxu0 0
  %74 = vmatpush1.bf16.msra.mxu0 0
  %75 = vmatprep.subr.bf16.mxu0 0
  %76 = vmatpush1.bf16.msra.mxu0 0
  %77 = vmatprep.subr.bf16.mxu0 0
  %78 = vmatpush1.bf16.msra.mxu0 0
  %79 = vmatprep.subr.bf16.mxu0 0
  %80 = vmatpush1.bf16.msra.mxu0 0
  %81 = vmatprep.subr.bf16.mxu0 0
  %82 = vmatpush1.bf16.msra.mxu0 0
  %83 = vmatprep.subr.bf16.mxu0 0
  %84 = vmatpush1.bf16.msra.mxu0 0
  %85 = vmatprep.subr.bf16.mxu0 0
  %86 = vmatpush1.bf16.msra.mxu0 0
  %87 = vmatprep.subr.bf16.mxu0 0
  %88 = vmatpush1.bf16.msra.mxu0 0
  %89 = vmatprep.subr.bf16.mxu0 0
  %90 = vmatpush1.bf16.msra.mxu0 0
  %91 = vmatprep.subr.bf16.mxu0 0
  %92 = vmatpush1.bf16.msra.mxu0 0
  %93 = vmatprep.subr.bf16.mxu0 0
  %94 = vmatpush1.bf16.msra.mxu0 0
  %95 = vmatprep.mubr.bf16.mxu0 0
  %96 = vmatmul.mubr.bf16.gmra.mrb[0].mxu0 %v58
  %v97 = vpop.f32.mrb[0].mxu0
  %v98 = vadd.f32 %v42, %v97
  %v99 = vpop.f32.mrb[0].mxu0
  %v100 = vpop.f32.mrb[0].mxu0
  %v101 = vadd.f32 %v42, %v100
  %v102 = vpop.f32.mrb[0].mxu0
  %103 = vmatprep.mubr.bf16.mxu0 0
  %104 = vmatmul.mubr.bf16.gmra.mrb[0].mxu0 %v61
  %v105 = vpop.f32.mrb[0].mxu0
  %v106 = vadd.f32 %v42, %v105
  %v107 = vpop.f32.mrb[0].mxu0
  %v108 = vpop.f32.mrb[0].mxu0
  %v109 = vadd.f32 %v42, %v108
  %v110 = vpop.f32.mrb[0].mxu0
  %111 = vdwg.mxu0
  %v112 = vmul.f32 %v98, 0.5
  %v113 = vmul.f32 %v101, 0.5
  %v114 = vmul.f32 %v106, 0.5
  %v115 = vmul.f32 %v109, 0.5
  %v116 = vmul.f32 %v98, 0.70710677
  %v117 = vmul.f32 %v101, 0.70710677
  %v118 = vmul.f32 %v106, 0.70710677
  %v119 = vmul.f32 %v109, 0.70710677
  %v120 = verf.f32.pop %v116
  %v121 = verf.f32.pop %v117
  %v122 = verf.f32.pop %v118
  %v123 = verf.f32.pop %v119
  %v124 = vadd.f32 %v120, 1.0
  %v125 = vadd.f32 %v121, 1.0
  %v126 = vadd.f32 %v122, 1.0
  %v127 = vadd.f32 %v123, 1.0
  %v128 = vmul.f32 %v112, %v124
  %v129 = vmul.f32 %v113, %v125
  %v130 = vmul.f32 %v114, %v126
  %v131 = vmul.f32 %v115, %v127
  %v132 = vpack.c.bf16 %v129, %v128
  %v133 = vpack.c.bf16 %v131, %v130
  %v134 = vld [vmem:[%s3] sm:$0xf]
  %v135 = vld [vmem:[%s3 + $0x4] sm:$0xf]
  %v136 = vld [vmem:[%s3 + $0x8] sm:$0xf]
  %v137 = vld [vmem:[%s3 + $0xc] sm:$0xf]
  %v138 = vld [vmem:[%s3 + $0x10] sm:$0xf]
  %v139 = vld [vmem:[%s3 + $0x14] sm:$0xf]
  %v140 = vld [vmem:[%s3 + $0x18] sm:$0xf]
  %v141 = vld [vmem:[%s3 + $0x1c] sm:$0xf]
  %v142 = vld [vmem:[%s4] sm:$0x1]
  %v144 = vlaneseq
  %v145 = vshrl.u32 %v144, 7
  %v146 = vsub.s32 0, %v145
  %v147 = vrot.slane %v142, %v146
  %v157 = vunpack.c.l.b16 %v134
  %v158 = vunpack.c.l.b16 %v135
  %v159 = vunpack.c.l.b16 %v136
  %v160 = vunpack.c.l.b16 %v137
  %v161 = vunpack.c.l.b16 %v138
  %v162 = vunpack.c.l.b16 %v139
  %v163 = vunpack.c.l.b16 %v140
  %v164 = vunpack.c.l.b16 %v141
  %v165 = vpack.c.b16 %v158, %v157
  %v166 = vpack.c.b16 %v160, %v159
  %v167 = vpack.c.b16 %v162, %v161
  %v168 = vpack.c.b16 %v164, %v163
  %vm173 = vcmask 523264
  %v175 = vsel %vm173, %v132, 0
  %v178 = vsel %vm173, %v133, 0
  %180 = vmatprep.subr.bf16.mxu0 0
  %181 = vmatpush1.bf16.msra.mxu0 %v165
  %182 = vmatprep.subr.bf16.mxu0 0
  %183 = vmatpush1.bf16.msra.mxu0 %v166
  %184 = vmatprep.subr.bf16.mxu0 0
  %185 = vmatpush1.bf16.msra.mxu0 %v167
  %186 = vmatprep.subr.bf16.mxu0 0
  %187 = vmatpush1.bf16.msra.mxu0 %v168
  %188 = vmatprep.subr.bf16.mxu0 0
  %189 = vmatpush1.bf16.msra.mxu0 0
  %190 = vmatprep.subr.bf16.mxu0 0
  %191 = vmatpush1.bf16.msra.mxu0 0
  %192 = vmatprep.subr.bf16.mxu0 0
  %193 = vmatpush1.bf16.msra.mxu0 0
  %194 = vmatprep.subr.bf16.mxu0 0
  %195 = vmatpush1.bf16.msra.mxu0 0
  %196 = vmatprep.subr.bf16.mxu0 0
  %197 = vmatpush1.bf16.msra.mxu0 0
  %198 = vmatprep.subr.bf16.mxu0 0
  %199 = vmatpush1.bf16.msra.mxu0 0
  %200 = vmatprep.subr.bf16.mxu0 0
  %201 = vmatpush1.bf16.msra.mxu0 0
  %202 = vmatprep.subr.bf16.mxu0 0
  %203 = vmatpush1.bf16.msra.mxu0 0
  %204 = vmatprep.subr.bf16.mxu0 0
  %205 = vmatpush1.bf16.msra.mxu0 0
  %206 = vmatprep.subr.bf16.mxu0 0
  %207 = vmatpush1.bf16.msra.mxu0 0
  %208 = vmatprep.subr.bf16.mxu0 0
  %209 = vmatpush1.bf16.msra.mxu0 0
  %210 = vmatprep.subr.bf16.mxu0 0
  %211 = vmatpush1.bf16.msra.mxu0 0
  %212 = vmatprep.mubr.bf16.mxu0 0
  %213 = vmatmul.mubr.bf16.gmra.mrb[0].mxu0 %v175
  %v214 = vpop.f32.mrb[0].mxu0
  %v215 = vadd.f32 %v147, %v214
  %v216 = vpop.f32.mrb[0].mxu0
  %v217 = vpop.f32.mrb[0].mxu0
  %v218 = vadd.f32 %v147, %v217
  %v219 = vpop.f32.mrb[0].mxu0
  %220 = vmatprep.mubr.bf16.mxu0 0
  %221 = vmatmul.mubr.bf16.gmra.mrb[0].mxu0 %v178
  %v222 = vpop.f32.mrb[0].mxu0
  %v223 = vadd.f32 %v147, %v222
  %v224 = vpop.f32.mrb[0].mxu0
  %v225 = vpop.f32.mrb[0].mxu0
  %v226 = vadd.f32 %v147, %v225
  %v227 = vpop.f32.mrb[0].mxu0
  %228 = vdwg.mxu0
  %v229 = vadd.f32 %v27, %v215
  %v230 = vadd.f32 %v28, %v218
  %v231 = vadd.f32 %v29, %v223
  %v232 = vadd.f32 %v30, %v226
  %v233 = vsel %vm56, %v229, 0.0
  %234 = vadd.xlane.f32.xlu0 %v233
  %v235 = vpop.xlane.xlu0 %234
  %v236 = vsel %vm56, %v230, 0.0
  %237 = vadd.xlane.f32.xlu0 %v236
  %v238 = vpop.xlane.xlu0 %237
  %v239 = vsel %vm56, %v231, 0.0
  %240 = vadd.xlane.f32.xlu0 %v239
  %v241 = vpop.xlane.xlu0 %240
  %v242 = vsel %vm56, %v232, 0.0
  %243 = vadd.xlane.f32.xlu0 %v242
  %v244 = vpop.xlane.xlu0 %243
  %v245 = vrcp.pop 32.0
  %v246 = vmul.f32 %v235, %v245
  %v247 = vmul.f32 %v238, %v245
  %v248 = vmul.f32 %v241, %v245
  %v249 = vmul.f32 %v244, %v245
  %v250 = vsub.f32 %v229, %v246
  %v251 = vsub.f32 %v230, %v247
  %v252 = vsub.f32 %v231, %v248
  %v253 = vsub.f32 %v232, %v249
  %v254 = vmul.f32 %v250, %v250
  %v255 = vmul.f32 %v251, %v251
  %v256 = vmul.f32 %v252, %v252
  %v257 = vmul.f32 %v253, %v253
  %v258 = vsel %vm56, %v254, 0.0
  %259 = vadd.xlane.f32.xlu0 %v258
  %v260 = vpop.xlane.xlu0 %259
  %v261 = vsel %vm56, %v255, 0.0
  %262 = vadd.xlane.f32.xlu0 %v261
  %v263 = vpop.xlane.xlu0 %262
  %v264 = vsel %vm56, %v256, 0.0
  %265 = vadd.xlane.f32.xlu0 %v264
  %v266 = vpop.xlane.xlu0 %265
  %v267 = vsel %vm56, %v257, 0.0
  %268 = vadd.xlane.f32.xlu0 %v267
  %v269 = vpop.xlane.xlu0 %268
  %v270 = vmul.f32 %v260, %v245
  %v271 = vmul.f32 %v263, %v245
  %v272 = vmul.f32 %v266, %v245
  %v273 = vmul.f32 %v269, %v245
  %v274 = vadd.f32 %v270, 1e-05
  %v275 = vadd.f32 %v271, 1e-05
  %v276 = vadd.f32 %v272, 1e-05
  %v277 = vadd.f32 %v273, 1e-05
  %v278 = vrsqrt.pop %v274
  %v279 = vrsqrt.pop %v275
  %v280 = vrsqrt.pop %v276
  %v281 = vrsqrt.pop %v277
  %v282 = vmul.f32 %v250, %v278
  %v283 = vmul.f32 %v251, %v279
  %v284 = vmul.f32 %v252, %v280
  %v285 = vmul.f32 %v253, %v281
  %v286 = vld [vmem:[%s5] sm:$0x1]
  %v288 = vlaneseq
  %v289 = vshrl.u32 %v288, 7
  %v290 = vsub.s32 0, %v289
  %v291 = vrot.slane %v286, %v290
  %v293 = vmul.f32 %v282, %v291
  %v294 = vmul.f32 %v283, %v291
  %v295 = vmul.f32 %v284, %v291
  %v296 = vmul.f32 %v285, %v291
  %v297 = vld [vmem:[%s6] sm:$0x1]
  %v299 = vlaneseq
  %v300 = vshrl.u32 %v299, 7
  %v301 = vsub.s32 0, %v300
  %v302 = vrot.slane %v297, %v301
  %v304 = vadd.f32 %v293, %v302
  %v305 = vadd.f32 %v294, %v302
  %v306 = vadd.f32 %v295, %v302
  %v307 = vadd.f32 %v296, %v302
  %308 = vst.msk [vmem:[%s7] sm:$0xff] %vm56, %v304
  %309 = vst.msk [vmem:[%s7 + $0x8] sm:$0xff] %vm56, %v305
  %310 = vst.msk [vmem:[%s7 + $0x10] sm:$0xff] %vm56, %v306
  %311 = vst.msk [vmem:[%s7 + $0x18] sm:$0xff] %vm56, %v307
  // Predicated region
  $region30: #{tvqvae_forward.34} parent=0 // pred_check
    _
  $region31: #{tvqvae_forward.34} parent=0 // pred_check_branch
    %313 = sbr.rel (0) target = $region33
  $region32: #{tvqvae_forward.34} parent=0 // pred_region
    _
  $region33: #{tvqvae_forward.34} parent=0 // pred_fallthru
    _
  // Predicated region
  $region34: #{tvqvae_forward.34} parent=0 // pred_check
    _
  $region35: #{tvqvae_forward.34} parent=0 // pred_check_branch
    %315 = sbr.rel (0) target = $region37
  $region36: #{tvqvae_forward.34} parent=0 // pred_region
    _
  $region37: #{tvqvae_forward.34} parent=0 // pred_fallthru
    _

// kernel: tvqvae_forward.32
$region0: #{tvqvae_forward.32}
  #allocation0 [shape = 'u32[]', space=smem, size = 0x4, offset = 0x4, fixed_abs, tag = 'smem constant byte address 0x4 - core index']
  #allocation1 [shape = 'u32[144,128]{1,0:T(1,128)}', space=vmem, size = 0x12000, scoped, tag = 'internal scratch']
  %s0 = inlined_call_operand.vmem [shape: f32[2,4,16,8], index: 0, kind: input, shape index: {}]
  %s1 = inlined_call_operand.vmem [shape: f32[2,4,16,8], index: 1, kind: input, shape index: {}]
  %s2 = inlined_call_operand.vmem [shape: f32[2,4,16,8], index: 2, kind: input, shape index: {}]
  %s3 = inlined_call_operand.vmem [shape: f32[4,16,16], index: 3, kind: input, shape index: {}]
  %s4 = inlined_call_operand.vmem [shape: f32[2,4,16,8], index: 4, kind: output, shape index: {}]
  %s5 = sld [smem:[#allocation0]]
  $region49: #{tvqvae_forward.32} parent=0
    _
  %s7 = ssub.s32 1, %s5
  %s8 = scalar_select 0, %s7, %s5
  loop: start=0, step=1, limit=4
  $region2: #{tvqvae_forward.32} parent=0 // loop_pre_header
    _
  $region3: #{tvqvae_forward.32} parent=0 // loop_header
    %s10 = sphi 0, %s14
    %p11 = scmp.ge.s32.totalorder %s10, 4
    %s20 = sphi 0, %s22
    %s23 = sphi 0, %s20
    %s24 = sphi 0, %s23
    %s40 = sphi 0, %s24
    %s46 = sphi 0, %s48
    %s49 = sphi 0, %s46
    %s50 = sphi 0, %s49
    %s66 = sphi 0, %s50
    %s72 = sphi 0, %s74
    %s75 = sphi 0, %s72
    %s76 = sphi 0, %s75
    %s92 = sphi 0, %s76
    %s96 = sphi 0, %s96
    %s98 = sphi 0, %s96
    %s99 = sphi 0, %s98
    %s113 = sphi 0, %s99
    %s119 = sphi 0, %s121
    %s122 = sphi 0, %s119
    %s123 = sphi 0, %s122
    %s139 = sphi 0, %s123
  $region4: #{tvqvae_forward.32} parent=0 // loop_header_branch
    %13 = sbr.rel (%p11) target = $region8
  $region5: #{tvqvae_forward.32} parent=0 // loop_body
    %s15 = ssub.s32 %s10, 1
    %s16 = ssub.s32 %s10, 2
    %s17 = sadd.s32 %s10, 1
    %s18 = ssub.s32 %s10, %s17
    %p19 = scmp.eq.s32.totalorder %s18, 0
    %s21 = sadd.s32 %s20, 1
    %s22 = scalar_select %p19, %s20, %s21
    %p25 = pneg %p19
    %p26 = scmp.eq.s32.totalorder %s10, 1
    %p27 = por %p25, %p26
    %p28 = scmp.ne.s32.totalorder %s20, %s23
    %p29 = scmp.eq.s32.totalorder %s10, 0
    %p30 = por %p28, %p29
    %p31 = scmp.ne.s32.totalorder %s20, %s23
    %p32 = scmp.eq.s32.totalorder %s15, 1
    %p33 = por %p31, %p32
    %p34 = scmp.ne.s32.totalorder %s23, %s24
    %p35 = scmp.eq.s32.totalorder %s15, 0
    %p36 = por %p34, %p35
    %p37 = scmp.ne.s32.totalorder %s23, %s24
    %p38 = scmp.eq.s32.totalorder %s16, 1
    %p39 = por %p37, %p38
    %p41 = scmp.ne.s32.totalorder %s24, %s40
    %p42 = scmp.eq.s32.totalorder %s16, 0
    %p43 = por %p41, %p42
    %s44 = ssub.s32 %s10, %s17
    %p45 = scmp.eq.s32.totalorder %s44, 0
    %s47 = sadd.s32 %s46, 1
    %s48 = scalar_select %p45, %s46, %s47
    %p51 = pneg %p45
    %p52 = scmp.eq.s32.totalorder %s10, 1
    %p53 = por %p51, %p52
    %p54 = scmp.ne.s32.totalorder %s46, %s49
    %p55 = scmp.eq.s32.totalorder %s10, 0
    %p56 = por %p54, %p55
    %p57 = scmp.ne.s32.totalorder %s46, %s49
    %p58 = scmp.eq.s32.totalorder %s15, 1
    %p59 = por %p57, %p58
    %p60 = scmp.ne.s32.totalorder %s49, %s50
    %p61 = scmp.eq.s32.totalorder %s15, 0
    %p62 = por %p60, %p61
    %p63 = scmp.ne.s32.totalorder %s49, %s50
    %p64 = scmp.eq.s32.totalorder %s16, 1
    %p65 = por %p63, %p64
    %p67 = scmp.ne.s32.totalorder %s50, %s66
    %p68 = scmp.eq.s32.totalorder %s16, 0
    %p69 = por %p67, %p68
    %s70 = ssub.s32 %s10, %s17
    %p71 = scmp.eq.s32.totalorder %s70, 0
    %s73 = sadd.s32 %s72, 1
    %s74 = scalar_select %p71, %s72, %s73
    %p77 = pneg %p71
    %p78 = scmp.eq.s32.totalorder %s10, 1
    %p79 = por %p77, %p78
    %p80 = scmp.ne.s32.totalorder %s72, %s75
    %p81 = scmp.eq.s32.totalorder %s10, 0
    %p82 = por %p80, %p81
    %p83 = scmp.ne.s32.totalorder %s72, %s75
    %p84 = scmp.eq.s32.totalorder %s15, 1
    %p85 = por %p83, %p84
    %p86 = scmp.ne.s32.totalorder %s75, %s76
    %p87 = scmp.eq.s32.totalorder %s15, 0
    %p88 = por %p86, %p87
    %p89 = scmp.ne.s32.totalorder %s75, %s76
    %p90 = scmp.eq.s32.totalorder %s16, 1
    %p91 = por %p89, %p90
    %p93 = scmp.ne.s32.totalorder %s76, %s92
    %p94 = scmp.eq.s32.totalorder %s16, 0
    %p95 = por %p93, %p94
    %s97 = sadd.s32 %s96, 1
    %p100 = scmp.eq.s32.totalorder %s10, 1
    %p101 = scmp.ne.s32.totalorder %s96, %s98
    %p102 = scmp.eq.s32.totalorder %s10, 0
    %p103 = por %p101, %p102
    %p104 = scmp.ne.s32.totalorder %s96, %s98
    %p105 = scmp.eq.s32.totalorder %s15, 1
    %p106 = por %p104, %p105
    %p107 = scmp.ne.s32.totalorder %s98, %s99
    %p108 = scmp.eq.s32.totalorder %s15, 0
    %p109 = por %p107, %p108
    %p110 = scmp.ne.s32.totalorder %s98, %s99
    %p111 = scmp.eq.s32.totalorder %s16, 1
    %p112 = por %p110, %p111
    %p114 = scmp.ne.s32.totalorder %s99, %s113
    %p115 = scmp.eq.s32.totalorder %s16, 0
    %p116 = por %p114, %p115
    %s117 = ssub.s32 %s10, %s17
    %p118 = scmp.eq.s32.totalorder %s117, 0
    %s120 = sadd.s32 %s119, 1
    %s121 = scalar_select %p118, %s119, %s120
    %p124 = pneg %p118
    %p125 = scmp.eq.s32.totalorder %s10, 1
    %p126 = por %p124, %p125
    %p127 = scmp.ne.s32.totalorder %s119, %s122
    %p128 = scmp.eq.s32.totalorder %s10, 0
    %p129 = por %p127, %p128
    %p130 = scmp.ne.s32.totalorder %s119, %s122
    %p131 = scmp.eq.s32.totalorder %s15, 1
    %p132 = por %p130, %p131
    %p133 = scmp.ne.s32.totalorder %s122, %s123
    %p134 = scmp.eq.s32.totalorder %s15, 0
    %p135 = por %p133, %p134
    %p136 = scmp.ne.s32.totalorder %s122, %s123
    %p137 = scmp.eq.s32.totalorder %s16, 1
    %p138 = por %p136, %p137
    %p140 = scmp.ne.s32.totalorder %s123, %s139
    %p141 = scmp.eq.s32.totalorder %s16, 0
    %p142 = por %p140, %p141
    %p143 = scmp.le.s32.totalorder 1, %s10
    %p144 = scmp.lt.s32.totalorder %s10, 3
    %p145 = pnand %p143, %p144
    %p146 = pneg %p145
    // Predicated region
    $region9: #{tvqvae_forward.32} parent=5 // pred_check
      _
    $region10: #{tvqvae_forward.32} parent=5 // pred_check_branch
      %148 = sbr.rel (%p145) target = $region12
    $region11: #{tvqvae_forward.32} parent=5 // pred_region
      %s149 = ssub.s32 %s10, 1
      // Predicated region
      $region13: #{tvqvae_forward.32} parent=11 // pred_check
        %p150 = pneg %p109
      $region14: #{tvqvae_forward.32} parent=11 // pred_check_branch
        %152 = sbr.rel (%p150) target = $region16
      $region15: #{tvqvae_forward.32} parent=11 // pred_region
        _
      $region16: #{tvqvae_forward.32} parent=11 // pred_fallthru
        _
    $region12: #{tvqvae_forward.32} parent=5 // pred_fallthru
      _
    %p153 = scmp.lt.s32.totalorder %s10, 2
    // Predicated region
    $region17: #{tvqvae_forward.32} parent=5 // pred_check
      %p154 = pneg %p153
    $region18: #{tvqvae_forward.32} parent=5 // pred_check_branch
      %156 = sbr.rel (%p154) target = $region20
    $region19: #{tvqvae_forward.32} parent=5 // pred_region
      // Predicated region
      $region21: #{tvqvae_forward.32} parent=19 // pred_check
        %p157 = pneg %p30
      $region22: #{tvqvae_forward.32} parent=19 // pred_check_branch
        %159 = sbr.rel (%p157) target = $region24
      $region23: #{tvqvae_forward.32} parent=19 // pred_region
        %p160 = scmp.lt.s32.totalorder %s10, 1
        %s161 = scalar_select %p160, %s10, 1
        %s162 = smul.addr %s161, 8
        %s163 = smul.addr %s162, 8
        %s164 = scalar_lea.vmem %s0, %s163
      $region24: #{tvqvae_forward.32} parent=19 // pred_fallthru
        _
      // Predicated region
      $region25: #{tvqvae_forward.32} parent=19 // pred_check
        %p165 = pneg %p56
      $region26: #{tvqvae_forward.32} parent=19 // pred_check_branch
        %167 = sbr.rel (%p165) target = $region28
      $region27: #{tvqvae_forward.32} parent=19 // pred_region
        %p168 = scmp.lt.s32.totalorder %s10, 1
        %s169 = scalar_select %p168, %s10, 1
        %s170 = smul.addr %s169, 8
        %s171 = smul.addr %s170, 8
        %s172 = scalar_lea.vmem %s1, %s171
      $region28: #{tvqvae_forward.32} parent=19 // pred_fallthru
        _
      // Predicated region
      $region29: #{tvqvae_forward.32} parent=19 // pred_check
        %p173 = pneg %p82
      $region30: #{tvqvae_forward.32} parent=19 // pred_check_branch
        %175 = sbr.rel (%p173) target = $region32
      $region31: #{tvqvae_forward.32} parent=19 // pred_region
        %p176 = scmp.lt.s32.totalorder %s10, 1
        %s177 = scalar_select %p176, %s10, 1
        %s178 = smul.addr %s177, 8
        %s179 = smul.addr %s178, 8
        %s180 = scalar_lea.vmem %s2, %s179
      $region32: #{tvqvae_forward.32} parent=19 // pred_fallthru
        _
    $region20: #{tvqvae_forward.32} parent=5 // pred_fallthru
      _
    %p181 = scmp.le.s32.totalorder 1, %s10
    %p182 = scmp.lt.s32.totalorder %s10, 3
    %p183 = pnand %p181, %p182
    %p184 = pneg %p183
    // Predicated region
    $region33: #{tvqvae_forward.32} parent=5 // pred_check
      _
    $region34: #{tvqvae_forward.32} parent=5 // pred_check_branch
      %186 = sbr.rel (%p183) target = $region36
    $region35: #{tvqvae_forward.32} parent=5 // pred_region
      %s187 = ssub.s32 %s10, 1
      %p188 = scmp.lt.s32.totalorder %s15, 1
      %s189 = scalar_select %p188, %s15, 1
      %s190 = smul.addr %s189, 8
      %s191 = smul.addr %s190, 8
      %s192 = scalar_lea.vmem %s0, %s191
      %p193 = pneg %p36
      %p194 = pneg %p33
      %p195 = scmp.lt.s32.totalorder %s15, 1
      %s196 = scalar_select %p195, %s15, 1
      %s197 = smul.addr %s196, 8
      %s198 = smul.addr %s197, 8
      %s199 = scalar_lea.vmem %s1, %s198
      %p200 = pneg %p62
      %p201 = pneg %p59
      %p202 = scmp.lt.s32.totalorder %s15, 1
      %s203 = scalar_select %p202, %s15, 1
      %s204 = smul.addr %s203, 8
      %s205 = smul.addr %s204, 8
      %s206 = scalar_lea.vmem %s2, %s205
      %p207 = pneg %p88
      %p208 = pneg %p85
      %p209 = pneg %p109
      %p210 = pneg %p106
      %p211 = pneg %p135
      %p212 = pneg %p132
      %p213 = scmp.lt.s32.totalorder %s15, 1
      %s214 = scalar_select %p213, %s15, 1
      %s215 = smul.addr %s214, 8
      %s216 = smul.addr %s215, 8
      %s217 = scalar_lea.vmem %s4, %s216
      %p218 = scmp.lt.s32.totalorder %s15, 1
      %s219 = scalar_select %p218, %s15, 1
      %s220 = smul.addr %s219, 8
      %s221 = smul.addr %s220, 8
      %s222 = scalar_lea.vmem %s0, %s221
      %p223 = scmp.lt.s32.totalorder %s15, 1
      %s224 = scalar_select %p223, %s15, 1
      %s225 = smul.addr %s224, 8
      %s226 = smul.addr %s225, 8
      %s227 = scalar_lea.vmem %s1, %s226
      %p228 = scmp.lt.s32.totalorder %s15, 1
      %s229 = scalar_select %p228, %s15, 1
      %s230 = smul.addr %s229, 8
      %s231 = smul.addr %s230, 8
      %s232 = scalar_lea.vmem %s2, %s231
      %p233 = scmp.lt.s32.totalorder %s15, 1
      %s234 = scalar_select %p233, %s15, 1
      %s235 = smul.addr %s234, 8
      %s236 = smul.addr %s235, 8
      %s237 = scalar_lea.vmem %s4, %s236
      %v239 = vld [vmem:[%s222] sm:$0xff]
      %v240 = vld [vmem:[%s222 + $0x8] sm:$0xff]
      %v241 = vld [vmem:[%s222 + $0x10] sm:$0xff]
      %v242 = vld [vmem:[%s222 + $0x18] sm:$0xff]
      %v243 = vld [vmem:[%s222 + $0x20] sm:$0xff]
      %v244 = vld [vmem:[%s222 + $0x28] sm:$0xff]
      %v245 = vld [vmem:[%s222 + $0x30] sm:$0xff]
      %v246 = vld [vmem:[%s222 + $0x38] sm:$0xff]
      %v247 = vpack.c.bf16 %v240, %v239
      %v248 = vpack.c.bf16 %v242, %v241
      %v249 = vpack.c.bf16 %v244, %v243
      %v250 = vpack.c.bf16 %v246, %v245
      %v251 = vld [vmem:[%s227] sm:$0xff]
      %v252 = vld [vmem:[%s227 + $0x8] sm:$0xff]
      %v253 = vld [vmem:[%s227 + $0x10] sm:$0xff]
      %v254 = vld [vmem:[%s227 + $0x18] sm:$0xff]
      %v255 = vld [vmem:[%s227 + $0x20] sm:$0xff]
      %v256 = vld [vmem:[%s227 + $0x28] sm:$0xff]
      %v257 = vld [vmem:[%s227 + $0x30] sm:$0xff]
      %v258 = vld [vmem:[%s227 + $0x38] sm:$0xff]
      %v259 = vpack.c.bf16 %v252, %v251
      %v260 = vpack.c.bf16 %v254, %v253
      %v261 = vpack.c.bf16 %v256, %v255
      %v262 = vpack.c.bf16 %v258, %v257
      %v263 = vld [vmem:[%s232] sm:$0xff]
      %v264 = vld [vmem:[%s232 + $0x8] sm:$0xff]
      %v265 = vld [vmem:[%s232 + $0x10] sm:$0xff]
      %v266 = vld [vmem:[%s232 + $0x18] sm:$0xff]
      %v267 = vld [vmem:[%s232 + $0x20] sm:$0xff]
      %v268 = vld [vmem:[%s232 + $0x28] sm:$0xff]
      %v269 = vld [vmem:[%s232 + $0x30] sm:$0xff]
      %v270 = vld [vmem:[%s232 + $0x38] sm:$0xff]
      %v271 = vpack.c.bf16 %v264, %v263
      %v272 = vpack.c.bf16 %v266, %v265
      %v273 = vpack.c.bf16 %v268, %v267
      %v274 = vpack.c.bf16 %v270, %v269
      %vm275 = vcmask 64512
      %v277 = vsel %vm275, %v247, 0
      %v280 = vsel %vm275, %v259, 0
      %282 = vmatprep.subr.bf16.mxu0 0
      %283 = vmatpush1.bf16.xpose.msra.mxu0 %v280
      %284 = vmatprep.subr.bf16.mxu0 0
      %285 = vmatpush1.bf16.xpose.msra.mxu0 0
      %286 = vmatprep.subr.bf16.mxu0 0
      %287 = vmatpush1.bf16.xpose.msra.mxu0 0
      %288 = vmatprep.subr.bf16.mxu0 0
      %289 = vmatpush1.bf16.xpose.msra.mxu0 0
      %290 = vmatprep.subr.bf16.mxu0 0
      %291 = vmatpush1.bf16.xpose.msra.mxu0 0
      %292 = vmatprep.subr.bf16.mxu0 0
      %293 = vmatpush1.bf16.xpose.msra.mxu0 0
      %294 = vmatprep.subr.bf16.mxu0 0
      %295 = vmatpush1.bf16.xpose.msra.mxu0 0
      %296 = vmatprep.subr.bf16.mxu0 0
      %297 = vmatpush1.bf16.xpose.msra.mxu0 0
      %298 = vmatprep.subr.bf16.mxu0 0
      %299 = vmatpush1.bf16.xpose.msra.mxu0 0
      %300 = vmatprep.subr.bf16.mxu0 0
      %301 = vmatpush1.bf16.xpose.msra.mxu0 0
      %302 = vmatprep.subr.bf16.mxu0 0
      %303 = vmatpush1.bf16.xpose.msra.mxu0 0
      %304 = vmatprep.subr.bf16.mxu0 0
      %305 = vmatpush1.bf16.xpose.msra.mxu0 0
      %306 = vmatprep.subr.bf16.mxu0 0
      %307 = vmatpush1.bf16.xpose.msra.mxu0 0
      %308 = vmatprep.subr.bf16.mxu0 0
      %309 = vmatpush1.bf16.xpose.msra.mxu0 0
      %310 = vmatprep.subr.bf16.mxu0 0
      %311 = vmatpush1.bf16.xpose.msra.mxu0 0
      %312 = vmatprep.subr.bf16.mxu0 0
      %313 = vmatpush1.bf16.xpose.msra.mxu0 0
      %314 = vmatprep.mubr.bf16.mxu0 0
      %315 = vmatmul.mubr.bf16.gmra.mrb[0].mxu0 %v277
      %v316 = vpop.f32.mrb[0].mxu0
      %v317 = vadd.f32 0.0, %v316
      %v318 = vpop.f32.mrb[0].mxu0
      %v319 = vpop.f32.mrb[0].mxu0
      %v320 = vadd.f32 0.0, %v319
      %v321 = vpop.f32.mrb[0].mxu0
      %322 = vdwg.mxu0
      %v324 = vsel %vm275, %v248, 0
      %v327 = vsel %vm275, %v260, 0
      %329 = vmatprep.subr.bf16.mxu0 0
      %330 = vmatpush1.bf16.xpose.msra.mxu0 %v327
      %331 = vmatprep.subr.bf16.mxu0 0
      %332 = vmatpush1.bf16.xpose.msra.mxu0 0
      %333 = vmatprep.subr.bf16.mxu0 0
      %334 = vmatpush1.bf16.xpose.msra.mxu0 0
      %335 = vmatprep.subr.bf16.mxu0 0
      %336 = vmatpush1.bf16.xpose.msra.mxu0 0
      %337 = vmatprep.subr.bf16.mxu0 0
      %338 = vmatpush1.bf16.xpose.msra.mxu0 0
      %339 = vmatprep.subr.bf16.mxu0 0
      %340 = vmatpush1.bf16.xpose.msra.mxu0 0
      %341 = vmatprep.subr.bf16.mxu0 0
      %342 = vmatpush1.bf16.xpose.msra.mxu0 0
      %343 = vmatprep.subr.bf16.mxu0 0
      %344 = vmatpush1.bf16.xpose.msra.mxu0 0
      %345 = vmatprep.subr.bf16.mxu0 0
      %346 = vmatpush1.bf16.xpose.msra.mxu0 0
      %347 = vmatprep.subr.bf16.mxu0 0
      %348 = vmatpush1.bf16.xpose.msra.mxu0 0
      %349 = vmatprep.subr.bf16.mxu0 0
      %350 = vmatpush1.bf16.xpose.msra.mxu0 0
      %351 = vmatprep.subr.bf16.mxu0 0
      %352 = vmatpush1.bf16.xpose.msra.mxu0 0
      %353 = vmatprep.subr.bf16.mxu0 0
      %354 = vmatpush1.bf16.xpose.msra.mxu0 0
      %355 = vmatprep.subr.bf16.mxu0 0
      %356 = vmatpush1.bf16.xpose.msra.mxu0 0
      %357 = vmatprep.subr.bf16.mxu0 0
      %358 = vmatpush1.bf16.xpose.msra.mxu0 0
      %359 = vmatprep.subr.bf16.mxu0 0
      %360 = vmatpush1.bf16.xpose.msra.mxu0 0
      %361 = vmatprep.mubr.bf16.mxu0 0
      %362 = vmatmul.mubr.bf16.gmra.mrb[0].mxu0 %v324
      %v363 = vpop.f32.mrb[0].mxu0
      %v364 = vadd.f32 0.0, %v363
      %v365 = vpop.f32.mrb[0].mxu0
      %v366 = vpop.f32.mrb[0].mxu0
      %v367 = vadd.f32 0.0, %v366
      %v368 = vpop.f32.mrb[0].mxu0
      %369 = vdwg.mxu0
      %v371 = vsel %vm275, %v249, 0
      %v374 = vsel %vm275, %v261, 0
      %376 = vmatprep.subr.bf16.mxu0 0
      %377 = vmatpush1.bf16.xpose.msra.mxu0 %v374
      %378 = vmatprep.subr.bf16.mxu0 0
      %379 = vmatpush1.bf16.xpose.msra.mxu0 0
      %380 = vmatprep.subr.bf16.mxu0 0
      %381 = vmatpush1.bf16.xpose.msra.mxu0 0
      %382 = vmatprep.subr.bf16.mxu0 0
      %383 = vmatpush1.bf16.xpose.msra.mxu0 0
      %384 = vmatprep.subr.bf16.mxu0 0
      %385 = vmatpush1.bf16.xpose.msra.mxu0 0
      %386 = vmatprep.subr.bf16.mxu0 0
      %387 = vmatpush1.bf16.xpose.msra.mxu0 0
      %388 = vmatprep.subr.bf16.mxu0 0
      %389 = vmatpush1.bf16.xpose.msra.mxu0 0
      %390 = vmatprep.subr.bf16.mxu0 0
      %391 = vmatpush1.bf16.xpose.msra.mxu0 0
      %392 = vmatprep.subr.bf16.mxu0 0
      %393 = vmatpush1.bf16.xpose.msra.mxu0 0
      %394 = vmatprep.subr.bf16.mxu0 0
      %395 = vmatpush1.bf16.xpose.msra.mxu0 0
      %396 = vmatprep.subr.bf16.mxu0 0
      %397 = vmatpush1.bf16.xpose.msra.mxu0 0
      %398 = vmatprep.subr.bf16.mxu0 0
      %399 = vmatpush1.bf16.xpose.msra.mxu0 0
      %400 = vmatprep.subr.bf16.mxu0 0
      %401 = vmatpush1.bf16.xpose.msra.mxu0 0
      %402 = vmatprep.subr.bf16.mxu0 0
      %403 = vmatpush1.bf16.xpose.msra.mxu0 0
      %404 = vmatprep.subr.bf16.mxu0 0
      %405 = vmatpush1.bf16.xpose.msra.mxu0 0
      %406 = vmatprep.subr.bf16.mxu0 0
      %407 = vmatpush1.bf16.xpose.msra.mxu0 0
      %408 = vmatprep.mubr.bf16.mxu0 0
      %409 = vmatmul.mubr.bf16.gmra.mrb[0].mxu0 %v371
      %v410 = vpop.f32.mrb[0].mxu0
      %v411 = vadd.f32 0.0, %v410
      %v412 = vpop.f32.mrb[0].mxu0
      %v413 = vpop.f32.mrb[0].mxu0
      %v414 = vadd.f32 0.0, %v413
      %v415 = vpop.f32.mrb[0].mxu0
      %416 = vdwg.mxu0
      %v418 = vsel %vm275, %v250, 0
      %v421 = vsel %vm275, %v262, 0
      %423 = vmatprep.subr.bf16.mxu0 0
      %424 = vmatpush1.bf16.xpose.msra.mxu0 %v421
      %425 = vmatprep.subr.bf16.mxu0 0
      %426 = vmatpush1.bf16.xpose.msra.mxu0 0
      %427 = vmatprep.subr.bf16.mxu0 0
      %428 = vmatpush1.bf16.xpose.msra.mxu0 0
      %429 = vmatprep.subr.bf16.mxu0 0
      %430 = vmatpush1.bf16.xpose.msra.mxu0 0
      %431 = vmatprep.subr.bf16.mxu0 0
      %432 = vmatpush1.bf16.xpose.msra.mxu0 0
      %433 = vmatprep.subr.bf16.mxu0 0
      %434 = vmatpush1.bf16.xpose.msra.mxu0 0
      %435 = vmatprep.subr.bf16.mxu0 0
      %436 = vmatpush1.bf16.xpose.msra.mxu0 0
      %437 = vmatprep.subr.bf16.mxu0 0
      %438 = vmatpush1.bf16.xpose.msra.mxu0 0
      %439 = vmatprep.subr.bf16.mxu0 0
      %440 = vmatpush1.bf16.xpose.msra.mxu0 0
      %441 = vmatprep.subr.bf16.mxu0 0
      %442 = vmatpush1.bf16.xpose.msra.mxu0 0
      %443 = vmatprep.subr.bf16.mxu0 0
      %444 = vmatpush1.bf16.xpose.msra.mxu0 0
      %445 = vmatprep.subr.bf16.mxu0 0
      %446 = vmatpush1.bf16.xpose.msra.mxu0 0
      %447 = vmatprep.subr.bf16.mxu0 0
      %448 = vmatpush1.bf16.xpose.msra.mxu0 0
      %449 = vmatprep.subr.bf16.mxu0 0
      %450 = vmatpush1.bf16.xpose.msra.mxu0 0
      %451 = vmatprep.subr.bf16.mxu0 0
      %452 = vmatpush1.bf16.xpose.msra.mxu0 0
      %453 = vmatprep.subr.bf16.mxu0 0
      %454 = vmatpush1.bf16.xpose.msra.mxu0 0
      %455 = vmatprep.mubr.bf16.mxu0 0
      %456 = vmatmul.mubr.bf16.gmra.mrb[0].mxu0 %v418
      %v457 = vpop.f32.mrb[0].mxu0
      %v458 = vadd.f32 0.0, %v457
      %v459 = vpop.f32.mrb[0].mxu0
      %v460 = vpop.f32.mrb[0].mxu0
      %v461 = vadd.f32 0.0, %v460
      %v462 = vpop.f32.mrb[0].mxu0
      %463 = vdwg.mxu0
      %v464 = vmul.f32 %v317, 0.35355338
      %v465 = vmul.f32 %v320, 0.35355338
      %v466 = vmul.f32 %v364, 0.35355338
      %v467 = vmul.f32 %v367, 0.35355338
      %v468 = vmul.f32 %v411, 0.35355338
      %v469 = vmul.f32 %v414, 0.35355338
      %v470 = vmul.f32 %v458, 0.35355338
      %v471 = vmul.f32 %v461, 0.35355338
      %v472 = vld [vmem:[%s3] sm:$0xff]
      %v473 = vld [vmem:[%s3 + $0x8] sm:$0xff]
      %v474 = vld [vmem:[%s3 + $0x10] sm:$0xff]
      %v475 = vld [vmem:[%s3 + $0x18] sm:$0xff]
      %v476 = vld [vmem:[%s3 + $0x20] sm:$0xff]
      %v477 = vld [vmem:[%s3 + $0x28] sm:$0xff]
      %v478 = vld [vmem:[%s3 + $0x30] sm:$0xff]
      %v479 = vld [vmem:[%s3 + $0x38] sm:$0xff]
      %v480 = vadd.f32 %v464, %v472
      %v481 = vadd.f32 %v465, %v473
      %v482 = vadd.f32 %v466, %v474
      %v483 = vadd.f32 %v467, %v475
      %v484 = vadd.f32 %v468, %v476
      %v485 = vadd.f32 %v469, %v477
      %v486 = vadd.f32 %v470, %v478
      %v487 = vadd.f32 %v471, %v479
      %vm488 = vcmask 130048
      %v489 = vsel %vm488, %v480, -inf
      %490 = vmax.xlane.f32.xlu0 %v489
      %v491 = vpop.xlane.xlu0 %490
      %v492 = vsel %vm488, %v481, -inf
      %493 = vmax.xlane.f32.xlu0 %v492
      %v494 = vpop.xlane.xlu0 %493
      %v495 = vsel %vm488, %v482, -inf
      %496 = vmax.xlane.f32.xlu0 %v495
      %v497 = vpop.xlane.xlu0 %496
      %v498 = vsel %vm488, %v483, -inf
      %499 = vmax.xlane.f32.xlu0 %v498
      %v500 = vpop.xlane.xlu0 %499
      %v501 = vsel %vm488, %v484, -inf
      %502 = vmax.xlane.f32.xlu0 %v501
      %v503 = vpop.xlane.xlu0 %502
      %v504 = vsel %vm488, %v485, -inf
      %505 = vmax.xlane.f32.xlu0 %v504
      %v506 = vpop.xlane.xlu0 %505
      %v507 = vsel %vm488, %v486, -inf
      %508 = vmax.xlane.f32.xlu0 %v507
      %v509 = vpop.xlane.xlu0 %508
      %v510 = vsel %vm488, %v487, -inf
      %511 = vmax.xlane.f32.xlu0 %v510
      %v512 = vpop.xlane.xlu0 %511
      %v513 = vsub.f32 %v480, %v491
      %v514 = vsub.f32 %v481, %v494
      %v515 = vsub.f32 %v482, %v497
      %v516 = vsub.f32 %v483, %v500
      %v517 = vsub.f32 %v484, %v503
      %v518 = vsub.f32 %v485, %v506
      %v519 = vsub.f32 %v486, %v509
      %v520 = vsub.f32 %v487, %v512
      %v521 = vmul.f32 %v513, 1.442695
      %v522 = vpow.pop %v521
      %v523 = vmul.f32 %v514, 1.442695
      %v524 = vpow.pop %v523
      %v525 = vmul.f32 %v515, 1.442695
      %v526 = vpow.pop %v525
      %v527 = vmul.f32 %v516, 1.442695
      %v528 = vpow.pop %v527
      %v529 = vmul.f32 %v517, 1.442695
      %v530 = vpow.pop %v529
      %v531 = vmul.f32 %v518, 1.442695
      %v532 = vpow.pop %v531
      %v533 = vmul.f32 %v519, 1.442695
      %v534 = vpow.pop %v533
      %v535 = vmul.f32 %v520, 1.442695
      %v536 = vpow.pop %v535
      %v537 = vsel %vm488, %v522, 0.0
      %538 = vadd.xlane.f32.xlu0 %v537
      %v539 = vpop.xlane.xlu0 %538
      %v540 = vsel %vm488, %v524, 0.0
      %541 = vadd.xlane.f32.xlu0 %v540
      %v542 = vpop.xlane.xlu0 %541
      %v543 = vsel %vm488, %v526, 0.0
      %544 = vadd.xlane.f32.xlu0 %v543
      %v545 = vpop.xlane.xlu0 %544
      %v546 = vsel %vm488, %v528, 0.0
      %547 = vadd.xlane.f32.xlu0 %v546
      %v548 = vpop.xlane.xlu0 %547
      %v549 = vsel %vm488, %v530, 0.0
      %550 = vadd.xlane.f32.xlu0 %v549
      %v551 = vpop.xlane.xlu0 %550
      %v552 = vsel %vm488, %v532, 0.0
      %553 = vadd.xlane.f32.xlu0 %v552
      %v554 = vpop.xlane.xlu0 %553
      %v555 = vsel %vm488, %v534, 0.0
      %556 = vadd.xlane.f32.xlu0 %v555
      %v557 = vpop.xlane.xlu0 %556
      %v558 = vsel %vm488, %v536, 0.0
      %559 = vadd.xlane.f32.xlu0 %v558
      %v560 = vpop.xlane.xlu0 %559
      %v561 = vrcp.pop %v539
      %v562 = vrcp.pop %v542
      %v563 = vrcp.pop %v545
      %v564 = vrcp.pop %v548
      %v565 = vrcp.pop %v551
      %v566 = vrcp.pop %v554
      %v567 = vrcp.pop %v557
      %v568 = vrcp.pop %v560
      %v569 = vmul.f32 %v522, %v561
      %v570 = vmul.f32 %v524, %v562
      %v571 = vmul.f32 %v526, %v563
      %v572 = vmul.f32 %v528, %v564
      %v573 = vmul.f32 %v530, %v565
      %v574 = vmul.f32 %v532, %v566
      %v575 = vmul.f32 %v534, %v567
      %v576 = vmul.f32 %v536, %v568
      %v577 = vpack.c.bf16 %v570, %v569
      %v578 = vpack.c.bf16 %v572, %v571
      %v579 = vpack.c.bf16 %v574, %v573
      %v580 = vpack.c.bf16 %v576, %v575
      %v582 = vsel %vm488, %v577, 0
      %584 = vmatprep.subr.bf16.mxu0 0
      %585 = vmatpush1.bf16.msra.mxu0 %v271
      %586 = vmatprep.subr.bf16.mxu0 0
      %587 = vmatpush1.bf16.msra.mxu0 0
      %588 = vmatprep.subr.bf16.mxu0 0
      %589 = vmatpush1.bf16.msra.mxu0 0
      %590 = vmatprep.subr.bf16.mxu0 0
      %591 = vmatpush1.bf16.msra.mxu0 0
      %592 = vmatprep.subr.bf16.mxu0 0
      %593 = vmatpush1.bf16.msra.mxu0 0
      %594 = vmatprep.subr.bf16.mxu0 0
      %595 = vmatpush1.bf16.msra.mxu0 0
      %596 = vmatprep.subr.bf16.mxu0 0
      %597 = vmatpush1.bf16.msra.mxu0 0
      %598 = vmatprep.subr.bf16.mxu0 0
      %599 = vmatpush1.bf16.msra.mxu0 0
      %600 = vmatprep.subr.bf16.mxu0 0
      %601 = vmatpush1.bf16.msra.mxu0 0
      %602 = vmatprep.subr.bf16.mxu0 0
      %603 = vmatpush1.bf16.msra.mxu0 0
      %604 = vmatprep.subr.bf16.mxu0 0
      %605 = vmatpush1.bf16.msra.mxu0 0
      %606 = vmatprep.subr.bf16.mxu0 0
      %607 = vmatpush1.bf16.msra.mxu0 0
      %608 = vmatprep.subr.bf16.mxu0 0
      %609 = vmatpush1.bf16.msra.mxu0 0
      %610 = vmatprep.subr.bf16.mxu0 0
      %611 = vmatpush1.bf16.msra.mxu0 0
      %612 = vmatprep.subr.bf16.mxu0 0
      %613 = vmatpush1.bf16.msra.mxu0 0
      %614 = vmatprep.subr.bf16.mxu0 0
      %615 = vmatpush1.bf16.msra.mxu0 0
      %616 = vmatprep.mubr.bf16.mxu0 0
      %617 = vmatmul.mubr.bf16.gmra.mrb[0].mxu0 %v582
      %v618 = vpop.f32.mrb[0].mxu0
      %v619 = vadd.f32 0.0, %v618
      %v620 = vpop.f32.mrb[0].mxu0
      %v621 = vpop.f32.mrb[0].mxu0
      %v622 = vadd.f32 0.0, %v621
      %v623 = vpop.f32.mrb[0].mxu0
      %624 = vdwg.mxu0
      %v626 = vsel %vm488, %v578, 0
      %628 = vmatprep.subr.bf16.mxu0 0
      %629 = vmatpush1.bf16.msra.mxu0 %v272
      %630 = vmatprep.subr.bf16.mxu0 0
      %631 = vmatpush1.bf16.msra.mxu0 0
      %632 = vmatprep.subr.bf16.mxu0 0
      %633 = vmatpush1.bf16.msra.mxu0 0
      %634 = vmatprep.subr.bf16.mxu0 0
      %635 = vmatpush1.bf16.msra.mxu0 0
      %636 = vmatprep.subr.bf16.mxu0 0
      %637 = vmatpush1.bf16.msra.mxu0 0
      %638 = vmatprep.subr.bf16.mxu0 0
      %639 = vmatpush1.bf16.msra.mxu0 0
      %640 = vmatprep.subr.bf16.mxu0 0
      %641 = vmatpush1.bf16.msra.mxu0 0
      %642 = vmatprep.subr.bf16.mxu0 0
      %643 = vmatpush1.bf16.msra.mxu0 0
      %644 = vmatprep.subr.bf16.mxu0 0
      %645 = vmatpush1.bf16.msra.mxu0 0
      %646 = vmatprep.subr.bf16.mxu0 0
      %647 = vmatpush1.bf16.msra.mxu0 0
      %648 = vmatprep.subr.bf16.mxu0 0
      %649 = vmatpush1.bf16.msra.mxu0 0
      %650 = vmatprep.subr.bf16.mxu0 0
      %651 = vmatpush1.bf16.msra.mxu0 0
      %652 = vmatprep.subr.bf16.mxu0 0
      %653 = vmatpush1.bf16.msra.mxu0 0
      %654 = vmatprep.subr.bf16.mxu0 0
      %655 = vmatpush1.bf16.msra.mxu0 0
      %656 = vmatprep.subr.bf16.mxu0 0
      %657 = vmatpush1.bf16.msra.mxu0 0
      %658 = vmatprep.subr.bf16.mxu0 0
      %659 = vmatpush1.bf16.msra.mxu0 0
      %660 = vmatprep.mubr.bf16.mxu0 0
      %661 = vmatmul.mubr.bf16.gmra.mrb[0].mxu0 %v626
      %v662 = vpop.f32.mrb[0].mxu0
      %v663 = vadd.f32 0.0, %v662
      %v664 = vpop.f32.mrb[0].mxu0
      %v665 = vpop.f32.mrb[0].mxu0
      %v666 = vadd.f32 0.0, %v665
      %v667 = vpop.f32.mrb[0].mxu0
      %668 = vdwg.mxu0
      %v670 = vsel %vm488, %v579, 0
      %672 = vmatprep.subr.bf16.mxu0 0
      %673 = vmatpush1.bf16.msra.mxu0 %v273
      %674 = vmatprep.subr.bf16.mxu0 0
      %675 = vmatpush1.bf16.msra.mxu0 0
      %676 = vmatprep.subr.bf16.mxu0 0
      %677 = vmatpush1.bf16.msra.mxu0 0
      %678 = vmatprep.subr.bf16.mxu0 0
      %679 = vmatpush1.bf16.msra.mxu0 0
      %680 = vmatprep.subr.bf16.mxu0 0
      %681 = vmatpush1.bf16.msra.mxu0 0
      %682 = vmatprep.subr.bf16.mxu0 0
      %683 = vmatpush1.bf16.msra.mxu0 0
      %684 = vmatprep.subr.bf16.mxu0 0
      %685 = vmatpush1.bf16.msra.mxu0 0
      %686 = vmatprep.subr.bf16.mxu0 0
      %687 = vmatpush1.bf16.msra.mxu0 0
      %688 = vmatprep.subr.bf16.mxu0 0
      %689 = vmatpush1.bf16.msra.mxu0 0
      %690 = vmatprep.subr.bf16.mxu0 0
      %691 = vmatpush1.bf16.msra.mxu0 0
      %692 = vmatprep.subr.bf16.mxu0 0
      %693 = vmatpush1.bf16.msra.mxu0 0
      %694 = vmatprep.subr.bf16.mxu0 0
      %695 = vmatpush1.bf16.msra.mxu0 0
      %696 = vmatprep.subr.bf16.mxu0 0
      %697 = vmatpush1.bf16.msra.mxu0 0
      %698 = vmatprep.subr.bf16.mxu0 0
      %699 = vmatpush1.bf16.msra.mxu0 0
      %700 = vmatprep.subr.bf16.mxu0 0
      %701 = vmatpush1.bf16.msra.mxu0 0
      %702 = vmatprep.subr.bf16.mxu0 0
      %703 = vmatpush1.bf16.msra.mxu0 0
      %704 = vmatprep.mubr.bf16.mxu0 0
      %705 = vmatmul.mubr.bf16.gmra.mrb[0].mxu0 %v670
      %v706 = vpop.f32.mrb[0].mxu0
      %v707 = vadd.f32 0.0, %v706
      %v708 = vpop.f32.mrb[0].mxu0
      %v709 = vpop.f32.mrb[0].mxu0
      %v710 = vadd.f32 0.0, %v709
      %v711 = vpop.f32.mrb[0].mxu0
      %712 = vdwg.mxu0
      %v714 = vsel %vm488, %v580, 0
      %716 = vmatprep.subr.bf16.mxu0 0
      %717 = vmatpush1.bf16.msra.mxu0 %v274
      %718 = vmatprep.subr.bf16.mxu0 0
      %719 = vmatpush1.bf16.msra.mxu0 0
      %720 = vmatprep.subr.bf16.mxu0 0
      %721 = vmatpush1.bf16.msra.mxu0 0
      %722 = vmatprep.subr.bf16.mxu0 0
      %723 = vmatpush1.bf16.msra.mxu0 0
      %724 = vmatprep.subr.bf16.mxu0 0
      %725 = vmatpush1.bf16.msra.mxu0 0
      %726 = vmatprep.subr.bf16.mxu0 0
      %727 = vmatpush1.bf16.msra.mxu0 0
      %728 = vmatprep.subr.bf16.mxu0 0
      %729 = vmatpush1.bf16.msra.mxu0 0
      %730 = vmatprep.subr.bf16.mxu0 0
      %731 = vmatpush1.bf16.msra.mxu0 0
      %732 = vmatprep.subr.bf16.mxu0 0
      %733 = vmatpush1.bf16.msra.mxu0 0
      %734 = vmatprep.subr.bf16.mxu0 0
      %735 = vmatpush1.bf16.msra.mxu0 0
      %736 = vmatprep.subr.bf16.mxu0 0
      %737 = vmatpush1.bf16.msra.mxu0 0
      %738 = vmatprep.subr.bf16.mxu0 0
      %739 = vmatpush1.bf16.msra.mxu0 0
      %740 = vmatprep.subr.bf16.mxu0 0
      %741 = vmatpush1.bf16.msra.mxu0 0
      %742 = vmatprep.subr.bf16.mxu0 0
      %743 = vmatpush1.bf16.msra.mxu0 0
      %744 = vmatprep.subr.bf16.mxu0 0
      %745 = vmatpush1.bf16.msra.mxu0 0
      %746 = vmatprep.subr.bf16.mxu0 0
      %747 = vmatpush1.bf16.msra.mxu0 0
      %748 = vmatprep.mubr.bf16.mxu0 0
      %749 = vmatmul.mubr.bf16.gmra.mrb[0].mxu0 %v714
      %v750 = vpop.f32.mrb[0].mxu0
      %v751 = vadd.f32 0.0, %v750
      %v752 = vpop.f32.mrb[0].mxu0
      %v753 = vpop.f32.mrb[0].mxu0
      %v754 = vadd.f32 0.0, %v753
      %v755 = vpop.f32.mrb[0].mxu0
      %756 = vdwg.mxu0
      %757 = vst.msk [vmem:[%s237] sm:$0xff] %vm275, %v619
      %758 = vst.msk [vmem:[%s237 + $0x8] sm:$0xff] %vm275, %v622
      %759 = vst.msk [vmem:[%s237 + $0x10] sm:$0xff] %vm275, %v663
      %760 = vst.msk [vmem:[%s237 + $0x18] sm:$0xff] %vm275, %v666
      %761 = vst.msk [vmem:[%s237 + $0x20] sm:$0xff] %vm275, %v707
      %762 = vst.msk [vmem:[%s237 + $0x28] sm:$0xff] %vm275, %v710
      %763 = vst.msk [vmem:[%s237 + $0x30] sm:$0xff] %vm275, %v751
      %764 = vst.msk [vmem:[%s237 + $0x38] sm:$0xff] %vm275, %v754
      %p765 = scmp.lt.s32.totalorder %s15, 1
      %s766 = scalar_select %p765, %s15, 1
      %s767 = smul.addr %s766, 8
      %s768 = smul.addr %s767, 8
      %s769 = scalar_lea.vmem %s4, %s768
      // Predicated region
      $region37: #{tvqvae_forward.32} parent=35 // pred_check
        %p770 = pneg %p132
      $region38: #{tvqvae_forward.32} parent=35 // pred_check_branch
        %772 = sbr.rel (%p770) target = $region40
      $region39: #{tvqvae_forward.32} parent=35 // pred_region
        _
      $region40: #{tvqvae_forward.32} parent=35 // pred_fallthru
        _
    $region36: #{tvqvae_forward.32} parent=5 // pred_fallthru
      _
    %p773 = scmp.le.s32.totalorder 2, %s10
    // Predicated region
    $region41: #{tvqvae_forward.32} parent=5 // pred_check
      %p774 = pneg %p773
    $region42: #{tvqvae_forward.32} parent=5 // pred_check_branch
      %776 = sbr.rel (%p774) target = $region44
    $region43: #{tvqvae_forward.32} parent=5 // pred_region
      %s777 = ssub.s32 %s10, 2
      // Predicated region
      $region45: #{tvqvae_forward.32} parent=43 // pred_check
        %p778 = pneg %p138
      $region46: #{tvqvae_forward.32} parent=43 // pred_check_branch
        %780 = sbr.rel (%p778) target = $region48
      $region47: #{tvqvae_forward.32} parent=43 // pred_region
        %p781 = scmp.lt.s32.totalorder %s16, 1
        %s782 = scalar_select %p781, %s16, 1
        %s783 = smul.addr %s782, 8
        %s784 = smul.addr %s783, 8
        %s785 = scalar_lea.vmem %s4, %s784
      $region48: #{tvqvae_forward.32} parent=43 // pred_fallthru
        _
    $region44: #{tvqvae_forward.32} parent=5 // pred_fallthru
      _
  $region6: #{tvqvae_forward.32} parent=0 // loop_footer
    %s14 = sadd.s32 1, %s10
  $region7: #{tvqvae_forward.32} parent=0 // loop_footer_branch
    %9 = sbr.rel target = $region3
  $region8: #{tvqvae_forward.32} parent=0 // loop_exit
    _

// kernel: tvqvae_forward.33
$region0: #{tvqvae_forward.33}
  #allocation0 [shape = 'u32[]', space=smem, size = 0x4, offset = 0x4, fixed_abs, tag = 'smem constant byte address 0x4 - core index']
  #allocation1 [shape = 'u32[144,128]{1,0:T(1,128)}', space=vmem, size = 0x12000, scoped, tag = 'internal scratch']
  %s0 = inlined_call_operand.vmem [shape: f32[32,32], index: 0, kind: input, shape index: {}]
  %s1 = inlined_call_operand.vmem [shape: bf16[32,32], index: 1, kind: input, shape index: {}]
  %s2 = inlined_call_operand.vmem [shape: f32[1,32], index: 2, kind: input, shape index: {}]
  %s3 = inlined_call_operand.vmem [shape: f32[32,32], index: 3, kind: input, shape index: {}]
  %s4 = inlined_call_operand.vmem [shape: f32[1,32], index: 4, kind: input, shape index: {}]
  %s5 = inlined_call_operand.vmem [shape: f32[1,32], index: 5, kind: input, shape index: {}]
  %s6 = inlined_call_operand.vmem [shape: f32[32,32], index: 6, kind: output, shape index: {}]
  %s7 = sld [smem:[#allocation0]]
  $region34: #{tvqvae_forward.33} parent=0
    _
  %s9 = ssub.s32 1, %s7
  %s10 = scalar_select 0, %s9, %s7
  // Predicated region
  $region2: #{tvqvae_forward.33} parent=0 // pred_check
    _
  $region3: #{tvqvae_forward.33} parent=0 // pred_check_branch
    %12 = sbr.rel (0) target = $region5
  $region4: #{tvqvae_forward.33} parent=0 // pred_region
    _
  $region5: #{tvqvae_forward.33} parent=0 // pred_fallthru
    _
  // Predicated region
  $region6: #{tvqvae_forward.33} parent=0 // pred_check
    _
  $region7: #{tvqvae_forward.33} parent=0 // pred_check_branch
    %14 = sbr.rel (0) target = $region9
  $region8: #{tvqvae_forward.33} parent=0 // pred_region
    _
  $region9: #{tvqvae_forward.33} parent=0 // pred_fallthru
    _
  // Predicated region
  $region10: #{tvqvae_forward.33} parent=0 // pred_check
    _
  $region11: #{tvqvae_forward.33} parent=0 // pred_check_branch
    %16 = sbr.rel (0) target = $region13
  $region12: #{tvqvae_forward.33} parent=0 // pred_region
    _
  $region13: #{tvqvae_forward.33} parent=0 // pred_fallthru
    _
  // Predicated region
  $region14: #{tvqvae_forward.33} parent=0 // pred_check
    _
  $region15: #{tvqvae_forward.33} parent=0 // pred_check_branch
    %18 = sbr.rel (0) target = $region17
  $region16: #{tvqvae_forward.33} parent=0 // pred_region
    _
  $region17: #{tvqvae_forward.33} parent=0 // pred_fallthru
    _
  // Predicated region
  $region18: #{tvqvae_forward.33} parent=0 // pred_check
    _
  $region19: #{tvqvae_forward.33} parent=0 // pred_check_branch
    %20 = sbr.rel (0) target = $region21
  $region20: #{tvqvae_forward.33} parent=0 // pred_region
    _
  $region21: #{tvqvae_forward.33} parent=0 // pred_fallthru
    _
  // Predicated region
  $region22: #{tvqvae_forward.33} parent=0 // pred_check
    _
  $region23: #{tvqvae_forward.33} parent=0 // pred_check_branch
    %22 = sbr.rel (0) target = $region25
  $region24: #{tvqvae_forward.33} parent=0 // pred_region
    _
  $region25: #{tvqvae_forward.33} parent=0 // pred_fallthru
    _
  %v24 = vld [vmem:[%s0] sm:$0xff]
  %v25 = vld [vmem:[%s0 + $0x8] sm:$0xff]
  %v26 = vld [vmem:[%s0 + $0x10] sm:$0xff]
  %v27 = vld [vmem:[%s0 + $0x18] sm:$0xff]
  %v28 = vpack.c.bf16 %v25, %v24
  %v29 = vpack.c.bf16 %v27, %v26
  %v30 = vld [vmem:[%s1] sm:$0xf]
  %v31 = vld [vmem:[%s1 + $0x4] sm:$0xf]
  %v32 = vld [vmem:[%s1 + $0x8] sm:$0xf]
  %v33 = vld [vmem:[%s1 + $0xc] sm:$0xf]
  %v34 = vld [vmem:[%s2] sm:$0x1]
  %v36 = vlaneseq
  %v37 = vshrl.u32 %v36, 7
  %v38 = vsub.s32 0, %v37
  %v39 = vrot.slane %v34, %v38
  %v45 = vunpack.c.l.b16 %v30
  %v46 = vunpack.c.l.b16 %v31
  %v47 = vunpack.c.l.b16 %v32
  %v48 = vunpack.c.l.b16 %v33
  %v49 = vpack.c.b16 %v46, %v45
  %v50 = vpack.c.b16 %v48, %v47
  %vm53 = vcmask 261120
  %v55 = vsel %vm53, %v28, 0
  %v58 = vsel %vm53, %v29, 0
  %60 = vmatprep.subr.bf16.mxu0 0
  %61 = vmatpush1.bf16.msra.mxu0 %v49
  %62 = vmatprep.subr.bf16.mxu0 0
  %63 = vmatpush1.bf16.msra.mxu0 %v50
  %64 = vmatprep.subr.bf16.mxu0 0
  %65 = vmatpush1.bf16.msra.mxu0 0
  %66 = vmatprep.subr.bf16.mxu0 0
  %67 = vmatpush1.bf16.msra.mxu0 0
  %68 = vmatprep.subr.bf16.mxu0 0
  %69 = vmatpush1.bf16.msra.mxu0 0
  %70 = vmatprep.subr.bf16.mxu0 0
  %71 = vmatpush1.bf16.msra.mxu0 0
  %72 = vmatprep.subr.bf16.mxu0 0
  %73 = vmatpush1.bf16.msra.mxu0 0
  %74 = vmatprep.subr.bf16.mxu0 0
  %75 = vmatpush1.bf16.msra.mxu0 0
  %76 = vmatprep.subr.bf16.mxu0 0
  %77 = vmatpush1.bf16.msra.mxu0 0
  %78 = vmatprep.subr.bf16.mxu0 0
  %79 = vmatpush1.bf16.msra.mxu0 0
  %80 = vmatprep.subr.bf16.mxu0 0
  %81 = vmatpush1.bf16.msra.mxu0 0
  %82 = vmatprep.subr.bf16.mxu0 0
  %83 = vmatpush1.bf16.msra.mxu0 0
  %84 = vmatprep.subr.bf16.mxu0 0
  %85 = vmatpush1.bf16.msra.mxu0 0
  %86 = vmatprep.subr.bf16.mxu0 0
  %87 = vmatpush1.bf16.msra.mxu0 0
  %88 = vmatprep.subr.bf16.mxu0 0
  %89 = vmatpush1.bf16.msra.mxu0 0
  %90 = vmatprep.subr.bf16.mxu0 0
  %91 = vmatpush1.bf16.msra.mxu0 0
  %92 = vmatprep.mubr.bf16.mxu0 0
  %93 = vmatmul.mubr.bf16.gmra.mrb[0].mxu0 %v55
  %v94 = vpop.f32.mrb[0].mxu0
  %v95 = vadd.f32 %v39, %v94
  %v96 = vpop.f32.mrb[0].mxu0
  %v97 = vpop.f32.mrb[0].mxu0
  %v98 = vadd.f32 %v39, %v97
  %v99 = vpop.f32.mrb[0].mxu0
  %100 = vmatprep.mubr.bf16.mxu0 0
  %101 = vmatmul.mubr.bf16.gmra.mrb[0].mxu0 %v58
  %v102 = vpop.f32.mrb[0].mxu0
  %v103 = vadd.f32 %v39, %v102
  %v104 = vpop.f32.mrb[0].mxu0
  %v105 = vpop.f32.mrb[0].mxu0
  %v106 = vadd.f32 %v39, %v105
  %v107 = vpop.f32.mrb[0].mxu0
  %108 = vdwg.mxu0
  %v109 = vld [vmem:[%s3] sm:$0xff]
  %v110 = vld [vmem:[%s3 + $0x8] sm:$0xff]
  %v111 = vld [vmem:[%s3 + $0x10] sm:$0xff]
  %v112 = vld [vmem:[%s3 + $0x18] sm:$0xff]
  %v113 = vadd.f32 %v109, %v95
  %v114 = vadd.f32 %v110, %v98
  %v115 = vadd.f32 %v111, %v103
  %v116 = vadd.f32 %v112, %v106
  %v117 = vsel %vm53, %v113, 0.0
  %118 = vadd.xlane.f32.xlu0 %v117
  %v119 = vpop.xlane.xlu0 %118
  %v120 = vsel %vm53, %v114, 0.0
  %121 = vadd.xlane.f32.xlu0 %v120
  %v122 = vpop.xlane.xlu0 %121
  %v123 = vsel %vm53, %v115, 0.0
  %124 = vadd.xlane.f32.xlu0 %v123
  %v125 = vpop.xlane.xlu0 %124
  %v126 = vsel %vm53, %v116, 0.0
  %127 = vadd.xlane.f32.xlu0 %v126
  %v128 = vpop.xlane.xlu0 %127
  %v129 = vrcp.pop 32.0
  %v130 = vmul.f32 %v119, %v129
  %v131 = vmul.f32 %v122, %v129
  %v132 = vmul.f32 %v125, %v129
  %v133 = vmul.f32 %v128, %v129
  %v134 = vsub.f32 %v113, %v130
  %v135 = vsub.f32 %v114, %v131
  %v136 = vsub.f32 %v115, %v132
  %v137 = vsub.f32 %v116, %v133
  %v138 = vmul.f32 %v134, %v134
  %v139 = vmul.f32 %v135, %v135
  %v140 = vmul.f32 %v136, %v136
  %v141 = vmul.f32 %v137, %v137
  %v142 = vsel %vm53, %v138, 0.0
  %143 = vadd.xlane.f32.xlu0 %v142
  %v144 = vpop.xlane.xlu0 %143
  %v145 = vsel %vm53, %v139, 0.0
  %146 = vadd.xlane.f32.xlu0 %v145
  %v147 = vpop.xlane.xlu0 %146
  %v148 = vsel %vm53, %v140, 0.0
  %149 = vadd.xlane.f32.xlu0 %v148
  %v150 = vpop.xlane.xlu0 %149
  %v151 = vsel %vm53, %v141, 0.0
  %152 = vadd.xlane.f32.xlu0 %v151
  %v153 = vpop.xlane.xlu0 %152
  %v154 = vmul.f32 %v144, %v129
  %v155 = vmul.f32 %v147, %v129
  %v156 = vmul.f32 %v150, %v129
  %v157 = vmul.f32 %v153, %v129
  %v158 = vadd.f32 %v154, 1e-05
  %v159 = vadd.f32 %v155, 1e-05
  %v160 = vadd.f32 %v156, 1e-05
  %v161 = vadd.f32 %v157, 1e-05
  %v162 = vrsqrt.pop %v158
  %v163 = vrsqrt.pop %v159
  %v164 = vrsqrt.pop %v160
  %v165 = vrsqrt.pop %v161
  %v166 = vmul.f32 %v134, %v162
  %v167 = vmul.f32 %v135, %v163
  %v168 = vmul.f32 %v136, %v164
  %v169 = vmul.f32 %v137, %v165
  %v170 = vld [vmem:[%s4] sm:$0x1]
  %v172 = vlaneseq
  %v173 = vshrl.u32 %v172, 7
  %v174 = vsub.s32 0, %v173
  %v175 = vrot.slane %v170, %v174
  %v177 = vmul.f32 %v166, %v175
  %v178 = vmul.f32 %v167, %v175
  %v179 = vmul.f32 %v168, %v175
  %v180 = vmul.f32 %v169, %v175
  %v181 = vld [vmem:[%s5] sm:$0x1]
  %v183 = vlaneseq
  %v184 = vshrl.u32 %v183, 7
  %v185 = vsub.s32 0, %v184
  %v186 = vrot.slane %v181, %v185
  %v188 = vadd.f32 %v177, %v186
  %v189 = vadd.f32 %v178, %v186
  %v190 = vadd.f32 %v179, %v186
  %v191 = vadd.f32 %v180, %v186
  %192 = vst.msk [vmem:[%s6] sm:$0xff] %vm53, %v188
  %193 = vst.msk [vmem:[%s6 + $0x8] sm:$0xff] %vm53, %v189
  %194 = vst.msk [vmem:[%s6 + $0x10] sm:$0xff] %vm53, %v190
  %195 = vst.msk [vmem:[%s6 + $0x18] sm:$0xff] %vm53, %v191
  // Predicated region
  $region26: #{tvqvae_forward.33} parent=0 // pred_check
    _
  $region27: #{tvqvae_forward.33} parent=0 // pred_check_branch
    %197 = sbr.rel (0) target = $region29
  $region28: #{tvqvae_forward.33} parent=0 // pred_region
    _
  $region29: #{tvqvae_forward.33} parent=0 // pred_fallthru
    _
  // Predicated region
  $region30: #{tvqvae_forward.33} parent=0 // pred_check
    _
  $region31: #{tvqvae_forward.33} parent=0 // pred_check_branch
    %199 = sbr.rel (0) target = $region33
  $region32: #{tvqvae_forward.33} parent=0 // pred_region
    _
  $region33: #{tvqvae_forward.33} parent=0 // pred_fallthru
    _

// kernel: tvqvae_forward.35
$region0: #{tvqvae_forward.35}
  #allocation0 [shape = 'u32[]', space=smem, size = 0x4, offset = 0x4, fixed_abs, tag = 'smem constant byte address 0x4 - core index']
  #allocation1 [shape = 'u32[144,128]{1,0:T(1,128)}', space=vmem, size = 0x12000, scoped, tag = 'internal scratch']
  %s0 = inlined_call_operand.vmem [shape: f32[2,20,32], index: 0, kind: input, shape index: {}]
  %s1 = inlined_call_operand.vmem [shape: bf16[5,32,12], index: 1, kind: input, shape index: {}]
  %s2 = inlined_call_operand.vmem [shape: f32[1,12], index: 2, kind: input, shape index: {}]
  %s3 = inlined_call_operand.vmem [shape: f32[1,12], index: 3, kind: input, shape index: {}]
  %s4 = inlined_call_operand.vmem [shape: f32[1,12], index: 4, kind: input, shape index: {}]
  %s5 = inlined_call_operand.vmem [shape: f32[2,16,12], index: 5, kind: output, shape index: {}]
  %s6 = sld [smem:[#allocation0]]
  $region53: #{tvqvae_forward.35} parent=0
    _
  %s8 = ssub.s32 1, %s6
  %s9 = scalar_select 0, %s8, %s6
  loop: start=0, step=1, limit=4
  $region2: #{tvqvae_forward.35} parent=0 // loop_pre_header
    _
  $region3: #{tvqvae_forward.35} parent=0 // loop_header
    %s11 = sphi 0, %s15
    %p12 = scmp.ge.s32.totalorder %s11, 4
    %s21 = sphi 0, %s23
    %s24 = sphi 0, %s21
    %s25 = sphi 0, %s24
    %s41 = sphi 0, %s25
    %s45 = sphi 0, %s45
    %s47 = sphi 0, %s45
    %s48 = sphi 0, %s47
    %s62 = sphi 0, %s48
    %s66 = sphi 0, %s66
    %s68 = sphi 0, %s66
    %s69 = sphi 0, %s68
    %s83 = sphi 0, %s69
    %s87 = sphi 0, %s87
    %s89 = sphi 0, %s87
    %s90 = sphi 0, %s89
    %s104 = sphi 0, %s90
    %s108 = sphi 0, %s108
    %s110 = sphi 0, %s108
    %s111 = sphi 0, %s110
    %s125 = sphi 0, %s111
    %s131 = sphi 0, %s133
    %s134 = sphi 0, %s131
    %s135 = sphi 0, %s134
    %s151 = sphi 0, %s135
  $region4: #{tvqvae_forward.35} parent=0 // loop_header_branch
    %14 = sbr.rel (%p12) target = $region8
  $region5: #{tvqvae_forward.35} parent=0 // loop_body
    %s16 = ssub.s32 %s11, 1
    %s17 = ssub.s32 %s11, 2
    %s18 = sadd.s32 %s11, 1
    %s19 = ssub.s32 %s11, %s18
    %p20 = scmp.eq.s32.totalorder %s19, 0
    %s22 = sadd.s32 %s21, 1
    %s23 = scalar_select %p20, %s21, %s22
    %p26 = pneg %p20
    %p27 = scmp.eq.s32.totalorder %s11, 1
    %p28 = por %p26, %p27
    %p29 = scmp.ne.s32.totalorder %s21, %s24
    %p30 = scmp.eq.s32.totalorder %s11, 0
    %p31 = por %p29, %p30
    %p32 = scmp.ne.s32.totalorder %s21, %s24
    %p33 = scmp.eq.s32.totalorder %s16, 1
    %p34 = por %p32, %p33
    %p35 = scmp.ne.s32.totalorder %s24, %s25
    %p36 = scmp.eq.s32.totalorder %s16, 0
    %p37 = por %p35, %p36
    %p38 = scmp.ne.s32.totalorder %s24, %s25
    %p39 = scmp.eq.s32.totalorder %s17, 1
    %p40 = por %p38, %p39
    %p42 = scmp.ne.s32.totalorder %s25, %s41
    %p43 = scmp.eq.s32.totalorder %s17, 0
    %p44 = por %p42, %p43
    %s46 = sadd.s32 %s45, 1
    %p49 = scmp.eq.s32.totalorder %s11, 1
    %p50 = scmp.ne.s32.totalorder %s45, %s47
    %p51 = scmp.eq.s32.totalorder %s11, 0
    %p52 = por %p50, %p51
    %p53 = scmp.ne.s32.totalorder %s45, %s47
    %p54 = scmp.eq.s32.totalorder %s16, 1
    %p55 = por %p53, %p54
    %p56 = scmp.ne.s32.totalorder %s47, %s48
    %p57 = scmp.eq.s32.totalorder %s16, 0
    %p58 = por %p56, %p57
    %p59 = scmp.ne.s32.totalorder %s47, %s48
    %p60 = scmp.eq.s32.totalorder %s17, 1
    %p61 = por %p59, %p60
    %p63 = scmp.ne.s32.totalorder %s48, %s62
    %p64 = scmp.eq.s32.totalorder %s17, 0
    %p65 = por %p63, %p64
    %s67 = sadd.s32 %s66, 1
    %p70 = scmp.eq.s32.totalorder %s11, 1
    %p71 = scmp.ne.s32.totalorder %s66, %s68
    %p72 = scmp.eq.s32.totalorder %s11, 0
    %p73 = por %p71, %p72
    %p74 = scmp.ne.s32.totalorder %s66, %s68
    %p75 = scmp.eq.s32.totalorder %s16, 1
    %p76 = por %p74, %p75
    %p77 = scmp.ne.s32.totalorder %s68, %s69
    %p78 = scmp.eq.s32.totalorder %s16, 0
    %p79 = por %p77, %p78
    %p80 = scmp.ne.s32.totalorder %s68, %s69
    %p81 = scmp.eq.s32.totalorder %s17, 1
    %p82 = por %p80, %p81
    %p84 = scmp.ne.s32.totalorder %s69, %s83
    %p85 = scmp.eq.s32.totalorder %s17, 0
    %p86 = por %p84, %p85
    %s88 = sadd.s32 %s87, 1
    %p91 = scmp.eq.s32.totalorder %s11, 1
    %p92 = scmp.ne.s32.totalorder %s87, %s89
    %p93 = scmp.eq.s32.totalorder %s11, 0
    %p94 = por %p92, %p93
    %p95 = scmp.ne.s32.totalorder %s87, %s89
    %p96 = scmp.eq.s32.totalorder %s16, 1
    %p97 = por %p95, %p96
    %p98 = scmp.ne.s32.totalorder %s89, %s90
    %p99 = scmp.eq.s32.totalorder %s16, 0
    %p100 = por %p98, %p99
    %p101 = scmp.ne.s32.totalorder %s89, %s90
    %p102 = scmp.eq.s32.totalorder %s17, 1
    %p103 = por %p101, %p102
    %p105 = scmp.ne.s32.totalorder %s90, %s104
    %p106 = scmp.eq.s32.totalorder %s17, 0
    %p107 = por %p105, %p106
    %s109 = sadd.s32 %s108, 1
    %p112 = scmp.eq.s32.totalorder %s11, 1
    %p113 = scmp.ne.s32.totalorder %s108, %s110
    %p114 = scmp.eq.s32.totalorder %s11, 0
    %p115 = por %p113, %p114
    %p116 = scmp.ne.s32.totalorder %s108, %s110
    %p117 = scmp.eq.s32.totalorder %s16, 1
    %p118 = por %p116, %p117
    %p119 = scmp.ne.s32.totalorder %s110, %s111
    %p120 = scmp.eq.s32.totalorder %s16, 0
    %p121 = por %p119, %p120
    %p122 = scmp.ne.s32.totalorder %s110, %s111
    %p123 = scmp.eq.s32.totalorder %s17, 1
    %p124 = por %p122, %p123
    %p126 = scmp.ne.s32.totalorder %s111, %s125
    %p127 = scmp.eq.s32.totalorder %s17, 0
    %p128 = por %p126, %p127
    %s129 = ssub.s32 %s11, %s18
    %p130 = scmp.eq.s32.totalorder %s129, 0
    %s132 = sadd.s32 %s131, 1
    %s133 = scalar_select %p130, %s131, %s132
    %p136 = pneg %p130
    %p137 = scmp.eq.s32.totalorder %s11, 1
    %p138 = por %p136, %p137
    %p139 = scmp.ne.s32.totalorder %s131, %s134
    %p140 = scmp.eq.s32.totalorder %s11, 0
    %p141 = por %p139, %p140
    %p142 = scmp.ne.s32.totalorder %s131, %s134
    %p143 = scmp.eq.s32.totalorder %s16, 1
    %p144 = por %p142, %p143
    %p145 = scmp.ne.s32.totalorder %s134, %s135
    %p146 = scmp.eq.s32.totalorder %s16, 0
    %p147 = por %p145, %p146
    %p148 = scmp.ne.s32.totalorder %s134, %s135
    %p149 = scmp.eq.s32.totalorder %s17, 1
    %p150 = por %p148, %p149
    %p152 = scmp.ne.s32.totalorder %s135, %s151
    %p153 = scmp.eq.s32.totalorder %s17, 0
    %p154 = por %p152, %p153
    %p155 = scmp.le.s32.totalorder 1, %s11
    %p156 = scmp.lt.s32.totalorder %s11, 3
    %p157 = pnand %p155, %p156
    %p158 = pneg %p157
    // Predicated region
    $region9: #{tvqvae_forward.35} parent=5 // pred_check
      _
    $region10: #{tvqvae_forward.35} parent=5 // pred_check_branch
      %160 = sbr.rel (%p157) target = $region12
    $region11: #{tvqvae_forward.35} parent=5 // pred_region
      %s161 = ssub.s32 %s11, 1
      // Predicated region
      $region13: #{tvqvae_forward.35} parent=11 // pred_check
        %p162 = pneg %p58
      $region14: #{tvqvae_forward.35} parent=11 // pred_check_branch
        %164 = sbr.rel (%p162) target = $region16
      $region15: #{tvqvae_forward.35} parent=11 // pred_region
        _
      $region16: #{tvqvae_forward.35} parent=11 // pred_fallthru
        _
      // Predicated region
      $region17: #{tvqvae_forward.35} parent=11 // pred_check
        %p165 = pneg %p79
      $region18: #{tvqvae_forward.35} parent=11 // pred_check_branch
        %167 = sbr.rel (%p165) target = $region20
      $region19: #{tvqvae_forward.35} parent=11 // pred_region
        _
      $region20: #{tvqvae_forward.35} parent=11 // pred_fallthru
        _
      // Predicated region
      $region21: #{tvqvae_forward.35} parent=11 // pred_check
        %p168 = pneg %p100
      $region22: #{tvqvae_forward.35} parent=11 // pred_check_branch
        %170 = sbr.rel (%p168) target = $region24
      $region23: #{tvqvae_forward.35} parent=11 // pred_region
        _
      $region24: #{tvqvae_forward.35} parent=11 // pred_fallthru
        _
      // Predicated region
      $region25: #{tvqvae_forward.35} parent=11 // pred_check
        %p171 = pneg %p121
      $region26: #{tvqvae_forward.35} parent=11 // pred_check_branch
        %173 = sbr.rel (%p171) target = $region28
      $region27: #{tvqvae_forward.35} parent=11 // pred_region
        _
      $region28: #{tvqvae_forward.35} parent=11 // pred_fallthru
        _
    $region12: #{tvqvae_forward.35} parent=5 // pred_fallthru
      _
    %p174 = scmp.lt.s32.totalorder %s11, 2
    // Predicated region
    $region29: #{tvqvae_forward.35} parent=5 // pred_check
      %p175 = pneg %p174
    $region30: #{tvqvae_forward.35} parent=5 // pred_check_branch
      %177 = sbr.rel (%p175) target = $region32
    $region31: #{tvqvae_forward.35} parent=5 // pred_region
      // Predicated region
      $region33: #{tvqvae_forward.35} parent=31 // pred_check
        %p178 = pneg %p31
      $region34: #{tvqvae_forward.35} parent=31 // pred_check_branch
        %180 = sbr.rel (%p178) target = $region36
      $region35: #{tvqvae_forward.35} parent=31 // pred_region
        %p181 = scmp.lt.s32.totalorder %s11, 1
        %s182 = scalar_select %p181, %s11, 1
        %s183 = smul.addr %s182, 3
        %s184 = smul.addr %s183, 8
        %s185 = scalar_lea.vmem %s0, %s184
      $region36: #{tvqvae_forward.35} parent=31 // pred_fallthru
        _
    $region32: #{tvqvae_forward.35} parent=5 // pred_fallthru
      _
    %p186 = scmp.le.s32.totalorder 1, %s11
    %p187 = scmp.lt.s32.totalorder %s11, 3
    %p188 = pnand %p186, %p187
    %p189 = pneg %p188
    // Predicated region
    $region37: #{tvqvae_forward.35} parent=5 // pred_check
      _
    $region38: #{tvqvae_forward.35} parent=5 // pred_check_branch
      %191 = sbr.rel (%p188) target = $region40
    $region39: #{tvqvae_forward.35} parent=5 // pred_region
      %s192 = ssub.s32 %s11, 1
      %p193 = scmp.lt.s32.totalorder %s16, 1
      %s194 = scalar_select %p193, %s16, 1
      %s195 = smul.addr %s194, 3
      %s196 = smul.addr %s195, 8
      %s197 = scalar_lea.vmem %s0, %s196
      %p198 = pneg %p37
      %p199 = pneg %p34
      %p200 = pneg %p58
      %p201 = pneg %p55
      %p202 = pneg %p79
      %p203 = pneg %p76
      %p204 = pneg %p100
      %p205 = pneg %p97
      %p206 = pneg %p121
      %p207 = pneg %p118
      %p208 = pneg %p147
      %p209 = pneg %p144
      %p210 = scmp.lt.s32.totalorder %s16, 1
      %s211 = scalar_select %p210, %s16, 1
      %s212 = smul.addr %s211, 2
      %s213 = smul.addr %s212, 8
      %s214 = scalar_lea.vmem %s5, %s213
      %p215 = scmp.lt.s32.totalorder %s16, 1
      %s216 = scalar_select %p215, %s16, 1
      %s217 = smul.addr %s216, 3
      %s218 = smul.addr %s217, 8
      %s219 = scalar_lea.vmem %s0, %s218
      %p220 = scmp.lt.s32.totalorder %s16, 1
      %s221 = scalar_select %p220, %s16, 1
      %s222 = smul.addr %s221, 2
      %s223 = smul.addr %s222, 8
      %s224 = scalar_lea.vmem %s5, %s223
      %v226 = vld [vmem:[%s219] sm:$0xff]
      %v227 = vld [vmem:[%s219 + $0x8] sm:$0xff]
      %v228 = vld [vmem:[%s219 + $0x10] sm:$0xf]
      %v229 = vpack.c.bf16 %v227, %v226
      %v230 = vpack.c.bf16 %v228, %v228
      %v231 = vld [vmem:[%s1] sm:$0xf]
      %v232 = vld [vmem:[%s1 + $0x4] sm:$0xf]
      %v233 = vld [vmem:[%s1 + $0x8] sm:$0xf]
      %v234 = vld [vmem:[%s1 + $0xc] sm:$0xf]
      %s235 = scalar_lea.vmem %s1, 16
      %v236 = vld [vmem:[%s235] sm:$0xf]
      %v237 = vld [vmem:[%s235 + $0x4] sm:$0xf]
      %v238 = vld [vmem:[%s235 + $0x8] sm:$0xf]
      %v239 = vld [vmem:[%s235 + $0xc] sm:$0xf]
      %vm240 = vsmask.f32 7424
      %v242 = vshrl.u32 %v229, 16
      %v244 = vshll.u32 %v229, 16
      %v246 = vrot.slane %v244, 1
      %v247 = vor.u32 %v242, %v246
      %v249 = vshll.u32 %v230, 16
      %v251 = vrot.slane %v249, 1
      %v252 = vsel %vm240, %v247, %v251
      %v257 = vunpack.c.l.b16 %v236
      %v258 = vunpack.c.l.b16 %v237
      %v259 = vunpack.c.l.b16 %v238
      %v260 = vunpack.c.l.b16 %v239
      %v261 = vpack.c.b16 %v258, %v257
      %v262 = vpack.c.b16 %v260, %v259
      %vm265 = vcmask 261120
      %v267 = vsel %vm265, %v252, 0
      %269 = vmatprep.subr.bf16.mxu0 0
      %270 = vmatpush1.bf16.msra.mxu0 %v261
      %271 = vmatprep.subr.bf16.mxu0 0
      %272 = vmatpush1.bf16.msra.mxu0 %v262
      %273 = vmatprep.subr.bf16.mxu0 0
      %274 = vmatpush1.bf16.msra.mxu0 0
      %275 = vmatprep.subr.bf16.mxu0 0
      %276 = vmatpush1.bf16.msra.mxu0 0
      %277 = vmatprep.subr.bf16.mxu0 0
      %278 = vmatpush1.bf16.msra.mxu0 0
      %279 = vmatprep.subr.bf16.mxu0 0
      %280 = vmatpush1.bf16.msra.mxu0 0
      %281 = vmatprep.subr.bf16.mxu0 0
      %282 = vmatpush1.bf16.msra.mxu0 0
      %283 = vmatprep.subr.bf16.mxu0 0
      %284 = vmatpush1.bf16.msra.mxu0 0
      %285 = vmatprep.subr.bf16.mxu0 0
      %286 = vmatpush1.bf16.msra.mxu0 0
      %287 = vmatprep.subr.bf16.mxu0 0
      %288 = vmatpush1.bf16.msra.mxu0 0
      %289 = vmatprep.subr.bf16.mxu0 0
      %290 = vmatpush1.bf16.msra.mxu0 0
      %291 = vmatprep.subr.bf16.mxu0 0
      %292 = vmatpush1.bf16.msra.mxu0 0
      %293 = vmatprep.subr.bf16.mxu0 0
      %294 = vmatpush1.bf16.msra.mxu0 0
      %295 = vmatprep.subr.bf16.mxu0 0
      %296 = vmatpush1.bf16.msra.mxu0 0
      %297 = vmatprep.subr.bf16.mxu0 0
      %298 = vmatpush1.bf16.msra.mxu0 0
      %299 = vmatprep.subr.bf16.mxu0 0
      %300 = vmatpush1.bf16.msra.mxu0 0
      %301 = vmatprep.mubr.bf16.mxu0 0
      %302 = vmatmul.mubr.bf16.gmra.mrb[0].mxu0 %v267
      %v303 = vpop.f32.mrb[0].mxu0
      %v304 = vadd.f32 0.0, %v303
      %v305 = vpop.f32.mrb[0].mxu0
      %v306 = vpop.f32.mrb[0].mxu0
      %v307 = vadd.f32 0.0, %v306
      %v308 = vpop.f32.mrb[0].mxu0
      %309 = vdwg.mxu0
      %v314 = vunpack.c.l.b16 %v231
      %v315 = vunpack.c.l.b16 %v232
      %v316 = vunpack.c.l.b16 %v233
      %v317 = vunpack.c.l.b16 %v234
      %v318 = vpack.c.b16 %v315, %v314
      %v319 = vpack.c.b16 %v317, %v316
      %v322 = vsel %vm265, %v229, 0
      %324 = vmatprep.subr.bf16.mxu0 0
      %325 = vmatpush1.bf16.msra.mxu0 %v318
      %326 = vmatprep.subr.bf16.mxu0 0
      %327 = vmatpush1.bf16.msra.mxu0 %v319
      %328 = vmatprep.subr.bf16.mxu0 0
      %329 = vmatpush1.bf16.msra.mxu0 0
      %330 = vmatprep.subr.bf16.mxu0 0
      %331 = vmatpush1.bf16.msra.mxu0 0
      %332 = vmatprep.subr.bf16.mxu0 0
      %333 = vmatpush1.bf16.msra.mxu0 0
      %334 = vmatprep.subr.bf16.mxu0 0
      %335 = vmatpush1.bf16.msra.mxu0 0
      %336 = vmatprep.subr.bf16.mxu0 0
      %337 = vmatpush1.bf16.msra.mxu0 0
      %338 = vmatprep.subr.bf16.mxu0 0
      %339 = vmatpush1.bf16.msra.mxu0 0
      %340 = vmatprep.subr.bf16.mxu0 0
      %341 = vmatpush1.bf16.msra.mxu0 0
      %342 = vmatprep.subr.bf16.mxu0 0
      %343 = vmatpush1.bf16.msra.mxu0 0
      %344 = vmatprep.subr.bf16.mxu0 0
      %345 = vmatpush1.bf16.msra.mxu0 0
      %346 = vmatprep.subr.bf16.mxu0 0
      %347 = vmatpush1.bf16.msra.mxu0 0
      %348 = vmatprep.subr.bf16.mxu0 0
      %349 = vmatpush1.bf16.msra.mxu0 0
      %350 = vmatprep.subr.bf16.mxu0 0
      %351 = vmatpush1.bf16.msra.mxu0 0
      %352 = vmatprep.subr.bf16.mxu0 0
      %353 = vmatpush1.bf16.msra.mxu0 0
      %354 = vmatprep.subr.bf16.mxu0 0
      %355 = vmatpush1.bf16.msra.mxu0 0
      %356 = vmatprep.mubr.bf16.mxu0 0
      %357 = vmatmul.mubr.bf16.gmra.mrb[0].mxu0 %v322
      %v358 = vpop.f32.mrb[0].mxu0
      %v359 = vadd.f32 %v304, %v358
      %v360 = vpop.f32.mrb[0].mxu0
      %v361 = vpop.f32.mrb[0].mxu0
      %v362 = vadd.f32 %v307, %v361
      %v363 = vpop.f32.mrb[0].mxu0
      %364 = vdwg.mxu0
      %s365 = scalar_lea.vmem %s1, 32
      %v366 = vld [vmem:[%s365] sm:$0xf]
      %v367 = vld [vmem:[%s365 + $0x4] sm:$0xf]
      %v368 = vld [vmem:[%s365 + $0x8] sm:$0xf]
      %v369 = vld [vmem:[%s365 + $0xc] sm:$0xf]
      %vm372 = vcmask 1046528
      %v373 = vrot.slane %v229, 1
      %v374 = vrot.slane %v230, 1
      %v375 = vsel %vm372, %v373, %v374
      %v380 = vunpack.c.l.b16 %v366
      %v381 = vunpack.c.l.b16 %v367
      %v382 = vunpack.c.l.b16 %v368
      %v383 = vunpack.c.l.b16 %v369
      %v384 = vpack.c.b16 %v381, %v380
      %v385 = vpack.c.b16 %v383, %v382
      %v389 = vsel %vm265, %v375, 0
      %391 = vmatprep.subr.bf16.mxu0 0
      %392 = vmatpush1.bf16.msra.mxu0 %v384
      %393 = vmatprep.subr.bf16.mxu0 0
      %394 = vmatpush1.bf16.msra.mxu0 %v385
      %395 = vmatprep.subr.bf16.mxu0 0
      %396 = vmatpush1.bf16.msra.mxu0 0
      %397 = vmatprep.subr.bf16.mxu0 0
      %398 = vmatpush1.bf16.msra.mxu0 0
      %399 = vmatprep.subr.bf16.mxu0 0
      %400 = vmatpush1.bf16.msra.mxu0 0
      %401 = vmatprep.subr.bf16.mxu0 0
      %402 = vmatpush1.bf16.msra.mxu0 0
      %403 = vmatprep.subr.bf16.mxu0 0
      %404 = vmatpush1.bf16.msra.mxu0 0
      %405 = vmatprep.subr.bf16.mxu0 0
      %406 = vmatpush1.bf16.msra.mxu0 0
      %407 = vmatprep.subr.bf16.mxu0 0
      %408 = vmatpush1.bf16.msra.mxu0 0
      %409 = vmatprep.subr.bf16.mxu0 0
      %410 = vmatpush1.bf16.msra.mxu0 0
      %411 = vmatprep.subr.bf16.mxu0 0
      %412 = vmatpush1.bf16.msra.mxu0 0
      %413 = vmatprep.subr.bf16.mxu0 0
      %414 = vmatpush1.bf16.msra.mxu0 0
      %415 = vmatprep.subr.bf16.mxu0 0
      %416 = vmatpush1.bf16.msra.mxu0 0
      %417 = vmatprep.subr.bf16.mxu0 0
      %418 = vmatpush1.bf16.msra.mxu0 0
      %419 = vmatprep.subr.bf16.mxu0 0
      %420 = vmatpush1.bf16.msra.mxu0 0
      %421 = vmatprep.subr.bf16.mxu0 0
      %422 = vmatpush1.bf16.msra.mxu0 0
      %423 = vmatprep.mubr.bf16.mxu0 0
      %424 = vmatmul.mubr.bf16.gmra.mrb[0].mxu0 %v389
      %v425 = vpop.f32.mrb[0].mxu0
      %v426 = vadd.f32 0.0, %v425
      %v427 = vpop.f32.mrb[0].mxu0
      %v428 = vpop.f32.mrb[0].mxu0
      %v429 = vadd.f32 0.0, %v428
      %v430 = vpop.f32.mrb[0].mxu0
      %431 = vdwg.mxu0
      %v432 = vadd.f32 %v359, %v426
      %v433 = vadd.f32 %v362, %v429
      %s434 = scalar_lea.vmem %s1, 48
      %v435 = vld [vmem:[%s434] sm:$0xf]
      %v436 = vld [vmem:[%s434 + $0x4] sm:$0xf]
      %v437 = vld [vmem:[%s434 + $0x8] sm:$0xf]
      %v438 = vld [vmem:[%s434 + $0xc] sm:$0xf]
      %vm439 = vsmask.f32 6400
      %v440 = vrot.slane %v242, 1
      %v441 = vrot.slane %v244, 2
      %v442 = vor.u32 %v440, %v441
      %v443 = vshrl.u32 %v230, 16
      %v445 = vrot.slane %v443, 1
      %v446 = vrot.slane %v249, 2
      %v447 = vor.u32 %v445, %v446
      %v448 = vsel %vm439, %v442, %v447
      %v453 = vunpack.c.l.b16 %v435
      %v454 = vunpack.c.l.b16 %v436
      %v455 = vunpack.c.l.b16 %v437
      %v456 = vunpack.c.l.b16 %v438
      %v457 = vpack.c.b16 %v454, %v453
      %v458 = vpack.c.b16 %v456, %v455
      %v462 = vsel %vm265, %v448, 0
      %464 = vmatprep.subr.bf16.mxu0 0
      %465 = vmatpush1.bf16.msra.mxu0 %v457
      %466 = vmatprep.subr.bf16.mxu0 0
      %467 = vmatpush1.bf16.msra.mxu0 %v458
      %468 = vmatprep.subr.bf16.mxu0 0
      %469 = vmatpush1.bf16.msra.mxu0 0
      %470 = vmatprep.subr.bf16.mxu0 0
      %471 = vmatpush1.bf16.msra.mxu0 0
      %472 = vmatprep.subr.bf16.mxu0 0
      %473 = vmatpush1.bf16.msra.mxu0 0
      %474 = vmatprep.subr.bf16.mxu0 0
      %475 = vmatpush1.bf16.msra.mxu0 0
      %476 = vmatprep.subr.bf16.mxu0 0
      %477 = vmatpush1.bf16.msra.mxu0 0
      %478 = vmatprep.subr.bf16.mxu0 0
      %479 = vmatpush1.bf16.msra.mxu0 0
      %480 = vmatprep.subr.bf16.mxu0 0
      %481 = vmatpush1.bf16.msra.mxu0 0
      %482 = vmatprep.subr.bf16.mxu0 0
      %483 = vmatpush1.bf16.msra.mxu0 0
      %484 = vmatprep.subr.bf16.mxu0 0
      %485 = vmatpush1.bf16.msra.mxu0 0
      %486 = vmatprep.subr.bf16.mxu0 0
      %487 = vmatpush1.bf16.msra.mxu0 0
      %488 = vmatprep.subr.bf16.mxu0 0
      %489 = vmatpush1.bf16.msra.mxu0 0
      %490 = vmatprep.subr.bf16.mxu0 0
      %491 = vmatpush1.bf16.msra.mxu0 0
      %492 = vmatprep.subr.bf16.mxu0 0
      %493 = vmatpush1.bf16.msra.mxu0 0
      %494 = vmatprep.subr.bf16.mxu0 0
      %495 = vmatpush1.bf16.msra.mxu0 0
      %496 = vmatprep.mubr.bf16.mxu0 0
      %497 = vmatmul.mubr.bf16.gmra.mrb[0].mxu0 %v462
      %v498 = vpop.f32.mrb[0].mxu0
      %v499 = vadd.f32 0.0, %v498
      %v500 = vpop.f32.mrb[0].mxu0
      %v501 = vpop.f32.mrb[0].mxu0
      %v502 = vadd.f32 0.0, %v501
      %v503 = vpop.f32.mrb[0].mxu0
      %504 = vdwg.mxu0
      %v505 = vadd.f32 %v432, %v499
      %v506 = vadd.f32 %v433, %v502
      %s507 = scalar_lea.vmem %s1, 64
      %v508 = vld [vmem:[%s507] sm:$0xf]
      %v509 = vld [vmem:[%s507 + $0x4] sm:$0xf]
      %v510 = vld [vmem:[%s507 + $0x8] sm:$0xf]
      %v511 = vld [vmem:[%s507 + $0xc] sm:$0xf]
      %vm512 = vcmask 1045504
      %v513 = vrot.slane %v229, 2
      %v514 = vrot.slane %v230, 2
      %v515 = vsel %vm512, %v513, %v514
      %v520 = vunpack.c.l.b16 %v508
      %v521 = vunpack.c.l.b16 %v509
      %v522 = vunpack.c.l.b16 %v510
      %v523 = vunpack.c.l.b16 %v511
      %v524 = vpack.c.b16 %v521, %v520
      %v525 = vpack.c.b16 %v523, %v522
      %v529 = vsel %vm265, %v515, 0
      %531 = vmatprep.subr.bf16.mxu0 0
      %532 = vmatpush1.bf16.msra.mxu0 %v524
      %533 = vmatprep.subr.bf16.mxu0 0
      %534 = vmatpush1.bf16.msra.mxu0 %v525
      %535 = vmatprep.subr.bf16.mxu0 0
      %536 = vmatpush1.bf16.msra.mxu0 0
      %537 = vmatprep.subr.bf16.mxu0 0
      %538 = vmatpush1.bf16.msra.mxu0 0
      %539 = vmatprep.subr.bf16.mxu0 0
      %540 = vmatpush1.bf16.msra.mxu0 0
      %541 = vmatprep.subr.bf16.mxu0 0
      %542 = vmatpush1.bf16.msra.mxu0 0
      %543 = vmatprep.subr.bf16.mxu0 0
      %544 = vmatpush1.bf16.msra.mxu0 0
      %545 = vmatprep.subr.bf16.mxu0 0
      %546 = vmatpush1.bf16.msra.mxu0 0
      %547 = vmatprep.subr.bf16.mxu0 0
      %548 = vmatpush1.bf16.msra.mxu0 0
      %549 = vmatprep.subr.bf16.mxu0 0
      %550 = vmatpush1.bf16.msra.mxu0 0
      %551 = vmatprep.subr.bf16.mxu0 0
      %552 = vmatpush1.bf16.msra.mxu0 0
      %553 = vmatprep.subr.bf16.mxu0 0
      %554 = vmatpush1.bf16.msra.mxu0 0
      %555 = vmatprep.subr.bf16.mxu0 0
      %556 = vmatpush1.bf16.msra.mxu0 0
      %557 = vmatprep.subr.bf16.mxu0 0
      %558 = vmatpush1.bf16.msra.mxu0 0
      %559 = vmatprep.subr.bf16.mxu0 0
      %560 = vmatpush1.bf16.msra.mxu0 0
      %561 = vmatprep.subr.bf16.mxu0 0
      %562 = vmatpush1.bf16.msra.mxu0 0
      %563 = vmatprep.mubr.bf16.mxu0 0
      %564 = vmatmul.mubr.bf16.gmra.mrb[0].mxu0 %v529
      %v565 = vpop.f32.mrb[0].mxu0
      %v566 = vadd.f32 0.0, %v565
      %v567 = vpop.f32.mrb[0].mxu0
      %v568 = vpop.f32.mrb[0].mxu0
      %v569 = vadd.f32 0.0, %v568
      %v570 = vpop.f32.mrb[0].mxu0
      %571 = vdwg.mxu0
      %v572 = vadd.f32 %v505, %v566
      %v573 = vadd.f32 %v506, %v569
      %v574 = vld [vmem:[%s2] sm:$0x1]
      %v576 = vlaneseq
      %v577 = vshrl.u32 %v576, 7
      %v578 = vsub.s32 0, %v577
      %v579 = vrot.slane %v574, %v578
      %v581 = vadd.f32 %v572, %v579
      %v582 = vadd.f32 %v573, %v579
      %v583 = vld [vmem:[%s3] sm:$0x1]
      %v585 = vlaneseq
      %v586 = vshrl.u32 %v585, 7
      %v587 = vsub.s32 0, %v586
      %v588 = vrot.slane %v583, %v587
      %v590 = vmul.f32 %v581, %v588
      %v591 = vmul.f32 %v582, %v588
      %v592 = vld [vmem:[%s4] sm:$0x1]
      %v594 = vlaneseq
      %v595 = vshrl.u32 %v594, 7
      %v596 = vsub.s32 0, %v595
      %v597 = vrot.slane %v592, %v596
      %v599 = vadd.f32 %v590, %v597
      %v600 = vadd.f32 %v591, %v597
      %vm601 = vcmask 97280
      %602 = vst.msk [vmem:[%s224] sm:$0xff] %vm601, %v599
      %603 = vst.msk [vmem:[%s224 + $0x8] sm:$0xff] %vm601, %v600
      %p604 = scmp.lt.s32.totalorder %s16, 1
      %s605 = scalar_select %p604, %s16, 1
      %s606 = smul.addr %s605, 2
      %s607 = smul.addr %s606, 8
      %s608 = scalar_lea.vmem %s5, %s607
      // Predicated region
      $region41: #{tvqvae_forward.35} parent=39 // pred_check
        %p609 = pneg %p144
      $region42: #{tvqvae_forward.35} parent=39 // pred_check_branch
        %611 = sbr.rel (%p609) target = $region44
      $region43: #{tvqvae_forward.35} parent=39 // pred_region
        _
      $region44: #{tvqvae_forward.35} parent=39 // pred_fallthru
        _
    $region40: #{tvqvae_forward.35} parent=5 // pred_fallthru
      _
    %p612 = scmp.le.s32.totalorder 2, %s11
    // Predicated region
    $region45: #{tvqvae_forward.35} parent=5 // pred_check
      %p613 = pneg %p612
    $region46: #{tvqvae_forward.35} parent=5 // pred_check_branch
      %615 = sbr.rel (%p613) target = $region48
    $region47: #{tvqvae_forward.35} parent=5 // pred_region
      %s616 = ssub.s32 %s11, 2
      // Predicated region
      $region49: #{tvqvae_forward.35} parent=47 // pred_check
        %p617 = pneg %p150
      $region50: #{tvqvae_forward.35} parent=47 // pred_check_branch
        %619 = sbr.rel (%p617) target = $region52
      $region51: #{tvqvae_forward.35} parent=47 // pred_region
        %p620 = scmp.lt.s32.totalorder %s17, 1
        %s621 = scalar_select %p620, %s17, 1
        %s622 = smul.addr %s621, 2
        %s623 = smul.addr %s622, 8
        %s624 = scalar_lea.vmem %s5, %s623
      $region52: #{tvqvae_forward.35} parent=47 // pred_fallthru
        _
    $region48: #{tvqvae_forward.35} parent=5 // pred_fallthru
      _
  $region6: #{tvqvae_forward.35} parent=0 // loop_footer
    %s15 = sadd.s32 1, %s11
  $region7: #{tvqvae_forward.35} parent=0 // loop_footer_branch
    %10 = sbr.rel target = $region3
  $region8: #{tvqvae_forward.35} parent=0 // loop_exit
    _

</llo_original>
